<compile_context>
chip_gen: v7x
topology: tpu7x:2x2x1
jax: 0.10.0
libtpu: 0.0.40
codegen_flags: <defaults>
</compile_context>

<pallas_src>
import jax
import jax.numpy as jnp
from jax.experimental import pallas as pl
from jax.experimental.pallas import tpu as pltpu


# ----------------------------------------------------------------------------
# Fused kernel
# ----------------------------------------------------------------------------
def mnist_fused_kernel(xp_ref, t1_ref, b1_ref, w2_ref, b2_ref,
                       wfc1_ref, bfc1_ref, wfc2_ref, bfc2_ref,
                       out_ref, fc_in_ref):
    f32 = jnp.float32
    B = out_ref.shape[0]

    # --- Stage A: conv1 (5x5, 1->32) fused with 2x2 max-pool -----------------
    # Toeplitz weights t1[kh, iw, dx*384 + pw*32 + c]; for each pool row
    # offset dy, 5 dots contracting over the 28 input columns.
    #   acc_dy[(b, ph1), dx*384 + pw1*32 + c] == conv1(x)[b, 2*ph1+dy, 2*pw1+dx, c]
    xpar = (xp_ref[0], xp_ref[1])             # row-parity split of x, [B, 24, 28]
    accs = []
    for dy in range(2):
        acc = None
        for kh in range(5):
            s = dy + kh
            lhs = xpar[s % 2][:, (s // 2):(s // 2) + 16, :].reshape(B * 16, 28)
            d = jnp.dot(lhs, t1_ref[kh], preferred_element_type=f32)  # [B*16,768]
            acc = d if acc is None else acc + d
        accs.append(acc)
    # Max over the 4 pool offsets (dy = row half, dx = lane half); bias after
    # the max (exact, constant per channel).  Rows ph1 >= 12 are never read.
    a1 = jnp.maximum(
        jnp.maximum(accs[0][:, :384], accs[0][:, 384:]),
        jnp.maximum(accs[1][:, :384], accs[1][:, 384:])) + b1_ref[...]
    a1 = a1.reshape(B, 16, 384)               # [b, ph1, pw1*32 + cin] in VMEM

    # --- Stage B: conv2 (5x5, 32->64) fused with 2x2 max-pool ----------------
    # Toeplitz-over-output-column weights w2[kh, pw1*32+cin, ow*64+cout]:
    # one dot per kernel row over the full 384 conv1 lanes, all 8 output
    # columns produced at once.  Lane order ow*64+cout == pw2*128 + dx*64 + c.
    acc2 = None
    for kh in range(5):
        lhs = a1[:, kh:kh + 8, :].reshape(B * 8, 384)
        d = jnp.dot(lhs, w2_ref[kh], preferred_element_type=f32)      # [B*8,512]
        acc2 = d if acc2 is None else acc2 + d
    for pw2 in range(4):
        blk = acc2[:, pw2 * 128:(pw2 + 1) * 128]                      # [B*8, 128]
        col = jnp.maximum(blk[:, :64], blk[:, 64:]) + b2_ref[...]     # dx-pool
        col = col.reshape(B, 8, 64)
        for ph2 in range(4):
            tile = jnp.max(col[:, 2 * ph2:2 * ph2 + 2, :], axis=1)    # dy-pool
            c0 = (ph2 * 4 + pw2) * 64
            fc_in_ref[:, c0:c0 + 64] = tile

    # --- Stage C: fc1 + ReLU --------------------------------------------------
    # TODO(synk): F.dropout(p=0.5, training=self.training) is identity here
    # (inference semantics); stochastic training-mode dropout not implemented.
    h = jnp.dot(fc_in_ref[...], wfc1_ref[...],
                preferred_element_type=f32) + bfc1_ref[...]
    h = jnp.maximum(h, 0.0)

    # --- Stage D: fc2 (lane-padded 10 -> 128) + softmax -----------------------
    # Padded columns carry bias -1e30, so exp() underflows to exactly 0 and the
    # normalization only sees the 10 real classes.
    y = jnp.dot(h, wfc2_ref[...], preferred_element_type=f32) + bfc2_ref[...]
    m = jnp.max(y, axis=1, keepdims=True)
    e = jnp.exp(y - m)
    out_ref[...] = e / jnp.sum(e, axis=1, keepdims=True)


# ----------------------------------------------------------------------------
# pallas_call wrapper: 1-D grid over batch tiles, weights resident in VMEM
# ----------------------------------------------------------------------------
def _fused_forward(xp, p, TB):
    Bp = xp.shape[1]
    nb = Bp // TB

    def bcast(shape):
        n = len(shape)
        return pl.BlockSpec(shape, lambda i, n=n: (0,) * n)

    return pl.pallas_call(
        mnist_fused_kernel,
        out_shape=jax.ShapeDtypeStruct((Bp, 128), jnp.float32),
        grid=(nb,),
        in_specs=[
            pl.BlockSpec((2, TB, 24, 28), lambda i: (0, i, 0, 0)),
            bcast(p["t1"].shape), bcast(p["b1"].shape),
            bcast(p["w2"].shape), bcast(p["b2"].shape),
            bcast(p["wfc1"].shape), bcast(p["bfc1"].shape),
            bcast(p["wfc2"].shape), bcast(p["bfc2"].shape),
        ],
        out_specs=pl.BlockSpec((TB, 128), lambda i: (i, 0)),
        scratch_shapes=[pltpu.VMEM((TB, 1024), jnp.float32)],
        compiler_params=pltpu.CompilerParams(
            dimension_semantics=("parallel",),
            vmem_limit_bytes=32 * 1024 * 1024),
    )(xp, p["t1"], p["b1"], p["w2"], p["b2"],
      p["wfc1"], p["bfc1"], p["wfc2"], p["bfc2"])


# ----------------------------------------------------------------------------
# One-time parameter preprocessing (all layout transforms hoisted here)
# ----------------------------------------------------------------------------
def prepare_params(params):
    f32 = jnp.float32
    c1w = params["conv1_w"].astype(f32)      # [32, 1, 5, 5]
    c1b = params["conv1_b"].astype(f32)
    c2w = params["conv2_w"].astype(f32)      # [64, 32, 5, 5]
    c2b = params["conv2_b"].astype(f32)
    f1w = params["fc1_w"].astype(f32)        # [1024, 1024]
    f1b = params["fc1_b"].astype(f32)
    f2w = params["fc2_w"].astype(f32)        # [10, 1024]
    f2b = params["fc2_b"].astype(f32)

    # conv1 banded-Toeplitz over input width, both pool dx offsets in lanes:
    #   t1[kh, iw, dx*384 + pw*32 + c] = c1w[c, 0, kh, iw - (2*pw + dx)]
    t1 = jnp.zeros((5, 28, 768), f32)
    pw = jnp.arange(12)
    ch = jnp.arange(32)
    for dx in range(2):
        cols = dx * 384 + pw[:, None] * 32 + ch[None, :]      # [12, 32]
        for kh in range(5):
            for kw in range(5):
                iw = 2 * pw + dx + kw                          # [12]
                vals = jnp.broadcast_to(c1w[:, 0, kh, kw], (12, 32))
                t1 = t1.at[kh, iw[:, None], cols].set(vals)
    b1row = jnp.tile(c1b, 12).reshape(1, 384)                  # lane = pw*32 + c

    # conv2 Toeplitz over output column:
    #   w2[kh, pw1*32 + cin, ow*64 + cout] = c2w[cout, cin, kh, pw1 - ow]
    w2t = jnp.transpose(c2w, (2, 3, 1, 0))                     # [kh, kw, cin, cout]
    pw1 = jnp.arange(12)
    ow = jnp.arange(8)
    kwidx = pw1[:, None] - ow[None, :]                          # [12, 8]
    valid = (kwidx >= 0) & (kwidx < 5)
    kwc = jnp.clip(kwidx, 0, 4)
    t2 = w2t[:, kwc, :, :]                                      # [5,12,8,32,64]
    t2 = jnp.where(valid[None, :, :, None, None], t2, 0.0)
    w2r = jnp.transpose(t2, (0, 1, 3, 2, 4)).reshape(5, 384, 512)
    b2row = c2b.reshape(1, 64)

    # fc1: fold PyTorch's NCHW .view(-1, 1024) flatten into the weight.
    # Kernel feature order j = (ph*4 + pw)*64 + c  ->  torch idx c*16 + ph*4 + pw
    hh, ww, cc = jnp.meshgrid(jnp.arange(4), jnp.arange(4), jnp.arange(64),
                              indexing="ij")
    perm = (cc * 16 + hh * 4 + ww).reshape(-1)
    wfc1 = f1w[:, perm].T                                        # [1024, 1024]
    bfc1 = f1b.reshape(1, 1024)

    # fc2: transpose + zero-pad to 128 lanes; padded bias -> -1e30.
    wfc2 = jnp.zeros((1024, 128), f32).at[:, :10].set(f2w.T)
    bfc2 = jnp.full((1, 128), -1e30, f32).at[0, :10].set(f2b)

    return dict(t1=t1, b1=b1row, w2=w2r, b2=b2row,
                wfc1=wfc1, bfc1=bfc1, wfc2=wfc2, bfc2=bfc2)


# ----------------------------------------------------------------------------
# Parameters (PyTorch-shaped, deterministic init ~ U(-1/sqrt(fan_in), +))
# ----------------------------------------------------------------------------
def init_params(key):
    def u(key, shape, fan_in):
        bound = 1.0 / (fan_in ** 0.5)
        return jax.random.uniform(key, shape, jnp.float32, -bound, bound)

    ks = jax.random.split(key, 8)
    return {
        "conv1_w": u(ks[0], (32, 1, 5, 5), 1 * 5 * 5),
        "conv1_b": u(ks[1], (32,), 1 * 5 * 5),
        "conv2_w": u(ks[2], (64, 32, 5, 5), 32 * 5 * 5),
        "conv2_b": u(ks[3], (64,), 32 * 5 * 5),
        "fc1_w": u(ks[4], (1024, 1024), 1024),
        "fc1_b": u(ks[5], (1024,), 1024),
        "fc2_w": u(ks[6], (10, 1024), 1024),
        "fc2_b": u(ks[7], (10,), 1024),
    }


# ----------------------------------------------------------------------------
# Forward pass == MNISTNet.forward (inference semantics)
# ----------------------------------------------------------------------------
def mnist_net_forward(x_nchw, prepped):
    B = x_nchw.shape[0]
    TB = B if B <= 128 else 128
    Bp = ((B + TB - 1) // TB) * TB
    xs = x_nchw.astype(jnp.float32)[:, 0, :, :]              # [B, 28, 28]
    if Bp != B:
        xs = jnp.pad(xs, ((0, Bp - B), (0, 0), (0, 0)))
    # Row-parity split (same-size permutation, NOT im2col inflation) so the
    # kernel's pool-folded conv1 only needs contiguous static slices.
    xp = xs.reshape(Bp, 14, 2, 28).transpose((2, 0, 1, 3))   # [2, Bp, 14, 28]
    xp = jnp.pad(xp, ((0, 0), (0, 0), (0, 10), (0, 0)))      # [2, Bp, 24, 28]
    out = _fused_forward(xp, prepped, TB)                     # [Bp, 128]
    return out[:B, :10]


# ----------------------------------------------------------------------------
# Pure-JAX reference (matches the torch module) for a runtime self-check
# ----------------------------------------------------------------------------
def reference_forward(x, params):
    dn = ("NCHW", "OIHW", "NCHW")
    y = jax.lax.conv_general_dilated(x.astype(jnp.float32), params["conv1_w"],
                                     (1, 1), "VALID", dimension_numbers=dn)
    y = y + params["conv1_b"][None, :, None, None]
    y = jax.lax.reduce_window(y, -jnp.inf, jax.lax.max,
                              (1, 1, 2, 2), (1, 1, 2, 2), "VALID")
    y = jax.lax.conv_general_dilated(y, params["conv2_w"],
                                     (1, 1), "VALID", dimension_numbers=dn)
    y = y + params["conv2_b"][None, :, None, None]
    y = jax.lax.reduce_window(y, -jnp.inf, jax.lax.max,
                              (1, 1, 2, 2), (1, 1, 2, 2), "VALID")
    y = y.reshape(y.shape[0], -1)
    y = jnp.maximum(y @ params["fc1_w"].T + params["fc1_b"], 0.0)
    y = y @ params["fc2_w"].T + params["fc2_b"]
    return jax.nn.softmax(y, axis=1)


if __name__ == "__main__":
    key = jax.random.PRNGKey(0)
    k_x, k_p = jax.random.split(key)
    x = jax.random.normal(k_x, (2, 1, 28, 28), dtype=jnp.float32)
    params = init_params(k_p)
    prepped = prepare_params(params)          # one-time layout prep

    fwd = jax.jit(mnist_net_forward)
    probs = jax.block_until_ready(fwd(x, prepped))

    assert probs.shape == (2, 10), probs.shape
    assert bool(jnp.all(jnp.isfinite(probs)))
    row_sums = jnp.sum(probs, axis=1)
    assert bool(jnp.all(jnp.abs(row_sums - 1.0) < 1e-5)), row_sums

    ref = jax.block_until_ready(reference_forward(x, params))
    assert float(jnp.max(jnp.abs(probs - ref))) < 5e-2, (probs, ref)

    print("KERNEL_OK")
</pallas_src>

<mosaic_0001>
module attributes {stable_mosaic.version = 11 : i64} {
  func.func @mnist_fused_kernel(%arg0: i32, %arg1: memref<2x2x24x28xf32, #tpu.memory_space<vmem>>, %arg2: memref<5x28x768xf32, #tpu.memory_space<vmem>>, %arg3: memref<1x384xf32, #tpu.memory_space<vmem>>, %arg4: memref<5x384x512xf32, #tpu.memory_space<vmem>>, %arg5: memref<1x64xf32, #tpu.memory_space<vmem>>, %arg6: memref<1024x1024xf32, #tpu.memory_space<vmem>>, %arg7: memref<1x1024xf32, #tpu.memory_space<vmem>>, %arg8: memref<1024x128xf32, #tpu.memory_space<vmem>>, %arg9: memref<1x128xf32, #tpu.memory_space<vmem>>, %arg10: memref<2x128xf32, #tpu.memory_space<vmem>>, %arg11: memref<2x1024xf32, #tpu.memory_space<vmem>>) attributes {dimension_semantics = [#tpu.dimension_semantics<parallel>], iteration_bounds = array<i64: 1>, scalar_prefetch = 0 : i64, scratch_operands = 1 : i64, tpu.core_type = #tpu.core_type<tc>, window_params = [{transform_indices = @transform_0, window_bounds = array<i64: 2, 2, 24, 28>}, {pipeline_mode = #tpu.pipeline_mode<synchronous>, transform_indices = @transform_1, window_bounds = array<i64: 5, 28, 768>}, {pipeline_mode = #tpu.pipeline_mode<synchronous>, transform_indices = @transform_2, window_bounds = array<i64: 1, 384>}, {pipeline_mode = #tpu.pipeline_mode<synchronous>, transform_indices = @transform_3, window_bounds = array<i64: 5, 384, 512>}, {pipeline_mode = #tpu.pipeline_mode<synchronous>, transform_indices = @transform_4, window_bounds = array<i64: 1, 64>}, {pipeline_mode = #tpu.pipeline_mode<synchronous>, transform_indices = @transform_5, window_bounds = array<i64: 1024, 1024>}, {pipeline_mode = #tpu.pipeline_mode<synchronous>, transform_indices = @transform_6, window_bounds = array<i64: 1, 1024>}, {pipeline_mode = #tpu.pipeline_mode<synchronous>, transform_indices = @transform_7, window_bounds = array<i64: 1024, 128>}, {pipeline_mode = #tpu.pipeline_mode<synchronous>, transform_indices = @transform_8, window_bounds = array<i64: 1, 128>}, {transform_indices = @transform_9, window_bounds = array<i64: 2, 128>}]} {
    %c0 = arith.constant 0 : index
    %c0_0 = arith.constant 0 : index
    %c0_1 = arith.constant 0 : index
    %c0_2 = arith.constant 0 : index
    %0 = vector.load %arg1[%c0, %c0_0, %c0_1, %c0_2] : memref<2x2x24x28xf32, #tpu.memory_space<vmem>>, vector<1x2x24x28xf32>
    %1 = vector.shape_cast %0 : vector<1x2x24x28xf32> to vector<2x24x28xf32>
    %c1 = arith.constant 1 : index
    %c0_3 = arith.constant 0 : index
    %c0_4 = arith.constant 0 : index
    %c0_5 = arith.constant 0 : index
    %2 = vector.load %arg1[%c1, %c0_3, %c0_4, %c0_5] : memref<2x2x24x28xf32, #tpu.memory_space<vmem>>, vector<1x2x24x28xf32>
    %3 = vector.shape_cast %2 : vector<1x2x24x28xf32> to vector<2x24x28xf32>
    %4 = vector.extract_strided_slice %1 {offsets = [0, 0, 0], sizes = [2, 16, 28], strides = [1, 1, 1]} : vector<2x24x28xf32> to vector<2x16x28xf32>
    %5 = vector.shape_cast %4 : vector<2x16x28xf32> to vector<32x28xf32>
    %c0_6 = arith.constant 0 : index
    %c0_7 = arith.constant 0 : index
    %c0_8 = arith.constant 0 : index
    %6 = vector.load %arg2[%c0_6, %c0_7, %c0_8] : memref<5x28x768xf32, #tpu.memory_space<vmem>>, vector<1x28x768xf32>
    %7 = vector.shape_cast %6 : vector<1x28x768xf32> to vector<28x768xf32>
    %cst = arith.constant dense<0.000000e+00> : vector<32x768xf32>
    %8 = tpu.matmul %5, %7, %cst {dimension_numbers = #tpu.dot_dimension_numbers<[1], [0], [0], [1], [0, 0, 1, 1], [], []>} : vector<32x28xf32>, vector<28x768xf32>, vector<32x768xf32> -> vector<32x768xf32>
    %9 = vector.extract_strided_slice %3 {offsets = [0, 0, 0], sizes = [2, 16, 28], strides = [1, 1, 1]} : vector<2x24x28xf32> to vector<2x16x28xf32>
    %10 = vector.shape_cast %9 : vector<2x16x28xf32> to vector<32x28xf32>
    %c1_9 = arith.constant 1 : index
    %c0_10 = arith.constant 0 : index
    %c0_11 = arith.constant 0 : index
    %11 = vector.load %arg2[%c1_9, %c0_10, %c0_11] : memref<5x28x768xf32, #tpu.memory_space<vmem>>, vector<1x28x768xf32>
    %12 = vector.shape_cast %11 : vector<1x28x768xf32> to vector<28x768xf32>
    %cst_12 = arith.constant dense<0.000000e+00> : vector<32x768xf32>
    %13 = tpu.matmul %10, %12, %cst_12 {dimension_numbers = #tpu.dot_dimension_numbers<[1], [0], [0], [1], [0, 0, 1, 1], [], []>} : vector<32x28xf32>, vector<28x768xf32>, vector<32x768xf32> -> vector<32x768xf32>
    %14 = arith.addf %8, %13 : vector<32x768xf32>
    %15 = vector.extract_strided_slice %1 {offsets = [0, 1, 0], sizes = [2, 16, 28], strides = [1, 1, 1]} : vector<2x24x28xf32> to vector<2x16x28xf32>
    %16 = vector.shape_cast %15 : vector<2x16x28xf32> to vector<32x28xf32>
    %c2 = arith.constant 2 : index
    %c0_13 = arith.constant 0 : index
    %c0_14 = arith.constant 0 : index
    %17 = vector.load %arg2[%c2, %c0_13, %c0_14] : memref<5x28x768xf32, #tpu.memory_space<vmem>>, vector<1x28x768xf32>
    %18 = vector.shape_cast %17 : vector<1x28x768xf32> to vector<28x768xf32>
    %cst_15 = arith.constant dense<0.000000e+00> : vector<32x768xf32>
    %19 = tpu.matmul %16, %18, %cst_15 {dimension_numbers = #tpu.dot_dimension_numbers<[1], [0], [0], [1], [0, 0, 1, 1], [], []>} : vector<32x28xf32>, vector<28x768xf32>, vector<32x768xf32> -> vector<32x768xf32>
    %20 = arith.addf %14, %19 : vector<32x768xf32>
    %21 = vector.extract_strided_slice %3 {offsets = [0, 1, 0], sizes = [2, 16, 28], strides = [1, 1, 1]} : vector<2x24x28xf32> to vector<2x16x28xf32>
    %22 = vector.shape_cast %21 : vector<2x16x28xf32> to vector<32x28xf32>
    %c3 = arith.constant 3 : index
    %c0_16 = arith.constant 0 : index
    %c0_17 = arith.constant 0 : index
    %23 = vector.load %arg2[%c3, %c0_16, %c0_17] : memref<5x28x768xf32, #tpu.memory_space<vmem>>, vector<1x28x768xf32>
    %24 = vector.shape_cast %23 : vector<1x28x768xf32> to vector<28x768xf32>
    %cst_18 = arith.constant dense<0.000000e+00> : vector<32x768xf32>
    %25 = tpu.matmul %22, %24, %cst_18 {dimension_numbers = #tpu.dot_dimension_numbers<[1], [0], [0], [1], [0, 0, 1, 1], [], []>} : vector<32x28xf32>, vector<28x768xf32>, vector<32x768xf32> -> vector<32x768xf32>
    %26 = arith.addf %20, %25 : vector<32x768xf32>
    %27 = vector.extract_strided_slice %1 {offsets = [0, 2, 0], sizes = [2, 16, 28], strides = [1, 1, 1]} : vector<2x24x28xf32> to vector<2x16x28xf32>
    %28 = vector.shape_cast %27 : vector<2x16x28xf32> to vector<32x28xf32>
    %c4 = arith.constant 4 : index
    %c0_19 = arith.constant 0 : index
    %c0_20 = arith.constant 0 : index
    %29 = vector.load %arg2[%c4, %c0_19, %c0_20] : memref<5x28x768xf32, #tpu.memory_space<vmem>>, vector<1x28x768xf32>
    %30 = vector.shape_cast %29 : vector<1x28x768xf32> to vector<28x768xf32>
    %cst_21 = arith.constant dense<0.000000e+00> : vector<32x768xf32>
    %31 = tpu.matmul %28, %30, %cst_21 {dimension_numbers = #tpu.dot_dimension_numbers<[1], [0], [0], [1], [0, 0, 1, 1], [], []>} : vector<32x28xf32>, vector<28x768xf32>, vector<32x768xf32> -> vector<32x768xf32>
    %32 = arith.addf %26, %31 : vector<32x768xf32>
    %33 = vector.extract_strided_slice %3 {offsets = [0, 0, 0], sizes = [2, 16, 28], strides = [1, 1, 1]} : vector<2x24x28xf32> to vector<2x16x28xf32>
    %34 = vector.shape_cast %33 : vector<2x16x28xf32> to vector<32x28xf32>
    %c0_22 = arith.constant 0 : index
    %c0_23 = arith.constant 0 : index
    %c0_24 = arith.constant 0 : index
    %35 = vector.load %arg2[%c0_22, %c0_23, %c0_24] : memref<5x28x768xf32, #tpu.memory_space<vmem>>, vector<1x28x768xf32>
    %36 = vector.shape_cast %35 : vector<1x28x768xf32> to vector<28x768xf32>
    %cst_25 = arith.constant dense<0.000000e+00> : vector<32x768xf32>
    %37 = tpu.matmul %34, %36, %cst_25 {dimension_numbers = #tpu.dot_dimension_numbers<[1], [0], [0], [1], [0, 0, 1, 1], [], []>} : vector<32x28xf32>, vector<28x768xf32>, vector<32x768xf32> -> vector<32x768xf32>
    %38 = vector.extract_strided_slice %1 {offsets = [0, 1, 0], sizes = [2, 16, 28], strides = [1, 1, 1]} : vector<2x24x28xf32> to vector<2x16x28xf32>
    %39 = vector.shape_cast %38 : vector<2x16x28xf32> to vector<32x28xf32>
    %c1_26 = arith.constant 1 : index
    %c0_27 = arith.constant 0 : index
    %c0_28 = arith.constant 0 : index
    %40 = vector.load %arg2[%c1_26, %c0_27, %c0_28] : memref<5x28x768xf32, #tpu.memory_space<vmem>>, vector<1x28x768xf32>
    %41 = vector.shape_cast %40 : vector<1x28x768xf32> to vector<28x768xf32>
    %cst_29 = arith.constant dense<0.000000e+00> : vector<32x768xf32>
    %42 = tpu.matmul %39, %41, %cst_29 {dimension_numbers = #tpu.dot_dimension_numbers<[1], [0], [0], [1], [0, 0, 1, 1], [], []>} : vector<32x28xf32>, vector<28x768xf32>, vector<32x768xf32> -> vector<32x768xf32>
    %43 = arith.addf %37, %42 : vector<32x768xf32>
    %44 = vector.extract_strided_slice %3 {offsets = [0, 1, 0], sizes = [2, 16, 28], strides = [1, 1, 1]} : vector<2x24x28xf32> to vector<2x16x28xf32>
    %45 = vector.shape_cast %44 : vector<2x16x28xf32> to vector<32x28xf32>
    %c2_30 = arith.constant 2 : index
    %c0_31 = arith.constant 0 : index
    %c0_32 = arith.constant 0 : index
    %46 = vector.load %arg2[%c2_30, %c0_31, %c0_32] : memref<5x28x768xf32, #tpu.memory_space<vmem>>, vector<1x28x768xf32>
    %47 = vector.shape_cast %46 : vector<1x28x768xf32> to vector<28x768xf32>
    %cst_33 = arith.constant dense<0.000000e+00> : vector<32x768xf32>
    %48 = tpu.matmul %45, %47, %cst_33 {dimension_numbers = #tpu.dot_dimension_numbers<[1], [0], [0], [1], [0, 0, 1, 1], [], []>} : vector<32x28xf32>, vector<28x768xf32>, vector<32x768xf32> -> vector<32x768xf32>
    %49 = arith.addf %43, %48 : vector<32x768xf32>
    %50 = vector.extract_strided_slice %1 {offsets = [0, 2, 0], sizes = [2, 16, 28], strides = [1, 1, 1]} : vector<2x24x28xf32> to vector<2x16x28xf32>
    %51 = vector.shape_cast %50 : vector<2x16x28xf32> to vector<32x28xf32>
    %c3_34 = arith.constant 3 : index
    %c0_35 = arith.constant 0 : index
    %c0_36 = arith.constant 0 : index
    %52 = vector.load %arg2[%c3_34, %c0_35, %c0_36] : memref<5x28x768xf32, #tpu.memory_space<vmem>>, vector<1x28x768xf32>
    %53 = vector.shape_cast %52 : vector<1x28x768xf32> to vector<28x768xf32>
    %cst_37 = arith.constant dense<0.000000e+00> : vector<32x768xf32>
    %54 = tpu.matmul %51, %53, %cst_37 {dimension_numbers = #tpu.dot_dimension_numbers<[1], [0], [0], [1], [0, 0, 1, 1], [], []>} : vector<32x28xf32>, vector<28x768xf32>, vector<32x768xf32> -> vector<32x768xf32>
    %55 = arith.addf %49, %54 : vector<32x768xf32>
    %56 = vector.extract_strided_slice %3 {offsets = [0, 2, 0], sizes = [2, 16, 28], strides = [1, 1, 1]} : vector<2x24x28xf32> to vector<2x16x28xf32>
    %57 = vector.shape_cast %56 : vector<2x16x28xf32> to vector<32x28xf32>
    %c4_38 = arith.constant 4 : index
    %c0_39 = arith.constant 0 : index
    %c0_40 = arith.constant 0 : index
    %58 = vector.load %arg2[%c4_38, %c0_39, %c0_40] : memref<5x28x768xf32, #tpu.memory_space<vmem>>, vector<1x28x768xf32>
    %59 = vector.shape_cast %58 : vector<1x28x768xf32> to vector<28x768xf32>
    %cst_41 = arith.constant dense<0.000000e+00> : vector<32x768xf32>
    %60 = tpu.matmul %57, %59, %cst_41 {dimension_numbers = #tpu.dot_dimension_numbers<[1], [0], [0], [1], [0, 0, 1, 1], [], []>} : vector<32x28xf32>, vector<28x768xf32>, vector<32x768xf32> -> vector<32x768xf32>
    %61 = arith.addf %55, %60 : vector<32x768xf32>
    %62 = vector.extract_strided_slice %32 {offsets = [0, 0], sizes = [32, 384], strides = [1, 1]} : vector<32x768xf32> to vector<32x384xf32>
    %63 = vector.extract_strided_slice %32 {offsets = [0, 384], sizes = [32, 384], strides = [1, 1]} : vector<32x768xf32> to vector<32x384xf32>
    %64 = arith.maximumf %62, %63 : vector<32x384xf32>
    %65 = vector.extract_strided_slice %61 {offsets = [0, 0], sizes = [32, 384], strides = [1, 1]} : vector<32x768xf32> to vector<32x384xf32>
    %66 = vector.extract_strided_slice %61 {offsets = [0, 384], sizes = [32, 384], strides = [1, 1]} : vector<32x768xf32> to vector<32x384xf32>
    %67 = arith.maximumf %65, %66 : vector<32x384xf32>
    %68 = arith.maximumf %64, %67 : vector<32x384xf32>
    %c0_42 = arith.constant 0 : index
    %c0_43 = arith.constant 0 : index
    %69 = vector.load %arg3[%c0_42, %c0_43] : memref<1x384xf32, #tpu.memory_space<vmem>>, vector<1x384xf32>
    %70 = vector.broadcast %69 : vector<1x384xf32> to vector<32x384xf32>
    %71 = arith.addf %68, %70 : vector<32x384xf32>
    %72 = vector.shape_cast %71 : vector<32x384xf32> to vector<2x16x384xf32>
    %73 = vector.extract_strided_slice %72 {offsets = [0, 0, 0], sizes = [2, 8, 384], strides = [1, 1, 1]} : vector<2x16x384xf32> to vector<2x8x384xf32>
    %74 = vector.shape_cast %73 : vector<2x8x384xf32> to vector<16x384xf32>
    %c0_44 = arith.constant 0 : index
    %c0_45 = arith.constant 0 : index
    %c0_46 = arith.constant 0 : index
    %75 = vector.load %arg4[%c0_44, %c0_45, %c0_46] : memref<5x384x512xf32, #tpu.memory_space<vmem>>, vector<1x384x512xf32>
    %76 = vector.shape_cast %75 : vector<1x384x512xf32> to vector<384x512xf32>
    %cst_47 = arith.constant dense<0.000000e+00> : vector<16x512xf32>
    %77 = tpu.matmul %74, %76, %cst_47 {dimension_numbers = #tpu.dot_dimension_numbers<[1], [0], [0], [1], [0, 0, 1, 1], [], []>} : vector<16x384xf32>, vector<384x512xf32>, vector<16x512xf32> -> vector<16x512xf32>
    %78 = vector.extract_strided_slice %72 {offsets = [0, 1, 0], sizes = [2, 8, 384], strides = [1, 1, 1]} : vector<2x16x384xf32> to vector<2x8x384xf32>
    %79 = vector.shape_cast %78 : vector<2x8x384xf32> to vector<16x384xf32>
    %c1_48 = arith.constant 1 : index
    %c0_49 = arith.constant 0 : index
    %c0_50 = arith.constant 0 : index
    %80 = vector.load %arg4[%c1_48, %c0_49, %c0_50] : memref<5x384x512xf32, #tpu.memory_space<vmem>>, vector<1x384x512xf32>
    %81 = vector.shape_cast %80 : vector<1x384x512xf32> to vector<384x512xf32>
    %cst_51 = arith.constant dense<0.000000e+00> : vector<16x512xf32>
    %82 = tpu.matmul %79, %81, %cst_51 {dimension_numbers = #tpu.dot_dimension_numbers<[1], [0], [0], [1], [0, 0, 1, 1], [], []>} : vector<16x384xf32>, vector<384x512xf32>, vector<16x512xf32> -> vector<16x512xf32>
    %83 = arith.addf %77, %82 : vector<16x512xf32>
    %84 = vector.extract_strided_slice %72 {offsets = [0, 2, 0], sizes = [2, 8, 384], strides = [1, 1, 1]} : vector<2x16x384xf32> to vector<2x8x384xf32>
    %85 = vector.shape_cast %84 : vector<2x8x384xf32> to vector<16x384xf32>
    %c2_52 = arith.constant 2 : index
    %c0_53 = arith.constant 0 : index
    %c0_54 = arith.constant 0 : index
    %86 = vector.load %arg4[%c2_52, %c0_53, %c0_54] : memref<5x384x512xf32, #tpu.memory_space<vmem>>, vector<1x384x512xf32>
    %87 = vector.shape_cast %86 : vector<1x384x512xf32> to vector<384x512xf32>
    %cst_55 = arith.constant dense<0.000000e+00> : vector<16x512xf32>
    %88 = tpu.matmul %85, %87, %cst_55 {dimension_numbers = #tpu.dot_dimension_numbers<[1], [0], [0], [1], [0, 0, 1, 1], [], []>} : vector<16x384xf32>, vector<384x512xf32>, vector<16x512xf32> -> vector<16x512xf32>
    %89 = arith.addf %83, %88 : vector<16x512xf32>
    %90 = vector.extract_strided_slice %72 {offsets = [0, 3, 0], sizes = [2, 8, 384], strides = [1, 1, 1]} : vector<2x16x384xf32> to vector<2x8x384xf32>
    %91 = vector.shape_cast %90 : vector<2x8x384xf32> to vector<16x384xf32>
    %c3_56 = arith.constant 3 : index
    %c0_57 = arith.constant 0 : index
    %c0_58 = arith.constant 0 : index
    %92 = vector.load %arg4[%c3_56, %c0_57, %c0_58] : memref<5x384x512xf32, #tpu.memory_space<vmem>>, vector<1x384x512xf32>
    %93 = vector.shape_cast %92 : vector<1x384x512xf32> to vector<384x512xf32>
    %cst_59 = arith.constant dense<0.000000e+00> : vector<16x512xf32>
    %94 = tpu.matmul %91, %93, %cst_59 {dimension_numbers = #tpu.dot_dimension_numbers<[1], [0], [0], [1], [0, 0, 1, 1], [], []>} : vector<16x384xf32>, vector<384x512xf32>, vector<16x512xf32> -> vector<16x512xf32>
    %95 = arith.addf %89, %94 : vector<16x512xf32>
    %96 = vector.extract_strided_slice %72 {offsets = [0, 4, 0], sizes = [2, 8, 384], strides = [1, 1, 1]} : vector<2x16x384xf32> to vector<2x8x384xf32>
    %97 = vector.shape_cast %96 : vector<2x8x384xf32> to vector<16x384xf32>
    %c4_60 = arith.constant 4 : index
    %c0_61 = arith.constant 0 : index
    %c0_62 = arith.constant 0 : index
    %98 = vector.load %arg4[%c4_60, %c0_61, %c0_62] : memref<5x384x512xf32, #tpu.memory_space<vmem>>, vector<1x384x512xf32>
    %99 = vector.shape_cast %98 : vector<1x384x512xf32> to vector<384x512xf32>
    %cst_63 = arith.constant dense<0.000000e+00> : vector<16x512xf32>
    %100 = tpu.matmul %97, %99, %cst_63 {dimension_numbers = #tpu.dot_dimension_numbers<[1], [0], [0], [1], [0, 0, 1, 1], [], []>} : vector<16x384xf32>, vector<384x512xf32>, vector<16x512xf32> -> vector<16x512xf32>
    %101 = arith.addf %95, %100 : vector<16x512xf32>
    %102 = vector.extract_strided_slice %101 {offsets = [0, 0], sizes = [16, 128], strides = [1, 1]} : vector<16x512xf32> to vector<16x128xf32>
    %103 = vector.extract_strided_slice %102 {offsets = [0, 0], sizes = [16, 64], strides = [1, 1]} : vector<16x128xf32> to vector<16x64xf32>
    %104 = vector.extract_strided_slice %102 {offsets = [0, 64], sizes = [16, 64], strides = [1, 1]} : vector<16x128xf32> to vector<16x64xf32>
    %105 = arith.maximumf %103, %104 : vector<16x64xf32>
    %c0_64 = arith.constant 0 : index
    %c0_65 = arith.constant 0 : index
    %106 = vector.load %arg5[%c0_64, %c0_65] : memref<1x64xf32, #tpu.memory_space<vmem>>, vector<1x64xf32>
    %107 = vector.broadcast %106 : vector<1x64xf32> to vector<16x64xf32>
    %108 = arith.addf %105, %107 : vector<16x64xf32>
    %109 = vector.shape_cast %108 : vector<16x64xf32> to vector<2x8x64xf32>
    %110 = vector.extract_strided_slice %109 {offsets = [0, 0, 0], sizes = [2, 2, 64], strides = [1, 1, 1]} : vector<2x8x64xf32> to vector<2x2x64xf32>
    %cst_66 = arith.constant dense<0xFF800000> : vector<2x64xf32>
    %111 = vector.multi_reduction <maximumf>, %110, %cst_66 [1] : vector<2x2x64xf32> to vector<2x64xf32>
    %c0_67 = arith.constant 0 : index
    %c0_68 = arith.constant 0 : index
    %112 = vector.load %arg11[%c0_67, %c0_68] : memref<2x1024xf32, #tpu.memory_space<vmem>>, vector<2x64xf32>
    tpu.vector_store %arg11[%c0_67, %c0_68], %111 {strides = array<i32>} : memref<2x1024xf32, #tpu.memory_space<vmem>>, vector<2x64xf32>,
    %113 = vector.extract_strided_slice %109 {offsets = [0, 2, 0], sizes = [2, 2, 64], strides = [1, 1, 1]} : vector<2x8x64xf32> to vector<2x2x64xf32>
    %cst_69 = arith.constant dense<0xFF800000> : vector<2x64xf32>
    %114 = vector.multi_reduction <maximumf>, %113, %cst_69 [1] : vector<2x2x64xf32> to vector<2x64xf32>
    %c0_70 = arith.constant 0 : index
    %c256 = arith.constant 256 : index
    %115 = vector.load %arg11[%c0_70, %c256] : memref<2x1024xf32, #tpu.memory_space<vmem>>, vector<2x64xf32>
    tpu.vector_store %arg11[%c0_70, %c256], %114 {strides = array<i32>} : memref<2x1024xf32, #tpu.memory_space<vmem>>, vector<2x64xf32>,
    %116 = vector.extract_strided_slice %109 {offsets = [0, 4, 0], sizes = [2, 2, 64], strides = [1, 1, 1]} : vector<2x8x64xf32> to vector<2x2x64xf32>
    %cst_71 = arith.constant dense<0xFF800000> : vector<2x64xf32>
    %117 = vector.multi_reduction <maximumf>, %116, %cst_71 [1] : vector<2x2x64xf32> to vector<2x64xf32>
    %c0_72 = arith.constant 0 : index
    %c512 = arith.constant 512 : index
    %118 = vector.load %arg11[%c0_72, %c512] : memref<2x1024xf32, #tpu.memory_space<vmem>>, vector<2x64xf32>
    tpu.vector_store %arg11[%c0_72, %c512], %117 {strides = array<i32>} : memref<2x1024xf32, #tpu.memory_space<vmem>>, vector<2x64xf32>,
    %119 = vector.extract_strided_slice %109 {offsets = [0, 6, 0], sizes = [2, 2, 64], strides = [1, 1, 1]} : vector<2x8x64xf32> to vector<2x2x64xf32>
    %cst_73 = arith.constant dense<0xFF800000> : vector<2x64xf32>
    %120 = vector.multi_reduction <maximumf>, %119, %cst_73 [1] : vector<2x2x64xf32> to vector<2x64xf32>
    %c0_74 = arith.constant 0 : index
    %c768 = arith.constant 768 : index
    %121 = vector.load %arg11[%c0_74, %c768] : memref<2x1024xf32, #tpu.memory_space<vmem>>, vector<2x64xf32>
    tpu.vector_store %arg11[%c0_74, %c768], %120 {strides = array<i32>} : memref<2x1024xf32, #tpu.memory_space<vmem>>, vector<2x64xf32>,
    %122 = vector.extract_strided_slice %101 {offsets = [0, 128], sizes = [16, 128], strides = [1, 1]} : vector<16x512xf32> to vector<16x128xf32>
    %123 = vector.extract_strided_slice %122 {offsets = [0, 0], sizes = [16, 64], strides = [1, 1]} : vector<16x128xf32> to vector<16x64xf32>
    %124 = vector.extract_strided_slice %122 {offsets = [0, 64], sizes = [16, 64], strides = [1, 1]} : vector<16x128xf32> to vector<16x64xf32>
    %125 = arith.maximumf %123, %124 : vector<16x64xf32>
    %c0_75 = arith.constant 0 : index
    %c0_76 = arith.constant 0 : index
    %126 = vector.load %arg5[%c0_75, %c0_76] : memref<1x64xf32, #tpu.memory_space<vmem>>, vector<1x64xf32>
    %127 = vector.broadcast %126 : vector<1x64xf32> to vector<16x64xf32>
    %128 = arith.addf %125, %127 : vector<16x64xf32>
    %129 = vector.shape_cast %128 : vector<16x64xf32> to vector<2x8x64xf32>
    %130 = vector.extract_strided_slice %129 {offsets = [0, 0, 0], sizes = [2, 2, 64], strides = [1, 1, 1]} : vector<2x8x64xf32> to vector<2x2x64xf32>
    %cst_77 = arith.constant dense<0xFF800000> : vector<2x64xf32>
    %131 = vector.multi_reduction <maximumf>, %130, %cst_77 [1] : vector<2x2x64xf32> to vector<2x64xf32>
    %c0_78 = arith.constant 0 : index
    %c64 = arith.constant 64 : index
    %132 = vector.load %arg11[%c0_78, %c64] : memref<2x1024xf32, #tpu.memory_space<vmem>>, vector<2x64xf32>
    tpu.vector_store %arg11[%c0_78, %c64], %131 {strides = array<i32>} : memref<2x1024xf32, #tpu.memory_space<vmem>>, vector<2x64xf32>,
    %133 = vector.extract_strided_slice %129 {offsets = [0, 2, 0], sizes = [2, 2, 64], strides = [1, 1, 1]} : vector<2x8x64xf32> to vector<2x2x64xf32>
    %cst_79 = arith.constant dense<0xFF800000> : vector<2x64xf32>
    %134 = vector.multi_reduction <maximumf>, %133, %cst_79 [1] : vector<2x2x64xf32> to vector<2x64xf32>
    %c0_80 = arith.constant 0 : index
    %c320 = arith.constant 320 : index
    %135 = vector.load %arg11[%c0_80, %c320] : memref<2x1024xf32, #tpu.memory_space<vmem>>, vector<2x64xf32>
    tpu.vector_store %arg11[%c0_80, %c320], %134 {strides = array<i32>} : memref<2x1024xf32, #tpu.memory_space<vmem>>, vector<2x64xf32>,
    %136 = vector.extract_strided_slice %129 {offsets = [0, 4, 0], sizes = [2, 2, 64], strides = [1, 1, 1]} : vector<2x8x64xf32> to vector<2x2x64xf32>
    %cst_81 = arith.constant dense<0xFF800000> : vector<2x64xf32>
    %137 = vector.multi_reduction <maximumf>, %136, %cst_81 [1] : vector<2x2x64xf32> to vector<2x64xf32>
    %c0_82 = arith.constant 0 : index
    %c576 = arith.constant 576 : index
    %138 = vector.load %arg11[%c0_82, %c576] : memref<2x1024xf32, #tpu.memory_space<vmem>>, vector<2x64xf32>
    tpu.vector_store %arg11[%c0_82, %c576], %137 {strides = array<i32>} : memref<2x1024xf32, #tpu.memory_space<vmem>>, vector<2x64xf32>,
    %139 = vector.extract_strided_slice %129 {offsets = [0, 6, 0], sizes = [2, 2, 64], strides = [1, 1, 1]} : vector<2x8x64xf32> to vector<2x2x64xf32>
    %cst_83 = arith.constant dense<0xFF800000> : vector<2x64xf32>
    %140 = vector.multi_reduction <maximumf>, %139, %cst_83 [1] : vector<2x2x64xf32> to vector<2x64xf32>
    %c0_84 = arith.constant 0 : index
    %c832 = arith.constant 832 : index
    %141 = vector.load %arg11[%c0_84, %c832] : memref<2x1024xf32, #tpu.memory_space<vmem>>, vector<2x64xf32>
    tpu.vector_store %arg11[%c0_84, %c832], %140 {strides = array<i32>} : memref<2x1024xf32, #tpu.memory_space<vmem>>, vector<2x64xf32>,
    %142 = vector.extract_strided_slice %101 {offsets = [0, 256], sizes = [16, 128], strides = [1, 1]} : vector<16x512xf32> to vector<16x128xf32>
    %143 = vector.extract_strided_slice %142 {offsets = [0, 0], sizes = [16, 64], strides = [1, 1]} : vector<16x128xf32> to vector<16x64xf32>
    %144 = vector.extract_strided_slice %142 {offsets = [0, 64], sizes = [16, 64], strides = [1, 1]} : vector<16x128xf32> to vector<16x64xf32>
    %145 = arith.maximumf %143, %144 : vector<16x64xf32>
    %c0_85 = arith.constant 0 : index
    %c0_86 = arith.constant 0 : index
    %146 = vector.load %arg5[%c0_85, %c0_86] : memref<1x64xf32, #tpu.memory_space<vmem>>, vector<1x64xf32>
    %147 = vector.broadcast %146 : vector<1x64xf32> to vector<16x64xf32>
    %148 = arith.addf %145, %147 : vector<16x64xf32>
    %149 = vector.shape_cast %148 : vector<16x64xf32> to vector<2x8x64xf32>
    %150 = vector.extract_strided_slice %149 {offsets = [0, 0, 0], sizes = [2, 2, 64], strides = [1, 1, 1]} : vector<2x8x64xf32> to vector<2x2x64xf32>
    %cst_87 = arith.constant dense<0xFF800000> : vector<2x64xf32>
    %151 = vector.multi_reduction <maximumf>, %150, %cst_87 [1] : vector<2x2x64xf32> to vector<2x64xf32>
    %c0_88 = arith.constant 0 : index
    %c128 = arith.constant 128 : index
    %152 = vector.load %arg11[%c0_88, %c128] : memref<2x1024xf32, #tpu.memory_space<vmem>>, vector<2x64xf32>
    tpu.vector_store %arg11[%c0_88, %c128], %151 {strides = array<i32>} : memref<2x1024xf32, #tpu.memory_space<vmem>>, vector<2x64xf32>,
    %153 = vector.extract_strided_slice %149 {offsets = [0, 2, 0], sizes = [2, 2, 64], strides = [1, 1, 1]} : vector<2x8x64xf32> to vector<2x2x64xf32>
    %cst_89 = arith.constant dense<0xFF800000> : vector<2x64xf32>
    %154 = vector.multi_reduction <maximumf>, %153, %cst_89 [1] : vector<2x2x64xf32> to vector<2x64xf32>
    %c0_90 = arith.constant 0 : index
    %c384 = arith.constant 384 : index
    %155 = vector.load %arg11[%c0_90, %c384] : memref<2x1024xf32, #tpu.memory_space<vmem>>, vector<2x64xf32>
    tpu.vector_store %arg11[%c0_90, %c384], %154 {strides = array<i32>} : memref<2x1024xf32, #tpu.memory_space<vmem>>, vector<2x64xf32>,
    %156 = vector.extract_strided_slice %149 {offsets = [0, 4, 0], sizes = [2, 2, 64], strides = [1, 1, 1]} : vector<2x8x64xf32> to vector<2x2x64xf32>
    %cst_91 = arith.constant dense<0xFF800000> : vector<2x64xf32>
    %157 = vector.multi_reduction <maximumf>, %156, %cst_91 [1] : vector<2x2x64xf32> to vector<2x64xf32>
    %c0_92 = arith.constant 0 : index
    %c640 = arith.constant 640 : index
    %158 = vector.load %arg11[%c0_92, %c640] : memref<2x1024xf32, #tpu.memory_space<vmem>>, vector<2x64xf32>
    tpu.vector_store %arg11[%c0_92, %c640], %157 {strides = array<i32>} : memref<2x1024xf32, #tpu.memory_space<vmem>>, vector<2x64xf32>,
    %159 = vector.extract_strided_slice %149 {offsets = [0, 6, 0], sizes = [2, 2, 64], strides = [1, 1, 1]} : vector<2x8x64xf32> to vector<2x2x64xf32>
    %cst_93 = arith.constant dense<0xFF800000> : vector<2x64xf32>
    %160 = vector.multi_reduction <maximumf>, %159, %cst_93 [1] : vector<2x2x64xf32> to vector<2x64xf32>
    %c0_94 = arith.constant 0 : index
    %c896 = arith.constant 896 : index
    %161 = vector.load %arg11[%c0_94, %c896] : memref<2x1024xf32, #tpu.memory_space<vmem>>, vector<2x64xf32>
    tpu.vector_store %arg11[%c0_94, %c896], %160 {strides = array<i32>} : memref<2x1024xf32, #tpu.memory_space<vmem>>, vector<2x64xf32>,
    %162 = vector.extract_strided_slice %101 {offsets = [0, 384], sizes = [16, 128], strides = [1, 1]} : vector<16x512xf32> to vector<16x128xf32>
    %163 = vector.extract_strided_slice %162 {offsets = [0, 0], sizes = [16, 64], strides = [1, 1]} : vector<16x128xf32> to vector<16x64xf32>
    %164 = vector.extract_strided_slice %162 {offsets = [0, 64], sizes = [16, 64], strides = [1, 1]} : vector<16x128xf32> to vector<16x64xf32>
    %165 = arith.maximumf %163, %164 : vector<16x64xf32>
    %c0_95 = arith.constant 0 : index
    %c0_96 = arith.constant 0 : index
    %166 = vector.load %arg5[%c0_95, %c0_96] : memref<1x64xf32, #tpu.memory_space<vmem>>, vector<1x64xf32>
    %167 = vector.broadcast %166 : vector<1x64xf32> to vector<16x64xf32>
    %168 = arith.addf %165, %167 : vector<16x64xf32>
    %169 = vector.shape_cast %168 : vector<16x64xf32> to vector<2x8x64xf32>
    %170 = vector.extract_strided_slice %169 {offsets = [0, 0, 0], sizes = [2, 2, 64], strides = [1, 1, 1]} : vector<2x8x64xf32> to vector<2x2x64xf32>
    %cst_97 = arith.constant dense<0xFF800000> : vector<2x64xf32>
    %171 = vector.multi_reduction <maximumf>, %170, %cst_97 [1] : vector<2x2x64xf32> to vector<2x64xf32>
    %c0_98 = arith.constant 0 : index
    %c192 = arith.constant 192 : index
    %172 = vector.load %arg11[%c0_98, %c192] : memref<2x1024xf32, #tpu.memory_space<vmem>>, vector<2x64xf32>
    tpu.vector_store %arg11[%c0_98, %c192], %171 {strides = array<i32>} : memref<2x1024xf32, #tpu.memory_space<vmem>>, vector<2x64xf32>,
    %173 = vector.extract_strided_slice %169 {offsets = [0, 2, 0], sizes = [2, 2, 64], strides = [1, 1, 1]} : vector<2x8x64xf32> to vector<2x2x64xf32>
    %cst_99 = arith.constant dense<0xFF800000> : vector<2x64xf32>
    %174 = vector.multi_reduction <maximumf>, %173, %cst_99 [1] : vector<2x2x64xf32> to vector<2x64xf32>
    %c0_100 = arith.constant 0 : index
    %c448 = arith.constant 448 : index
    %175 = vector.load %arg11[%c0_100, %c448] : memref<2x1024xf32, #tpu.memory_space<vmem>>, vector<2x64xf32>
    tpu.vector_store %arg11[%c0_100, %c448], %174 {strides = array<i32>} : memref<2x1024xf32, #tpu.memory_space<vmem>>, vector<2x64xf32>,
    %176 = vector.extract_strided_slice %169 {offsets = [0, 4, 0], sizes = [2, 2, 64], strides = [1, 1, 1]} : vector<2x8x64xf32> to vector<2x2x64xf32>
    %cst_101 = arith.constant dense<0xFF800000> : vector<2x64xf32>
    %177 = vector.multi_reduction <maximumf>, %176, %cst_101 [1] : vector<2x2x64xf32> to vector<2x64xf32>
    %c0_102 = arith.constant 0 : index
    %c704 = arith.constant 704 : index
    %178 = vector.load %arg11[%c0_102, %c704] : memref<2x1024xf32, #tpu.memory_space<vmem>>, vector<2x64xf32>
    tpu.vector_store %arg11[%c0_102, %c704], %177 {strides = array<i32>} : memref<2x1024xf32, #tpu.memory_space<vmem>>, vector<2x64xf32>,
    %179 = vector.extract_strided_slice %169 {offsets = [0, 6, 0], sizes = [2, 2, 64], strides = [1, 1, 1]} : vector<2x8x64xf32> to vector<2x2x64xf32>
    %cst_103 = arith.constant dense<0xFF800000> : vector<2x64xf32>
    %180 = vector.multi_reduction <maximumf>, %179, %cst_103 [1] : vector<2x2x64xf32> to vector<2x64xf32>
    %c0_104 = arith.constant 0 : index
    %c960 = arith.constant 960 : index
    %181 = vector.load %arg11[%c0_104, %c960] : memref<2x1024xf32, #tpu.memory_space<vmem>>, vector<2x64xf32>
    tpu.vector_store %arg11[%c0_104, %c960], %180 {strides = array<i32>} : memref<2x1024xf32, #tpu.memory_space<vmem>>, vector<2x64xf32>,
    %c0_105 = arith.constant 0 : index
    %c0_106 = arith.constant 0 : index
    %182 = vector.load %arg11[%c0_105, %c0_106] : memref<2x1024xf32, #tpu.memory_space<vmem>>, vector<2x1024xf32>
    %c0_107 = arith.constant 0 : index
    %c0_108 = arith.constant 0 : index
    %183 = vector.load %arg6[%c0_107, %c0_108] : memref<1024x1024xf32, #tpu.memory_space<vmem>>, vector<1024x1024xf32>
    %cst_109 = arith.constant dense<0.000000e+00> : vector<2x1024xf32>
    %184 = tpu.matmul %182, %183, %cst_109 {dimension_numbers = #tpu.dot_dimension_numbers<[1], [0], [0], [1], [0, 0, 1, 1], [], []>} : vector<2x1024xf32>, vector<1024x1024xf32>, vector<2x1024xf32> -> vector<2x1024xf32>
    %c0_110 = arith.constant 0 : index
    %c0_111 = arith.constant 0 : index
    %185 = vector.load %arg7[%c0_110, %c0_111] : memref<1x1024xf32, #tpu.memory_space<vmem>>, vector<1x1024xf32>
    %186 = vector.broadcast %185 : vector<1x1024xf32> to vector<2x1024xf32>
    %187 = arith.addf %184, %186 : vector<2x1024xf32>
    %cst_112 = arith.constant 0.000000e+00 : f32
    %188 = vector.broadcast %cst_112 : f32 to vector<2x1024xf32>
    %189 = arith.maximumf %187, %188 : vector<2x1024xf32>
    %c0_113 = arith.constant 0 : index
    %c0_114 = arith.constant 0 : index
    %190 = vector.load %arg8[%c0_113, %c0_114] : memref<1024x128xf32, #tpu.memory_space<vmem>>, vector<1024x128xf32>
    %cst_115 = arith.constant dense<0.000000e+00> : vector<2x128xf32>
    %191 = tpu.matmul %189, %190, %cst_115 {dimension_numbers = #tpu.dot_dimension_numbers<[1], [0], [0], [1], [0, 0, 1, 1], [], []>} : vector<2x1024xf32>, vector<1024x128xf32>, vector<2x128xf32> -> vector<2x128xf32>
    %c0_116 = arith.constant 0 : index
    %c0_117 = arith.constant 0 : index
    %192 = vector.load %arg9[%c0_116, %c0_117] : memref<1x128xf32, #tpu.memory_space<vmem>>, vector<1x128xf32>
    %193 = vector.broadcast %192 : vector<1x128xf32> to vector<2x128xf32>
    %194 = arith.addf %191, %193 : vector<2x128xf32>
    %cst_118 = arith.constant dense<0xFF800000> : vector<2xf32>
    %195 = vector.multi_reduction <maximumf>, %194, %cst_118 [1] : vector<2x128xf32> to vector<2xf32>
    %196 = vector.shape_cast %195 : vector<2xf32> to vector<2x1xf32>
    %197 = vector.broadcast %196 : vector<2x1xf32> to vector<2x128xf32>
    %198 = arith.subf %194, %197 : vector<2x128xf32>
    %199 = math.exp %198 : vector<2x128xf32>
    %cst_119 = arith.constant dense<0.000000e+00> : vector<2xf32>
    %200 = vector.multi_reduction <add>, %199, %cst_119 [1] : vector<2x128xf32> to vector<2xf32>
    %201 = vector.shape_cast %200 : vector<2xf32> to vector<2x1xf32>
    %202 = vector.broadcast %201 : vector<2x1xf32> to vector<2x128xf32>
    %203 = arith.divf %199, %202 : vector<2x128xf32>
    %c0_120 = arith.constant 0 : index
    %c0_121 = arith.constant 0 : index
    %204 = vector.load %arg10[%c0_120, %c0_121] : memref<2x128xf32, #tpu.memory_space<vmem>>, vector<2x128xf32>
    tpu.vector_store %arg10[%c0_120, %c0_121], %203 {strides = array<i32>} : memref<2x128xf32, #tpu.memory_space<vmem>>, vector<2x128xf32>,
    return
  }
  func.func @transform_0(%arg0: i32) -> (i32, i32, i32, i32) {
    %c0_i32 = arith.constant 0 : i32
    %c0_i32_0 = arith.constant 0 : i32
    %c0_i32_1 = arith.constant 0 : i32
    %c0_i32_2 = arith.constant 0 : i32
    return %c0_i32, %arg0, %c0_i32_0, %c0_i32_1 : i32, i32, i32, i32
  }
  func.func @transform_1(%arg0: i32) -> (i32, i32, i32) {
    %c0_i32 = arith.constant 0 : i32
    %c0_i32_0 = arith.constant 0 : i32
    %c0_i32_1 = arith.constant 0 : i32
    %c0_i32_2 = arith.constant 0 : i32
    return %c0_i32, %c0_i32_0, %c0_i32_1 : i32, i32, i32
  }
  func.func @transform_2(%arg0: i32) -> (i32, i32) {
    %c0_i32 = arith.constant 0 : i32
    %c0_i32_0 = arith.constant 0 : i32
    %c0_i32_1 = arith.constant 0 : i32
    return %c0_i32, %c0_i32_0 : i32, i32
  }
  func.func @transform_3(%arg0: i32) -> (i32, i32, i32) {
    %c0_i32 = arith.constant 0 : i32
    %c0_i32_0 = arith.constant 0 : i32
    %c0_i32_1 = arith.constant 0 : i32
    %c0_i32_2 = arith.constant 0 : i32
    return %c0_i32, %c0_i32_0, %c0_i32_1 : i32, i32, i32
  }
  func.func @transform_4(%arg0: i32) -> (i32, i32) {
    %c0_i32 = arith.constant 0 : i32
    %c0_i32_0 = arith.constant 0 : i32
    %c0_i32_1 = arith.constant 0 : i32
    return %c0_i32, %c0_i32_0 : i32, i32
  }
  func.func @transform_5(%arg0: i32) -> (i32, i32) {
    %c0_i32 = arith.constant 0 : i32
    %c0_i32_0 = arith.constant 0 : i32
    %c0_i32_1 = arith.constant 0 : i32
    return %c0_i32, %c0_i32_0 : i32, i32
  }
  func.func @transform_6(%arg0: i32) -> (i32, i32) {
    %c0_i32 = arith.constant 0 : i32
    %c0_i32_0 = arith.constant 0 : i32
    %c0_i32_1 = arith.constant 0 : i32
    return %c0_i32, %c0_i32_0 : i32, i32
  }
  func.func @transform_7(%arg0: i32) -> (i32, i32) {
    %c0_i32 = arith.constant 0 : i32
    %c0_i32_0 = arith.constant 0 : i32
    %c0_i32_1 = arith.constant 0 : i32
    return %c0_i32, %c0_i32_0 : i32, i32
  }
  func.func @transform_8(%arg0: i32) -> (i32, i32) {
    %c0_i32 = arith.constant 0 : i32
    %c0_i32_0 = arith.constant 0 : i32
    %c0_i32_1 = arith.constant 0 : i32
    return %c0_i32, %c0_i32_0 : i32, i32
  }
  func.func @transform_9(%arg0: i32) -> (i32, i32) {
    %c0_i32 = arith.constant 0 : i32
    %c0_i32_0 = arith.constant 0 : i32
    return %arg0, %c0_i32 : i32, i32
  }
}

</mosaic_0001>

<llo_original>
// kernel: mnist_net_forward.1
$region0: #{mnist_net_forward.1}
  #allocation0 [shape = 'u32[]', space=smem, size = 0x4, offset = 0x4, fixed_abs, tag = 'smem constant byte address 0x4 - core index']
  #allocation1 [shape = 'u32[144,128]{1,0:T(1,128)}', space=vmem, size = 0x12000, scoped, tag = 'internal scratch']
  #allocation2 [shape = 'f32[2,1024]{1,0:T(2,128)}', space=vmem, size = 0x2000, scoped, tag = 'scratch operand']
  %s0 = inlined_call_operand.vmem [shape: f32[2,2,24,28], index: 0, kind: input, shape index: {}]
  %s1 = inlined_call_operand.hbm [shape: f32[5,28,768], index: 1, kind: input, shape index: {}]
  %s2 = inlined_call_operand.hbm [shape: f32[1,384], index: 2, kind: input, shape index: {}]
  %s3 = inlined_call_operand.hbm [shape: f32[5,384,512], index: 3, kind: input, shape index: {}]
  %s4 = inlined_call_operand.hbm [shape: f32[1,64], index: 4, kind: input, shape index: {}]
  %s5 = inlined_call_operand.hbm [shape: f32[1024,1024], index: 5, kind: input, shape index: {}]
  %s6 = inlined_call_operand.hbm [shape: f32[1,1024], index: 6, kind: input, shape index: {}]
  %s7 = inlined_call_operand.hbm [shape: f32[1024,128], index: 7, kind: input, shape index: {}]
  %s8 = inlined_call_operand.hbm [shape: f32[1,128], index: 8, kind: input, shape index: {}]
  %s9 = inlined_call_operand.hbm [shape: f32[2,128], index: 9, kind: output, shape index: {}]
  %s10 = sld [smem:[#allocation0]]
  $region78: #{mnist_net_forward.1} parent=0
    _
  %s12 = ssub.s32 1, %s10
  %s13 = scalar_select 0, %s12, %s10
  $region1: #{mnist_net_forward.1} parent=0
    #allocation3 [shape = 'u8[491520]{0}', space=vmem, size = 0x78000, scoped, tag = 'input window, operand 1, single buffered']
    #allocation4 [shape = 's32[1]{0}', space=sflag, size = 0x4, scoped, tag = 'scoped memory for mnist_net_forward.1']
    #allocation5 [shape = 's32[1]{0}', space=sflag, size = 0x4, scoped, tag = 'scoped memory for mnist_net_forward.1']
    #allocation6 [shape = 'u8[1536]{0}', space=vmem, size = 0x800, scoped, tag = 'input window, operand 2, single buffered']
    #allocation7 [shape = 's32[1]{0}', space=sflag, size = 0x4, scoped, tag = 'scoped memory for mnist_net_forward.1']
    #allocation8 [shape = 'u8[3932160]{0}', space=vmem, size = 0x3c0000, scoped, tag = 'input window, operand 3, single buffered']
    #allocation9 [shape = 'u8[512]{0}', space=vmem, size = 0x400, scoped, tag = 'input window, operand 4, single buffered']
    #allocation10 [shape = 's32[1]{0}', space=sflag, size = 0x4, scoped, tag = 'scoped memory for mnist_net_forward.1']
    #allocation11 [shape = 'u8[4194304]{0}', space=vmem, size = 0x400000, scoped, tag = 'input window, operand 5, single buffered']
    #allocation12 [shape = 'u8[4096]{0}', space=vmem, size = 0x1000, scoped, tag = 'input window, operand 6, single buffered']
    #allocation13 [shape = 's32[1]{0}', space=sflag, size = 0x4, scoped, tag = 'scoped memory for mnist_net_forward.1']
    #allocation14 [shape = 'u8[524288]{0}', space=vmem, size = 0x80000, scoped, tag = 'input window, operand 7, single buffered']
    #allocation15 [shape = 'u8[512]{0}', space=vmem, size = 0x400, scoped, tag = 'input window, operand 8, single buffered']
    #allocation16 [shape = 's32[1]{0}', space=sflag, size = 0x4, scoped, tag = 'scoped memory for mnist_net_forward.1']
    #allocation17 [shape = 'u8[1024]{0}', space=vmem, size = 0x400, scoped, tag = 'output window, operand 0, single buffered']
    %14 = vsyncpa [#allocation4], 0
    %15 = vsyncpa [#allocation7], 0
    %16 = vsyncpa [#allocation10], 0
    %17 = vsyncpa [#allocation13], 0
    %18 = vsyncpa [#allocation16], 0
    %19 = vsyncpa [#allocation5], 0
    // Predicated region
    $region2: #{mnist_net_forward.1} parent=1 // pred_check
      _
    $region3: #{mnist_net_forward.1} parent=1 // pred_check_branch
      %21 = sbr.rel (0) target = $region5
    $region4: #{mnist_net_forward.1} parent=1 // pred_region
      _
    $region5: #{mnist_net_forward.1} parent=1 // pred_fallthru
      _
    // Predicated region
    $region6: #{mnist_net_forward.1} parent=1 // pred_check
      _
    $region7: #{mnist_net_forward.1} parent=1 // pred_check_branch
      %23 = sbr.rel (0) target = $region9
    $region8: #{mnist_net_forward.1} parent=1 // pred_region
      %s25 = ssub.s32 15360, 15360
      %26 = vsyncadd [#allocation4], %s25
      %s27 = sshll.u32 [#allocation3], 4
      %s28 = int_to_ptr.vmem [resolvable:$true] %s27
      %33 = dma.hbm_to_vmem [thread:$0]  %s1, 15360, %s28, [#allocation4], 768, 768, 48
    $region9: #{mnist_net_forward.1} parent=1 // pred_fallthru
      _
    // Predicated region
    $region10: #{mnist_net_forward.1} parent=1 // pred_check
      _
    $region11: #{mnist_net_forward.1} parent=1 // pred_check_branch
      %35 = sbr.rel (0) target = $region13
    $region12: #{mnist_net_forward.1} parent=1 // pred_region
      %s37 = ssub.s32 48, 48
      %38 = vsyncadd [#allocation7], %s37
      %s40 = sshll.u32 [#allocation6], 4
      %s41 = int_to_ptr.vmem [resolvable:$true] %s40
      %43 = dma.hbm_to_vmem [thread:$0]  %s2, 48, %s41, [#allocation7]
    $region13: #{mnist_net_forward.1} parent=1 // pred_fallthru
      _
    // Predicated region
    $region14: #{mnist_net_forward.1} parent=1 // pred_check
      _
    $region15: #{mnist_net_forward.1} parent=1 // pred_check_branch
      %45 = sbr.rel (0) target = $region17
    $region16: #{mnist_net_forward.1} parent=1 // pred_region
      %s47 = ssub.s32 122880, 122880
      %48 = vsyncadd [#allocation7], %s47
      %s49 = sshll.u32 [#allocation8], 4
      %s50 = int_to_ptr.vmem [resolvable:$true] %s49
      %55 = dma.hbm_to_vmem [thread:$0]  %s3, 122880, %s50, [#allocation7], 512, 512, 32
    $region17: #{mnist_net_forward.1} parent=1 // pred_fallthru
      _
    // Predicated region
    $region18: #{mnist_net_forward.1} parent=1 // pred_check
      _
    $region19: #{mnist_net_forward.1} parent=1 // pred_check_branch
      %57 = sbr.rel (0) target = $region21
    $region20: #{mnist_net_forward.1} parent=1 // pred_region
      %s59 = ssub.s32 16, 16
      %60 = vsyncadd [#allocation10], %s59
      %s62 = sshll.u32 [#allocation9], 4
      %s63 = int_to_ptr.vmem [resolvable:$true] %s62
      %65 = dma.hbm_to_vmem [thread:$0]  %s4, 16, %s63, [#allocation10]
    $region21: #{mnist_net_forward.1} parent=1 // pred_fallthru
      _
    // Predicated region
    $region22: #{mnist_net_forward.1} parent=1 // pred_check
      _
    $region23: #{mnist_net_forward.1} parent=1 // pred_check_branch
      %67 = sbr.rel (0) target = $region25
    $region24: #{mnist_net_forward.1} parent=1 // pred_region
      %s69 = ssub.s32 131072, 131072
      %70 = vsyncadd [#allocation10], %s69
      %s71 = sshll.u32 [#allocation11], 4
      %s72 = int_to_ptr.vmem [resolvable:$true] %s71
      %77 = dma.hbm_to_vmem [thread:$0]  %s5, 131072, %s72, [#allocation10], 1024, 1024, 64
    $region25: #{mnist_net_forward.1} parent=1 // pred_fallthru
      _
    // Predicated region
    $region26: #{mnist_net_forward.1} parent=1 // pred_check
      _
    $region27: #{mnist_net_forward.1} parent=1 // pred_check_branch
      %79 = sbr.rel (0) target = $region29
    $region28: #{mnist_net_forward.1} parent=1 // pred_region
      %s81 = ssub.s32 128, 128
      %82 = vsyncadd [#allocation13], %s81
      %s84 = sshll.u32 [#allocation12], 4
      %s85 = int_to_ptr.vmem [resolvable:$true] %s84
      %87 = dma.hbm_to_vmem [thread:$0]  %s6, 128, %s85, [#allocation13]
    $region29: #{mnist_net_forward.1} parent=1 // pred_fallthru
      _
    // Predicated region
    $region30: #{mnist_net_forward.1} parent=1 // pred_check
      _
    $region31: #{mnist_net_forward.1} parent=1 // pred_check_branch
      %89 = sbr.rel (0) target = $region33
    $region32: #{mnist_net_forward.1} parent=1 // pred_region
      %s91 = ssub.s32 16384, 16384
      %92 = vsyncadd [#allocation13], %s91
      %s93 = sshll.u32 [#allocation14], 4
      %s94 = int_to_ptr.vmem [resolvable:$true] %s93
      %99 = dma.hbm_to_vmem [thread:$0]  %s7, 16384, %s94, [#allocation13], 128, 128, 8
    $region33: #{mnist_net_forward.1} parent=1 // pred_fallthru
      _
    // Predicated region
    $region34: #{mnist_net_forward.1} parent=1 // pred_check
      _
    $region35: #{mnist_net_forward.1} parent=1 // pred_check_branch
      %101 = sbr.rel (0) target = $region37
    $region36: #{mnist_net_forward.1} parent=1 // pred_region
      %s103 = ssub.s32 16, 16
      %104 = vsyncadd [#allocation16], %s103
      %s106 = sshll.u32 [#allocation15], 4
      %s107 = int_to_ptr.vmem [resolvable:$true] %s106
      %109 = dma.hbm_to_vmem [thread:$0]  %s8, 16, %s107, [#allocation16]
    $region37: #{mnist_net_forward.1} parent=1 // pred_fallthru
      _
    // Predicated region
    $region38: #{mnist_net_forward.1} parent=1 // pred_check
      _
    $region39: #{mnist_net_forward.1} parent=1 // pred_check_branch
      %111 = sbr.rel (0) target = $region41
    $region40: #{mnist_net_forward.1} parent=1 // pred_region
      %112 = dma.done [#allocation4], 15360
    $region41: #{mnist_net_forward.1} parent=1 // pred_fallthru
      _
    // Predicated region
    $region42: #{mnist_net_forward.1} parent=1 // pred_check
      _
    $region43: #{mnist_net_forward.1} parent=1 // pred_check_branch
      %114 = sbr.rel (0) target = $region45
    $region44: #{mnist_net_forward.1} parent=1 // pred_region
      %115 = dma.done [#allocation7], 48
    $region45: #{mnist_net_forward.1} parent=1 // pred_fallthru
      _
    // Predicated region
    $region46: #{mnist_net_forward.1} parent=1 // pred_check
      _
    $region47: #{mnist_net_forward.1} parent=1 // pred_check_branch
      %117 = sbr.rel (0) target = $region49
    $region48: #{mnist_net_forward.1} parent=1 // pred_region
      %118 = dma.done [#allocation7], 122880
    $region49: #{mnist_net_forward.1} parent=1 // pred_fallthru
      _
    // Predicated region
    $region50: #{mnist_net_forward.1} parent=1 // pred_check
      _
    $region51: #{mnist_net_forward.1} parent=1 // pred_check_branch
      %120 = sbr.rel (0) target = $region53
    $region52: #{mnist_net_forward.1} parent=1 // pred_region
      %121 = dma.done [#allocation10], 16
    $region53: #{mnist_net_forward.1} parent=1 // pred_fallthru
      _
    // Predicated region
    $region54: #{mnist_net_forward.1} parent=1 // pred_check
      _
    $region55: #{mnist_net_forward.1} parent=1 // pred_check_branch
      %123 = sbr.rel (0) target = $region57
    $region56: #{mnist_net_forward.1} parent=1 // pred_region
      %124 = dma.done [#allocation10], 131072
    $region57: #{mnist_net_forward.1} parent=1 // pred_fallthru
      _
    // Predicated region
    $region58: #{mnist_net_forward.1} parent=1 // pred_check
      _
    $region59: #{mnist_net_forward.1} parent=1 // pred_check_branch
      %126 = sbr.rel (0) target = $region61
    $region60: #{mnist_net_forward.1} parent=1 // pred_region
      %127 = dma.done [#allocation13], 128
    $region61: #{mnist_net_forward.1} parent=1 // pred_fallthru
      _
    // Predicated region
    $region62: #{mnist_net_forward.1} parent=1 // pred_check
      _
    $region63: #{mnist_net_forward.1} parent=1 // pred_check_branch
      %129 = sbr.rel (0) target = $region65
    $region64: #{mnist_net_forward.1} parent=1 // pred_region
      %130 = dma.done [#allocation13], 16384
    $region65: #{mnist_net_forward.1} parent=1 // pred_fallthru
      _
    // Predicated region
    $region66: #{mnist_net_forward.1} parent=1 // pred_check
      _
    $region67: #{mnist_net_forward.1} parent=1 // pred_check_branch
      %132 = sbr.rel (0) target = $region69
    $region68: #{mnist_net_forward.1} parent=1 // pred_region
      %133 = dma.done [#allocation16], 16
    $region69: #{mnist_net_forward.1} parent=1 // pred_fallthru
      _
    %v134 = vld [vmem:[%s0] sm:$0xff]
    %v135 = vld [vmem:[%s0 + $0x8] sm:$0xff]
    %v136 = vld [vmem:[%s0 + $0x10] sm:$0xff]
    %v137 = vld [vmem:[%s0 + $0x18] sm:$0xff]
    %v138 = vld [vmem:[%s0 + $0x20] sm:$0xff]
    %v139 = vld [vmem:[%s0 + $0x28] sm:$0xff]
    %s140 = scalar_lea.vmem %s0, 48
    %v141 = vld [vmem:[%s140] sm:$0xff]
    %v142 = vld [vmem:[%s140 + $0x8] sm:$0xff]
    %v143 = vld [vmem:[%s140 + $0x10] sm:$0xff]
    %v144 = vld [vmem:[%s140 + $0x18] sm:$0xff]
    %v145 = vld [vmem:[%s140 + $0x20] sm:$0xff]
    %v146 = vld [vmem:[%s140 + $0x28] sm:$0xff]
    %v147 = vld [vmem:[#allocation3] sm:$0xff]
    %v148 = vld [vmem:[#allocation3 + $0x8] sm:$0xff]
    %v149 = vld [vmem:[#allocation3 + $0x10] sm:$0xff]
    %v150 = vld [vmem:[#allocation3 + $0x18] sm:$0xff]
    %v151 = vld [vmem:[#allocation3 + $0x20] sm:$0xff]
    %v152 = vld [vmem:[#allocation3 + $0x28] sm:$0xff]
    %v153 = vld [vmem:[#allocation3 + $0x30] sm:$0xff]
    %v154 = vld [vmem:[#allocation3 + $0x38] sm:$0xff]
    %v155 = vld [vmem:[#allocation3 + $0x40] sm:$0xff]
    %v156 = vld [vmem:[#allocation3 + $0x48] sm:$0xff]
    %v157 = vld [vmem:[#allocation3 + $0x50] sm:$0xff]
    %v158 = vld [vmem:[#allocation3 + $0x58] sm:$0xff]
    %v159 = vld [vmem:[#allocation3 + $0x60] sm:$0xff]
    %v160 = vld [vmem:[#allocation3 + $0x68] sm:$0xff]
    %v161 = vld [vmem:[#allocation3 + $0x70] sm:$0xff]
    %v162 = vld [vmem:[#allocation3 + $0x78] sm:$0xff]
    %v163 = vld [vmem:[#allocation3 + $0x80] sm:$0xff]
    %v164 = vld [vmem:[#allocation3 + $0x88] sm:$0xff]
    %v165 = vld [vmem:[#allocation3 + $0x90] sm:$0xf]
    %v166 = vld [vmem:[#allocation3 + $0x98] sm:$0xf]
    %v167 = vld [vmem:[#allocation3 + $0xa0] sm:$0xf]
    %v168 = vld [vmem:[#allocation3 + $0xa8] sm:$0xf]
    %v169 = vld [vmem:[#allocation3 + $0xb0] sm:$0xf]
    %v170 = vld [vmem:[#allocation3 + $0xb8] sm:$0xf]
    %s171 = scalar_lea.vmem [#allocation3], 192
    %v172 = vld [vmem:[%s171] sm:$0xff]
    %v173 = vld [vmem:[%s171 + $0x8] sm:$0xff]
    %v174 = vld [vmem:[%s171 + $0x10] sm:$0xff]
    %v175 = vld [vmem:[%s171 + $0x18] sm:$0xff]
    %v176 = vld [vmem:[%s171 + $0x20] sm:$0xff]
    %v177 = vld [vmem:[%s171 + $0x28] sm:$0xff]
    %v178 = vld [vmem:[%s171 + $0x30] sm:$0xff]
    %v179 = vld [vmem:[%s171 + $0x38] sm:$0xff]
    %v180 = vld [vmem:[%s171 + $0x40] sm:$0xff]
    %v181 = vld [vmem:[%s171 + $0x48] sm:$0xff]
    %v182 = vld [vmem:[%s171 + $0x50] sm:$0xff]
    %v183 = vld [vmem:[%s171 + $0x58] sm:$0xff]
    %v184 = vld [vmem:[%s171 + $0x60] sm:$0xff]
    %v185 = vld [vmem:[%s171 + $0x68] sm:$0xff]
    %v186 = vld [vmem:[%s171 + $0x70] sm:$0xff]
    %v187 = vld [vmem:[%s171 + $0x78] sm:$0xff]
    %v188 = vld [vmem:[%s171 + $0x80] sm:$0xff]
    %v189 = vld [vmem:[%s171 + $0x88] sm:$0xff]
    %v190 = vld [vmem:[%s171 + $0x90] sm:$0xf]
    %v191 = vld [vmem:[%s171 + $0x98] sm:$0xf]
    %v192 = vld [vmem:[%s171 + $0xa0] sm:$0xf]
    %v193 = vld [vmem:[%s171 + $0xa8] sm:$0xf]
    %v194 = vld [vmem:[%s171 + $0xb0] sm:$0xf]
    %v195 = vld [vmem:[%s171 + $0xb8] sm:$0xf]
    %vm196 = vcmask 228352
    %v198 = vsel %vm196, %v141, 0
    %v201 = vsel %vm196, %v142, 0
    %v204 = vsel %vm196, %v144, 0
    %v207 = vsel %vm196, %v145, 0
    %vm209 = vcmask 1043456
    %v211 = vsel %vm209, %v190, 0
    %v214 = vsel %vm209, %v191, 0
    %v217 = vsel %vm209, %v192, 0
    %v220 = vsel %vm209, %v193, 0
    %v223 = vsel %vm209, %v194, 0
    %v226 = vsel %vm209, %v195, 0
    %228 = vmatprep.subr.mxu0 %v173
    %229 = vmatpush1.msra.mxu0 %v172
    %230 = vmatprep.subr.mxu0 %v179
    %231 = vmatpush1.msra.mxu0 %v178
    %232 = vmatprep.subr.mxu0 %v185
    %233 = vmatpush1.msra.mxu0 %v184
    %234 = vmatprep.subr.mxu0 %v214
    %235 = vmatpush1.msra.mxu0 %v211
    %236 = vmatprep.subr.mxu0 0.0
    %237 = vmatpush1.msra.mxu0 0.0
    %238 = vmatprep.subr.mxu0 0.0
    %239 = vmatpush1.msra.mxu0 0.0
    %240 = vmatprep.subr.mxu0 0.0
    %241 = vmatpush1.msra.mxu0 0.0
    %242 = vmatprep.subr.mxu0 0.0
    %243 = vmatpush1.msra.mxu0 0.0
    %244 = vmatprep.subr.mxu0 0.0
    %245 = vmatpush1.msra.mxu0 0.0
    %246 = vmatprep.subr.mxu0 0.0
    %247 = vmatpush1.msra.mxu0 0.0
    %248 = vmatprep.subr.mxu0 0.0
    %249 = vmatpush1.msra.mxu0 0.0
    %250 = vmatprep.subr.mxu0 0.0
    %251 = vmatpush1.msra.mxu0 0.0
    %252 = vmatprep.subr.mxu0 0.0
    %253 = vmatpush1.msra.mxu0 0.0
    %254 = vmatprep.subr.mxu0 0.0
    %255 = vmatpush1.msra.mxu0 0.0
    %256 = vmatprep.subr.mxu0 0.0
    %257 = vmatpush1.msra.mxu0 0.0
    %258 = vmatprep.subr.mxu0 0.0
    %259 = vmatpush1.msra.mxu0 0.0
    %260 = vmatprep.subr.mxu0 0.0
    %261 = vmatpush1.msra.mxu0 0.0
    %262 = vmatprep.subr.mxu0 0.0
    %263 = vmatpush1.msra.mxu0 0.0
    %264 = vmatprep.subr.mxu0 0.0
    %265 = vmatpush1.msra.mxu0 0.0
    %266 = vmatprep.subr.mxu0 0.0
    %267 = vmatpush1.msra.mxu0 0.0
    %268 = vmatprep.subr.mxu0 0.0
    %269 = vmatpush1.msra.mxu0 0.0
    %270 = vmatprep.subr.mxu0 0.0
    %271 = vmatpush1.msra.mxu0 0.0
    %272 = vmatprep.subr.mxu0 0.0
    %273 = vmatpush1.msra.mxu0 0.0
    %274 = vmatprep.subr.mxu0 0.0
    %275 = vmatpush1.msra.mxu0 0.0
    %276 = vmatprep.subr.mxu0 0.0
    %277 = vmatpush1.msra.mxu0 0.0
    %278 = vmatprep.subr.mxu0 0.0
    %279 = vmatpush1.msra.mxu0 0.0
    %280 = vmatprep.subr.mxu0 0.0
    %281 = vmatpush1.msra.mxu0 0.0
    %282 = vmatprep.subr.mxu0 0.0
    %283 = vmatpush1.msra.mxu0 0.0
    %284 = vmatprep.subr.mxu0 0.0
    %285 = vmatpush1.msra.mxu0 0.0
    %286 = vmatprep.subr.mxu0 0.0
    %287 = vmatpush1.msra.mxu0 0.0
    %288 = vmatprep.subr.mxu0 0.0
    %289 = vmatpush1.msra.mxu0 0.0
    %290 = vmatprep.subr.mxu0 0.0
    %291 = vmatpush1.msra.mxu0 0.0
    %292 = vmatprep.mubr.f32.mxu0 0.0
    %293 = vmatmul.mubr.f32.gmra.mrb[0].mxu0 %v198
    %v294 = vpop.f32.mrb[0].mxu0
    %v295 = vadd.f32 0.0, %v294
    %v296 = vpop.f32.mrb[0].mxu0
    %v297 = vadd.f32 0.0, %v296
    %298 = vmatprep.mubr.f32.mxu0 0.0
    %299 = vmatmul.mubr.f32.gmra.mrb[0].mxu0 %v201
    %v300 = vpop.f32.mrb[0].mxu0
    %v301 = vadd.f32 0.0, %v300
    %v302 = vpop.f32.mrb[0].mxu0
    %v303 = vadd.f32 0.0, %v302
    %304 = vmatprep.mubr.f32.mxu0 0.0
    %305 = vmatmul.mubr.f32.gmra.mrb[0].mxu0 %v204
    %v306 = vpop.f32.mrb[0].mxu0
    %v307 = vadd.f32 0.0, %v306
    %v308 = vpop.f32.mrb[0].mxu0
    %v309 = vadd.f32 0.0, %v308
    %310 = vmatprep.mubr.f32.mxu0 0.0
    %311 = vmatmul.mubr.f32.gmra.mrb[0].mxu0 %v207
    %v312 = vpop.f32.mrb[0].mxu0
    %v313 = vadd.f32 0.0, %v312
    %v314 = vpop.f32.mrb[0].mxu0
    %v315 = vadd.f32 0.0, %v314
    %316 = vdwg.mxu0
    %317 = vmatprep.subr.mxu0 %v175
    %318 = vmatpush1.msra.mxu0 %v174
    %319 = vmatprep.subr.mxu0 %v181
    %320 = vmatpush1.msra.mxu0 %v180
    %321 = vmatprep.subr.mxu0 %v187
    %322 = vmatpush1.msra.mxu0 %v186
    %323 = vmatprep.subr.mxu0 %v220
    %324 = vmatpush1.msra.mxu0 %v217
    %325 = vmatprep.subr.mxu0 0.0
    %326 = vmatpush1.msra.mxu0 0.0
    %327 = vmatprep.subr.mxu0 0.0
    %328 = vmatpush1.msra.mxu0 0.0
    %329 = vmatprep.subr.mxu0 0.0
    %330 = vmatpush1.msra.mxu0 0.0
    %331 = vmatprep.subr.mxu0 0.0
    %332 = vmatpush1.msra.mxu0 0.0
    %333 = vmatprep.subr.mxu0 0.0
    %334 = vmatpush1.msra.mxu0 0.0
    %335 = vmatprep.subr.mxu0 0.0
    %336 = vmatpush1.msra.mxu0 0.0
    %337 = vmatprep.subr.mxu0 0.0
    %338 = vmatpush1.msra.mxu0 0.0
    %339 = vmatprep.subr.mxu0 0.0
    %340 = vmatpush1.msra.mxu0 0.0
    %341 = vmatprep.subr.mxu0 0.0
    %342 = vmatpush1.msra.mxu0 0.0
    %343 = vmatprep.subr.mxu0 0.0
    %344 = vmatpush1.msra.mxu0 0.0
    %345 = vmatprep.subr.mxu0 0.0
    %346 = vmatpush1.msra.mxu0 0.0
    %347 = vmatprep.subr.mxu0 0.0
    %348 = vmatpush1.msra.mxu0 0.0
    %349 = vmatprep.subr.mxu0 0.0
    %350 = vmatpush1.msra.mxu0 0.0
    %351 = vmatprep.subr.mxu0 0.0
    %352 = vmatpush1.msra.mxu0 0.0
    %353 = vmatprep.subr.mxu0 0.0
    %354 = vmatpush1.msra.mxu0 0.0
    %355 = vmatprep.subr.mxu0 0.0
    %356 = vmatpush1.msra.mxu0 0.0
    %357 = vmatprep.subr.mxu0 0.0
    %358 = vmatpush1.msra.mxu0 0.0
    %359 = vmatprep.subr.mxu0 0.0
    %360 = vmatpush1.msra.mxu0 0.0
    %361 = vmatprep.subr.mxu0 0.0
    %362 = vmatpush1.msra.mxu0 0.0
    %363 = vmatprep.subr.mxu0 0.0
    %364 = vmatpush1.msra.mxu0 0.0
    %365 = vmatprep.subr.mxu0 0.0
    %366 = vmatpush1.msra.mxu0 0.0
    %367 = vmatprep.subr.mxu0 0.0
    %368 = vmatpush1.msra.mxu0 0.0
    %369 = vmatprep.subr.mxu0 0.0
    %370 = vmatpush1.msra.mxu0 0.0
    %371 = vmatprep.subr.mxu0 0.0
    %372 = vmatpush1.msra.mxu0 0.0
    %373 = vmatprep.subr.mxu0 0.0
    %374 = vmatpush1.msra.mxu0 0.0
    %375 = vmatprep.subr.mxu0 0.0
    %376 = vmatpush1.msra.mxu0 0.0
    %377 = vmatprep.subr.mxu0 0.0
    %378 = vmatpush1.msra.mxu0 0.0
    %379 = vmatprep.subr.mxu0 0.0
    %380 = vmatpush1.msra.mxu0 0.0
    %381 = vmatprep.mubr.f32.mxu0 0.0
    %382 = vmatmul.mubr.f32.gmra.mrb[0].mxu0 %v198
    %v383 = vpop.f32.mrb[0].mxu0
    %v384 = vadd.f32 0.0, %v383
    %v385 = vpop.f32.mrb[0].mxu0
    %v386 = vadd.f32 0.0, %v385
    %387 = vmatprep.mubr.f32.mxu0 0.0
    %388 = vmatmul.mubr.f32.gmra.mrb[0].mxu0 %v201
    %v389 = vpop.f32.mrb[0].mxu0
    %v390 = vadd.f32 0.0, %v389
    %v391 = vpop.f32.mrb[0].mxu0
    %v392 = vadd.f32 0.0, %v391
    %393 = vmatprep.mubr.f32.mxu0 0.0
    %394 = vmatmul.mubr.f32.gmra.mrb[0].mxu0 %v204
    %v395 = vpop.f32.mrb[0].mxu0
    %v396 = vadd.f32 0.0, %v395
    %v397 = vpop.f32.mrb[0].mxu0
    %v398 = vadd.f32 0.0, %v397
    %399 = vmatprep.mubr.f32.mxu0 0.0
    %400 = vmatmul.mubr.f32.gmra.mrb[0].mxu0 %v207
    %v401 = vpop.f32.mrb[0].mxu0
    %v402 = vadd.f32 0.0, %v401
    %v403 = vpop.f32.mrb[0].mxu0
    %v404 = vadd.f32 0.0, %v403
    %405 = vdwg.mxu0
    %406 = vmatprep.subr.mxu0 %v177
    %407 = vmatpush1.msra.mxu0 %v176
    %408 = vmatprep.subr.mxu0 %v183
    %409 = vmatpush1.msra.mxu0 %v182
    %410 = vmatprep.subr.mxu0 %v189
    %411 = vmatpush1.msra.mxu0 %v188
    %412 = vmatprep.subr.mxu0 %v226
    %413 = vmatpush1.msra.mxu0 %v223
    %414 = vmatprep.subr.mxu0 0.0
    %415 = vmatpush1.msra.mxu0 0.0
    %416 = vmatprep.subr.mxu0 0.0
    %417 = vmatpush1.msra.mxu0 0.0
    %418 = vmatprep.subr.mxu0 0.0
    %419 = vmatpush1.msra.mxu0 0.0
    %420 = vmatprep.subr.mxu0 0.0
    %421 = vmatpush1.msra.mxu0 0.0
    %422 = vmatprep.subr.mxu0 0.0
    %423 = vmatpush1.msra.mxu0 0.0
    %424 = vmatprep.subr.mxu0 0.0
    %425 = vmatpush1.msra.mxu0 0.0
    %426 = vmatprep.subr.mxu0 0.0
    %427 = vmatpush1.msra.mxu0 0.0
    %428 = vmatprep.subr.mxu0 0.0
    %429 = vmatpush1.msra.mxu0 0.0
    %430 = vmatprep.subr.mxu0 0.0
    %431 = vmatpush1.msra.mxu0 0.0
    %432 = vmatprep.subr.mxu0 0.0
    %433 = vmatpush1.msra.mxu0 0.0
    %434 = vmatprep.subr.mxu0 0.0
    %435 = vmatpush1.msra.mxu0 0.0
    %436 = vmatprep.subr.mxu0 0.0
    %437 = vmatpush1.msra.mxu0 0.0
    %438 = vmatprep.subr.mxu0 0.0
    %439 = vmatpush1.msra.mxu0 0.0
    %440 = vmatprep.subr.mxu0 0.0
    %441 = vmatpush1.msra.mxu0 0.0
    %442 = vmatprep.subr.mxu0 0.0
    %443 = vmatpush1.msra.mxu0 0.0
    %444 = vmatprep.subr.mxu0 0.0
    %445 = vmatpush1.msra.mxu0 0.0
    %446 = vmatprep.subr.mxu0 0.0
    %447 = vmatpush1.msra.mxu0 0.0
    %448 = vmatprep.subr.mxu0 0.0
    %449 = vmatpush1.msra.mxu0 0.0
    %450 = vmatprep.subr.mxu0 0.0
    %451 = vmatpush1.msra.mxu0 0.0
    %452 = vmatprep.subr.mxu0 0.0
    %453 = vmatpush1.msra.mxu0 0.0
    %454 = vmatprep.subr.mxu0 0.0
    %455 = vmatpush1.msra.mxu0 0.0
    %456 = vmatprep.subr.mxu0 0.0
    %457 = vmatpush1.msra.mxu0 0.0
    %458 = vmatprep.subr.mxu0 0.0
    %459 = vmatpush1.msra.mxu0 0.0
    %460 = vmatprep.subr.mxu0 0.0
    %461 = vmatpush1.msra.mxu0 0.0
    %462 = vmatprep.subr.mxu0 0.0
    %463 = vmatpush1.msra.mxu0 0.0
    %464 = vmatprep.subr.mxu0 0.0
    %465 = vmatpush1.msra.mxu0 0.0
    %466 = vmatprep.subr.mxu0 0.0
    %467 = vmatpush1.msra.mxu0 0.0
    %468 = vmatprep.subr.mxu0 0.0
    %469 = vmatpush1.msra.mxu0 0.0
    %470 = vmatprep.mubr.f32.mxu0 0.0
    %471 = vmatmul.mubr.f32.gmra.mrb[0].mxu0 %v198
    %v472 = vpop.f32.mrb[0].mxu0
    %v473 = vadd.f32 0.0, %v472
    %v474 = vpop.f32.mrb[0].mxu0
    %v475 = vadd.f32 0.0, %v474
    %476 = vmatprep.mubr.f32.mxu0 0.0
    %477 = vmatmul.mubr.f32.gmra.mrb[0].mxu0 %v201
    %v478 = vpop.f32.mrb[0].mxu0
    %v479 = vadd.f32 0.0, %v478
    %v480 = vpop.f32.mrb[0].mxu0
    %v481 = vadd.f32 0.0, %v480
    %482 = vmatprep.mubr.f32.mxu0 0.0
    %483 = vmatmul.mubr.f32.gmra.mrb[0].mxu0 %v204
    %v484 = vpop.f32.mrb[0].mxu0
    %v485 = vadd.f32 0.0, %v484
    %v486 = vpop.f32.mrb[0].mxu0
    %v487 = vadd.f32 0.0, %v486
    %488 = vmatprep.mubr.f32.mxu0 0.0
    %489 = vmatmul.mubr.f32.gmra.mrb[0].mxu0 %v207
    %v490 = vpop.f32.mrb[0].mxu0
    %v491 = vadd.f32 0.0, %v490
    %v492 = vpop.f32.mrb[0].mxu0
    %v493 = vadd.f32 0.0, %v492
    %494 = vdwg.mxu0
    %v496 = vsel %vm196, %v134, 0
    %v499 = vsel %vm196, %v135, 0
    %v502 = vsel %vm196, %v137, 0
    %v505 = vsel %vm196, %v138, 0
    %v508 = vsel %vm209, %v165, 0
    %v511 = vsel %vm209, %v166, 0
    %v514 = vsel %vm209, %v167, 0
    %v517 = vsel %vm209, %v168, 0
    %v520 = vsel %vm209, %v169, 0
    %v523 = vsel %vm209, %v170, 0
    %525 = vmatprep.subr.mxu0 %v148
    %526 = vmatpush1.msra.mxu0 %v147
    %527 = vmatprep.subr.mxu0 %v154
    %528 = vmatpush1.msra.mxu0 %v153
    %529 = vmatprep.subr.mxu0 %v160
    %530 = vmatpush1.msra.mxu0 %v159
    %531 = vmatprep.subr.mxu0 %v511
    %532 = vmatpush1.msra.mxu0 %v508
    %533 = vmatprep.subr.mxu0 0.0
    %534 = vmatpush1.msra.mxu0 0.0
    %535 = vmatprep.subr.mxu0 0.0
    %536 = vmatpush1.msra.mxu0 0.0
    %537 = vmatprep.subr.mxu0 0.0
    %538 = vmatpush1.msra.mxu0 0.0
    %539 = vmatprep.subr.mxu0 0.0
    %540 = vmatpush1.msra.mxu0 0.0
    %541 = vmatprep.subr.mxu0 0.0
    %542 = vmatpush1.msra.mxu0 0.0
    %543 = vmatprep.subr.mxu0 0.0
    %544 = vmatpush1.msra.mxu0 0.0
    %545 = vmatprep.subr.mxu0 0.0
    %546 = vmatpush1.msra.mxu0 0.0
    %547 = vmatprep.subr.mxu0 0.0
    %548 = vmatpush1.msra.mxu0 0.0
    %549 = vmatprep.subr.mxu0 0.0
    %550 = vmatpush1.msra.mxu0 0.0
    %551 = vmatprep.subr.mxu0 0.0
    %552 = vmatpush1.msra.mxu0 0.0
    %553 = vmatprep.subr.mxu0 0.0
    %554 = vmatpush1.msra.mxu0 0.0
    %555 = vmatprep.subr.mxu0 0.0
    %556 = vmatpush1.msra.mxu0 0.0
    %557 = vmatprep.subr.mxu0 0.0
    %558 = vmatpush1.msra.mxu0 0.0
    %559 = vmatprep.subr.mxu0 0.0
    %560 = vmatpush1.msra.mxu0 0.0
    %561 = vmatprep.subr.mxu0 0.0
    %562 = vmatpush1.msra.mxu0 0.0
    %563 = vmatprep.subr.mxu0 0.0
    %564 = vmatpush1.msra.mxu0 0.0
    %565 = vmatprep.subr.mxu0 0.0
    %566 = vmatpush1.msra.mxu0 0.0
    %567 = vmatprep.subr.mxu0 0.0
    %568 = vmatpush1.msra.mxu0 0.0
    %569 = vmatprep.subr.mxu0 0.0
    %570 = vmatpush1.msra.mxu0 0.0
    %571 = vmatprep.subr.mxu0 0.0
    %572 = vmatpush1.msra.mxu0 0.0
    %573 = vmatprep.subr.mxu0 0.0
    %574 = vmatpush1.msra.mxu0 0.0
    %575 = vmatprep.subr.mxu0 0.0
    %576 = vmatpush1.msra.mxu0 0.0
    %577 = vmatprep.subr.mxu0 0.0
    %578 = vmatpush1.msra.mxu0 0.0
    %579 = vmatprep.subr.mxu0 0.0
    %580 = vmatpush1.msra.mxu0 0.0
    %581 = vmatprep.subr.mxu0 0.0
    %582 = vmatpush1.msra.mxu0 0.0
    %583 = vmatprep.subr.mxu0 0.0
    %584 = vmatpush1.msra.mxu0 0.0
    %585 = vmatprep.subr.mxu0 0.0
    %586 = vmatpush1.msra.mxu0 0.0
    %587 = vmatprep.subr.mxu0 0.0
    %588 = vmatpush1.msra.mxu0 0.0
    %589 = vmatprep.mubr.f32.mxu0 0.0
    %590 = vmatmul.mubr.f32.gmra.mrb[0].mxu0 %v496
    %v591 = vpop.f32.mrb[0].mxu0
    %v592 = vadd.f32 %v295, %v591
    %v593 = vpop.f32.mrb[0].mxu0
    %v594 = vadd.f32 %v297, %v593
    %595 = vmatprep.mubr.f32.mxu0 0.0
    %596 = vmatmul.mubr.f32.gmra.mrb[0].mxu0 %v499
    %v597 = vpop.f32.mrb[0].mxu0
    %v598 = vadd.f32 %v301, %v597
    %v599 = vpop.f32.mrb[0].mxu0
    %v600 = vadd.f32 %v303, %v599
    %601 = vmatprep.mubr.f32.mxu0 0.0
    %602 = vmatmul.mubr.f32.gmra.mrb[0].mxu0 %v502
    %v603 = vpop.f32.mrb[0].mxu0
    %v604 = vadd.f32 %v307, %v603
    %v605 = vpop.f32.mrb[0].mxu0
    %v606 = vadd.f32 %v309, %v605
    %607 = vmatprep.mubr.f32.mxu0 0.0
    %608 = vmatmul.mubr.f32.gmra.mrb[0].mxu0 %v505
    %v609 = vpop.f32.mrb[0].mxu0
    %v610 = vadd.f32 %v313, %v609
    %v611 = vpop.f32.mrb[0].mxu0
    %v612 = vadd.f32 %v315, %v611
    %613 = vdwg.mxu0
    %614 = vmatprep.subr.mxu0 %v150
    %615 = vmatpush1.msra.mxu0 %v149
    %616 = vmatprep.subr.mxu0 %v156
    %617 = vmatpush1.msra.mxu0 %v155
    %618 = vmatprep.subr.mxu0 %v162
    %619 = vmatpush1.msra.mxu0 %v161
    %620 = vmatprep.subr.mxu0 %v517
    %621 = vmatpush1.msra.mxu0 %v514
    %622 = vmatprep.subr.mxu0 0.0
    %623 = vmatpush1.msra.mxu0 0.0
    %624 = vmatprep.subr.mxu0 0.0
    %625 = vmatpush1.msra.mxu0 0.0
    %626 = vmatprep.subr.mxu0 0.0
    %627 = vmatpush1.msra.mxu0 0.0
    %628 = vmatprep.subr.mxu0 0.0
    %629 = vmatpush1.msra.mxu0 0.0
    %630 = vmatprep.subr.mxu0 0.0
    %631 = vmatpush1.msra.mxu0 0.0
    %632 = vmatprep.subr.mxu0 0.0
    %633 = vmatpush1.msra.mxu0 0.0
    %634 = vmatprep.subr.mxu0 0.0
    %635 = vmatpush1.msra.mxu0 0.0
    %636 = vmatprep.subr.mxu0 0.0
    %637 = vmatpush1.msra.mxu0 0.0
    %638 = vmatprep.subr.mxu0 0.0
    %639 = vmatpush1.msra.mxu0 0.0
    %640 = vmatprep.subr.mxu0 0.0
    %641 = vmatpush1.msra.mxu0 0.0
    %642 = vmatprep.subr.mxu0 0.0
    %643 = vmatpush1.msra.mxu0 0.0
    %644 = vmatprep.subr.mxu0 0.0
    %645 = vmatpush1.msra.mxu0 0.0
    %646 = vmatprep.subr.mxu0 0.0
    %647 = vmatpush1.msra.mxu0 0.0
    %648 = vmatprep.subr.mxu0 0.0
    %649 = vmatpush1.msra.mxu0 0.0
    %650 = vmatprep.subr.mxu0 0.0
    %651 = vmatpush1.msra.mxu0 0.0
    %652 = vmatprep.subr.mxu0 0.0
    %653 = vmatpush1.msra.mxu0 0.0
    %654 = vmatprep.subr.mxu0 0.0
    %655 = vmatpush1.msra.mxu0 0.0
    %656 = vmatprep.subr.mxu0 0.0
    %657 = vmatpush1.msra.mxu0 0.0
    %658 = vmatprep.subr.mxu0 0.0
    %659 = vmatpush1.msra.mxu0 0.0
    %660 = vmatprep.subr.mxu0 0.0
    %661 = vmatpush1.msra.mxu0 0.0
    %662 = vmatprep.subr.mxu0 0.0
    %663 = vmatpush1.msra.mxu0 0.0
    %664 = vmatprep.subr.mxu0 0.0
    %665 = vmatpush1.msra.mxu0 0.0
    %666 = vmatprep.subr.mxu0 0.0
    %667 = vmatpush1.msra.mxu0 0.0
    %668 = vmatprep.subr.mxu0 0.0
    %669 = vmatpush1.msra.mxu0 0.0
    %670 = vmatprep.subr.mxu0 0.0
    %671 = vmatpush1.msra.mxu0 0.0
    %672 = vmatprep.subr.mxu0 0.0
    %673 = vmatpush1.msra.mxu0 0.0
    %674 = vmatprep.subr.mxu0 0.0
    %675 = vmatpush1.msra.mxu0 0.0
    %676 = vmatprep.subr.mxu0 0.0
    %677 = vmatpush1.msra.mxu0 0.0
    %678 = vmatprep.mubr.f32.mxu0 0.0
    %679 = vmatmul.mubr.f32.gmra.mrb[0].mxu0 %v496
    %v680 = vpop.f32.mrb[0].mxu0
    %v681 = vadd.f32 %v384, %v680
    %v682 = vpop.f32.mrb[0].mxu0
    %v683 = vadd.f32 %v386, %v682
    %684 = vmatprep.mubr.f32.mxu0 0.0
    %685 = vmatmul.mubr.f32.gmra.mrb[0].mxu0 %v499
    %v686 = vpop.f32.mrb[0].mxu0
    %v687 = vadd.f32 %v390, %v686
    %v688 = vpop.f32.mrb[0].mxu0
    %v689 = vadd.f32 %v392, %v688
    %690 = vmatprep.mubr.f32.mxu0 0.0
    %691 = vmatmul.mubr.f32.gmra.mrb[0].mxu0 %v502
    %v692 = vpop.f32.mrb[0].mxu0
    %v693 = vadd.f32 %v396, %v692
    %v694 = vpop.f32.mrb[0].mxu0
    %v695 = vadd.f32 %v398, %v694
    %696 = vmatprep.mubr.f32.mxu0 0.0
    %697 = vmatmul.mubr.f32.gmra.mrb[0].mxu0 %v505
    %v698 = vpop.f32.mrb[0].mxu0
    %v699 = vadd.f32 %v402, %v698
    %v700 = vpop.f32.mrb[0].mxu0
    %v701 = vadd.f32 %v404, %v700
    %702 = vdwg.mxu0
    %703 = vmatprep.subr.mxu0 %v152
    %704 = vmatpush1.msra.mxu0 %v151
    %705 = vmatprep.subr.mxu0 %v158
    %706 = vmatpush1.msra.mxu0 %v157
    %707 = vmatprep.subr.mxu0 %v164
    %708 = vmatpush1.msra.mxu0 %v163
    %709 = vmatprep.subr.mxu0 %v523
    %710 = vmatpush1.msra.mxu0 %v520
    %711 = vmatprep.subr.mxu0 0.0
    %712 = vmatpush1.msra.mxu0 0.0
    %713 = vmatprep.subr.mxu0 0.0
    %714 = vmatpush1.msra.mxu0 0.0
    %715 = vmatprep.subr.mxu0 0.0
    %716 = vmatpush1.msra.mxu0 0.0
    %717 = vmatprep.subr.mxu0 0.0
    %718 = vmatpush1.msra.mxu0 0.0
    %719 = vmatprep.subr.mxu0 0.0
    %720 = vmatpush1.msra.mxu0 0.0
    %721 = vmatprep.subr.mxu0 0.0
    %722 = vmatpush1.msra.mxu0 0.0
    %723 = vmatprep.subr.mxu0 0.0
    %724 = vmatpush1.msra.mxu0 0.0
    %725 = vmatprep.subr.mxu0 0.0
    %726 = vmatpush1.msra.mxu0 0.0
    %727 = vmatprep.subr.mxu0 0.0
    %728 = vmatpush1.msra.mxu0 0.0
    %729 = vmatprep.subr.mxu0 0.0
    %730 = vmatpush1.msra.mxu0 0.0
    %731 = vmatprep.subr.mxu0 0.0
    %732 = vmatpush1.msra.mxu0 0.0
    %733 = vmatprep.subr.mxu0 0.0
    %734 = vmatpush1.msra.mxu0 0.0
    %735 = vmatprep.subr.mxu0 0.0
    %736 = vmatpush1.msra.mxu0 0.0
    %737 = vmatprep.subr.mxu0 0.0
    %738 = vmatpush1.msra.mxu0 0.0
    %739 = vmatprep.subr.mxu0 0.0
    %740 = vmatpush1.msra.mxu0 0.0
    %741 = vmatprep.subr.mxu0 0.0
    %742 = vmatpush1.msra.mxu0 0.0
    %743 = vmatprep.subr.mxu0 0.0
    %744 = vmatpush1.msra.mxu0 0.0
    %745 = vmatprep.subr.mxu0 0.0
    %746 = vmatpush1.msra.mxu0 0.0
    %747 = vmatprep.subr.mxu0 0.0
    %748 = vmatpush1.msra.mxu0 0.0
    %749 = vmatprep.subr.mxu0 0.0
    %750 = vmatpush1.msra.mxu0 0.0
    %751 = vmatprep.subr.mxu0 0.0
    %752 = vmatpush1.msra.mxu0 0.0
    %753 = vmatprep.subr.mxu0 0.0
    %754 = vmatpush1.msra.mxu0 0.0
    %755 = vmatprep.subr.mxu0 0.0
    %756 = vmatpush1.msra.mxu0 0.0
    %757 = vmatprep.subr.mxu0 0.0
    %758 = vmatpush1.msra.mxu0 0.0
    %759 = vmatprep.subr.mxu0 0.0
    %760 = vmatpush1.msra.mxu0 0.0
    %761 = vmatprep.subr.mxu0 0.0
    %762 = vmatpush1.msra.mxu0 0.0
    %763 = vmatprep.subr.mxu0 0.0
    %764 = vmatpush1.msra.mxu0 0.0
    %765 = vmatprep.subr.mxu0 0.0
    %766 = vmatpush1.msra.mxu0 0.0
    %767 = vmatprep.mubr.f32.mxu0 0.0
    %768 = vmatmul.mubr.f32.gmra.mrb[0].mxu0 %v496
    %v769 = vpop.f32.mrb[0].mxu0
    %v770 = vadd.f32 %v473, %v769
    %v771 = vpop.f32.mrb[0].mxu0
    %v772 = vadd.f32 %v475, %v771
    %773 = vmatprep.mubr.f32.mxu0 0.0
    %774 = vmatmul.mubr.f32.gmra.mrb[0].mxu0 %v499
    %v775 = vpop.f32.mrb[0].mxu0
    %v776 = vadd.f32 %v479, %v775
    %v777 = vpop.f32.mrb[0].mxu0
    %v778 = vadd.f32 %v481, %v777
    %779 = vmatprep.mubr.f32.mxu0 0.0
    %780 = vmatmul.mubr.f32.gmra.mrb[0].mxu0 %v502
    %v781 = vpop.f32.mrb[0].mxu0
    %v782 = vadd.f32 %v485, %v781
    %v783 = vpop.f32.mrb[0].mxu0
    %v784 = vadd.f32 %v487, %v783
    %785 = vmatprep.mubr.f32.mxu0 0.0
    %786 = vmatmul.mubr.f32.gmra.mrb[0].mxu0 %v505
    %v787 = vpop.f32.mrb[0].mxu0
    %v788 = vadd.f32 %v491, %v787
    %v789 = vpop.f32.mrb[0].mxu0
    %v790 = vadd.f32 %v493, %v789
    %791 = vdwg.mxu0
    %vm794 = vcmask 1046528
    %v795 = vrot.slane %v134, 1
    %v796 = vrot.slane %v135, 1
    %v797 = vsel %vm794, %v795, %v796
    %v798 = vrot.slane %v136, 1
    %v799 = vsel %vm794, %v796, %v798
    %v800 = vrot.slane %v137, 1
    %v801 = vrot.slane %v138, 1
    %v802 = vsel %vm794, %v800, %v801
    %v803 = vrot.slane %v139, 1
    %v804 = vsel %vm794, %v801, %v803
    %s805 = scalar_lea.vmem [#allocation3], 384
    %v806 = vld [vmem:[%s805] sm:$0xff]
    %v807 = vld [vmem:[%s805 + $0x8] sm:$0xff]
    %v808 = vld [vmem:[%s805 + $0x10] sm:$0xff]
    %v809 = vld [vmem:[%s805 + $0x18] sm:$0xff]
    %v810 = vld [vmem:[%s805 + $0x20] sm:$0xff]
    %v811 = vld [vmem:[%s805 + $0x28] sm:$0xff]
    %v812 = vld [vmem:[%s805 + $0x30] sm:$0xff]
    %v813 = vld [vmem:[%s805 + $0x38] sm:$0xff]
    %v814 = vld [vmem:[%s805 + $0x40] sm:$0xff]
    %v815 = vld [vmem:[%s805 + $0x48] sm:$0xff]
    %v816 = vld [vmem:[%s805 + $0x50] sm:$0xff]
    %v817 = vld [vmem:[%s805 + $0x58] sm:$0xff]
    %v818 = vld [vmem:[%s805 + $0x60] sm:$0xff]
    %v819 = vld [vmem:[%s805 + $0x68] sm:$0xff]
    %v820 = vld [vmem:[%s805 + $0x70] sm:$0xff]
    %v821 = vld [vmem:[%s805 + $0x78] sm:$0xff]
    %v822 = vld [vmem:[%s805 + $0x80] sm:$0xff]
    %v823 = vld [vmem:[%s805 + $0x88] sm:$0xff]
    %v824 = vld [vmem:[%s805 + $0x90] sm:$0xf]
    %v825 = vld [vmem:[%s805 + $0x98] sm:$0xf]
    %v826 = vld [vmem:[%s805 + $0xa0] sm:$0xf]
    %v827 = vld [vmem:[%s805 + $0xa8] sm:$0xf]
    %v828 = vld [vmem:[%s805 + $0xb0] sm:$0xf]
    %v829 = vld [vmem:[%s805 + $0xb8] sm:$0xf]
    %v830 = vsel %vm196, %v797, 0
    %v832 = vsel %vm196, %v799, 0
    %v834 = vsel %vm196, %v802, 0
    %v836 = vsel %vm196, %v804, 0
    %v839 = vsel %vm209, %v824, 0
    %v842 = vsel %vm209, %v825, 0
    %v845 = vsel %vm209, %v826, 0
    %v848 = vsel %vm209, %v827, 0
    %v851 = vsel %vm209, %v828, 0
    %v854 = vsel %vm209, %v829, 0
    %856 = vmatprep.subr.mxu0 %v807
    %857 = vmatpush1.msra.mxu0 %v806
    %858 = vmatprep.subr.mxu0 %v813
    %859 = vmatpush1.msra.mxu0 %v812
    %860 = vmatprep.subr.mxu0 %v819
    %861 = vmatpush1.msra.mxu0 %v818
    %862 = vmatprep.subr.mxu0 %v842
    %863 = vmatpush1.msra.mxu0 %v839
    %864 = vmatprep.subr.mxu0 0.0
    %865 = vmatpush1.msra.mxu0 0.0
    %866 = vmatprep.subr.mxu0 0.0
    %867 = vmatpush1.msra.mxu0 0.0
    %868 = vmatprep.subr.mxu0 0.0
    %869 = vmatpush1.msra.mxu0 0.0
    %870 = vmatprep.subr.mxu0 0.0
    %871 = vmatpush1.msra.mxu0 0.0
    %872 = vmatprep.subr.mxu0 0.0
    %873 = vmatpush1.msra.mxu0 0.0
    %874 = vmatprep.subr.mxu0 0.0
    %875 = vmatpush1.msra.mxu0 0.0
    %876 = vmatprep.subr.mxu0 0.0
    %877 = vmatpush1.msra.mxu0 0.0
    %878 = vmatprep.subr.mxu0 0.0
    %879 = vmatpush1.msra.mxu0 0.0
    %880 = vmatprep.subr.mxu0 0.0
    %881 = vmatpush1.msra.mxu0 0.0
    %882 = vmatprep.subr.mxu0 0.0
    %883 = vmatpush1.msra.mxu0 0.0
    %884 = vmatprep.subr.mxu0 0.0
    %885 = vmatpush1.msra.mxu0 0.0
    %886 = vmatprep.subr.mxu0 0.0
    %887 = vmatpush1.msra.mxu0 0.0
    %888 = vmatprep.subr.mxu0 0.0
    %889 = vmatpush1.msra.mxu0 0.0
    %890 = vmatprep.subr.mxu0 0.0
    %891 = vmatpush1.msra.mxu0 0.0
    %892 = vmatprep.subr.mxu0 0.0
    %893 = vmatpush1.msra.mxu0 0.0
    %894 = vmatprep.subr.mxu0 0.0
    %895 = vmatpush1.msra.mxu0 0.0
    %896 = vmatprep.subr.mxu0 0.0
    %897 = vmatpush1.msra.mxu0 0.0
    %898 = vmatprep.subr.mxu0 0.0
    %899 = vmatpush1.msra.mxu0 0.0
    %900 = vmatprep.subr.mxu0 0.0
    %901 = vmatpush1.msra.mxu0 0.0
    %902 = vmatprep.subr.mxu0 0.0
    %903 = vmatpush1.msra.mxu0 0.0
    %904 = vmatprep.subr.mxu0 0.0
    %905 = vmatpush1.msra.mxu0 0.0
    %906 = vmatprep.subr.mxu0 0.0
    %907 = vmatpush1.msra.mxu0 0.0
    %908 = vmatprep.subr.mxu0 0.0
    %909 = vmatpush1.msra.mxu0 0.0
    %910 = vmatprep.subr.mxu0 0.0
    %911 = vmatpush1.msra.mxu0 0.0
    %912 = vmatprep.subr.mxu0 0.0
    %913 = vmatpush1.msra.mxu0 0.0
    %914 = vmatprep.subr.mxu0 0.0
    %915 = vmatpush1.msra.mxu0 0.0
    %916 = vmatprep.subr.mxu0 0.0
    %917 = vmatpush1.msra.mxu0 0.0
    %918 = vmatprep.subr.mxu0 0.0
    %919 = vmatpush1.msra.mxu0 0.0
    %920 = vmatprep.mubr.f32.mxu0 0.0
    %921 = vmatmul.mubr.f32.gmra.mrb[0].mxu0 %v830
    %v922 = vpop.f32.mrb[0].mxu0
    %v923 = vadd.f32 0.0, %v922
    %v924 = vpop.f32.mrb[0].mxu0
    %v925 = vadd.f32 0.0, %v924
    %926 = vmatprep.mubr.f32.mxu0 0.0
    %927 = vmatmul.mubr.f32.gmra.mrb[0].mxu0 %v832
    %v928 = vpop.f32.mrb[0].mxu0
    %v929 = vadd.f32 0.0, %v928
    %v930 = vpop.f32.mrb[0].mxu0
    %v931 = vadd.f32 0.0, %v930
    %932 = vmatprep.mubr.f32.mxu0 0.0
    %933 = vmatmul.mubr.f32.gmra.mrb[0].mxu0 %v834
    %v934 = vpop.f32.mrb[0].mxu0
    %v935 = vadd.f32 0.0, %v934
    %v936 = vpop.f32.mrb[0].mxu0
    %v937 = vadd.f32 0.0, %v936
    %938 = vmatprep.mubr.f32.mxu0 0.0
    %939 = vmatmul.mubr.f32.gmra.mrb[0].mxu0 %v836
    %v940 = vpop.f32.mrb[0].mxu0
    %v941 = vadd.f32 0.0, %v940
    %v942 = vpop.f32.mrb[0].mxu0
    %v943 = vadd.f32 0.0, %v942
    %944 = vdwg.mxu0
    %945 = vmatprep.subr.mxu0 %v809
    %946 = vmatpush1.msra.mxu0 %v808
    %947 = vmatprep.subr.mxu0 %v815
    %948 = vmatpush1.msra.mxu0 %v814
    %949 = vmatprep.subr.mxu0 %v821
    %950 = vmatpush1.msra.mxu0 %v820
    %951 = vmatprep.subr.mxu0 %v848
    %952 = vmatpush1.msra.mxu0 %v845
    %953 = vmatprep.subr.mxu0 0.0
    %954 = vmatpush1.msra.mxu0 0.0
    %955 = vmatprep.subr.mxu0 0.0
    %956 = vmatpush1.msra.mxu0 0.0
    %957 = vmatprep.subr.mxu0 0.0
    %958 = vmatpush1.msra.mxu0 0.0
    %959 = vmatprep.subr.mxu0 0.0
    %960 = vmatpush1.msra.mxu0 0.0
    %961 = vmatprep.subr.mxu0 0.0
    %962 = vmatpush1.msra.mxu0 0.0
    %963 = vmatprep.subr.mxu0 0.0
    %964 = vmatpush1.msra.mxu0 0.0
    %965 = vmatprep.subr.mxu0 0.0
    %966 = vmatpush1.msra.mxu0 0.0
    %967 = vmatprep.subr.mxu0 0.0
    %968 = vmatpush1.msra.mxu0 0.0
    %969 = vmatprep.subr.mxu0 0.0
    %970 = vmatpush1.msra.mxu0 0.0
    %971 = vmatprep.subr.mxu0 0.0
    %972 = vmatpush1.msra.mxu0 0.0
    %973 = vmatprep.subr.mxu0 0.0
    %974 = vmatpush1.msra.mxu0 0.0
    %975 = vmatprep.subr.mxu0 0.0
    %976 = vmatpush1.msra.mxu0 0.0
    %977 = vmatprep.subr.mxu0 0.0
    %978 = vmatpush1.msra.mxu0 0.0
    %979 = vmatprep.subr.mxu0 0.0
    %980 = vmatpush1.msra.mxu0 0.0
    %981 = vmatprep.subr.mxu0 0.0
    %982 = vmatpush1.msra.mxu0 0.0
    %983 = vmatprep.subr.mxu0 0.0
    %984 = vmatpush1.msra.mxu0 0.0
    %985 = vmatprep.subr.mxu0 0.0
    %986 = vmatpush1.msra.mxu0 0.0
    %987 = vmatprep.subr.mxu0 0.0
    %988 = vmatpush1.msra.mxu0 0.0
    %989 = vmatprep.subr.mxu0 0.0
    %990 = vmatpush1.msra.mxu0 0.0
    %991 = vmatprep.subr.mxu0 0.0
    %992 = vmatpush1.msra.mxu0 0.0
    %993 = vmatprep.subr.mxu0 0.0
    %994 = vmatpush1.msra.mxu0 0.0
    %995 = vmatprep.subr.mxu0 0.0
    %996 = vmatpush1.msra.mxu0 0.0
    %997 = vmatprep.subr.mxu0 0.0
    %998 = vmatpush1.msra.mxu0 0.0
    %999 = vmatprep.subr.mxu0 0.0
    %1000 = vmatpush1.msra.mxu0 0.0
    %1001 = vmatprep.subr.mxu0 0.0
    %1002 = vmatpush1.msra.mxu0 0.0
    %1003 = vmatprep.subr.mxu0 0.0
    %1004 = vmatpush1.msra.mxu0 0.0
    %1005 = vmatprep.subr.mxu0 0.0
    %1006 = vmatpush1.msra.mxu0 0.0
    %1007 = vmatprep.subr.mxu0 0.0
    %1008 = vmatpush1.msra.mxu0 0.0
    %1009 = vmatprep.mubr.f32.mxu0 0.0
    %1010 = vmatmul.mubr.f32.gmra.mrb[0].mxu0 %v830
    %v1011 = vpop.f32.mrb[0].mxu0
    %v1012 = vadd.f32 0.0, %v1011
    %v1013 = vpop.f32.mrb[0].mxu0
    %v1014 = vadd.f32 0.0, %v1013
    %1015 = vmatprep.mubr.f32.mxu0 0.0
    %1016 = vmatmul.mubr.f32.gmra.mrb[0].mxu0 %v832
    %v1017 = vpop.f32.mrb[0].mxu0
    %v1018 = vadd.f32 0.0, %v1017
    %v1019 = vpop.f32.mrb[0].mxu0
    %v1020 = vadd.f32 0.0, %v1019
    %1021 = vmatprep.mubr.f32.mxu0 0.0
    %1022 = vmatmul.mubr.f32.gmra.mrb[0].mxu0 %v834
    %v1023 = vpop.f32.mrb[0].mxu0
    %v1024 = vadd.f32 0.0, %v1023
    %v1025 = vpop.f32.mrb[0].mxu0
    %v1026 = vadd.f32 0.0, %v1025
    %1027 = vmatprep.mubr.f32.mxu0 0.0
    %1028 = vmatmul.mubr.f32.gmra.mrb[0].mxu0 %v836
    %v1029 = vpop.f32.mrb[0].mxu0
    %v1030 = vadd.f32 0.0, %v1029
    %v1031 = vpop.f32.mrb[0].mxu0
    %v1032 = vadd.f32 0.0, %v1031
    %1033 = vdwg.mxu0
    %1034 = vmatprep.subr.mxu0 %v811
    %1035 = vmatpush1.msra.mxu0 %v810
    %1036 = vmatprep.subr.mxu0 %v817
    %1037 = vmatpush1.msra.mxu0 %v816
    %1038 = vmatprep.subr.mxu0 %v823
    %1039 = vmatpush1.msra.mxu0 %v822
    %1040 = vmatprep.subr.mxu0 %v854
    %1041 = vmatpush1.msra.mxu0 %v851
    %1042 = vmatprep.subr.mxu0 0.0
    %1043 = vmatpush1.msra.mxu0 0.0
    %1044 = vmatprep.subr.mxu0 0.0
    %1045 = vmatpush1.msra.mxu0 0.0
    %1046 = vmatprep.subr.mxu0 0.0
    %1047 = vmatpush1.msra.mxu0 0.0
    %1048 = vmatprep.subr.mxu0 0.0
    %1049 = vmatpush1.msra.mxu0 0.0
    %1050 = vmatprep.subr.mxu0 0.0
    %1051 = vmatpush1.msra.mxu0 0.0
    %1052 = vmatprep.subr.mxu0 0.0
    %1053 = vmatpush1.msra.mxu0 0.0
    %1054 = vmatprep.subr.mxu0 0.0
    %1055 = vmatpush1.msra.mxu0 0.0
    %1056 = vmatprep.subr.mxu0 0.0
    %1057 = vmatpush1.msra.mxu0 0.0
    %1058 = vmatprep.subr.mxu0 0.0
    %1059 = vmatpush1.msra.mxu0 0.0
    %1060 = vmatprep.subr.mxu0 0.0
    %1061 = vmatpush1.msra.mxu0 0.0
    %1062 = vmatprep.subr.mxu0 0.0
    %1063 = vmatpush1.msra.mxu0 0.0
    %1064 = vmatprep.subr.mxu0 0.0
    %1065 = vmatpush1.msra.mxu0 0.0
    %1066 = vmatprep.subr.mxu0 0.0
    %1067 = vmatpush1.msra.mxu0 0.0
    %1068 = vmatprep.subr.mxu0 0.0
    %1069 = vmatpush1.msra.mxu0 0.0
    %1070 = vmatprep.subr.mxu0 0.0
    %1071 = vmatpush1.msra.mxu0 0.0
    %1072 = vmatprep.subr.mxu0 0.0
    %1073 = vmatpush1.msra.mxu0 0.0
    %1074 = vmatprep.subr.mxu0 0.0
    %1075 = vmatpush1.msra.mxu0 0.0
    %1076 = vmatprep.subr.mxu0 0.0
    %1077 = vmatpush1.msra.mxu0 0.0
    %1078 = vmatprep.subr.mxu0 0.0
    %1079 = vmatpush1.msra.mxu0 0.0
    %1080 = vmatprep.subr.mxu0 0.0
    %1081 = vmatpush1.msra.mxu0 0.0
    %1082 = vmatprep.subr.mxu0 0.0
    %1083 = vmatpush1.msra.mxu0 0.0
    %1084 = vmatprep.subr.mxu0 0.0
    %1085 = vmatpush1.msra.mxu0 0.0
    %1086 = vmatprep.subr.mxu0 0.0
    %1087 = vmatpush1.msra.mxu0 0.0
    %1088 = vmatprep.subr.mxu0 0.0
    %1089 = vmatpush1.msra.mxu0 0.0
    %1090 = vmatprep.subr.mxu0 0.0
    %1091 = vmatpush1.msra.mxu0 0.0
    %1092 = vmatprep.subr.mxu0 0.0
    %1093 = vmatpush1.msra.mxu0 0.0
    %1094 = vmatprep.subr.mxu0 0.0
    %1095 = vmatpush1.msra.mxu0 0.0
    %1096 = vmatprep.subr.mxu0 0.0
    %1097 = vmatpush1.msra.mxu0 0.0
    %1098 = vmatprep.mubr.f32.mxu0 0.0
    %1099 = vmatmul.mubr.f32.gmra.mrb[0].mxu0 %v830
    %v1100 = vpop.f32.mrb[0].mxu0
    %v1101 = vadd.f32 0.0, %v1100
    %v1102 = vpop.f32.mrb[0].mxu0
    %v1103 = vadd.f32 0.0, %v1102
    %1104 = vmatprep.mubr.f32.mxu0 0.0
    %1105 = vmatmul.mubr.f32.gmra.mrb[0].mxu0 %v832
    %v1106 = vpop.f32.mrb[0].mxu0
    %v1107 = vadd.f32 0.0, %v1106
    %v1108 = vpop.f32.mrb[0].mxu0
    %v1109 = vadd.f32 0.0, %v1108
    %1110 = vmatprep.mubr.f32.mxu0 0.0
    %1111 = vmatmul.mubr.f32.gmra.mrb[0].mxu0 %v834
    %v1112 = vpop.f32.mrb[0].mxu0
    %v1113 = vadd.f32 0.0, %v1112
    %v1114 = vpop.f32.mrb[0].mxu0
    %v1115 = vadd.f32 0.0, %v1114
    %1116 = vmatprep.mubr.f32.mxu0 0.0
    %1117 = vmatmul.mubr.f32.gmra.mrb[0].mxu0 %v836
    %v1118 = vpop.f32.mrb[0].mxu0
    %v1119 = vadd.f32 0.0, %v1118
    %v1120 = vpop.f32.mrb[0].mxu0
    %v1121 = vadd.f32 0.0, %v1120
    %1122 = vdwg.mxu0
    %v1123 = vadd.f32 %v592, %v923
    %v1124 = vadd.f32 %v594, %v925
    %v1125 = vadd.f32 %v681, %v1012
    %v1126 = vadd.f32 %v683, %v1014
    %v1127 = vadd.f32 %v770, %v1101
    %v1128 = vadd.f32 %v772, %v1103
    %v1129 = vadd.f32 %v598, %v929
    %v1130 = vadd.f32 %v600, %v931
    %v1131 = vadd.f32 %v687, %v1018
    %v1132 = vadd.f32 %v689, %v1020
    %v1133 = vadd.f32 %v776, %v1107
    %v1134 = vadd.f32 %v778, %v1109
    %v1135 = vadd.f32 %v604, %v935
    %v1136 = vadd.f32 %v606, %v937
    %v1137 = vadd.f32 %v693, %v1024
    %v1138 = vadd.f32 %v695, %v1026
    %v1139 = vadd.f32 %v782, %v1113
    %v1140 = vadd.f32 %v784, %v1115
    %v1141 = vadd.f32 %v610, %v941
    %v1142 = vadd.f32 %v612, %v943
    %v1143 = vadd.f32 %v699, %v1030
    %v1144 = vadd.f32 %v701, %v1032
    %v1145 = vadd.f32 %v788, %v1119
    %v1146 = vadd.f32 %v790, %v1121
    %v1149 = vrot.slane %v141, 1
    %v1150 = vrot.slane %v142, 1
    %v1151 = vsel %vm794, %v1149, %v1150
    %v1152 = vrot.slane %v143, 1
    %v1153 = vsel %vm794, %v1150, %v1152
    %v1154 = vrot.slane %v144, 1
    %v1155 = vrot.slane %v145, 1
    %v1156 = vsel %vm794, %v1154, %v1155
    %v1157 = vrot.slane %v146, 1
    %v1158 = vsel %vm794, %v1155, %v1157
    %s1159 = scalar_lea.vmem [#allocation3], 576
    %v1160 = vld [vmem:[%s1159] sm:$0xff]
    %v1161 = vld [vmem:[%s1159 + $0x8] sm:$0xff]
    %v1162 = vld [vmem:[%s1159 + $0x10] sm:$0xff]
    %v1163 = vld [vmem:[%s1159 + $0x18] sm:$0xff]
    %v1164 = vld [vmem:[%s1159 + $0x20] sm:$0xff]
    %v1165 = vld [vmem:[%s1159 + $0x28] sm:$0xff]
    %v1166 = vld [vmem:[%s1159 + $0x30] sm:$0xff]
    %v1167 = vld [vmem:[%s1159 + $0x38] sm:$0xff]
    %v1168 = vld [vmem:[%s1159 + $0x40] sm:$0xff]
    %v1169 = vld [vmem:[%s1159 + $0x48] sm:$0xff]
    %v1170 = vld [vmem:[%s1159 + $0x50] sm:$0xff]
    %v1171 = vld [vmem:[%s1159 + $0x58] sm:$0xff]
    %v1172 = vld [vmem:[%s1159 + $0x60] sm:$0xff]
    %v1173 = vld [vmem:[%s1159 + $0x68] sm:$0xff]
    %v1174 = vld [vmem:[%s1159 + $0x70] sm:$0xff]
    %v1175 = vld [vmem:[%s1159 + $0x78] sm:$0xff]
    %v1176 = vld [vmem:[%s1159 + $0x80] sm:$0xff]
    %v1177 = vld [vmem:[%s1159 + $0x88] sm:$0xff]
    %v1178 = vld [vmem:[%s1159 + $0x90] sm:$0xf]
    %v1179 = vld [vmem:[%s1159 + $0x98] sm:$0xf]
    %v1180 = vld [vmem:[%s1159 + $0xa0] sm:$0xf]
    %v1181 = vld [vmem:[%s1159 + $0xa8] sm:$0xf]
    %v1182 = vld [vmem:[%s1159 + $0xb0] sm:$0xf]
    %v1183 = vld [vmem:[%s1159 + $0xb8] sm:$0xf]
    %v1184 = vsel %vm196, %v1151, 0
    %v1186 = vsel %vm196, %v1153, 0
    %v1188 = vsel %vm196, %v1156, 0
    %v1190 = vsel %vm196, %v1158, 0
    %v1193 = vsel %vm209, %v1178, 0
    %v1196 = vsel %vm209, %v1179, 0
    %v1199 = vsel %vm209, %v1180, 0
    %v1202 = vsel %vm209, %v1181, 0
    %v1205 = vsel %vm209, %v1182, 0
    %v1208 = vsel %vm209, %v1183, 0
    %1210 = vmatprep.subr.mxu0 %v1161
    %1211 = vmatpush1.msra.mxu0 %v1160
    %1212 = vmatprep.subr.mxu0 %v1167
    %1213 = vmatpush1.msra.mxu0 %v1166
    %1214 = vmatprep.subr.mxu0 %v1173
    %1215 = vmatpush1.msra.mxu0 %v1172
    %1216 = vmatprep.subr.mxu0 %v1196
    %1217 = vmatpush1.msra.mxu0 %v1193
    %1218 = vmatprep.subr.mxu0 0.0
    %1219 = vmatpush1.msra.mxu0 0.0
    %1220 = vmatprep.subr.mxu0 0.0
    %1221 = vmatpush1.msra.mxu0 0.0
    %1222 = vmatprep.subr.mxu0 0.0
    %1223 = vmatpush1.msra.mxu0 0.0
    %1224 = vmatprep.subr.mxu0 0.0
    %1225 = vmatpush1.msra.mxu0 0.0
    %1226 = vmatprep.subr.mxu0 0.0
    %1227 = vmatpush1.msra.mxu0 0.0
    %1228 = vmatprep.subr.mxu0 0.0
    %1229 = vmatpush1.msra.mxu0 0.0
    %1230 = vmatprep.subr.mxu0 0.0
    %1231 = vmatpush1.msra.mxu0 0.0
    %1232 = vmatprep.subr.mxu0 0.0
    %1233 = vmatpush1.msra.mxu0 0.0
    %1234 = vmatprep.subr.mxu0 0.0
    %1235 = vmatpush1.msra.mxu0 0.0
    %1236 = vmatprep.subr.mxu0 0.0
    %1237 = vmatpush1.msra.mxu0 0.0
    %1238 = vmatprep.subr.mxu0 0.0
    %1239 = vmatpush1.msra.mxu0 0.0
    %1240 = vmatprep.subr.mxu0 0.0
    %1241 = vmatpush1.msra.mxu0 0.0
    %1242 = vmatprep.subr.mxu0 0.0
    %1243 = vmatpush1.msra.mxu0 0.0
    %1244 = vmatprep.subr.mxu0 0.0
    %1245 = vmatpush1.msra.mxu0 0.0
    %1246 = vmatprep.subr.mxu0 0.0
    %1247 = vmatpush1.msra.mxu0 0.0
    %1248 = vmatprep.subr.mxu0 0.0
    %1249 = vmatpush1.msra.mxu0 0.0
    %1250 = vmatprep.subr.mxu0 0.0
    %1251 = vmatpush1.msra.mxu0 0.0
    %1252 = vmatprep.subr.mxu0 0.0
    %1253 = vmatpush1.msra.mxu0 0.0
    %1254 = vmatprep.subr.mxu0 0.0
    %1255 = vmatpush1.msra.mxu0 0.0
    %1256 = vmatprep.subr.mxu0 0.0
    %1257 = vmatpush1.msra.mxu0 0.0
    %1258 = vmatprep.subr.mxu0 0.0
    %1259 = vmatpush1.msra.mxu0 0.0
    %1260 = vmatprep.subr.mxu0 0.0
    %1261 = vmatpush1.msra.mxu0 0.0
    %1262 = vmatprep.subr.mxu0 0.0
    %1263 = vmatpush1.msra.mxu0 0.0
    %1264 = vmatprep.subr.mxu0 0.0
    %1265 = vmatpush1.msra.mxu0 0.0
    %1266 = vmatprep.subr.mxu0 0.0
    %1267 = vmatpush1.msra.mxu0 0.0
    %1268 = vmatprep.subr.mxu0 0.0
    %1269 = vmatpush1.msra.mxu0 0.0
    %1270 = vmatprep.subr.mxu0 0.0
    %1271 = vmatpush1.msra.mxu0 0.0
    %1272 = vmatprep.subr.mxu0 0.0
    %1273 = vmatpush1.msra.mxu0 0.0
    %1274 = vmatprep.mubr.f32.mxu0 0.0
    %1275 = vmatmul.mubr.f32.gmra.mrb[0].mxu0 %v1184
    %v1276 = vpop.f32.mrb[0].mxu0
    %v1277 = vadd.f32 0.0, %v1276
    %v1278 = vpop.f32.mrb[0].mxu0
    %v1279 = vadd.f32 0.0, %v1278
    %1280 = vmatprep.mubr.f32.mxu0 0.0
    %1281 = vmatmul.mubr.f32.gmra.mrb[0].mxu0 %v1186
    %v1282 = vpop.f32.mrb[0].mxu0
    %v1283 = vadd.f32 0.0, %v1282
    %v1284 = vpop.f32.mrb[0].mxu0
    %v1285 = vadd.f32 0.0, %v1284
    %1286 = vmatprep.mubr.f32.mxu0 0.0
    %1287 = vmatmul.mubr.f32.gmra.mrb[0].mxu0 %v1188
    %v1288 = vpop.f32.mrb[0].mxu0
    %v1289 = vadd.f32 0.0, %v1288
    %v1290 = vpop.f32.mrb[0].mxu0
    %v1291 = vadd.f32 0.0, %v1290
    %1292 = vmatprep.mubr.f32.mxu0 0.0
    %1293 = vmatmul.mubr.f32.gmra.mrb[0].mxu0 %v1190
    %v1294 = vpop.f32.mrb[0].mxu0
    %v1295 = vadd.f32 0.0, %v1294
    %v1296 = vpop.f32.mrb[0].mxu0
    %v1297 = vadd.f32 0.0, %v1296
    %1298 = vdwg.mxu0
    %1299 = vmatprep.subr.mxu0 %v1163
    %1300 = vmatpush1.msra.mxu0 %v1162
    %1301 = vmatprep.subr.mxu0 %v1169
    %1302 = vmatpush1.msra.mxu0 %v1168
    %1303 = vmatprep.subr.mxu0 %v1175
    %1304 = vmatpush1.msra.mxu0 %v1174
    %1305 = vmatprep.subr.mxu0 %v1202
    %1306 = vmatpush1.msra.mxu0 %v1199
    %1307 = vmatprep.subr.mxu0 0.0
    %1308 = vmatpush1.msra.mxu0 0.0
    %1309 = vmatprep.subr.mxu0 0.0
    %1310 = vmatpush1.msra.mxu0 0.0
    %1311 = vmatprep.subr.mxu0 0.0
    %1312 = vmatpush1.msra.mxu0 0.0
    %1313 = vmatprep.subr.mxu0 0.0
    %1314 = vmatpush1.msra.mxu0 0.0
    %1315 = vmatprep.subr.mxu0 0.0
    %1316 = vmatpush1.msra.mxu0 0.0
    %1317 = vmatprep.subr.mxu0 0.0
    %1318 = vmatpush1.msra.mxu0 0.0
    %1319 = vmatprep.subr.mxu0 0.0
    %1320 = vmatpush1.msra.mxu0 0.0
    %1321 = vmatprep.subr.mxu0 0.0
    %1322 = vmatpush1.msra.mxu0 0.0
    %1323 = vmatprep.subr.mxu0 0.0
    %1324 = vmatpush1.msra.mxu0 0.0
    %1325 = vmatprep.subr.mxu0 0.0
    %1326 = vmatpush1.msra.mxu0 0.0
    %1327 = vmatprep.subr.mxu0 0.0
    %1328 = vmatpush1.msra.mxu0 0.0
    %1329 = vmatprep.subr.mxu0 0.0
    %1330 = vmatpush1.msra.mxu0 0.0
    %1331 = vmatprep.subr.mxu0 0.0
    %1332 = vmatpush1.msra.mxu0 0.0
    %1333 = vmatprep.subr.mxu0 0.0
    %1334 = vmatpush1.msra.mxu0 0.0
    %1335 = vmatprep.subr.mxu0 0.0
    %1336 = vmatpush1.msra.mxu0 0.0
    %1337 = vmatprep.subr.mxu0 0.0
    %1338 = vmatpush1.msra.mxu0 0.0
    %1339 = vmatprep.subr.mxu0 0.0
    %1340 = vmatpush1.msra.mxu0 0.0
    %1341 = vmatprep.subr.mxu0 0.0
    %1342 = vmatpush1.msra.mxu0 0.0
    %1343 = vmatprep.subr.mxu0 0.0
    %1344 = vmatpush1.msra.mxu0 0.0
    %1345 = vmatprep.subr.mxu0 0.0
    %1346 = vmatpush1.msra.mxu0 0.0
    %1347 = vmatprep.subr.mxu0 0.0
    %1348 = vmatpush1.msra.mxu0 0.0
    %1349 = vmatprep.subr.mxu0 0.0
    %1350 = vmatpush1.msra.mxu0 0.0
    %1351 = vmatprep.subr.mxu0 0.0
    %1352 = vmatpush1.msra.mxu0 0.0
    %1353 = vmatprep.subr.mxu0 0.0
    %1354 = vmatpush1.msra.mxu0 0.0
    %1355 = vmatprep.subr.mxu0 0.0
    %1356 = vmatpush1.msra.mxu0 0.0
    %1357 = vmatprep.subr.mxu0 0.0
    %1358 = vmatpush1.msra.mxu0 0.0
    %1359 = vmatprep.subr.mxu0 0.0
    %1360 = vmatpush1.msra.mxu0 0.0
    %1361 = vmatprep.subr.mxu0 0.0
    %1362 = vmatpush1.msra.mxu0 0.0
    %1363 = vmatprep.mubr.f32.mxu0 0.0
    %1364 = vmatmul.mubr.f32.gmra.mrb[0].mxu0 %v1184
    %v1365 = vpop.f32.mrb[0].mxu0
    %v1366 = vadd.f32 0.0, %v1365
    %v1367 = vpop.f32.mrb[0].mxu0
    %v1368 = vadd.f32 0.0, %v1367
    %1369 = vmatprep.mubr.f32.mxu0 0.0
    %1370 = vmatmul.mubr.f32.gmra.mrb[0].mxu0 %v1186
    %v1371 = vpop.f32.mrb[0].mxu0
    %v1372 = vadd.f32 0.0, %v1371
    %v1373 = vpop.f32.mrb[0].mxu0
    %v1374 = vadd.f32 0.0, %v1373
    %1375 = vmatprep.mubr.f32.mxu0 0.0
    %1376 = vmatmul.mubr.f32.gmra.mrb[0].mxu0 %v1188
    %v1377 = vpop.f32.mrb[0].mxu0
    %v1378 = vadd.f32 0.0, %v1377
    %v1379 = vpop.f32.mrb[0].mxu0
    %v1380 = vadd.f32 0.0, %v1379
    %1381 = vmatprep.mubr.f32.mxu0 0.0
    %1382 = vmatmul.mubr.f32.gmra.mrb[0].mxu0 %v1190
    %v1383 = vpop.f32.mrb[0].mxu0
    %v1384 = vadd.f32 0.0, %v1383
    %v1385 = vpop.f32.mrb[0].mxu0
    %v1386 = vadd.f32 0.0, %v1385
    %1387 = vdwg.mxu0
    %1388 = vmatprep.subr.mxu0 %v1165
    %1389 = vmatpush1.msra.mxu0 %v1164
    %1390 = vmatprep.subr.mxu0 %v1171
    %1391 = vmatpush1.msra.mxu0 %v1170
    %1392 = vmatprep.subr.mxu0 %v1177
    %1393 = vmatpush1.msra.mxu0 %v1176
    %1394 = vmatprep.subr.mxu0 %v1208
    %1395 = vmatpush1.msra.mxu0 %v1205
    %1396 = vmatprep.subr.mxu0 0.0
    %1397 = vmatpush1.msra.mxu0 0.0
    %1398 = vmatprep.subr.mxu0 0.0
    %1399 = vmatpush1.msra.mxu0 0.0
    %1400 = vmatprep.subr.mxu0 0.0
    %1401 = vmatpush1.msra.mxu0 0.0
    %1402 = vmatprep.subr.mxu0 0.0
    %1403 = vmatpush1.msra.mxu0 0.0
    %1404 = vmatprep.subr.mxu0 0.0
    %1405 = vmatpush1.msra.mxu0 0.0
    %1406 = vmatprep.subr.mxu0 0.0
    %1407 = vmatpush1.msra.mxu0 0.0
    %1408 = vmatprep.subr.mxu0 0.0
    %1409 = vmatpush1.msra.mxu0 0.0
    %1410 = vmatprep.subr.mxu0 0.0
    %1411 = vmatpush1.msra.mxu0 0.0
    %1412 = vmatprep.subr.mxu0 0.0
    %1413 = vmatpush1.msra.mxu0 0.0
    %1414 = vmatprep.subr.mxu0 0.0
    %1415 = vmatpush1.msra.mxu0 0.0
    %1416 = vmatprep.subr.mxu0 0.0
    %1417 = vmatpush1.msra.mxu0 0.0
    %1418 = vmatprep.subr.mxu0 0.0
    %1419 = vmatpush1.msra.mxu0 0.0
    %1420 = vmatprep.subr.mxu0 0.0
    %1421 = vmatpush1.msra.mxu0 0.0
    %1422 = vmatprep.subr.mxu0 0.0
    %1423 = vmatpush1.msra.mxu0 0.0
    %1424 = vmatprep.subr.mxu0 0.0
    %1425 = vmatpush1.msra.mxu0 0.0
    %1426 = vmatprep.subr.mxu0 0.0
    %1427 = vmatpush1.msra.mxu0 0.0
    %1428 = vmatprep.subr.mxu0 0.0
    %1429 = vmatpush1.msra.mxu0 0.0
    %1430 = vmatprep.subr.mxu0 0.0
    %1431 = vmatpush1.msra.mxu0 0.0
    %1432 = vmatprep.subr.mxu0 0.0
    %1433 = vmatpush1.msra.mxu0 0.0
    %1434 = vmatprep.subr.mxu0 0.0
    %1435 = vmatpush1.msra.mxu0 0.0
    %1436 = vmatprep.subr.mxu0 0.0
    %1437 = vmatpush1.msra.mxu0 0.0
    %1438 = vmatprep.subr.mxu0 0.0
    %1439 = vmatpush1.msra.mxu0 0.0
    %1440 = vmatprep.subr.mxu0 0.0
    %1441 = vmatpush1.msra.mxu0 0.0
    %1442 = vmatprep.subr.mxu0 0.0
    %1443 = vmatpush1.msra.mxu0 0.0
    %1444 = vmatprep.subr.mxu0 0.0
    %1445 = vmatpush1.msra.mxu0 0.0
    %1446 = vmatprep.subr.mxu0 0.0
    %1447 = vmatpush1.msra.mxu0 0.0
    %1448 = vmatprep.subr.mxu0 0.0
    %1449 = vmatpush1.msra.mxu0 0.0
    %1450 = vmatprep.subr.mxu0 0.0
    %1451 = vmatpush1.msra.mxu0 0.0
    %1452 = vmatprep.mubr.f32.mxu0 0.0
    %1453 = vmatmul.mubr.f32.gmra.mrb[0].mxu0 %v1184
    %v1454 = vpop.f32.mrb[0].mxu0
    %v1455 = vadd.f32 0.0, %v1454
    %v1456 = vpop.f32.mrb[0].mxu0
    %v1457 = vadd.f32 0.0, %v1456
    %1458 = vmatprep.mubr.f32.mxu0 0.0
    %1459 = vmatmul.mubr.f32.gmra.mrb[0].mxu0 %v1186
    %v1460 = vpop.f32.mrb[0].mxu0
    %v1461 = vadd.f32 0.0, %v1460
    %v1462 = vpop.f32.mrb[0].mxu0
    %v1463 = vadd.f32 0.0, %v1462
    %1464 = vmatprep.mubr.f32.mxu0 0.0
    %1465 = vmatmul.mubr.f32.gmra.mrb[0].mxu0 %v1188
    %v1466 = vpop.f32.mrb[0].mxu0
    %v1467 = vadd.f32 0.0, %v1466
    %v1468 = vpop.f32.mrb[0].mxu0
    %v1469 = vadd.f32 0.0, %v1468
    %1470 = vmatprep.mubr.f32.mxu0 0.0
    %1471 = vmatmul.mubr.f32.gmra.mrb[0].mxu0 %v1190
    %v1472 = vpop.f32.mrb[0].mxu0
    %v1473 = vadd.f32 0.0, %v1472
    %v1474 = vpop.f32.mrb[0].mxu0
    %v1475 = vadd.f32 0.0, %v1474
    %1476 = vdwg.mxu0
    %v1477 = vadd.f32 %v1123, %v1277
    %v1478 = vadd.f32 %v1124, %v1279
    %v1479 = vadd.f32 %v1125, %v1366
    %v1480 = vadd.f32 %v1126, %v1368
    %v1481 = vadd.f32 %v1127, %v1455
    %v1482 = vadd.f32 %v1128, %v1457
    %v1483 = vadd.f32 %v1129, %v1283
    %v1484 = vadd.f32 %v1130, %v1285
    %v1485 = vadd.f32 %v1131, %v1372
    %v1486 = vadd.f32 %v1132, %v1374
    %v1487 = vadd.f32 %v1133, %v1461
    %v1488 = vadd.f32 %v1134, %v1463
    %v1489 = vadd.f32 %v1135, %v1289
    %v1490 = vadd.f32 %v1136, %v1291
    %v1491 = vadd.f32 %v1137, %v1378
    %v1492 = vadd.f32 %v1138, %v1380
    %v1493 = vadd.f32 %v1139, %v1467
    %v1494 = vadd.f32 %v1140, %v1469
    %v1495 = vadd.f32 %v1141, %v1295
    %v1496 = vadd.f32 %v1142, %v1297
    %v1497 = vadd.f32 %v1143, %v1384
    %v1498 = vadd.f32 %v1144, %v1386
    %v1499 = vadd.f32 %v1145, %v1473
    %v1500 = vadd.f32 %v1146, %v1475
    %vm1501 = vcmask 1045504
    %v1502 = vrot.slane %v134, 2
    %v1503 = vrot.slane %v135, 2
    %v1504 = vsel %vm1501, %v1502, %v1503
    %v1505 = vrot.slane %v136, 2
    %v1506 = vsel %vm1501, %v1503, %v1505
    %v1507 = vrot.slane %v137, 2
    %v1508 = vrot.slane %v138, 2
    %v1509 = vsel %vm1501, %v1507, %v1508
    %v1510 = vrot.slane %v139, 2
    %v1511 = vsel %vm1501, %v1508, %v1510
    %s1512 = scalar_lea.vmem [#allocation3], 768
    %v1513 = vld [vmem:[%s1512] sm:$0xff]
    %v1514 = vld [vmem:[%s1512 + $0x8] sm:$0xff]
    %v1515 = vld [vmem:[%s1512 + $0x10] sm:$0xff]
    %v1516 = vld [vmem:[%s1512 + $0x18] sm:$0xff]
    %v1517 = vld [vmem:[%s1512 + $0x20] sm:$0xff]
    %v1518 = vld [vmem:[%s1512 + $0x28] sm:$0xff]
    %v1519 = vld [vmem:[%s1512 + $0x30] sm:$0xff]
    %v1520 = vld [vmem:[%s1512 + $0x38] sm:$0xff]
    %v1521 = vld [vmem:[%s1512 + $0x40] sm:$0xff]
    %v1522 = vld [vmem:[%s1512 + $0x48] sm:$0xff]
    %v1523 = vld [vmem:[%s1512 + $0x50] sm:$0xff]
    %v1524 = vld [vmem:[%s1512 + $0x58] sm:$0xff]
    %v1525 = vld [vmem:[%s1512 + $0x60] sm:$0xff]
    %v1526 = vld [vmem:[%s1512 + $0x68] sm:$0xff]
    %v1527 = vld [vmem:[%s1512 + $0x70] sm:$0xff]
    %v1528 = vld [vmem:[%s1512 + $0x78] sm:$0xff]
    %v1529 = vld [vmem:[%s1512 + $0x80] sm:$0xff]
    %v1530 = vld [vmem:[%s1512 + $0x88] sm:$0xff]
    %v1531 = vld [vmem:[%s1512 + $0x90] sm:$0xf]
    %v1532 = vld [vmem:[%s1512 + $0x98] sm:$0xf]
    %v1533 = vld [vmem:[%s1512 + $0xa0] sm:$0xf]
    %v1534 = vld [vmem:[%s1512 + $0xa8] sm:$0xf]
    %v1535 = vld [vmem:[%s1512 + $0xb0] sm:$0xf]
    %v1536 = vld [vmem:[%s1512 + $0xb8] sm:$0xf]
    %v1537 = vsel %vm196, %v1504, 0
    %v1539 = vsel %vm196, %v1506, 0
    %v1541 = vsel %vm196, %v1509, 0
    %v1543 = vsel %vm196, %v1511, 0
    %v1546 = vsel %vm209, %v1531, 0
    %v1549 = vsel %vm209, %v1532, 0
    %v1552 = vsel %vm209, %v1533, 0
    %v1555 = vsel %vm209, %v1534, 0
    %v1558 = vsel %vm209, %v1535, 0
    %v1561 = vsel %vm209, %v1536, 0
    %1563 = vmatprep.subr.mxu0 %v1514
    %1564 = vmatpush1.msra.mxu0 %v1513
    %1565 = vmatprep.subr.mxu0 %v1520
    %1566 = vmatpush1.msra.mxu0 %v1519
    %1567 = vmatprep.subr.mxu0 %v1526
    %1568 = vmatpush1.msra.mxu0 %v1525
    %1569 = vmatprep.subr.mxu0 %v1549
    %1570 = vmatpush1.msra.mxu0 %v1546
    %1571 = vmatprep.subr.mxu0 0.0
    %1572 = vmatpush1.msra.mxu0 0.0
    %1573 = vmatprep.subr.mxu0 0.0
    %1574 = vmatpush1.msra.mxu0 0.0
    %1575 = vmatprep.subr.mxu0 0.0
    %1576 = vmatpush1.msra.mxu0 0.0
    %1577 = vmatprep.subr.mxu0 0.0
    %1578 = vmatpush1.msra.mxu0 0.0
    %1579 = vmatprep.subr.mxu0 0.0
    %1580 = vmatpush1.msra.mxu0 0.0
    %1581 = vmatprep.subr.mxu0 0.0
    %1582 = vmatpush1.msra.mxu0 0.0
    %1583 = vmatprep.subr.mxu0 0.0
    %1584 = vmatpush1.msra.mxu0 0.0
    %1585 = vmatprep.subr.mxu0 0.0
    %1586 = vmatpush1.msra.mxu0 0.0
    %1587 = vmatprep.subr.mxu0 0.0
    %1588 = vmatpush1.msra.mxu0 0.0
    %1589 = vmatprep.subr.mxu0 0.0
    %1590 = vmatpush1.msra.mxu0 0.0
    %1591 = vmatprep.subr.mxu0 0.0
    %1592 = vmatpush1.msra.mxu0 0.0
    %1593 = vmatprep.subr.mxu0 0.0
    %1594 = vmatpush1.msra.mxu0 0.0
    %1595 = vmatprep.subr.mxu0 0.0
    %1596 = vmatpush1.msra.mxu0 0.0
    %1597 = vmatprep.subr.mxu0 0.0
    %1598 = vmatpush1.msra.mxu0 0.0
    %1599 = vmatprep.subr.mxu0 0.0
    %1600 = vmatpush1.msra.mxu0 0.0
    %1601 = vmatprep.subr.mxu0 0.0
    %1602 = vmatpush1.msra.mxu0 0.0
    %1603 = vmatprep.subr.mxu0 0.0
    %1604 = vmatpush1.msra.mxu0 0.0
    %1605 = vmatprep.subr.mxu0 0.0
    %1606 = vmatpush1.msra.mxu0 0.0
    %1607 = vmatprep.subr.mxu0 0.0
    %1608 = vmatpush1.msra.mxu0 0.0
    %1609 = vmatprep.subr.mxu0 0.0
    %1610 = vmatpush1.msra.mxu0 0.0
    %1611 = vmatprep.subr.mxu0 0.0
    %1612 = vmatpush1.msra.mxu0 0.0
    %1613 = vmatprep.subr.mxu0 0.0
    %1614 = vmatpush1.msra.mxu0 0.0
    %1615 = vmatprep.subr.mxu0 0.0
    %1616 = vmatpush1.msra.mxu0 0.0
    %1617 = vmatprep.subr.mxu0 0.0
    %1618 = vmatpush1.msra.mxu0 0.0
    %1619 = vmatprep.subr.mxu0 0.0
    %1620 = vmatpush1.msra.mxu0 0.0
    %1621 = vmatprep.subr.mxu0 0.0
    %1622 = vmatpush1.msra.mxu0 0.0
    %1623 = vmatprep.subr.mxu0 0.0
    %1624 = vmatpush1.msra.mxu0 0.0
    %1625 = vmatprep.subr.mxu0 0.0
    %1626 = vmatpush1.msra.mxu0 0.0
    %1627 = vmatprep.mubr.f32.mxu0 0.0
    %1628 = vmatmul.mubr.f32.gmra.mrb[0].mxu0 %v1537
    %v1629 = vpop.f32.mrb[0].mxu0
    %v1630 = vadd.f32 0.0, %v1629
    %v1631 = vpop.f32.mrb[0].mxu0
    %v1632 = vadd.f32 0.0, %v1631
    %1633 = vmatprep.mubr.f32.mxu0 0.0
    %1634 = vmatmul.mubr.f32.gmra.mrb[0].mxu0 %v1539
    %v1635 = vpop.f32.mrb[0].mxu0
    %v1636 = vadd.f32 0.0, %v1635
    %v1637 = vpop.f32.mrb[0].mxu0
    %v1638 = vadd.f32 0.0, %v1637
    %1639 = vmatprep.mubr.f32.mxu0 0.0
    %1640 = vmatmul.mubr.f32.gmra.mrb[0].mxu0 %v1541
    %v1641 = vpop.f32.mrb[0].mxu0
    %v1642 = vadd.f32 0.0, %v1641
    %v1643 = vpop.f32.mrb[0].mxu0
    %v1644 = vadd.f32 0.0, %v1643
    %1645 = vmatprep.mubr.f32.mxu0 0.0
    %1646 = vmatmul.mubr.f32.gmra.mrb[0].mxu0 %v1543
    %v1647 = vpop.f32.mrb[0].mxu0
    %v1648 = vadd.f32 0.0, %v1647
    %v1649 = vpop.f32.mrb[0].mxu0
    %v1650 = vadd.f32 0.0, %v1649
    %1651 = vdwg.mxu0
    %1652 = vmatprep.subr.mxu0 %v1516
    %1653 = vmatpush1.msra.mxu0 %v1515
    %1654 = vmatprep.subr.mxu0 %v1522
    %1655 = vmatpush1.msra.mxu0 %v1521
    %1656 = vmatprep.subr.mxu0 %v1528
    %1657 = vmatpush1.msra.mxu0 %v1527
    %1658 = vmatprep.subr.mxu0 %v1555
    %1659 = vmatpush1.msra.mxu0 %v1552
    %1660 = vmatprep.subr.mxu0 0.0
    %1661 = vmatpush1.msra.mxu0 0.0
    %1662 = vmatprep.subr.mxu0 0.0
    %1663 = vmatpush1.msra.mxu0 0.0
    %1664 = vmatprep.subr.mxu0 0.0
    %1665 = vmatpush1.msra.mxu0 0.0
    %1666 = vmatprep.subr.mxu0 0.0
    %1667 = vmatpush1.msra.mxu0 0.0
    %1668 = vmatprep.subr.mxu0 0.0
    %1669 = vmatpush1.msra.mxu0 0.0
    %1670 = vmatprep.subr.mxu0 0.0
    %1671 = vmatpush1.msra.mxu0 0.0
    %1672 = vmatprep.subr.mxu0 0.0
    %1673 = vmatpush1.msra.mxu0 0.0
    %1674 = vmatprep.subr.mxu0 0.0
    %1675 = vmatpush1.msra.mxu0 0.0
    %1676 = vmatprep.subr.mxu0 0.0
    %1677 = vmatpush1.msra.mxu0 0.0
    %1678 = vmatprep.subr.mxu0 0.0
    %1679 = vmatpush1.msra.mxu0 0.0
    %1680 = vmatprep.subr.mxu0 0.0
    %1681 = vmatpush1.msra.mxu0 0.0
    %1682 = vmatprep.subr.mxu0 0.0
    %1683 = vmatpush1.msra.mxu0 0.0
    %1684 = vmatprep.subr.mxu0 0.0
    %1685 = vmatpush1.msra.mxu0 0.0
    %1686 = vmatprep.subr.mxu0 0.0
    %1687 = vmatpush1.msra.mxu0 0.0
    %1688 = vmatprep.subr.mxu0 0.0
    %1689 = vmatpush1.msra.mxu0 0.0
    %1690 = vmatprep.subr.mxu0 0.0
    %1691 = vmatpush1.msra.mxu0 0.0
    %1692 = vmatprep.subr.mxu0 0.0
    %1693 = vmatpush1.msra.mxu0 0.0
    %1694 = vmatprep.subr.mxu0 0.0
    %1695 = vmatpush1.msra.mxu0 0.0
    %1696 = vmatprep.subr.mxu0 0.0
    %1697 = vmatpush1.msra.mxu0 0.0
    %1698 = vmatprep.subr.mxu0 0.0
    %1699 = vmatpush1.msra.mxu0 0.0
    %1700 = vmatprep.subr.mxu0 0.0
    %1701 = vmatpush1.msra.mxu0 0.0
    %1702 = vmatprep.subr.mxu0 0.0
    %1703 = vmatpush1.msra.mxu0 0.0
    %1704 = vmatprep.subr.mxu0 0.0
    %1705 = vmatpush1.msra.mxu0 0.0
    %1706 = vmatprep.subr.mxu0 0.0
    %1707 = vmatpush1.msra.mxu0 0.0
    %1708 = vmatprep.subr.mxu0 0.0
    %1709 = vmatpush1.msra.mxu0 0.0
    %1710 = vmatprep.subr.mxu0 0.0
    %1711 = vmatpush1.msra.mxu0 0.0
    %1712 = vmatprep.subr.mxu0 0.0
    %1713 = vmatpush1.msra.mxu0 0.0
    %1714 = vmatprep.subr.mxu0 0.0
    %1715 = vmatpush1.msra.mxu0 0.0
    %1716 = vmatprep.mubr.f32.mxu0 0.0
    %1717 = vmatmul.mubr.f32.gmra.mrb[0].mxu0 %v1537
    %v1718 = vpop.f32.mrb[0].mxu0
    %v1719 = vadd.f32 0.0, %v1718
    %v1720 = vpop.f32.mrb[0].mxu0
    %v1721 = vadd.f32 0.0, %v1720
    %1722 = vmatprep.mubr.f32.mxu0 0.0
    %1723 = vmatmul.mubr.f32.gmra.mrb[0].mxu0 %v1539
    %v1724 = vpop.f32.mrb[0].mxu0
    %v1725 = vadd.f32 0.0, %v1724
    %v1726 = vpop.f32.mrb[0].mxu0
    %v1727 = vadd.f32 0.0, %v1726
    %1728 = vmatprep.mubr.f32.mxu0 0.0
    %1729 = vmatmul.mubr.f32.gmra.mrb[0].mxu0 %v1541
    %v1730 = vpop.f32.mrb[0].mxu0
    %v1731 = vadd.f32 0.0, %v1730
    %v1732 = vpop.f32.mrb[0].mxu0
    %v1733 = vadd.f32 0.0, %v1732
    %1734 = vmatprep.mubr.f32.mxu0 0.0
    %1735 = vmatmul.mubr.f32.gmra.mrb[0].mxu0 %v1543
    %v1736 = vpop.f32.mrb[0].mxu0
    %v1737 = vadd.f32 0.0, %v1736
    %v1738 = vpop.f32.mrb[0].mxu0
    %v1739 = vadd.f32 0.0, %v1738
    %1740 = vdwg.mxu0
    %1741 = vmatprep.subr.mxu0 %v1518
    %1742 = vmatpush1.msra.mxu0 %v1517
    %1743 = vmatprep.subr.mxu0 %v1524
    %1744 = vmatpush1.msra.mxu0 %v1523
    %1745 = vmatprep.subr.mxu0 %v1530
    %1746 = vmatpush1.msra.mxu0 %v1529
    %1747 = vmatprep.subr.mxu0 %v1561
    %1748 = vmatpush1.msra.mxu0 %v1558
    %1749 = vmatprep.subr.mxu0 0.0
    %1750 = vmatpush1.msra.mxu0 0.0
    %1751 = vmatprep.subr.mxu0 0.0
    %1752 = vmatpush1.msra.mxu0 0.0
    %1753 = vmatprep.subr.mxu0 0.0
    %1754 = vmatpush1.msra.mxu0 0.0
    %1755 = vmatprep.subr.mxu0 0.0
    %1756 = vmatpush1.msra.mxu0 0.0
    %1757 = vmatprep.subr.mxu0 0.0
    %1758 = vmatpush1.msra.mxu0 0.0
    %1759 = vmatprep.subr.mxu0 0.0
    %1760 = vmatpush1.msra.mxu0 0.0
    %1761 = vmatprep.subr.mxu0 0.0
    %1762 = vmatpush1.msra.mxu0 0.0
    %1763 = vmatprep.subr.mxu0 0.0
    %1764 = vmatpush1.msra.mxu0 0.0
    %1765 = vmatprep.subr.mxu0 0.0
    %1766 = vmatpush1.msra.mxu0 0.0
    %1767 = vmatprep.subr.mxu0 0.0
    %1768 = vmatpush1.msra.mxu0 0.0
    %1769 = vmatprep.subr.mxu0 0.0
    %1770 = vmatpush1.msra.mxu0 0.0
    %1771 = vmatprep.subr.mxu0 0.0
    %1772 = vmatpush1.msra.mxu0 0.0
    %1773 = vmatprep.subr.mxu0 0.0
    %1774 = vmatpush1.msra.mxu0 0.0
    %1775 = vmatprep.subr.mxu0 0.0
    %1776 = vmatpush1.msra.mxu0 0.0
    %1777 = vmatprep.subr.mxu0 0.0
    %1778 = vmatpush1.msra.mxu0 0.0
    %1779 = vmatprep.subr.mxu0 0.0
    %1780 = vmatpush1.msra.mxu0 0.0
    %1781 = vmatprep.subr.mxu0 0.0
    %1782 = vmatpush1.msra.mxu0 0.0
    %1783 = vmatprep.subr.mxu0 0.0
    %1784 = vmatpush1.msra.mxu0 0.0
    %1785 = vmatprep.subr.mxu0 0.0
    %1786 = vmatpush1.msra.mxu0 0.0
    %1787 = vmatprep.subr.mxu0 0.0
    %1788 = vmatpush1.msra.mxu0 0.0
    %1789 = vmatprep.subr.mxu0 0.0
    %1790 = vmatpush1.msra.mxu0 0.0
    %1791 = vmatprep.subr.mxu0 0.0
    %1792 = vmatpush1.msra.mxu0 0.0
    %1793 = vmatprep.subr.mxu0 0.0
    %1794 = vmatpush1.msra.mxu0 0.0
    %1795 = vmatprep.subr.mxu0 0.0
    %1796 = vmatpush1.msra.mxu0 0.0
    %1797 = vmatprep.subr.mxu0 0.0
    %1798 = vmatpush1.msra.mxu0 0.0
    %1799 = vmatprep.subr.mxu0 0.0
    %1800 = vmatpush1.msra.mxu0 0.0
    %1801 = vmatprep.subr.mxu0 0.0
    %1802 = vmatpush1.msra.mxu0 0.0
    %1803 = vmatprep.subr.mxu0 0.0
    %1804 = vmatpush1.msra.mxu0 0.0
    %1805 = vmatprep.mubr.f32.mxu0 0.0
    %1806 = vmatmul.mubr.f32.gmra.mrb[0].mxu0 %v1537
    %v1807 = vpop.f32.mrb[0].mxu0
    %v1808 = vadd.f32 0.0, %v1807
    %v1809 = vpop.f32.mrb[0].mxu0
    %v1810 = vadd.f32 0.0, %v1809
    %1811 = vmatprep.mubr.f32.mxu0 0.0
    %1812 = vmatmul.mubr.f32.gmra.mrb[0].mxu0 %v1539
    %v1813 = vpop.f32.mrb[0].mxu0
    %v1814 = vadd.f32 0.0, %v1813
    %v1815 = vpop.f32.mrb[0].mxu0
    %v1816 = vadd.f32 0.0, %v1815
    %1817 = vmatprep.mubr.f32.mxu0 0.0
    %1818 = vmatmul.mubr.f32.gmra.mrb[0].mxu0 %v1541
    %v1819 = vpop.f32.mrb[0].mxu0
    %v1820 = vadd.f32 0.0, %v1819
    %v1821 = vpop.f32.mrb[0].mxu0
    %v1822 = vadd.f32 0.0, %v1821
    %1823 = vmatprep.mubr.f32.mxu0 0.0
    %1824 = vmatmul.mubr.f32.gmra.mrb[0].mxu0 %v1543
    %v1825 = vpop.f32.mrb[0].mxu0
    %v1826 = vadd.f32 0.0, %v1825
    %v1827 = vpop.f32.mrb[0].mxu0
    %v1828 = vadd.f32 0.0, %v1827
    %1829 = vdwg.mxu0
    %v1830 = vadd.f32 %v1477, %v1630
    %v1831 = vadd.f32 %v1478, %v1632
    %v1832 = vadd.f32 %v1479, %v1719
    %v1833 = vadd.f32 %v1480, %v1721
    %v1834 = vadd.f32 %v1481, %v1808
    %v1835 = vadd.f32 %v1482, %v1810
    %v1836 = vadd.f32 %v1483, %v1636
    %v1837 = vadd.f32 %v1484, %v1638
    %v1838 = vadd.f32 %v1485, %v1725
    %v1839 = vadd.f32 %v1486, %v1727
    %v1840 = vadd.f32 %v1487, %v1814
    %v1841 = vadd.f32 %v1488, %v1816
    %v1842 = vadd.f32 %v1489, %v1642
    %v1843 = vadd.f32 %v1490, %v1644
    %v1844 = vadd.f32 %v1491, %v1731
    %v1845 = vadd.f32 %v1492, %v1733
    %v1846 = vadd.f32 %v1493, %v1820
    %v1847 = vadd.f32 %v1494, %v1822
    %v1848 = vadd.f32 %v1495, %v1648
    %v1849 = vadd.f32 %v1496, %v1650
    %v1850 = vadd.f32 %v1497, %v1737
    %v1851 = vadd.f32 %v1498, %v1739
    %v1852 = vadd.f32 %v1499, %v1826
    %v1853 = vadd.f32 %v1500, %v1828
    %1854 = vmatprep.subr.mxu0 %v173
    %1855 = vmatpush1.msra.mxu0 %v172
    %1856 = vmatprep.subr.mxu0 %v179
    %1857 = vmatpush1.msra.mxu0 %v178
    %1858 = vmatprep.subr.mxu0 %v185
    %1859 = vmatpush1.msra.mxu0 %v184
    %1860 = vmatprep.subr.mxu0 %v214
    %1861 = vmatpush1.msra.mxu0 %v211
    %1862 = vmatprep.subr.mxu0 0.0
    %1863 = vmatpush1.msra.mxu0 0.0
    %1864 = vmatprep.subr.mxu0 0.0
    %1865 = vmatpush1.msra.mxu0 0.0
    %1866 = vmatprep.subr.mxu0 0.0
    %1867 = vmatpush1.msra.mxu0 0.0
    %1868 = vmatprep.subr.mxu0 0.0
    %1869 = vmatpush1.msra.mxu0 0.0
    %1870 = vmatprep.subr.mxu0 0.0
    %1871 = vmatpush1.msra.mxu0 0.0
    %1872 = vmatprep.subr.mxu0 0.0
    %1873 = vmatpush1.msra.mxu0 0.0
    %1874 = vmatprep.subr.mxu0 0.0
    %1875 = vmatpush1.msra.mxu0 0.0
    %1876 = vmatprep.subr.mxu0 0.0
    %1877 = vmatpush1.msra.mxu0 0.0
    %1878 = vmatprep.subr.mxu0 0.0
    %1879 = vmatpush1.msra.mxu0 0.0
    %1880 = vmatprep.subr.mxu0 0.0
    %1881 = vmatpush1.msra.mxu0 0.0
    %1882 = vmatprep.subr.mxu0 0.0
    %1883 = vmatpush1.msra.mxu0 0.0
    %1884 = vmatprep.subr.mxu0 0.0
    %1885 = vmatpush1.msra.mxu0 0.0
    %1886 = vmatprep.subr.mxu0 0.0
    %1887 = vmatpush1.msra.mxu0 0.0
    %1888 = vmatprep.subr.mxu0 0.0
    %1889 = vmatpush1.msra.mxu0 0.0
    %1890 = vmatprep.subr.mxu0 0.0
    %1891 = vmatpush1.msra.mxu0 0.0
    %1892 = vmatprep.subr.mxu0 0.0
    %1893 = vmatpush1.msra.mxu0 0.0
    %1894 = vmatprep.subr.mxu0 0.0
    %1895 = vmatpush1.msra.mxu0 0.0
    %1896 = vmatprep.subr.mxu0 0.0
    %1897 = vmatpush1.msra.mxu0 0.0
    %1898 = vmatprep.subr.mxu0 0.0
    %1899 = vmatpush1.msra.mxu0 0.0
    %1900 = vmatprep.subr.mxu0 0.0
    %1901 = vmatpush1.msra.mxu0 0.0
    %1902 = vmatprep.subr.mxu0 0.0
    %1903 = vmatpush1.msra.mxu0 0.0
    %1904 = vmatprep.subr.mxu0 0.0
    %1905 = vmatpush1.msra.mxu0 0.0
    %1906 = vmatprep.subr.mxu0 0.0
    %1907 = vmatpush1.msra.mxu0 0.0
    %1908 = vmatprep.subr.mxu0 0.0
    %1909 = vmatpush1.msra.mxu0 0.0
    %1910 = vmatprep.subr.mxu0 0.0
    %1911 = vmatpush1.msra.mxu0 0.0
    %1912 = vmatprep.subr.mxu0 0.0
    %1913 = vmatpush1.msra.mxu0 0.0
    %1914 = vmatprep.subr.mxu0 0.0
    %1915 = vmatpush1.msra.mxu0 0.0
    %1916 = vmatprep.subr.mxu0 0.0
    %1917 = vmatpush1.msra.mxu0 0.0
    %1918 = vmatprep.mubr.f32.mxu0 0.0
    %1919 = vmatmul.mubr.f32.gmra.mrb[0].mxu0 %v830
    %v1920 = vpop.f32.mrb[0].mxu0
    %v1921 = vadd.f32 0.0, %v1920
    %v1922 = vpop.f32.mrb[0].mxu0
    %v1923 = vadd.f32 0.0, %v1922
    %1924 = vmatprep.mubr.f32.mxu0 0.0
    %1925 = vmatmul.mubr.f32.gmra.mrb[0].mxu0 %v832
    %v1926 = vpop.f32.mrb[0].mxu0
    %v1927 = vadd.f32 0.0, %v1926
    %v1928 = vpop.f32.mrb[0].mxu0
    %v1929 = vadd.f32 0.0, %v1928
    %1930 = vmatprep.mubr.f32.mxu0 0.0
    %1931 = vmatmul.mubr.f32.gmra.mrb[0].mxu0 %v834
    %v1932 = vpop.f32.mrb[0].mxu0
    %v1933 = vadd.f32 0.0, %v1932
    %v1934 = vpop.f32.mrb[0].mxu0
    %v1935 = vadd.f32 0.0, %v1934
    %1936 = vmatprep.mubr.f32.mxu0 0.0
    %1937 = vmatmul.mubr.f32.gmra.mrb[0].mxu0 %v836
    %v1938 = vpop.f32.mrb[0].mxu0
    %v1939 = vadd.f32 0.0, %v1938
    %v1940 = vpop.f32.mrb[0].mxu0
    %v1941 = vadd.f32 0.0, %v1940
    %1942 = vdwg.mxu0
    %1943 = vmatprep.subr.mxu0 %v175
    %1944 = vmatpush1.msra.mxu0 %v174
    %1945 = vmatprep.subr.mxu0 %v181
    %1946 = vmatpush1.msra.mxu0 %v180
    %1947 = vmatprep.subr.mxu0 %v187
    %1948 = vmatpush1.msra.mxu0 %v186
    %1949 = vmatprep.subr.mxu0 %v220
    %1950 = vmatpush1.msra.mxu0 %v217
    %1951 = vmatprep.subr.mxu0 0.0
    %1952 = vmatpush1.msra.mxu0 0.0
    %1953 = vmatprep.subr.mxu0 0.0
    %1954 = vmatpush1.msra.mxu0 0.0
    %1955 = vmatprep.subr.mxu0 0.0
    %1956 = vmatpush1.msra.mxu0 0.0
    %1957 = vmatprep.subr.mxu0 0.0
    %1958 = vmatpush1.msra.mxu0 0.0
    %1959 = vmatprep.subr.mxu0 0.0
    %1960 = vmatpush1.msra.mxu0 0.0
    %1961 = vmatprep.subr.mxu0 0.0
    %1962 = vmatpush1.msra.mxu0 0.0
    %1963 = vmatprep.subr.mxu0 0.0
    %1964 = vmatpush1.msra.mxu0 0.0
    %1965 = vmatprep.subr.mxu0 0.0
    %1966 = vmatpush1.msra.mxu0 0.0
    %1967 = vmatprep.subr.mxu0 0.0
    %1968 = vmatpush1.msra.mxu0 0.0
    %1969 = vmatprep.subr.mxu0 0.0
    %1970 = vmatpush1.msra.mxu0 0.0
    %1971 = vmatprep.subr.mxu0 0.0
    %1972 = vmatpush1.msra.mxu0 0.0
    %1973 = vmatprep.subr.mxu0 0.0
    %1974 = vmatpush1.msra.mxu0 0.0
    %1975 = vmatprep.subr.mxu0 0.0
    %1976 = vmatpush1.msra.mxu0 0.0
    %1977 = vmatprep.subr.mxu0 0.0
    %1978 = vmatpush1.msra.mxu0 0.0
    %1979 = vmatprep.subr.mxu0 0.0
    %1980 = vmatpush1.msra.mxu0 0.0
    %1981 = vmatprep.subr.mxu0 0.0
    %1982 = vmatpush1.msra.mxu0 0.0
    %1983 = vmatprep.subr.mxu0 0.0
    %1984 = vmatpush1.msra.mxu0 0.0
    %1985 = vmatprep.subr.mxu0 0.0
    %1986 = vmatpush1.msra.mxu0 0.0
    %1987 = vmatprep.subr.mxu0 0.0
    %1988 = vmatpush1.msra.mxu0 0.0
    %1989 = vmatprep.subr.mxu0 0.0
    %1990 = vmatpush1.msra.mxu0 0.0
    %1991 = vmatprep.subr.mxu0 0.0
    %1992 = vmatpush1.msra.mxu0 0.0
    %1993 = vmatprep.subr.mxu0 0.0
    %1994 = vmatpush1.msra.mxu0 0.0
    %1995 = vmatprep.subr.mxu0 0.0
    %1996 = vmatpush1.msra.mxu0 0.0
    %1997 = vmatprep.subr.mxu0 0.0
    %1998 = vmatpush1.msra.mxu0 0.0
    %1999 = vmatprep.subr.mxu0 0.0
    %2000 = vmatpush1.msra.mxu0 0.0
    %2001 = vmatprep.subr.mxu0 0.0
    %2002 = vmatpush1.msra.mxu0 0.0
    %2003 = vmatprep.subr.mxu0 0.0
    %2004 = vmatpush1.msra.mxu0 0.0
    %2005 = vmatprep.subr.mxu0 0.0
    %2006 = vmatpush1.msra.mxu0 0.0
    %2007 = vmatprep.mubr.f32.mxu0 0.0
    %2008 = vmatmul.mubr.f32.gmra.mrb[0].mxu0 %v830
    %v2009 = vpop.f32.mrb[0].mxu0
    %v2010 = vadd.f32 0.0, %v2009
    %v2011 = vpop.f32.mrb[0].mxu0
    %v2012 = vadd.f32 0.0, %v2011
    %2013 = vmatprep.mubr.f32.mxu0 0.0
    %2014 = vmatmul.mubr.f32.gmra.mrb[0].mxu0 %v832
    %v2015 = vpop.f32.mrb[0].mxu0
    %v2016 = vadd.f32 0.0, %v2015
    %v2017 = vpop.f32.mrb[0].mxu0
    %v2018 = vadd.f32 0.0, %v2017
    %2019 = vmatprep.mubr.f32.mxu0 0.0
    %2020 = vmatmul.mubr.f32.gmra.mrb[0].mxu0 %v834
    %v2021 = vpop.f32.mrb[0].mxu0
    %v2022 = vadd.f32 0.0, %v2021
    %v2023 = vpop.f32.mrb[0].mxu0
    %v2024 = vadd.f32 0.0, %v2023
    %2025 = vmatprep.mubr.f32.mxu0 0.0
    %2026 = vmatmul.mubr.f32.gmra.mrb[0].mxu0 %v836
    %v2027 = vpop.f32.mrb[0].mxu0
    %v2028 = vadd.f32 0.0, %v2027
    %v2029 = vpop.f32.mrb[0].mxu0
    %v2030 = vadd.f32 0.0, %v2029
    %2031 = vdwg.mxu0
    %2032 = vmatprep.subr.mxu0 %v177
    %2033 = vmatpush1.msra.mxu0 %v176
    %2034 = vmatprep.subr.mxu0 %v183
    %2035 = vmatpush1.msra.mxu0 %v182
    %2036 = vmatprep.subr.mxu0 %v189
    %2037 = vmatpush1.msra.mxu0 %v188
    %2038 = vmatprep.subr.mxu0 %v226
    %2039 = vmatpush1.msra.mxu0 %v223
    %2040 = vmatprep.subr.mxu0 0.0
    %2041 = vmatpush1.msra.mxu0 0.0
    %2042 = vmatprep.subr.mxu0 0.0
    %2043 = vmatpush1.msra.mxu0 0.0
    %2044 = vmatprep.subr.mxu0 0.0
    %2045 = vmatpush1.msra.mxu0 0.0
    %2046 = vmatprep.subr.mxu0 0.0
    %2047 = vmatpush1.msra.mxu0 0.0
    %2048 = vmatprep.subr.mxu0 0.0
    %2049 = vmatpush1.msra.mxu0 0.0
    %2050 = vmatprep.subr.mxu0 0.0
    %2051 = vmatpush1.msra.mxu0 0.0
    %2052 = vmatprep.subr.mxu0 0.0
    %2053 = vmatpush1.msra.mxu0 0.0
    %2054 = vmatprep.subr.mxu0 0.0
    %2055 = vmatpush1.msra.mxu0 0.0
    %2056 = vmatprep.subr.mxu0 0.0
    %2057 = vmatpush1.msra.mxu0 0.0
    %2058 = vmatprep.subr.mxu0 0.0
    %2059 = vmatpush1.msra.mxu0 0.0
    %2060 = vmatprep.subr.mxu0 0.0
    %2061 = vmatpush1.msra.mxu0 0.0
    %2062 = vmatprep.subr.mxu0 0.0
    %2063 = vmatpush1.msra.mxu0 0.0
    %2064 = vmatprep.subr.mxu0 0.0
    %2065 = vmatpush1.msra.mxu0 0.0
    %2066 = vmatprep.subr.mxu0 0.0
    %2067 = vmatpush1.msra.mxu0 0.0
    %2068 = vmatprep.subr.mxu0 0.0
    %2069 = vmatpush1.msra.mxu0 0.0
    %2070 = vmatprep.subr.mxu0 0.0
    %2071 = vmatpush1.msra.mxu0 0.0
    %2072 = vmatprep.subr.mxu0 0.0
    %2073 = vmatpush1.msra.mxu0 0.0
    %2074 = vmatprep.subr.mxu0 0.0
    %2075 = vmatpush1.msra.mxu0 0.0
    %2076 = vmatprep.subr.mxu0 0.0
    %2077 = vmatpush1.msra.mxu0 0.0
    %2078 = vmatprep.subr.mxu0 0.0
    %2079 = vmatpush1.msra.mxu0 0.0
    %2080 = vmatprep.subr.mxu0 0.0
    %2081 = vmatpush1.msra.mxu0 0.0
    %2082 = vmatprep.subr.mxu0 0.0
    %2083 = vmatpush1.msra.mxu0 0.0
    %2084 = vmatprep.subr.mxu0 0.0
    %2085 = vmatpush1.msra.mxu0 0.0
    %2086 = vmatprep.subr.mxu0 0.0
    %2087 = vmatpush1.msra.mxu0 0.0
    %2088 = vmatprep.subr.mxu0 0.0
    %2089 = vmatpush1.msra.mxu0 0.0
    %2090 = vmatprep.subr.mxu0 0.0
    %2091 = vmatpush1.msra.mxu0 0.0
    %2092 = vmatprep.subr.mxu0 0.0
    %2093 = vmatpush1.msra.mxu0 0.0
    %2094 = vmatprep.subr.mxu0 0.0
    %2095 = vmatpush1.msra.mxu0 0.0
    %2096 = vmatprep.mubr.f32.mxu0 0.0
    %2097 = vmatmul.mubr.f32.gmra.mrb[0].mxu0 %v830
    %v2098 = vpop.f32.mrb[0].mxu0
    %v2099 = vadd.f32 0.0, %v2098
    %v2100 = vpop.f32.mrb[0].mxu0
    %v2101 = vadd.f32 0.0, %v2100
    %2102 = vmatprep.mubr.f32.mxu0 0.0
    %2103 = vmatmul.mubr.f32.gmra.mrb[0].mxu0 %v832
    %v2104 = vpop.f32.mrb[0].mxu0
    %v2105 = vadd.f32 0.0, %v2104
    %v2106 = vpop.f32.mrb[0].mxu0
    %v2107 = vadd.f32 0.0, %v2106
    %2108 = vmatprep.mubr.f32.mxu0 0.0
    %2109 = vmatmul.mubr.f32.gmra.mrb[0].mxu0 %v834
    %v2110 = vpop.f32.mrb[0].mxu0
    %v2111 = vadd.f32 0.0, %v2110
    %v2112 = vpop.f32.mrb[0].mxu0
    %v2113 = vadd.f32 0.0, %v2112
    %2114 = vmatprep.mubr.f32.mxu0 0.0
    %2115 = vmatmul.mubr.f32.gmra.mrb[0].mxu0 %v836
    %v2116 = vpop.f32.mrb[0].mxu0
    %v2117 = vadd.f32 0.0, %v2116
    %v2118 = vpop.f32.mrb[0].mxu0
    %v2119 = vadd.f32 0.0, %v2118
    %2120 = vdwg.mxu0
    %2121 = vmatprep.subr.mxu0 %v148
    %2122 = vmatpush1.msra.mxu0 %v147
    %2123 = vmatprep.subr.mxu0 %v154
    %2124 = vmatpush1.msra.mxu0 %v153
    %2125 = vmatprep.subr.mxu0 %v160
    %2126 = vmatpush1.msra.mxu0 %v159
    %2127 = vmatprep.subr.mxu0 %v511
    %2128 = vmatpush1.msra.mxu0 %v508
    %2129 = vmatprep.subr.mxu0 0.0
    %2130 = vmatpush1.msra.mxu0 0.0
    %2131 = vmatprep.subr.mxu0 0.0
    %2132 = vmatpush1.msra.mxu0 0.0
    %2133 = vmatprep.subr.mxu0 0.0
    %2134 = vmatpush1.msra.mxu0 0.0
    %2135 = vmatprep.subr.mxu0 0.0
    %2136 = vmatpush1.msra.mxu0 0.0
    %2137 = vmatprep.subr.mxu0 0.0
    %2138 = vmatpush1.msra.mxu0 0.0
    %2139 = vmatprep.subr.mxu0 0.0
    %2140 = vmatpush1.msra.mxu0 0.0
    %2141 = vmatprep.subr.mxu0 0.0
    %2142 = vmatpush1.msra.mxu0 0.0
    %2143 = vmatprep.subr.mxu0 0.0
    %2144 = vmatpush1.msra.mxu0 0.0
    %2145 = vmatprep.subr.mxu0 0.0
    %2146 = vmatpush1.msra.mxu0 0.0
    %2147 = vmatprep.subr.mxu0 0.0
    %2148 = vmatpush1.msra.mxu0 0.0
    %2149 = vmatprep.subr.mxu0 0.0
    %2150 = vmatpush1.msra.mxu0 0.0
    %2151 = vmatprep.subr.mxu0 0.0
    %2152 = vmatpush1.msra.mxu0 0.0
    %2153 = vmatprep.subr.mxu0 0.0
    %2154 = vmatpush1.msra.mxu0 0.0
    %2155 = vmatprep.subr.mxu0 0.0
    %2156 = vmatpush1.msra.mxu0 0.0
    %2157 = vmatprep.subr.mxu0 0.0
    %2158 = vmatpush1.msra.mxu0 0.0
    %2159 = vmatprep.subr.mxu0 0.0
    %2160 = vmatpush1.msra.mxu0 0.0
    %2161 = vmatprep.subr.mxu0 0.0
    %2162 = vmatpush1.msra.mxu0 0.0
    %2163 = vmatprep.subr.mxu0 0.0
    %2164 = vmatpush1.msra.mxu0 0.0
    %2165 = vmatprep.subr.mxu0 0.0
    %2166 = vmatpush1.msra.mxu0 0.0
    %2167 = vmatprep.subr.mxu0 0.0
    %2168 = vmatpush1.msra.mxu0 0.0
    %2169 = vmatprep.subr.mxu0 0.0
    %2170 = vmatpush1.msra.mxu0 0.0
    %2171 = vmatprep.subr.mxu0 0.0
    %2172 = vmatpush1.msra.mxu0 0.0
    %2173 = vmatprep.subr.mxu0 0.0
    %2174 = vmatpush1.msra.mxu0 0.0
    %2175 = vmatprep.subr.mxu0 0.0
    %2176 = vmatpush1.msra.mxu0 0.0
    %2177 = vmatprep.subr.mxu0 0.0
    %2178 = vmatpush1.msra.mxu0 0.0
    %2179 = vmatprep.subr.mxu0 0.0
    %2180 = vmatpush1.msra.mxu0 0.0
    %2181 = vmatprep.subr.mxu0 0.0
    %2182 = vmatpush1.msra.mxu0 0.0
    %2183 = vmatprep.subr.mxu0 0.0
    %2184 = vmatpush1.msra.mxu0 0.0
    %2185 = vmatprep.mubr.f32.mxu0 0.0
    %2186 = vmatmul.mubr.f32.gmra.mrb[0].mxu0 %v198
    %v2187 = vpop.f32.mrb[0].mxu0
    %v2188 = vadd.f32 %v1921, %v2187
    %v2189 = vpop.f32.mrb[0].mxu0
    %v2190 = vadd.f32 %v1923, %v2189
    %2191 = vmatprep.mubr.f32.mxu0 0.0
    %2192 = vmatmul.mubr.f32.gmra.mrb[0].mxu0 %v201
    %v2193 = vpop.f32.mrb[0].mxu0
    %v2194 = vadd.f32 %v1927, %v2193
    %v2195 = vpop.f32.mrb[0].mxu0
    %v2196 = vadd.f32 %v1929, %v2195
    %2197 = vmatprep.mubr.f32.mxu0 0.0
    %2198 = vmatmul.mubr.f32.gmra.mrb[0].mxu0 %v204
    %v2199 = vpop.f32.mrb[0].mxu0
    %v2200 = vadd.f32 %v1933, %v2199
    %v2201 = vpop.f32.mrb[0].mxu0
    %v2202 = vadd.f32 %v1935, %v2201
    %2203 = vmatprep.mubr.f32.mxu0 0.0
    %2204 = vmatmul.mubr.f32.gmra.mrb[0].mxu0 %v207
    %v2205 = vpop.f32.mrb[0].mxu0
    %v2206 = vadd.f32 %v1939, %v2205
    %v2207 = vpop.f32.mrb[0].mxu0
    %v2208 = vadd.f32 %v1941, %v2207
    %2209 = vdwg.mxu0
    %2210 = vmatprep.subr.mxu0 %v150
    %2211 = vmatpush1.msra.mxu0 %v149
    %2212 = vmatprep.subr.mxu0 %v156
    %2213 = vmatpush1.msra.mxu0 %v155
    %2214 = vmatprep.subr.mxu0 %v162
    %2215 = vmatpush1.msra.mxu0 %v161
    %2216 = vmatprep.subr.mxu0 %v517
    %2217 = vmatpush1.msra.mxu0 %v514
    %2218 = vmatprep.subr.mxu0 0.0
    %2219 = vmatpush1.msra.mxu0 0.0
    %2220 = vmatprep.subr.mxu0 0.0
    %2221 = vmatpush1.msra.mxu0 0.0
    %2222 = vmatprep.subr.mxu0 0.0
    %2223 = vmatpush1.msra.mxu0 0.0
    %2224 = vmatprep.subr.mxu0 0.0
    %2225 = vmatpush1.msra.mxu0 0.0
    %2226 = vmatprep.subr.mxu0 0.0
    %2227 = vmatpush1.msra.mxu0 0.0
    %2228 = vmatprep.subr.mxu0 0.0
    %2229 = vmatpush1.msra.mxu0 0.0
    %2230 = vmatprep.subr.mxu0 0.0
    %2231 = vmatpush1.msra.mxu0 0.0
    %2232 = vmatprep.subr.mxu0 0.0
    %2233 = vmatpush1.msra.mxu0 0.0
    %2234 = vmatprep.subr.mxu0 0.0
    %2235 = vmatpush1.msra.mxu0 0.0
    %2236 = vmatprep.subr.mxu0 0.0
    %2237 = vmatpush1.msra.mxu0 0.0
    %2238 = vmatprep.subr.mxu0 0.0
    %2239 = vmatpush1.msra.mxu0 0.0
    %2240 = vmatprep.subr.mxu0 0.0
    %2241 = vmatpush1.msra.mxu0 0.0
    %2242 = vmatprep.subr.mxu0 0.0
    %2243 = vmatpush1.msra.mxu0 0.0
    %2244 = vmatprep.subr.mxu0 0.0
    %2245 = vmatpush1.msra.mxu0 0.0
    %2246 = vmatprep.subr.mxu0 0.0
    %2247 = vmatpush1.msra.mxu0 0.0
    %2248 = vmatprep.subr.mxu0 0.0
    %2249 = vmatpush1.msra.mxu0 0.0
    %2250 = vmatprep.subr.mxu0 0.0
    %2251 = vmatpush1.msra.mxu0 0.0
    %2252 = vmatprep.subr.mxu0 0.0
    %2253 = vmatpush1.msra.mxu0 0.0
    %2254 = vmatprep.subr.mxu0 0.0
    %2255 = vmatpush1.msra.mxu0 0.0
    %2256 = vmatprep.subr.mxu0 0.0
    %2257 = vmatpush1.msra.mxu0 0.0
    %2258 = vmatprep.subr.mxu0 0.0
    %2259 = vmatpush1.msra.mxu0 0.0
    %2260 = vmatprep.subr.mxu0 0.0
    %2261 = vmatpush1.msra.mxu0 0.0
    %2262 = vmatprep.subr.mxu0 0.0
    %2263 = vmatpush1.msra.mxu0 0.0
    %2264 = vmatprep.subr.mxu0 0.0
    %2265 = vmatpush1.msra.mxu0 0.0
    %2266 = vmatprep.subr.mxu0 0.0
    %2267 = vmatpush1.msra.mxu0 0.0
    %2268 = vmatprep.subr.mxu0 0.0
    %2269 = vmatpush1.msra.mxu0 0.0
    %2270 = vmatprep.subr.mxu0 0.0
    %2271 = vmatpush1.msra.mxu0 0.0
    %2272 = vmatprep.subr.mxu0 0.0
    %2273 = vmatpush1.msra.mxu0 0.0
    %2274 = vmatprep.mubr.f32.mxu0 0.0
    %2275 = vmatmul.mubr.f32.gmra.mrb[0].mxu0 %v198
    %v2276 = vpop.f32.mrb[0].mxu0
    %v2277 = vadd.f32 %v2010, %v2276
    %v2278 = vpop.f32.mrb[0].mxu0
    %v2279 = vadd.f32 %v2012, %v2278
    %2280 = vmatprep.mubr.f32.mxu0 0.0
    %2281 = vmatmul.mubr.f32.gmra.mrb[0].mxu0 %v201
    %v2282 = vpop.f32.mrb[0].mxu0
    %v2283 = vadd.f32 %v2016, %v2282
    %v2284 = vpop.f32.mrb[0].mxu0
    %v2285 = vadd.f32 %v2018, %v2284
    %2286 = vmatprep.mubr.f32.mxu0 0.0
    %2287 = vmatmul.mubr.f32.gmra.mrb[0].mxu0 %v204
    %v2288 = vpop.f32.mrb[0].mxu0
    %v2289 = vadd.f32 %v2022, %v2288
    %v2290 = vpop.f32.mrb[0].mxu0
    %v2291 = vadd.f32 %v2024, %v2290
    %2292 = vmatprep.mubr.f32.mxu0 0.0
    %2293 = vmatmul.mubr.f32.gmra.mrb[0].mxu0 %v207
    %v2294 = vpop.f32.mrb[0].mxu0
    %v2295 = vadd.f32 %v2028, %v2294
    %v2296 = vpop.f32.mrb[0].mxu0
    %v2297 = vadd.f32 %v2030, %v2296
    %2298 = vdwg.mxu0
    %2299 = vmatprep.subr.mxu0 %v152
    %2300 = vmatpush1.msra.mxu0 %v151
    %2301 = vmatprep.subr.mxu0 %v158
    %2302 = vmatpush1.msra.mxu0 %v157
    %2303 = vmatprep.subr.mxu0 %v164
    %2304 = vmatpush1.msra.mxu0 %v163
    %2305 = vmatprep.subr.mxu0 %v523
    %2306 = vmatpush1.msra.mxu0 %v520
    %2307 = vmatprep.subr.mxu0 0.0
    %2308 = vmatpush1.msra.mxu0 0.0
    %2309 = vmatprep.subr.mxu0 0.0
    %2310 = vmatpush1.msra.mxu0 0.0
    %2311 = vmatprep.subr.mxu0 0.0
    %2312 = vmatpush1.msra.mxu0 0.0
    %2313 = vmatprep.subr.mxu0 0.0
    %2314 = vmatpush1.msra.mxu0 0.0
    %2315 = vmatprep.subr.mxu0 0.0
    %2316 = vmatpush1.msra.mxu0 0.0
    %2317 = vmatprep.subr.mxu0 0.0
    %2318 = vmatpush1.msra.mxu0 0.0
    %2319 = vmatprep.subr.mxu0 0.0
    %2320 = vmatpush1.msra.mxu0 0.0
    %2321 = vmatprep.subr.mxu0 0.0
    %2322 = vmatpush1.msra.mxu0 0.0
    %2323 = vmatprep.subr.mxu0 0.0
    %2324 = vmatpush1.msra.mxu0 0.0
    %2325 = vmatprep.subr.mxu0 0.0
    %2326 = vmatpush1.msra.mxu0 0.0
    %2327 = vmatprep.subr.mxu0 0.0
    %2328 = vmatpush1.msra.mxu0 0.0
    %2329 = vmatprep.subr.mxu0 0.0
    %2330 = vmatpush1.msra.mxu0 0.0
    %2331 = vmatprep.subr.mxu0 0.0
    %2332 = vmatpush1.msra.mxu0 0.0
    %2333 = vmatprep.subr.mxu0 0.0
    %2334 = vmatpush1.msra.mxu0 0.0
    %2335 = vmatprep.subr.mxu0 0.0
    %2336 = vmatpush1.msra.mxu0 0.0
    %2337 = vmatprep.subr.mxu0 0.0
    %2338 = vmatpush1.msra.mxu0 0.0
    %2339 = vmatprep.subr.mxu0 0.0
    %2340 = vmatpush1.msra.mxu0 0.0
    %2341 = vmatprep.subr.mxu0 0.0
    %2342 = vmatpush1.msra.mxu0 0.0
    %2343 = vmatprep.subr.mxu0 0.0
    %2344 = vmatpush1.msra.mxu0 0.0
    %2345 = vmatprep.subr.mxu0 0.0
    %2346 = vmatpush1.msra.mxu0 0.0
    %2347 = vmatprep.subr.mxu0 0.0
    %2348 = vmatpush1.msra.mxu0 0.0
    %2349 = vmatprep.subr.mxu0 0.0
    %2350 = vmatpush1.msra.mxu0 0.0
    %2351 = vmatprep.subr.mxu0 0.0
    %2352 = vmatpush1.msra.mxu0 0.0
    %2353 = vmatprep.subr.mxu0 0.0
    %2354 = vmatpush1.msra.mxu0 0.0
    %2355 = vmatprep.subr.mxu0 0.0
    %2356 = vmatpush1.msra.mxu0 0.0
    %2357 = vmatprep.subr.mxu0 0.0
    %2358 = vmatpush1.msra.mxu0 0.0
    %2359 = vmatprep.subr.mxu0 0.0
    %2360 = vmatpush1.msra.mxu0 0.0
    %2361 = vmatprep.subr.mxu0 0.0
    %2362 = vmatpush1.msra.mxu0 0.0
    %2363 = vmatprep.mubr.f32.mxu0 0.0
    %2364 = vmatmul.mubr.f32.gmra.mrb[0].mxu0 %v198
    %v2365 = vpop.f32.mrb[0].mxu0
    %v2366 = vadd.f32 %v2099, %v2365
    %v2367 = vpop.f32.mrb[0].mxu0
    %v2368 = vadd.f32 %v2101, %v2367
    %2369 = vmatprep.mubr.f32.mxu0 0.0
    %2370 = vmatmul.mubr.f32.gmra.mrb[0].mxu0 %v201
    %v2371 = vpop.f32.mrb[0].mxu0
    %v2372 = vadd.f32 %v2105, %v2371
    %v2373 = vpop.f32.mrb[0].mxu0
    %v2374 = vadd.f32 %v2107, %v2373
    %2375 = vmatprep.mubr.f32.mxu0 0.0
    %2376 = vmatmul.mubr.f32.gmra.mrb[0].mxu0 %v204
    %v2377 = vpop.f32.mrb[0].mxu0
    %v2378 = vadd.f32 %v2111, %v2377
    %v2379 = vpop.f32.mrb[0].mxu0
    %v2380 = vadd.f32 %v2113, %v2379
    %2381 = vmatprep.mubr.f32.mxu0 0.0
    %2382 = vmatmul.mubr.f32.gmra.mrb[0].mxu0 %v207
    %v2383 = vpop.f32.mrb[0].mxu0
    %v2384 = vadd.f32 %v2117, %v2383
    %v2385 = vpop.f32.mrb[0].mxu0
    %v2386 = vadd.f32 %v2119, %v2385
    %2387 = vdwg.mxu0
    %2388 = vmatprep.subr.mxu0 %v807
    %2389 = vmatpush1.msra.mxu0 %v806
    %2390 = vmatprep.subr.mxu0 %v813
    %2391 = vmatpush1.msra.mxu0 %v812
    %2392 = vmatprep.subr.mxu0 %v819
    %2393 = vmatpush1.msra.mxu0 %v818
    %2394 = vmatprep.subr.mxu0 %v842
    %2395 = vmatpush1.msra.mxu0 %v839
    %2396 = vmatprep.subr.mxu0 0.0
    %2397 = vmatpush1.msra.mxu0 0.0
    %2398 = vmatprep.subr.mxu0 0.0
    %2399 = vmatpush1.msra.mxu0 0.0
    %2400 = vmatprep.subr.mxu0 0.0
    %2401 = vmatpush1.msra.mxu0 0.0
    %2402 = vmatprep.subr.mxu0 0.0
    %2403 = vmatpush1.msra.mxu0 0.0
    %2404 = vmatprep.subr.mxu0 0.0
    %2405 = vmatpush1.msra.mxu0 0.0
    %2406 = vmatprep.subr.mxu0 0.0
    %2407 = vmatpush1.msra.mxu0 0.0
    %2408 = vmatprep.subr.mxu0 0.0
    %2409 = vmatpush1.msra.mxu0 0.0
    %2410 = vmatprep.subr.mxu0 0.0
    %2411 = vmatpush1.msra.mxu0 0.0
    %2412 = vmatprep.subr.mxu0 0.0
    %2413 = vmatpush1.msra.mxu0 0.0
    %2414 = vmatprep.subr.mxu0 0.0
    %2415 = vmatpush1.msra.mxu0 0.0
    %2416 = vmatprep.subr.mxu0 0.0
    %2417 = vmatpush1.msra.mxu0 0.0
    %2418 = vmatprep.subr.mxu0 0.0
    %2419 = vmatpush1.msra.mxu0 0.0
    %2420 = vmatprep.subr.mxu0 0.0
    %2421 = vmatpush1.msra.mxu0 0.0
    %2422 = vmatprep.subr.mxu0 0.0
    %2423 = vmatpush1.msra.mxu0 0.0
    %2424 = vmatprep.subr.mxu0 0.0
    %2425 = vmatpush1.msra.mxu0 0.0
    %2426 = vmatprep.subr.mxu0 0.0
    %2427 = vmatpush1.msra.mxu0 0.0
    %2428 = vmatprep.subr.mxu0 0.0
    %2429 = vmatpush1.msra.mxu0 0.0
    %2430 = vmatprep.subr.mxu0 0.0
    %2431 = vmatpush1.msra.mxu0 0.0
    %2432 = vmatprep.subr.mxu0 0.0
    %2433 = vmatpush1.msra.mxu0 0.0
    %2434 = vmatprep.subr.mxu0 0.0
    %2435 = vmatpush1.msra.mxu0 0.0
    %2436 = vmatprep.subr.mxu0 0.0
    %2437 = vmatpush1.msra.mxu0 0.0
    %2438 = vmatprep.subr.mxu0 0.0
    %2439 = vmatpush1.msra.mxu0 0.0
    %2440 = vmatprep.subr.mxu0 0.0
    %2441 = vmatpush1.msra.mxu0 0.0
    %2442 = vmatprep.subr.mxu0 0.0
    %2443 = vmatpush1.msra.mxu0 0.0
    %2444 = vmatprep.subr.mxu0 0.0
    %2445 = vmatpush1.msra.mxu0 0.0
    %2446 = vmatprep.subr.mxu0 0.0
    %2447 = vmatpush1.msra.mxu0 0.0
    %2448 = vmatprep.subr.mxu0 0.0
    %2449 = vmatpush1.msra.mxu0 0.0
    %2450 = vmatprep.subr.mxu0 0.0
    %2451 = vmatpush1.msra.mxu0 0.0
    %2452 = vmatprep.mubr.f32.mxu0 0.0
    %2453 = vmatmul.mubr.f32.gmra.mrb[0].mxu0 %v1184
    %v2454 = vpop.f32.mrb[0].mxu0
    %v2455 = vadd.f32 0.0, %v2454
    %v2456 = vpop.f32.mrb[0].mxu0
    %v2457 = vadd.f32 0.0, %v2456
    %2458 = vmatprep.mubr.f32.mxu0 0.0
    %2459 = vmatmul.mubr.f32.gmra.mrb[0].mxu0 %v1186
    %v2460 = vpop.f32.mrb[0].mxu0
    %v2461 = vadd.f32 0.0, %v2460
    %v2462 = vpop.f32.mrb[0].mxu0
    %v2463 = vadd.f32 0.0, %v2462
    %2464 = vmatprep.mubr.f32.mxu0 0.0
    %2465 = vmatmul.mubr.f32.gmra.mrb[0].mxu0 %v1188
    %v2466 = vpop.f32.mrb[0].mxu0
    %v2467 = vadd.f32 0.0, %v2466
    %v2468 = vpop.f32.mrb[0].mxu0
    %v2469 = vadd.f32 0.0, %v2468
    %2470 = vmatprep.mubr.f32.mxu0 0.0
    %2471 = vmatmul.mubr.f32.gmra.mrb[0].mxu0 %v1190
    %v2472 = vpop.f32.mrb[0].mxu0
    %v2473 = vadd.f32 0.0, %v2472
    %v2474 = vpop.f32.mrb[0].mxu0
    %v2475 = vadd.f32 0.0, %v2474
    %2476 = vdwg.mxu0
    %2477 = vmatprep.subr.mxu0 %v809
    %2478 = vmatpush1.msra.mxu0 %v808
    %2479 = vmatprep.subr.mxu0 %v815
    %2480 = vmatpush1.msra.mxu0 %v814
    %2481 = vmatprep.subr.mxu0 %v821
    %2482 = vmatpush1.msra.mxu0 %v820
    %2483 = vmatprep.subr.mxu0 %v848
    %2484 = vmatpush1.msra.mxu0 %v845
    %2485 = vmatprep.subr.mxu0 0.0
    %2486 = vmatpush1.msra.mxu0 0.0
    %2487 = vmatprep.subr.mxu0 0.0
    %2488 = vmatpush1.msra.mxu0 0.0
    %2489 = vmatprep.subr.mxu0 0.0
    %2490 = vmatpush1.msra.mxu0 0.0
    %2491 = vmatprep.subr.mxu0 0.0
    %2492 = vmatpush1.msra.mxu0 0.0
    %2493 = vmatprep.subr.mxu0 0.0
    %2494 = vmatpush1.msra.mxu0 0.0
    %2495 = vmatprep.subr.mxu0 0.0
    %2496 = vmatpush1.msra.mxu0 0.0
    %2497 = vmatprep.subr.mxu0 0.0
    %2498 = vmatpush1.msra.mxu0 0.0
    %2499 = vmatprep.subr.mxu0 0.0
    %2500 = vmatpush1.msra.mxu0 0.0
    %2501 = vmatprep.subr.mxu0 0.0
    %2502 = vmatpush1.msra.mxu0 0.0
    %2503 = vmatprep.subr.mxu0 0.0
    %2504 = vmatpush1.msra.mxu0 0.0
    %2505 = vmatprep.subr.mxu0 0.0
    %2506 = vmatpush1.msra.mxu0 0.0
    %2507 = vmatprep.subr.mxu0 0.0
    %2508 = vmatpush1.msra.mxu0 0.0
    %2509 = vmatprep.subr.mxu0 0.0
    %2510 = vmatpush1.msra.mxu0 0.0
    %2511 = vmatprep.subr.mxu0 0.0
    %2512 = vmatpush1.msra.mxu0 0.0
    %2513 = vmatprep.subr.mxu0 0.0
    %2514 = vmatpush1.msra.mxu0 0.0
    %2515 = vmatprep.subr.mxu0 0.0
    %2516 = vmatpush1.msra.mxu0 0.0
    %2517 = vmatprep.subr.mxu0 0.0
    %2518 = vmatpush1.msra.mxu0 0.0
    %2519 = vmatprep.subr.mxu0 0.0
    %2520 = vmatpush1.msra.mxu0 0.0
    %2521 = vmatprep.subr.mxu0 0.0
    %2522 = vmatpush1.msra.mxu0 0.0
    %2523 = vmatprep.subr.mxu0 0.0
    %2524 = vmatpush1.msra.mxu0 0.0
    %2525 = vmatprep.subr.mxu0 0.0
    %2526 = vmatpush1.msra.mxu0 0.0
    %2527 = vmatprep.subr.mxu0 0.0
    %2528 = vmatpush1.msra.mxu0 0.0
    %2529 = vmatprep.subr.mxu0 0.0
    %2530 = vmatpush1.msra.mxu0 0.0
    %2531 = vmatprep.subr.mxu0 0.0
    %2532 = vmatpush1.msra.mxu0 0.0
    %2533 = vmatprep.subr.mxu0 0.0
    %2534 = vmatpush1.msra.mxu0 0.0
    %2535 = vmatprep.subr.mxu0 0.0
    %2536 = vmatpush1.msra.mxu0 0.0
    %2537 = vmatprep.subr.mxu0 0.0
    %2538 = vmatpush1.msra.mxu0 0.0
    %2539 = vmatprep.subr.mxu0 0.0
    %2540 = vmatpush1.msra.mxu0 0.0
    %2541 = vmatprep.mubr.f32.mxu0 0.0
    %2542 = vmatmul.mubr.f32.gmra.mrb[0].mxu0 %v1184
    %v2543 = vpop.f32.mrb[0].mxu0
    %v2544 = vadd.f32 0.0, %v2543
    %v2545 = vpop.f32.mrb[0].mxu0
    %v2546 = vadd.f32 0.0, %v2545
    %2547 = vmatprep.mubr.f32.mxu0 0.0
    %2548 = vmatmul.mubr.f32.gmra.mrb[0].mxu0 %v1186
    %v2549 = vpop.f32.mrb[0].mxu0
    %v2550 = vadd.f32 0.0, %v2549
    %v2551 = vpop.f32.mrb[0].mxu0
    %v2552 = vadd.f32 0.0, %v2551
    %2553 = vmatprep.mubr.f32.mxu0 0.0
    %2554 = vmatmul.mubr.f32.gmra.mrb[0].mxu0 %v1188
    %v2555 = vpop.f32.mrb[0].mxu0
    %v2556 = vadd.f32 0.0, %v2555
    %v2557 = vpop.f32.mrb[0].mxu0
    %v2558 = vadd.f32 0.0, %v2557
    %2559 = vmatprep.mubr.f32.mxu0 0.0
    %2560 = vmatmul.mubr.f32.gmra.mrb[0].mxu0 %v1190
    %v2561 = vpop.f32.mrb[0].mxu0
    %v2562 = vadd.f32 0.0, %v2561
    %v2563 = vpop.f32.mrb[0].mxu0
    %v2564 = vadd.f32 0.0, %v2563
    %2565 = vdwg.mxu0
    %2566 = vmatprep.subr.mxu0 %v811
    %2567 = vmatpush1.msra.mxu0 %v810
    %2568 = vmatprep.subr.mxu0 %v817
    %2569 = vmatpush1.msra.mxu0 %v816
    %2570 = vmatprep.subr.mxu0 %v823
    %2571 = vmatpush1.msra.mxu0 %v822
    %2572 = vmatprep.subr.mxu0 %v854
    %2573 = vmatpush1.msra.mxu0 %v851
    %2574 = vmatprep.subr.mxu0 0.0
    %2575 = vmatpush1.msra.mxu0 0.0
    %2576 = vmatprep.subr.mxu0 0.0
    %2577 = vmatpush1.msra.mxu0 0.0
    %2578 = vmatprep.subr.mxu0 0.0
    %2579 = vmatpush1.msra.mxu0 0.0
    %2580 = vmatprep.subr.mxu0 0.0
    %2581 = vmatpush1.msra.mxu0 0.0
    %2582 = vmatprep.subr.mxu0 0.0
    %2583 = vmatpush1.msra.mxu0 0.0
    %2584 = vmatprep.subr.mxu0 0.0
    %2585 = vmatpush1.msra.mxu0 0.0
    %2586 = vmatprep.subr.mxu0 0.0
    %2587 = vmatpush1.msra.mxu0 0.0
    %2588 = vmatprep.subr.mxu0 0.0
    %2589 = vmatpush1.msra.mxu0 0.0
    %2590 = vmatprep.subr.mxu0 0.0
    %2591 = vmatpush1.msra.mxu0 0.0
    %2592 = vmatprep.subr.mxu0 0.0
    %2593 = vmatpush1.msra.mxu0 0.0
    %2594 = vmatprep.subr.mxu0 0.0
    %2595 = vmatpush1.msra.mxu0 0.0
    %2596 = vmatprep.subr.mxu0 0.0
    %2597 = vmatpush1.msra.mxu0 0.0
    %2598 = vmatprep.subr.mxu0 0.0
    %2599 = vmatpush1.msra.mxu0 0.0
    %2600 = vmatprep.subr.mxu0 0.0
    %2601 = vmatpush1.msra.mxu0 0.0
    %2602 = vmatprep.subr.mxu0 0.0
    %2603 = vmatpush1.msra.mxu0 0.0
    %2604 = vmatprep.subr.mxu0 0.0
    %2605 = vmatpush1.msra.mxu0 0.0
    %2606 = vmatprep.subr.mxu0 0.0
    %2607 = vmatpush1.msra.mxu0 0.0
    %2608 = vmatprep.subr.mxu0 0.0
    %2609 = vmatpush1.msra.mxu0 0.0
    %2610 = vmatprep.subr.mxu0 0.0
    %2611 = vmatpush1.msra.mxu0 0.0
    %2612 = vmatprep.subr.mxu0 0.0
    %2613 = vmatpush1.msra.mxu0 0.0
    %2614 = vmatprep.subr.mxu0 0.0
    %2615 = vmatpush1.msra.mxu0 0.0
    %2616 = vmatprep.subr.mxu0 0.0
    %2617 = vmatpush1.msra.mxu0 0.0
    %2618 = vmatprep.subr.mxu0 0.0
    %2619 = vmatpush1.msra.mxu0 0.0
    %2620 = vmatprep.subr.mxu0 0.0
    %2621 = vmatpush1.msra.mxu0 0.0
    %2622 = vmatprep.subr.mxu0 0.0
    %2623 = vmatpush1.msra.mxu0 0.0
    %2624 = vmatprep.subr.mxu0 0.0
    %2625 = vmatpush1.msra.mxu0 0.0
    %2626 = vmatprep.subr.mxu0 0.0
    %2627 = vmatpush1.msra.mxu0 0.0
    %2628 = vmatprep.subr.mxu0 0.0
    %2629 = vmatpush1.msra.mxu0 0.0
    %2630 = vmatprep.mubr.f32.mxu0 0.0
    %2631 = vmatmul.mubr.f32.gmra.mrb[0].mxu0 %v1184
    %v2632 = vpop.f32.mrb[0].mxu0
    %v2633 = vadd.f32 0.0, %v2632
    %v2634 = vpop.f32.mrb[0].mxu0
    %v2635 = vadd.f32 0.0, %v2634
    %2636 = vmatprep.mubr.f32.mxu0 0.0
    %2637 = vmatmul.mubr.f32.gmra.mrb[0].mxu0 %v1186
    %v2638 = vpop.f32.mrb[0].mxu0
    %v2639 = vadd.f32 0.0, %v2638
    %v2640 = vpop.f32.mrb[0].mxu0
    %v2641 = vadd.f32 0.0, %v2640
    %2642 = vmatprep.mubr.f32.mxu0 0.0
    %2643 = vmatmul.mubr.f32.gmra.mrb[0].mxu0 %v1188
    %v2644 = vpop.f32.mrb[0].mxu0
    %v2645 = vadd.f32 0.0, %v2644
    %v2646 = vpop.f32.mrb[0].mxu0
    %v2647 = vadd.f32 0.0, %v2646
    %2648 = vmatprep.mubr.f32.mxu0 0.0
    %2649 = vmatmul.mubr.f32.gmra.mrb[0].mxu0 %v1190
    %v2650 = vpop.f32.mrb[0].mxu0
    %v2651 = vadd.f32 0.0, %v2650
    %v2652 = vpop.f32.mrb[0].mxu0
    %v2653 = vadd.f32 0.0, %v2652
    %2654 = vdwg.mxu0
    %v2655 = vadd.f32 %v2188, %v2455
    %v2656 = vadd.f32 %v2190, %v2457
    %v2657 = vadd.f32 %v2277, %v2544
    %v2658 = vadd.f32 %v2279, %v2546
    %v2659 = vadd.f32 %v2366, %v2633
    %v2660 = vadd.f32 %v2368, %v2635
    %v2661 = vadd.f32 %v2194, %v2461
    %v2662 = vadd.f32 %v2196, %v2463
    %v2663 = vadd.f32 %v2283, %v2550
    %v2664 = vadd.f32 %v2285, %v2552
    %v2665 = vadd.f32 %v2372, %v2639
    %v2666 = vadd.f32 %v2374, %v2641
    %v2667 = vadd.f32 %v2200, %v2467
    %v2668 = vadd.f32 %v2202, %v2469
    %v2669 = vadd.f32 %v2289, %v2556
    %v2670 = vadd.f32 %v2291, %v2558
    %v2671 = vadd.f32 %v2378, %v2645
    %v2672 = vadd.f32 %v2380, %v2647
    %v2673 = vadd.f32 %v2206, %v2473
    %v2674 = vadd.f32 %v2208, %v2475
    %v2675 = vadd.f32 %v2295, %v2562
    %v2676 = vadd.f32 %v2297, %v2564
    %v2677 = vadd.f32 %v2384, %v2651
    %v2678 = vadd.f32 %v2386, %v2653
    %2679 = vmatprep.subr.mxu0 %v1161
    %2680 = vmatpush1.msra.mxu0 %v1160
    %2681 = vmatprep.subr.mxu0 %v1167
    %2682 = vmatpush1.msra.mxu0 %v1166
    %2683 = vmatprep.subr.mxu0 %v1173
    %2684 = vmatpush1.msra.mxu0 %v1172
    %2685 = vmatprep.subr.mxu0 %v1196
    %2686 = vmatpush1.msra.mxu0 %v1193
    %2687 = vmatprep.subr.mxu0 0.0
    %2688 = vmatpush1.msra.mxu0 0.0
    %2689 = vmatprep.subr.mxu0 0.0
    %2690 = vmatpush1.msra.mxu0 0.0
    %2691 = vmatprep.subr.mxu0 0.0
    %2692 = vmatpush1.msra.mxu0 0.0
    %2693 = vmatprep.subr.mxu0 0.0
    %2694 = vmatpush1.msra.mxu0 0.0
    %2695 = vmatprep.subr.mxu0 0.0
    %2696 = vmatpush1.msra.mxu0 0.0
    %2697 = vmatprep.subr.mxu0 0.0
    %2698 = vmatpush1.msra.mxu0 0.0
    %2699 = vmatprep.subr.mxu0 0.0
    %2700 = vmatpush1.msra.mxu0 0.0
    %2701 = vmatprep.subr.mxu0 0.0
    %2702 = vmatpush1.msra.mxu0 0.0
    %2703 = vmatprep.subr.mxu0 0.0
    %2704 = vmatpush1.msra.mxu0 0.0
    %2705 = vmatprep.subr.mxu0 0.0
    %2706 = vmatpush1.msra.mxu0 0.0
    %2707 = vmatprep.subr.mxu0 0.0
    %2708 = vmatpush1.msra.mxu0 0.0
    %2709 = vmatprep.subr.mxu0 0.0
    %2710 = vmatpush1.msra.mxu0 0.0
    %2711 = vmatprep.subr.mxu0 0.0
    %2712 = vmatpush1.msra.mxu0 0.0
    %2713 = vmatprep.subr.mxu0 0.0
    %2714 = vmatpush1.msra.mxu0 0.0
    %2715 = vmatprep.subr.mxu0 0.0
    %2716 = vmatpush1.msra.mxu0 0.0
    %2717 = vmatprep.subr.mxu0 0.0
    %2718 = vmatpush1.msra.mxu0 0.0
    %2719 = vmatprep.subr.mxu0 0.0
    %2720 = vmatpush1.msra.mxu0 0.0
    %2721 = vmatprep.subr.mxu0 0.0
    %2722 = vmatpush1.msra.mxu0 0.0
    %2723 = vmatprep.subr.mxu0 0.0
    %2724 = vmatpush1.msra.mxu0 0.0
    %2725 = vmatprep.subr.mxu0 0.0
    %2726 = vmatpush1.msra.mxu0 0.0
    %2727 = vmatprep.subr.mxu0 0.0
    %2728 = vmatpush1.msra.mxu0 0.0
    %2729 = vmatprep.subr.mxu0 0.0
    %2730 = vmatpush1.msra.mxu0 0.0
    %2731 = vmatprep.subr.mxu0 0.0
    %2732 = vmatpush1.msra.mxu0 0.0
    %2733 = vmatprep.subr.mxu0 0.0
    %2734 = vmatpush1.msra.mxu0 0.0
    %2735 = vmatprep.subr.mxu0 0.0
    %2736 = vmatpush1.msra.mxu0 0.0
    %2737 = vmatprep.subr.mxu0 0.0
    %2738 = vmatpush1.msra.mxu0 0.0
    %2739 = vmatprep.subr.mxu0 0.0
    %2740 = vmatpush1.msra.mxu0 0.0
    %2741 = vmatprep.subr.mxu0 0.0
    %2742 = vmatpush1.msra.mxu0 0.0
    %2743 = vmatprep.mubr.f32.mxu0 0.0
    %2744 = vmatmul.mubr.f32.gmra.mrb[0].mxu0 %v1537
    %v2745 = vpop.f32.mrb[0].mxu0
    %v2746 = vadd.f32 0.0, %v2745
    %v2747 = vpop.f32.mrb[0].mxu0
    %v2748 = vadd.f32 0.0, %v2747
    %2749 = vmatprep.mubr.f32.mxu0 0.0
    %2750 = vmatmul.mubr.f32.gmra.mrb[0].mxu0 %v1539
    %v2751 = vpop.f32.mrb[0].mxu0
    %v2752 = vadd.f32 0.0, %v2751
    %v2753 = vpop.f32.mrb[0].mxu0
    %v2754 = vadd.f32 0.0, %v2753
    %2755 = vmatprep.mubr.f32.mxu0 0.0
    %2756 = vmatmul.mubr.f32.gmra.mrb[0].mxu0 %v1541
    %v2757 = vpop.f32.mrb[0].mxu0
    %v2758 = vadd.f32 0.0, %v2757
    %v2759 = vpop.f32.mrb[0].mxu0
    %v2760 = vadd.f32 0.0, %v2759
    %2761 = vmatprep.mubr.f32.mxu0 0.0
    %2762 = vmatmul.mubr.f32.gmra.mrb[0].mxu0 %v1543
    %v2763 = vpop.f32.mrb[0].mxu0
    %v2764 = vadd.f32 0.0, %v2763
    %v2765 = vpop.f32.mrb[0].mxu0
    %v2766 = vadd.f32 0.0, %v2765
    %2767 = vdwg.mxu0
    %2768 = vmatprep.subr.mxu0 %v1163
    %2769 = vmatpush1.msra.mxu0 %v1162
    %2770 = vmatprep.subr.mxu0 %v1169
    %2771 = vmatpush1.msra.mxu0 %v1168
    %2772 = vmatprep.subr.mxu0 %v1175
    %2773 = vmatpush1.msra.mxu0 %v1174
    %2774 = vmatprep.subr.mxu0 %v1202
    %2775 = vmatpush1.msra.mxu0 %v1199
    %2776 = vmatprep.subr.mxu0 0.0
    %2777 = vmatpush1.msra.mxu0 0.0
    %2778 = vmatprep.subr.mxu0 0.0
    %2779 = vmatpush1.msra.mxu0 0.0
    %2780 = vmatprep.subr.mxu0 0.0
    %2781 = vmatpush1.msra.mxu0 0.0
    %2782 = vmatprep.subr.mxu0 0.0
    %2783 = vmatpush1.msra.mxu0 0.0
    %2784 = vmatprep.subr.mxu0 0.0
    %2785 = vmatpush1.msra.mxu0 0.0
    %2786 = vmatprep.subr.mxu0 0.0
    %2787 = vmatpush1.msra.mxu0 0.0
    %2788 = vmatprep.subr.mxu0 0.0
    %2789 = vmatpush1.msra.mxu0 0.0
    %2790 = vmatprep.subr.mxu0 0.0
    %2791 = vmatpush1.msra.mxu0 0.0
    %2792 = vmatprep.subr.mxu0 0.0
    %2793 = vmatpush1.msra.mxu0 0.0
    %2794 = vmatprep.subr.mxu0 0.0
    %2795 = vmatpush1.msra.mxu0 0.0
    %2796 = vmatprep.subr.mxu0 0.0
    %2797 = vmatpush1.msra.mxu0 0.0
    %2798 = vmatprep.subr.mxu0 0.0
    %2799 = vmatpush1.msra.mxu0 0.0
    %2800 = vmatprep.subr.mxu0 0.0
    %2801 = vmatpush1.msra.mxu0 0.0
    %2802 = vmatprep.subr.mxu0 0.0
    %2803 = vmatpush1.msra.mxu0 0.0
    %2804 = vmatprep.subr.mxu0 0.0
    %2805 = vmatpush1.msra.mxu0 0.0
    %2806 = vmatprep.subr.mxu0 0.0
    %2807 = vmatpush1.msra.mxu0 0.0
    %2808 = vmatprep.subr.mxu0 0.0
    %2809 = vmatpush1.msra.mxu0 0.0
    %2810 = vmatprep.subr.mxu0 0.0
    %2811 = vmatpush1.msra.mxu0 0.0
    %2812 = vmatprep.subr.mxu0 0.0
    %2813 = vmatpush1.msra.mxu0 0.0
    %2814 = vmatprep.subr.mxu0 0.0
    %2815 = vmatpush1.msra.mxu0 0.0
    %2816 = vmatprep.subr.mxu0 0.0
    %2817 = vmatpush1.msra.mxu0 0.0
    %2818 = vmatprep.subr.mxu0 0.0
    %2819 = vmatpush1.msra.mxu0 0.0
    %2820 = vmatprep.subr.mxu0 0.0
    %2821 = vmatpush1.msra.mxu0 0.0
    %2822 = vmatprep.subr.mxu0 0.0
    %2823 = vmatpush1.msra.mxu0 0.0
    %2824 = vmatprep.subr.mxu0 0.0
    %2825 = vmatpush1.msra.mxu0 0.0
    %2826 = vmatprep.subr.mxu0 0.0
    %2827 = vmatpush1.msra.mxu0 0.0
    %2828 = vmatprep.subr.mxu0 0.0
    %2829 = vmatpush1.msra.mxu0 0.0
    %2830 = vmatprep.subr.mxu0 0.0
    %2831 = vmatpush1.msra.mxu0 0.0
    %2832 = vmatprep.mubr.f32.mxu0 0.0
    %2833 = vmatmul.mubr.f32.gmra.mrb[0].mxu0 %v1537
    %v2834 = vpop.f32.mrb[0].mxu0
    %v2835 = vadd.f32 0.0, %v2834
    %v2836 = vpop.f32.mrb[0].mxu0
    %v2837 = vadd.f32 0.0, %v2836
    %2838 = vmatprep.mubr.f32.mxu0 0.0
    %2839 = vmatmul.mubr.f32.gmra.mrb[0].mxu0 %v1539
    %v2840 = vpop.f32.mrb[0].mxu0
    %v2841 = vadd.f32 0.0, %v2840
    %v2842 = vpop.f32.mrb[0].mxu0
    %v2843 = vadd.f32 0.0, %v2842
    %2844 = vmatprep.mubr.f32.mxu0 0.0
    %2845 = vmatmul.mubr.f32.gmra.mrb[0].mxu0 %v1541
    %v2846 = vpop.f32.mrb[0].mxu0
    %v2847 = vadd.f32 0.0, %v2846
    %v2848 = vpop.f32.mrb[0].mxu0
    %v2849 = vadd.f32 0.0, %v2848
    %2850 = vmatprep.mubr.f32.mxu0 0.0
    %2851 = vmatmul.mubr.f32.gmra.mrb[0].mxu0 %v1543
    %v2852 = vpop.f32.mrb[0].mxu0
    %v2853 = vadd.f32 0.0, %v2852
    %v2854 = vpop.f32.mrb[0].mxu0
    %v2855 = vadd.f32 0.0, %v2854
    %2856 = vdwg.mxu0
    %2857 = vmatprep.subr.mxu0 %v1165
    %2858 = vmatpush1.msra.mxu0 %v1164
    %2859 = vmatprep.subr.mxu0 %v1171
    %2860 = vmatpush1.msra.mxu0 %v1170
    %2861 = vmatprep.subr.mxu0 %v1177
    %2862 = vmatpush1.msra.mxu0 %v1176
    %2863 = vmatprep.subr.mxu0 %v1208
    %2864 = vmatpush1.msra.mxu0 %v1205
    %2865 = vmatprep.subr.mxu0 0.0
    %2866 = vmatpush1.msra.mxu0 0.0
    %2867 = vmatprep.subr.mxu0 0.0
    %2868 = vmatpush1.msra.mxu0 0.0
    %2869 = vmatprep.subr.mxu0 0.0
    %2870 = vmatpush1.msra.mxu0 0.0
    %2871 = vmatprep.subr.mxu0 0.0
    %2872 = vmatpush1.msra.mxu0 0.0
    %2873 = vmatprep.subr.mxu0 0.0
    %2874 = vmatpush1.msra.mxu0 0.0
    %2875 = vmatprep.subr.mxu0 0.0
    %2876 = vmatpush1.msra.mxu0 0.0
    %2877 = vmatprep.subr.mxu0 0.0
    %2878 = vmatpush1.msra.mxu0 0.0
    %2879 = vmatprep.subr.mxu0 0.0
    %2880 = vmatpush1.msra.mxu0 0.0
    %2881 = vmatprep.subr.mxu0 0.0
    %2882 = vmatpush1.msra.mxu0 0.0
    %2883 = vmatprep.subr.mxu0 0.0
    %2884 = vmatpush1.msra.mxu0 0.0
    %2885 = vmatprep.subr.mxu0 0.0
    %2886 = vmatpush1.msra.mxu0 0.0
    %2887 = vmatprep.subr.mxu0 0.0
    %2888 = vmatpush1.msra.mxu0 0.0
    %2889 = vmatprep.subr.mxu0 0.0
    %2890 = vmatpush1.msra.mxu0 0.0
    %2891 = vmatprep.subr.mxu0 0.0
    %2892 = vmatpush1.msra.mxu0 0.0
    %2893 = vmatprep.subr.mxu0 0.0
    %2894 = vmatpush1.msra.mxu0 0.0
    %2895 = vmatprep.subr.mxu0 0.0
    %2896 = vmatpush1.msra.mxu0 0.0
    %2897 = vmatprep.subr.mxu0 0.0
    %2898 = vmatpush1.msra.mxu0 0.0
    %2899 = vmatprep.subr.mxu0 0.0
    %2900 = vmatpush1.msra.mxu0 0.0
    %2901 = vmatprep.subr.mxu0 0.0
    %2902 = vmatpush1.msra.mxu0 0.0
    %2903 = vmatprep.subr.mxu0 0.0
    %2904 = vmatpush1.msra.mxu0 0.0
    %2905 = vmatprep.subr.mxu0 0.0
    %2906 = vmatpush1.msra.mxu0 0.0
    %2907 = vmatprep.subr.mxu0 0.0
    %2908 = vmatpush1.msra.mxu0 0.0
    %2909 = vmatprep.subr.mxu0 0.0
    %2910 = vmatpush1.msra.mxu0 0.0
    %2911 = vmatprep.subr.mxu0 0.0
    %2912 = vmatpush1.msra.mxu0 0.0
    %2913 = vmatprep.subr.mxu0 0.0
    %2914 = vmatpush1.msra.mxu0 0.0
    %2915 = vmatprep.subr.mxu0 0.0
    %2916 = vmatpush1.msra.mxu0 0.0
    %2917 = vmatprep.subr.mxu0 0.0
    %2918 = vmatpush1.msra.mxu0 0.0
    %2919 = vmatprep.subr.mxu0 0.0
    %2920 = vmatpush1.msra.mxu0 0.0
    %2921 = vmatprep.mubr.f32.mxu0 0.0
    %2922 = vmatmul.mubr.f32.gmra.mrb[0].mxu0 %v1537
    %v2923 = vpop.f32.mrb[0].mxu0
    %v2924 = vadd.f32 0.0, %v2923
    %v2925 = vpop.f32.mrb[0].mxu0
    %v2926 = vadd.f32 0.0, %v2925
    %2927 = vmatprep.mubr.f32.mxu0 0.0
    %2928 = vmatmul.mubr.f32.gmra.mrb[0].mxu0 %v1539
    %v2929 = vpop.f32.mrb[0].mxu0
    %v2930 = vadd.f32 0.0, %v2929
    %v2931 = vpop.f32.mrb[0].mxu0
    %v2932 = vadd.f32 0.0, %v2931
    %2933 = vmatprep.mubr.f32.mxu0 0.0
    %2934 = vmatmul.mubr.f32.gmra.mrb[0].mxu0 %v1541
    %v2935 = vpop.f32.mrb[0].mxu0
    %v2936 = vadd.f32 0.0, %v2935
    %v2937 = vpop.f32.mrb[0].mxu0
    %v2938 = vadd.f32 0.0, %v2937
    %2939 = vmatprep.mubr.f32.mxu0 0.0
    %2940 = vmatmul.mubr.f32.gmra.mrb[0].mxu0 %v1543
    %v2941 = vpop.f32.mrb[0].mxu0
    %v2942 = vadd.f32 0.0, %v2941
    %v2943 = vpop.f32.mrb[0].mxu0
    %v2944 = vadd.f32 0.0, %v2943
    %2945 = vdwg.mxu0
    %v2946 = vadd.f32 %v2655, %v2746
    %v2947 = vadd.f32 %v2656, %v2748
    %v2948 = vadd.f32 %v2657, %v2835
    %v2949 = vadd.f32 %v2658, %v2837
    %v2950 = vadd.f32 %v2659, %v2924
    %v2951 = vadd.f32 %v2660, %v2926
    %v2952 = vadd.f32 %v2661, %v2752
    %v2953 = vadd.f32 %v2662, %v2754
    %v2954 = vadd.f32 %v2663, %v2841
    %v2955 = vadd.f32 %v2664, %v2843
    %v2956 = vadd.f32 %v2665, %v2930
    %v2957 = vadd.f32 %v2666, %v2932
    %v2958 = vadd.f32 %v2667, %v2758
    %v2959 = vadd.f32 %v2668, %v2760
    %v2960 = vadd.f32 %v2669, %v2847
    %v2961 = vadd.f32 %v2670, %v2849
    %v2962 = vadd.f32 %v2671, %v2936
    %v2963 = vadd.f32 %v2672, %v2938
    %v2964 = vadd.f32 %v2673, %v2764
    %v2965 = vadd.f32 %v2674, %v2766
    %v2966 = vadd.f32 %v2675, %v2853
    %v2967 = vadd.f32 %v2676, %v2855
    %v2968 = vadd.f32 %v2677, %v2942
    %v2969 = vadd.f32 %v2678, %v2944
    %v2970 = vrot.slane %v141, 2
    %v2971 = vrot.slane %v142, 2
    %v2972 = vsel %vm1501, %v2970, %v2971
    %v2973 = vrot.slane %v143, 2
    %v2974 = vsel %vm1501, %v2971, %v2973
    %v2975 = vrot.slane %v144, 2
    %v2976 = vrot.slane %v145, 2
    %v2977 = vsel %vm1501, %v2975, %v2976
    %v2978 = vrot.slane %v146, 2
    %v2979 = vsel %vm1501, %v2976, %v2978
    %v2980 = vsel %vm196, %v2972, 0
    %v2982 = vsel %vm196, %v2974, 0
    %v2984 = vsel %vm196, %v2977, 0
    %v2986 = vsel %vm196, %v2979, 0
    %2988 = vmatprep.subr.mxu0 %v1514
    %2989 = vmatpush1.msra.mxu0 %v1513
    %2990 = vmatprep.subr.mxu0 %v1520
    %2991 = vmatpush1.msra.mxu0 %v1519
    %2992 = vmatprep.subr.mxu0 %v1526
    %2993 = vmatpush1.msra.mxu0 %v1525
    %2994 = vmatprep.subr.mxu0 %v1549
    %2995 = vmatpush1.msra.mxu0 %v1546
    %2996 = vmatprep.subr.mxu0 0.0
    %2997 = vmatpush1.msra.mxu0 0.0
    %2998 = vmatprep.subr.mxu0 0.0
    %2999 = vmatpush1.msra.mxu0 0.0
    %3000 = vmatprep.subr.mxu0 0.0
    %3001 = vmatpush1.msra.mxu0 0.0
    %3002 = vmatprep.subr.mxu0 0.0
    %3003 = vmatpush1.msra.mxu0 0.0
    %3004 = vmatprep.subr.mxu0 0.0
    %3005 = vmatpush1.msra.mxu0 0.0
    %3006 = vmatprep.subr.mxu0 0.0
    %3007 = vmatpush1.msra.mxu0 0.0
    %3008 = vmatprep.subr.mxu0 0.0
    %3009 = vmatpush1.msra.mxu0 0.0
    %3010 = vmatprep.subr.mxu0 0.0
    %3011 = vmatpush1.msra.mxu0 0.0
    %3012 = vmatprep.subr.mxu0 0.0
    %3013 = vmatpush1.msra.mxu0 0.0
    %3014 = vmatprep.subr.mxu0 0.0
    %3015 = vmatpush1.msra.mxu0 0.0
    %3016 = vmatprep.subr.mxu0 0.0
    %3017 = vmatpush1.msra.mxu0 0.0
    %3018 = vmatprep.subr.mxu0 0.0
    %3019 = vmatpush1.msra.mxu0 0.0
    %3020 = vmatprep.subr.mxu0 0.0
    %3021 = vmatpush1.msra.mxu0 0.0
    %3022 = vmatprep.subr.mxu0 0.0
    %3023 = vmatpush1.msra.mxu0 0.0
    %3024 = vmatprep.subr.mxu0 0.0
    %3025 = vmatpush1.msra.mxu0 0.0
    %3026 = vmatprep.subr.mxu0 0.0
    %3027 = vmatpush1.msra.mxu0 0.0
    %3028 = vmatprep.subr.mxu0 0.0
    %3029 = vmatpush1.msra.mxu0 0.0
    %3030 = vmatprep.subr.mxu0 0.0
    %3031 = vmatpush1.msra.mxu0 0.0
    %3032 = vmatprep.subr.mxu0 0.0
    %3033 = vmatpush1.msra.mxu0 0.0
    %3034 = vmatprep.subr.mxu0 0.0
    %3035 = vmatpush1.msra.mxu0 0.0
    %3036 = vmatprep.subr.mxu0 0.0
    %3037 = vmatpush1.msra.mxu0 0.0
    %3038 = vmatprep.subr.mxu0 0.0
    %3039 = vmatpush1.msra.mxu0 0.0
    %3040 = vmatprep.subr.mxu0 0.0
    %3041 = vmatpush1.msra.mxu0 0.0
    %3042 = vmatprep.subr.mxu0 0.0
    %3043 = vmatpush1.msra.mxu0 0.0
    %3044 = vmatprep.subr.mxu0 0.0
    %3045 = vmatpush1.msra.mxu0 0.0
    %3046 = vmatprep.subr.mxu0 0.0
    %3047 = vmatpush1.msra.mxu0 0.0
    %3048 = vmatprep.subr.mxu0 0.0
    %3049 = vmatpush1.msra.mxu0 0.0
    %3050 = vmatprep.subr.mxu0 0.0
    %3051 = vmatpush1.msra.mxu0 0.0
    %3052 = vmatprep.mubr.f32.mxu0 0.0
    %3053 = vmatmul.mubr.f32.gmra.mrb[0].mxu0 %v2980
    %v3054 = vpop.f32.mrb[0].mxu0
    %v3055 = vadd.f32 0.0, %v3054
    %v3056 = vpop.f32.mrb[0].mxu0
    %v3057 = vadd.f32 0.0, %v3056
    %3058 = vmatprep.mubr.f32.mxu0 0.0
    %3059 = vmatmul.mubr.f32.gmra.mrb[0].mxu0 %v2982
    %v3060 = vpop.f32.mrb[0].mxu0
    %v3061 = vadd.f32 0.0, %v3060
    %v3062 = vpop.f32.mrb[0].mxu0
    %v3063 = vadd.f32 0.0, %v3062
    %3064 = vmatprep.mubr.f32.mxu0 0.0
    %3065 = vmatmul.mubr.f32.gmra.mrb[0].mxu0 %v2984
    %v3066 = vpop.f32.mrb[0].mxu0
    %v3067 = vadd.f32 0.0, %v3066
    %v3068 = vpop.f32.mrb[0].mxu0
    %v3069 = vadd.f32 0.0, %v3068
    %3070 = vmatprep.mubr.f32.mxu0 0.0
    %3071 = vmatmul.mubr.f32.gmra.mrb[0].mxu0 %v2986
    %v3072 = vpop.f32.mrb[0].mxu0
    %v3073 = vadd.f32 0.0, %v3072
    %v3074 = vpop.f32.mrb[0].mxu0
    %v3075 = vadd.f32 0.0, %v3074
    %3076 = vdwg.mxu0
    %3077 = vmatprep.subr.mxu0 %v1516
    %3078 = vmatpush1.msra.mxu0 %v1515
    %3079 = vmatprep.subr.mxu0 %v1522
    %3080 = vmatpush1.msra.mxu0 %v1521
    %3081 = vmatprep.subr.mxu0 %v1528
    %3082 = vmatpush1.msra.mxu0 %v1527
    %3083 = vmatprep.subr.mxu0 %v1555
    %3084 = vmatpush1.msra.mxu0 %v1552
    %3085 = vmatprep.subr.mxu0 0.0
    %3086 = vmatpush1.msra.mxu0 0.0
    %3087 = vmatprep.subr.mxu0 0.0
    %3088 = vmatpush1.msra.mxu0 0.0
    %3089 = vmatprep.subr.mxu0 0.0
    %3090 = vmatpush1.msra.mxu0 0.0
    %3091 = vmatprep.subr.mxu0 0.0
    %3092 = vmatpush1.msra.mxu0 0.0
    %3093 = vmatprep.subr.mxu0 0.0
    %3094 = vmatpush1.msra.mxu0 0.0
    %3095 = vmatprep.subr.mxu0 0.0
    %3096 = vmatpush1.msra.mxu0 0.0
    %3097 = vmatprep.subr.mxu0 0.0
    %3098 = vmatpush1.msra.mxu0 0.0
    %3099 = vmatprep.subr.mxu0 0.0
    %3100 = vmatpush1.msra.mxu0 0.0
    %3101 = vmatprep.subr.mxu0 0.0
    %3102 = vmatpush1.msra.mxu0 0.0
    %3103 = vmatprep.subr.mxu0 0.0
    %3104 = vmatpush1.msra.mxu0 0.0
    %3105 = vmatprep.subr.mxu0 0.0
    %3106 = vmatpush1.msra.mxu0 0.0
    %3107 = vmatprep.subr.mxu0 0.0
    %3108 = vmatpush1.msra.mxu0 0.0
    %3109 = vmatprep.subr.mxu0 0.0
    %3110 = vmatpush1.msra.mxu0 0.0
    %3111 = vmatprep.subr.mxu0 0.0
    %3112 = vmatpush1.msra.mxu0 0.0
    %3113 = vmatprep.subr.mxu0 0.0
    %3114 = vmatpush1.msra.mxu0 0.0
    %3115 = vmatprep.subr.mxu0 0.0
    %3116 = vmatpush1.msra.mxu0 0.0
    %3117 = vmatprep.subr.mxu0 0.0
    %3118 = vmatpush1.msra.mxu0 0.0
    %3119 = vmatprep.subr.mxu0 0.0
    %3120 = vmatpush1.msra.mxu0 0.0
    %3121 = vmatprep.subr.mxu0 0.0
    %3122 = vmatpush1.msra.mxu0 0.0
    %3123 = vmatprep.subr.mxu0 0.0
    %3124 = vmatpush1.msra.mxu0 0.0
    %3125 = vmatprep.subr.mxu0 0.0
    %3126 = vmatpush1.msra.mxu0 0.0
    %3127 = vmatprep.subr.mxu0 0.0
    %3128 = vmatpush1.msra.mxu0 0.0
    %3129 = vmatprep.subr.mxu0 0.0
    %3130 = vmatpush1.msra.mxu0 0.0
    %3131 = vmatprep.subr.mxu0 0.0
    %3132 = vmatpush1.msra.mxu0 0.0
    %3133 = vmatprep.subr.mxu0 0.0
    %3134 = vmatpush1.msra.mxu0 0.0
    %3135 = vmatprep.subr.mxu0 0.0
    %3136 = vmatpush1.msra.mxu0 0.0
    %3137 = vmatprep.subr.mxu0 0.0
    %3138 = vmatpush1.msra.mxu0 0.0
    %3139 = vmatprep.subr.mxu0 0.0
    %3140 = vmatpush1.msra.mxu0 0.0
    %3141 = vmatprep.mubr.f32.mxu0 0.0
    %3142 = vmatmul.mubr.f32.gmra.mrb[0].mxu0 %v2980
    %v3143 = vpop.f32.mrb[0].mxu0
    %v3144 = vadd.f32 0.0, %v3143
    %v3145 = vpop.f32.mrb[0].mxu0
    %v3146 = vadd.f32 0.0, %v3145
    %3147 = vmatprep.mubr.f32.mxu0 0.0
    %3148 = vmatmul.mubr.f32.gmra.mrb[0].mxu0 %v2982
    %v3149 = vpop.f32.mrb[0].mxu0
    %v3150 = vadd.f32 0.0, %v3149
    %v3151 = vpop.f32.mrb[0].mxu0
    %v3152 = vadd.f32 0.0, %v3151
    %3153 = vmatprep.mubr.f32.mxu0 0.0
    %3154 = vmatmul.mubr.f32.gmra.mrb[0].mxu0 %v2984
    %v3155 = vpop.f32.mrb[0].mxu0
    %v3156 = vadd.f32 0.0, %v3155
    %v3157 = vpop.f32.mrb[0].mxu0
    %v3158 = vadd.f32 0.0, %v3157
    %3159 = vmatprep.mubr.f32.mxu0 0.0
    %3160 = vmatmul.mubr.f32.gmra.mrb[0].mxu0 %v2986
    %v3161 = vpop.f32.mrb[0].mxu0
    %v3162 = vadd.f32 0.0, %v3161
    %v3163 = vpop.f32.mrb[0].mxu0
    %v3164 = vadd.f32 0.0, %v3163
    %3165 = vdwg.mxu0
    %3166 = vmatprep.subr.mxu0 %v1518
    %3167 = vmatpush1.msra.mxu0 %v1517
    %3168 = vmatprep.subr.mxu0 %v1524
    %3169 = vmatpush1.msra.mxu0 %v1523
    %3170 = vmatprep.subr.mxu0 %v1530
    %3171 = vmatpush1.msra.mxu0 %v1529
    %3172 = vmatprep.subr.mxu0 %v1561
    %3173 = vmatpush1.msra.mxu0 %v1558
    %3174 = vmatprep.subr.mxu0 0.0
    %3175 = vmatpush1.msra.mxu0 0.0
    %3176 = vmatprep.subr.mxu0 0.0
    %3177 = vmatpush1.msra.mxu0 0.0
    %3178 = vmatprep.subr.mxu0 0.0
    %3179 = vmatpush1.msra.mxu0 0.0
    %3180 = vmatprep.subr.mxu0 0.0
    %3181 = vmatpush1.msra.mxu0 0.0
    %3182 = vmatprep.subr.mxu0 0.0
    %3183 = vmatpush1.msra.mxu0 0.0
    %3184 = vmatprep.subr.mxu0 0.0
    %3185 = vmatpush1.msra.mxu0 0.0
    %3186 = vmatprep.subr.mxu0 0.0
    %3187 = vmatpush1.msra.mxu0 0.0
    %3188 = vmatprep.subr.mxu0 0.0
    %3189 = vmatpush1.msra.mxu0 0.0
    %3190 = vmatprep.subr.mxu0 0.0
    %3191 = vmatpush1.msra.mxu0 0.0
    %3192 = vmatprep.subr.mxu0 0.0
    %3193 = vmatpush1.msra.mxu0 0.0
    %3194 = vmatprep.subr.mxu0 0.0
    %3195 = vmatpush1.msra.mxu0 0.0
    %3196 = vmatprep.subr.mxu0 0.0
    %3197 = vmatpush1.msra.mxu0 0.0
    %3198 = vmatprep.subr.mxu0 0.0
    %3199 = vmatpush1.msra.mxu0 0.0
    %3200 = vmatprep.subr.mxu0 0.0
    %3201 = vmatpush1.msra.mxu0 0.0
    %3202 = vmatprep.subr.mxu0 0.0
    %3203 = vmatpush1.msra.mxu0 0.0
    %3204 = vmatprep.subr.mxu0 0.0
    %3205 = vmatpush1.msra.mxu0 0.0
    %3206 = vmatprep.subr.mxu0 0.0
    %3207 = vmatpush1.msra.mxu0 0.0
    %3208 = vmatprep.subr.mxu0 0.0
    %3209 = vmatpush1.msra.mxu0 0.0
    %3210 = vmatprep.subr.mxu0 0.0
    %3211 = vmatpush1.msra.mxu0 0.0
    %3212 = vmatprep.subr.mxu0 0.0
    %3213 = vmatpush1.msra.mxu0 0.0
    %3214 = vmatprep.subr.mxu0 0.0
    %3215 = vmatpush1.msra.mxu0 0.0
    %3216 = vmatprep.subr.mxu0 0.0
    %3217 = vmatpush1.msra.mxu0 0.0
    %3218 = vmatprep.subr.mxu0 0.0
    %3219 = vmatpush1.msra.mxu0 0.0
    %3220 = vmatprep.subr.mxu0 0.0
    %3221 = vmatpush1.msra.mxu0 0.0
    %3222 = vmatprep.subr.mxu0 0.0
    %3223 = vmatpush1.msra.mxu0 0.0
    %3224 = vmatprep.subr.mxu0 0.0
    %3225 = vmatpush1.msra.mxu0 0.0
    %3226 = vmatprep.subr.mxu0 0.0
    %3227 = vmatpush1.msra.mxu0 0.0
    %3228 = vmatprep.subr.mxu0 0.0
    %3229 = vmatpush1.msra.mxu0 0.0
    %3230 = vmatprep.mubr.f32.mxu0 0.0
    %3231 = vmatmul.mubr.f32.gmra.mrb[0].mxu0 %v2980
    %v3232 = vpop.f32.mrb[0].mxu0
    %v3233 = vadd.f32 0.0, %v3232
    %v3234 = vpop.f32.mrb[0].mxu0
    %v3235 = vadd.f32 0.0, %v3234
    %3236 = vmatprep.mubr.f32.mxu0 0.0
    %3237 = vmatmul.mubr.f32.gmra.mrb[0].mxu0 %v2982
    %v3238 = vpop.f32.mrb[0].mxu0
    %v3239 = vadd.f32 0.0, %v3238
    %v3240 = vpop.f32.mrb[0].mxu0
    %v3241 = vadd.f32 0.0, %v3240
    %3242 = vmatprep.mubr.f32.mxu0 0.0
    %3243 = vmatmul.mubr.f32.gmra.mrb[0].mxu0 %v2984
    %v3244 = vpop.f32.mrb[0].mxu0
    %v3245 = vadd.f32 0.0, %v3244
    %v3246 = vpop.f32.mrb[0].mxu0
    %v3247 = vadd.f32 0.0, %v3246
    %3248 = vmatprep.mubr.f32.mxu0 0.0
    %3249 = vmatmul.mubr.f32.gmra.mrb[0].mxu0 %v2986
    %v3250 = vpop.f32.mrb[0].mxu0
    %v3251 = vadd.f32 0.0, %v3250
    %v3252 = vpop.f32.mrb[0].mxu0
    %v3253 = vadd.f32 0.0, %v3252
    %3254 = vdwg.mxu0
    %v3255 = vadd.f32 %v2946, %v3055
    %v3256 = vadd.f32 %v2947, %v3057
    %v3257 = vadd.f32 %v2948, %v3144
    %v3258 = vadd.f32 %v2949, %v3146
    %v3259 = vadd.f32 %v2950, %v3233
    %v3260 = vadd.f32 %v2951, %v3235
    %v3261 = vadd.f32 %v2952, %v3061
    %v3262 = vadd.f32 %v2953, %v3063
    %v3263 = vadd.f32 %v2954, %v3150
    %v3264 = vadd.f32 %v2955, %v3152
    %v3265 = vadd.f32 %v2956, %v3239
    %v3266 = vadd.f32 %v2957, %v3241
    %v3267 = vadd.f32 %v2958, %v3067
    %v3268 = vadd.f32 %v2959, %v3069
    %v3269 = vadd.f32 %v2960, %v3156
    %v3270 = vadd.f32 %v2961, %v3158
    %v3271 = vadd.f32 %v2962, %v3245
    %v3272 = vadd.f32 %v2963, %v3247
    %v3273 = vadd.f32 %v2964, %v3073
    %v3274 = vadd.f32 %v2965, %v3075
    %v3275 = vadd.f32 %v2966, %v3162
    %v3276 = vadd.f32 %v2967, %v3164
    %v3277 = vadd.f32 %v2968, %v3251
    %v3278 = vadd.f32 %v2969, %v3253
    %v3279 = vmax.f32 %v1830, %v1833
    %v3280 = vmax.f32 %v1831, %v1834
    %v3281 = vmax.f32 %v1832, %v1835
    %v3282 = vmax.f32 %v1836, %v1839
    %v3283 = vmax.f32 %v1837, %v1840
    %v3284 = vmax.f32 %v1838, %v1841
    %v3285 = vmax.f32 %v1842, %v1845
    %v3286 = vmax.f32 %v1843, %v1846
    %v3287 = vmax.f32 %v1844, %v1847
    %v3288 = vmax.f32 %v1848, %v1851
    %v3289 = vmax.f32 %v1849, %v1852
    %v3290 = vmax.f32 %v1850, %v1853
    %v3291 = vmax.f32 %v3255, %v3258
    %v3292 = vmax.f32 %v3256, %v3259
    %v3293 = vmax.f32 %v3257, %v3260
    %v3294 = vmax.f32 %v3261, %v3264
    %v3295 = vmax.f32 %v3262, %v3265
    %v3296 = vmax.f32 %v3263, %v3266
    %v3297 = vmax.f32 %v3267, %v3270
    %v3298 = vmax.f32 %v3268, %v3271
    %v3299 = vmax.f32 %v3269, %v3272
    %v3300 = vmax.f32 %v3273, %v3276
    %v3301 = vmax.f32 %v3274, %v3277
    %v3302 = vmax.f32 %v3275, %v3278
    %v3303 = vmax.f32 %v3279, %v3291
    %v3304 = vmax.f32 %v3280, %v3292
    %v3305 = vmax.f32 %v3281, %v3293
    %v3306 = vmax.f32 %v3282, %v3294
    %v3307 = vmax.f32 %v3283, %v3295
    %v3308 = vmax.f32 %v3284, %v3296
    %v3309 = vmax.f32 %v3285, %v3297
    %v3310 = vmax.f32 %v3286, %v3298
    %v3311 = vmax.f32 %v3287, %v3299
    %v3312 = vmax.f32 %v3288, %v3300
    %v3313 = vmax.f32 %v3289, %v3301
    %v3314 = vmax.f32 %v3290, %v3302
    %v3315 = vld [vmem:[#allocation6] sm:$0x7]
    %v3317 = vlaneseq
    %v3318 = vshrl.u32 %v3317, 7
    %v3319 = vsub.s32 0, %v3318
    %v3320 = vrot.slane %v3315, %v3319
    %v3321 = vlaneseq
    %v3322 = vshrl.u32 %v3321, 7
    %v3323 = vsub.s32 1, %v3322
    %v3324 = vrot.slane %v3315, %v3323
    %v3325 = vlaneseq
    %v3326 = vshrl.u32 %v3325, 7
    %v3327 = vsub.s32 2, %v3326
    %v3328 = vrot.slane %v3315, %v3327
    %v3332 = vadd.f32 %v3303, %v3320
    %v3333 = vadd.f32 %v3304, %v3324
    %v3334 = vadd.f32 %v3305, %v3328
    %v3335 = vadd.f32 %v3306, %v3320
    %v3336 = vadd.f32 %v3307, %v3324
    %v3337 = vadd.f32 %v3308, %v3328
    %v3338 = vadd.f32 %v3309, %v3320
    %v3339 = vadd.f32 %v3310, %v3324
    %v3340 = vadd.f32 %v3311, %v3328
    %v3341 = vadd.f32 %v3312, %v3320
    %v3342 = vadd.f32 %v3313, %v3324
    %v3343 = vadd.f32 %v3314, %v3328
    %v3344 = vld [vmem:[#allocation8] sm:$0xff]
    %v3345 = vld [vmem:[#allocation8 + $0x8] sm:$0xff]
    %v3346 = vld [vmem:[#allocation8 + $0x10] sm:$0xff]
    %v3347 = vld [vmem:[#allocation8 + $0x18] sm:$0xff]
    %v3348 = vld [vmem:[#allocation8 + $0x20] sm:$0xff]
    %v3349 = vld [vmem:[#allocation8 + $0x28] sm:$0xff]
    %v3350 = vld [vmem:[#allocation8 + $0x30] sm:$0xff]
    %v3351 = vld [vmem:[#allocation8 + $0x38] sm:$0xff]
    %v3352 = vld [vmem:[#allocation8 + $0x40] sm:$0xff]
    %v3353 = vld [vmem:[#allocation8 + $0x48] sm:$0xff]
    %v3354 = vld [vmem:[#allocation8 + $0x50] sm:$0xff]
    %v3355 = vld [vmem:[#allocation8 + $0x58] sm:$0xff]
    %v3356 = vld [vmem:[#allocation8 + $0x60] sm:$0xff]
    %v3357 = vld [vmem:[#allocation8 + $0x68] sm:$0xff]
    %v3358 = vld [vmem:[#allocation8 + $0x70] sm:$0xff]
    %v3359 = vld [vmem:[#allocation8 + $0x78] sm:$0xff]
    %v3360 = vld [vmem:[#allocation8 + $0x80] sm:$0xff]
    %v3361 = vld [vmem:[#allocation8 + $0x88] sm:$0xff]
    %v3362 = vld [vmem:[#allocation8 + $0x90] sm:$0xff]
    %v3363 = vld [vmem:[#allocation8 + $0x98] sm:$0xff]
    %v3364 = vld [vmem:[#allocation8 + $0xa0] sm:$0xff]
    %v3365 = vld [vmem:[#allocation8 + $0xa8] sm:$0xff]
    %v3366 = vld [vmem:[#allocation8 + $0xb0] sm:$0xff]
    %v3367 = vld [vmem:[#allocation8 + $0xb8] sm:$0xff]
    %v3368 = vld [vmem:[#allocation8 + $0xc0] sm:$0xff]
    %v3369 = vld [vmem:[#allocation8 + $0xc8] sm:$0xff]
    %v3370 = vld [vmem:[#allocation8 + $0xd0] sm:$0xff]
    %v3371 = vld [vmem:[#allocation8 + $0xd8] sm:$0xff]
    %v3372 = vld [vmem:[#allocation8 + $0xe0] sm:$0xff]
    %v3373 = vld [vmem:[#allocation8 + $0xe8] sm:$0xff]
    %v3374 = vld [vmem:[#allocation8 + $0xf0] sm:$0xff]
    %v3375 = vld [vmem:[#allocation8 + $0xf8] sm:$0xff]
    %v3376 = vld [vmem:[#allocation8 + $0x100] sm:$0xff]
    %v3377 = vld [vmem:[#allocation8 + $0x108] sm:$0xff]
    %v3378 = vld [vmem:[#allocation8 + $0x110] sm:$0xff]
    %v3379 = vld [vmem:[#allocation8 + $0x118] sm:$0xff]
    %v3380 = vld [vmem:[#allocation8 + $0x120] sm:$0xff]
    %v3381 = vld [vmem:[#allocation8 + $0x128] sm:$0xff]
    %v3382 = vld [vmem:[#allocation8 + $0x130] sm:$0xff]
    %v3383 = vld [vmem:[#allocation8 + $0x138] sm:$0xff]
    %v3384 = vld [vmem:[#allocation8 + $0x140] sm:$0xff]
    %v3385 = vld [vmem:[#allocation8 + $0x148] sm:$0xff]
    %v3386 = vld [vmem:[#allocation8 + $0x150] sm:$0xff]
    %v3387 = vld [vmem:[#allocation8 + $0x158] sm:$0xff]
    %v3388 = vld [vmem:[#allocation8 + $0x160] sm:$0xff]
    %v3389 = vld [vmem:[#allocation8 + $0x168] sm:$0xff]
    %v3390 = vld [vmem:[#allocation8 + $0x170] sm:$0xff]
    %v3391 = vld [vmem:[#allocation8 + $0x178] sm:$0xff]
    %v3392 = vld [vmem:[#allocation8 + $0x180] sm:$0xff]
    %v3393 = vld [vmem:[#allocation8 + $0x188] sm:$0xff]
    %v3394 = vld [vmem:[#allocation8 + $0x190] sm:$0xff]
    %v3395 = vld [vmem:[#allocation8 + $0x198] sm:$0xff]
    %v3396 = vld [vmem:[#allocation8 + $0x1a0] sm:$0xff]
    %v3397 = vld [vmem:[#allocation8 + $0x1a8] sm:$0xff]
    %v3398 = vld [vmem:[#allocation8 + $0x1b0] sm:$0xff]
    %v3399 = vld [vmem:[#allocation8 + $0x1b8] sm:$0xff]
    %v3400 = vld [vmem:[#allocation8 + $0x1c0] sm:$0xff]
    %v3401 = vld [vmem:[#allocation8 + $0x1c8] sm:$0xff]
    %v3402 = vld [vmem:[#allocation8 + $0x1d0] sm:$0xff]
    %v3403 = vld [vmem:[#allocation8 + $0x1d8] sm:$0xff]
    %v3404 = vld [vmem:[#allocation8 + $0x1e0] sm:$0xff]
    %v3405 = vld [vmem:[#allocation8 + $0x1e8] sm:$0xff]
    %v3406 = vld [vmem:[#allocation8 + $0x1f0] sm:$0xff]
    %v3407 = vld [vmem:[#allocation8 + $0x1f8] sm:$0xff]
    %v3408 = vld [vmem:[#allocation8 + $0x200] sm:$0xff]
    %v3409 = vld [vmem:[#allocation8 + $0x208] sm:$0xff]
    %v3410 = vld [vmem:[#allocation8 + $0x210] sm:$0xff]
    %v3411 = vld [vmem:[#allocation8 + $0x218] sm:$0xff]
    %v3412 = vld [vmem:[#allocation8 + $0x220] sm:$0xff]
    %v3413 = vld [vmem:[#allocation8 + $0x228] sm:$0xff]
    %v3414 = vld [vmem:[#allocation8 + $0x230] sm:$0xff]
    %v3415 = vld [vmem:[#allocation8 + $0x238] sm:$0xff]
    %v3416 = vld [vmem:[#allocation8 + $0x240] sm:$0xff]
    %v3417 = vld [vmem:[#allocation8 + $0x248] sm:$0xff]
    %v3418 = vld [vmem:[#allocation8 + $0x250] sm:$0xff]
    %v3419 = vld [vmem:[#allocation8 + $0x258] sm:$0xff]
    %v3420 = vld [vmem:[#allocation8 + $0x260] sm:$0xff]
    %v3421 = vld [vmem:[#allocation8 + $0x268] sm:$0xff]
    %v3422 = vld [vmem:[#allocation8 + $0x270] sm:$0xff]
    %v3423 = vld [vmem:[#allocation8 + $0x278] sm:$0xff]
    %v3424 = vld [vmem:[#allocation8 + $0x280] sm:$0xff]
    %v3425 = vld [vmem:[#allocation8 + $0x288] sm:$0xff]
    %v3426 = vld [vmem:[#allocation8 + $0x290] sm:$0xff]
    %v3427 = vld [vmem:[#allocation8 + $0x298] sm:$0xff]
    %v3428 = vld [vmem:[#allocation8 + $0x2a0] sm:$0xff]
    %v3429 = vld [vmem:[#allocation8 + $0x2a8] sm:$0xff]
    %v3430 = vld [vmem:[#allocation8 + $0x2b0] sm:$0xff]
    %v3431 = vld [vmem:[#allocation8 + $0x2b8] sm:$0xff]
    %v3432 = vld [vmem:[#allocation8 + $0x2c0] sm:$0xff]
    %v3433 = vld [vmem:[#allocation8 + $0x2c8] sm:$0xff]
    %v3434 = vld [vmem:[#allocation8 + $0x2d0] sm:$0xff]
    %v3435 = vld [vmem:[#allocation8 + $0x2d8] sm:$0xff]
    %v3436 = vld [vmem:[#allocation8 + $0x2e0] sm:$0xff]
    %v3437 = vld [vmem:[#allocation8 + $0x2e8] sm:$0xff]
    %v3438 = vld [vmem:[#allocation8 + $0x2f0] sm:$0xff]
    %v3439 = vld [vmem:[#allocation8 + $0x2f8] sm:$0xff]
    %v3440 = vld [vmem:[#allocation8 + $0x300] sm:$0xff]
    %v3441 = vld [vmem:[#allocation8 + $0x308] sm:$0xff]
    %v3442 = vld [vmem:[#allocation8 + $0x310] sm:$0xff]
    %v3443 = vld [vmem:[#allocation8 + $0x318] sm:$0xff]
    %v3444 = vld [vmem:[#allocation8 + $0x320] sm:$0xff]
    %v3445 = vld [vmem:[#allocation8 + $0x328] sm:$0xff]
    %v3446 = vld [vmem:[#allocation8 + $0x330] sm:$0xff]
    %v3447 = vld [vmem:[#allocation8 + $0x338] sm:$0xff]
    %v3448 = vld [vmem:[#allocation8 + $0x340] sm:$0xff]
    %v3449 = vld [vmem:[#allocation8 + $0x348] sm:$0xff]
    %v3450 = vld [vmem:[#allocation8 + $0x350] sm:$0xff]
    %v3451 = vld [vmem:[#allocation8 + $0x358] sm:$0xff]
    %v3452 = vld [vmem:[#allocation8 + $0x360] sm:$0xff]
    %v3453 = vld [vmem:[#allocation8 + $0x368] sm:$0xff]
    %v3454 = vld [vmem:[#allocation8 + $0x370] sm:$0xff]
    %v3455 = vld [vmem:[#allocation8 + $0x378] sm:$0xff]
    %v3456 = vld [vmem:[#allocation8 + $0x380] sm:$0xff]
    %v3457 = vld [vmem:[#allocation8 + $0x388] sm:$0xff]
    %v3458 = vld [vmem:[#allocation8 + $0x390] sm:$0xff]
    %v3459 = vld [vmem:[#allocation8 + $0x398] sm:$0xff]
    %v3460 = vld [vmem:[#allocation8 + $0x3a0] sm:$0xff]
    %v3461 = vld [vmem:[#allocation8 + $0x3a8] sm:$0xff]
    %v3462 = vld [vmem:[#allocation8 + $0x3b0] sm:$0xff]
    %v3463 = vld [vmem:[#allocation8 + $0x3b8] sm:$0xff]
    %v3464 = vld [vmem:[#allocation8 + $0x3c0] sm:$0xff]
    %v3465 = vld [vmem:[#allocation8 + $0x3c8] sm:$0xff]
    %v3466 = vld [vmem:[#allocation8 + $0x3d0] sm:$0xff]
    %v3467 = vld [vmem:[#allocation8 + $0x3d8] sm:$0xff]
    %v3468 = vld [vmem:[#allocation8 + $0x3e0] sm:$0xff]
    %v3469 = vld [vmem:[#allocation8 + $0x3e8] sm:$0xff]
    %v3470 = vld [vmem:[#allocation8 + $0x3f0] sm:$0xff]
    %v3471 = vld [vmem:[#allocation8 + $0x3f8] sm:$0xff]
    %v3472 = vld [vmem:[#allocation8 + $0x400] sm:$0xff]
    %v3473 = vld [vmem:[#allocation8 + $0x408] sm:$0xff]
    %v3474 = vld [vmem:[#allocation8 + $0x410] sm:$0xff]
    %v3475 = vld [vmem:[#allocation8 + $0x418] sm:$0xff]
    %v3476 = vld [vmem:[#allocation8 + $0x420] sm:$0xff]
    %v3477 = vld [vmem:[#allocation8 + $0x428] sm:$0xff]
    %v3478 = vld [vmem:[#allocation8 + $0x430] sm:$0xff]
    %v3479 = vld [vmem:[#allocation8 + $0x438] sm:$0xff]
    %v3480 = vld [vmem:[#allocation8 + $0x440] sm:$0xff]
    %v3481 = vld [vmem:[#allocation8 + $0x448] sm:$0xff]
    %v3482 = vld [vmem:[#allocation8 + $0x450] sm:$0xff]
    %v3483 = vld [vmem:[#allocation8 + $0x458] sm:$0xff]
    %v3484 = vld [vmem:[#allocation8 + $0x460] sm:$0xff]
    %v3485 = vld [vmem:[#allocation8 + $0x468] sm:$0xff]
    %v3486 = vld [vmem:[#allocation8 + $0x470] sm:$0xff]
    %v3487 = vld [vmem:[#allocation8 + $0x478] sm:$0xff]
    %v3488 = vld [vmem:[#allocation8 + $0x480] sm:$0xff]
    %v3489 = vld [vmem:[#allocation8 + $0x488] sm:$0xff]
    %v3490 = vld [vmem:[#allocation8 + $0x490] sm:$0xff]
    %v3491 = vld [vmem:[#allocation8 + $0x498] sm:$0xff]
    %v3492 = vld [vmem:[#allocation8 + $0x4a0] sm:$0xff]
    %v3493 = vld [vmem:[#allocation8 + $0x4a8] sm:$0xff]
    %v3494 = vld [vmem:[#allocation8 + $0x4b0] sm:$0xff]
    %v3495 = vld [vmem:[#allocation8 + $0x4b8] sm:$0xff]
    %v3496 = vld [vmem:[#allocation8 + $0x4c0] sm:$0xff]
    %v3497 = vld [vmem:[#allocation8 + $0x4c8] sm:$0xff]
    %v3498 = vld [vmem:[#allocation8 + $0x4d0] sm:$0xff]
    %v3499 = vld [vmem:[#allocation8 + $0x4d8] sm:$0xff]
    %v3500 = vld [vmem:[#allocation8 + $0x4e0] sm:$0xff]
    %v3501 = vld [vmem:[#allocation8 + $0x4e8] sm:$0xff]
    %v3502 = vld [vmem:[#allocation8 + $0x4f0] sm:$0xff]
    %v3503 = vld [vmem:[#allocation8 + $0x4f8] sm:$0xff]
    %v3504 = vld [vmem:[#allocation8 + $0x500] sm:$0xff]
    %v3505 = vld [vmem:[#allocation8 + $0x508] sm:$0xff]
    %v3506 = vld [vmem:[#allocation8 + $0x510] sm:$0xff]
    %v3507 = vld [vmem:[#allocation8 + $0x518] sm:$0xff]
    %v3508 = vld [vmem:[#allocation8 + $0x520] sm:$0xff]
    %v3509 = vld [vmem:[#allocation8 + $0x528] sm:$0xff]
    %v3510 = vld [vmem:[#allocation8 + $0x530] sm:$0xff]
    %v3511 = vld [vmem:[#allocation8 + $0x538] sm:$0xff]
    %v3512 = vld [vmem:[#allocation8 + $0x540] sm:$0xff]
    %v3513 = vld [vmem:[#allocation8 + $0x548] sm:$0xff]
    %v3514 = vld [vmem:[#allocation8 + $0x550] sm:$0xff]
    %v3515 = vld [vmem:[#allocation8 + $0x558] sm:$0xff]
    %v3516 = vld [vmem:[#allocation8 + $0x560] sm:$0xff]
    %v3517 = vld [vmem:[#allocation8 + $0x568] sm:$0xff]
    %v3518 = vld [vmem:[#allocation8 + $0x570] sm:$0xff]
    %v3519 = vld [vmem:[#allocation8 + $0x578] sm:$0xff]
    %v3520 = vld [vmem:[#allocation8 + $0x580] sm:$0xff]
    %v3521 = vld [vmem:[#allocation8 + $0x588] sm:$0xff]
    %v3522 = vld [vmem:[#allocation8 + $0x590] sm:$0xff]
    %v3523 = vld [vmem:[#allocation8 + $0x598] sm:$0xff]
    %v3524 = vld [vmem:[#allocation8 + $0x5a0] sm:$0xff]
    %v3525 = vld [vmem:[#allocation8 + $0x5a8] sm:$0xff]
    %v3526 = vld [vmem:[#allocation8 + $0x5b0] sm:$0xff]
    %v3527 = vld [vmem:[#allocation8 + $0x5b8] sm:$0xff]
    %v3528 = vld [vmem:[#allocation8 + $0x5c0] sm:$0xff]
    %v3529 = vld [vmem:[#allocation8 + $0x5c8] sm:$0xff]
    %v3530 = vld [vmem:[#allocation8 + $0x5d0] sm:$0xff]
    %v3531 = vld [vmem:[#allocation8 + $0x5d8] sm:$0xff]
    %v3532 = vld [vmem:[#allocation8 + $0x5e0] sm:$0xff]
    %v3533 = vld [vmem:[#allocation8 + $0x5e8] sm:$0xff]
    %v3534 = vld [vmem:[#allocation8 + $0x5f0] sm:$0xff]
    %v3535 = vld [vmem:[#allocation8 + $0x5f8] sm:$0xff]
    %v3548 = vrot.slane %v3332, 1
    %v3549 = vrot.slane %v3335, 1
    %v3550 = vsel %vm794, %v3548, %v3549
    %v3551 = vrot.slane %v3333, 1
    %v3552 = vrot.slane %v3336, 1
    %v3553 = vsel %vm794, %v3551, %v3552
    %v3554 = vrot.slane %v3334, 1
    %v3555 = vrot.slane %v3337, 1
    %v3556 = vsel %vm794, %v3554, %v3555
    %v3557 = vrot.slane %v3338, 1
    %v3558 = vrot.slane %v3341, 1
    %v3559 = vsel %vm794, %v3557, %v3558
    %v3560 = vrot.slane %v3339, 1
    %v3561 = vrot.slane %v3342, 1
    %v3562 = vsel %vm794, %v3560, %v3561
    %v3563 = vrot.slane %v3340, 1
    %v3564 = vrot.slane %v3343, 1
    %v3565 = vsel %vm794, %v3563, %v3564
    %s3572 = scalar_lea.vmem [#allocation8], 1536
    %v3573 = vld [vmem:[%s3572] sm:$0xff]
    %v3574 = vld [vmem:[%s3572 + $0x8] sm:$0xff]
    %v3575 = vld [vmem:[%s3572 + $0x10] sm:$0xff]
    %v3576 = vld [vmem:[%s3572 + $0x18] sm:$0xff]
    %v3577 = vld [vmem:[%s3572 + $0x20] sm:$0xff]
    %v3578 = vld [vmem:[%s3572 + $0x28] sm:$0xff]
    %v3579 = vld [vmem:[%s3572 + $0x30] sm:$0xff]
    %v3580 = vld [vmem:[%s3572 + $0x38] sm:$0xff]
    %v3581 = vld [vmem:[%s3572 + $0x40] sm:$0xff]
    %v3582 = vld [vmem:[%s3572 + $0x48] sm:$0xff]
    %v3583 = vld [vmem:[%s3572 + $0x50] sm:$0xff]
    %v3584 = vld [vmem:[%s3572 + $0x58] sm:$0xff]
    %v3585 = vld [vmem:[%s3572 + $0x60] sm:$0xff]
    %v3586 = vld [vmem:[%s3572 + $0x68] sm:$0xff]
    %v3587 = vld [vmem:[%s3572 + $0x70] sm:$0xff]
    %v3588 = vld [vmem:[%s3572 + $0x78] sm:$0xff]
    %v3589 = vld [vmem:[%s3572 + $0x80] sm:$0xff]
    %v3590 = vld [vmem:[%s3572 + $0x88] sm:$0xff]
    %v3591 = vld [vmem:[%s3572 + $0x90] sm:$0xff]
    %v3592 = vld [vmem:[%s3572 + $0x98] sm:$0xff]
    %v3593 = vld [vmem:[%s3572 + $0xa0] sm:$0xff]
    %v3594 = vld [vmem:[%s3572 + $0xa8] sm:$0xff]
    %v3595 = vld [vmem:[%s3572 + $0xb0] sm:$0xff]
    %v3596 = vld [vmem:[%s3572 + $0xb8] sm:$0xff]
    %v3597 = vld [vmem:[%s3572 + $0xc0] sm:$0xff]
    %v3598 = vld [vmem:[%s3572 + $0xc8] sm:$0xff]
    %v3599 = vld [vmem:[%s3572 + $0xd0] sm:$0xff]
    %v3600 = vld [vmem:[%s3572 + $0xd8] sm:$0xff]
    %v3601 = vld [vmem:[%s3572 + $0xe0] sm:$0xff]
    %v3602 = vld [vmem:[%s3572 + $0xe8] sm:$0xff]
    %v3603 = vld [vmem:[%s3572 + $0xf0] sm:$0xff]
    %v3604 = vld [vmem:[%s3572 + $0xf8] sm:$0xff]
    %v3605 = vld [vmem:[%s3572 + $0x100] sm:$0xff]
    %v3606 = vld [vmem:[%s3572 + $0x108] sm:$0xff]
    %v3607 = vld [vmem:[%s3572 + $0x110] sm:$0xff]
    %v3608 = vld [vmem:[%s3572 + $0x118] sm:$0xff]
    %v3609 = vld [vmem:[%s3572 + $0x120] sm:$0xff]
    %v3610 = vld [vmem:[%s3572 + $0x128] sm:$0xff]
    %v3611 = vld [vmem:[%s3572 + $0x130] sm:$0xff]
    %v3612 = vld [vmem:[%s3572 + $0x138] sm:$0xff]
    %v3613 = vld [vmem:[%s3572 + $0x140] sm:$0xff]
    %v3614 = vld [vmem:[%s3572 + $0x148] sm:$0xff]
    %v3615 = vld [vmem:[%s3572 + $0x150] sm:$0xff]
    %v3616 = vld [vmem:[%s3572 + $0x158] sm:$0xff]
    %v3617 = vld [vmem:[%s3572 + $0x160] sm:$0xff]
    %v3618 = vld [vmem:[%s3572 + $0x168] sm:$0xff]
    %v3619 = vld [vmem:[%s3572 + $0x170] sm:$0xff]
    %v3620 = vld [vmem:[%s3572 + $0x178] sm:$0xff]
    %v3621 = vld [vmem:[%s3572 + $0x180] sm:$0xff]
    %v3622 = vld [vmem:[%s3572 + $0x188] sm:$0xff]
    %v3623 = vld [vmem:[%s3572 + $0x190] sm:$0xff]
    %v3624 = vld [vmem:[%s3572 + $0x198] sm:$0xff]
    %v3625 = vld [vmem:[%s3572 + $0x1a0] sm:$0xff]
    %v3626 = vld [vmem:[%s3572 + $0x1a8] sm:$0xff]
    %v3627 = vld [vmem:[%s3572 + $0x1b0] sm:$0xff]
    %v3628 = vld [vmem:[%s3572 + $0x1b8] sm:$0xff]
    %v3629 = vld [vmem:[%s3572 + $0x1c0] sm:$0xff]
    %v3630 = vld [vmem:[%s3572 + $0x1c8] sm:$0xff]
    %v3631 = vld [vmem:[%s3572 + $0x1d0] sm:$0xff]
    %v3632 = vld [vmem:[%s3572 + $0x1d8] sm:$0xff]
    %v3633 = vld [vmem:[%s3572 + $0x1e0] sm:$0xff]
    %v3634 = vld [vmem:[%s3572 + $0x1e8] sm:$0xff]
    %v3635 = vld [vmem:[%s3572 + $0x1f0] sm:$0xff]
    %v3636 = vld [vmem:[%s3572 + $0x1f8] sm:$0xff]
    %v3637 = vld [vmem:[%s3572 + $0x200] sm:$0xff]
    %v3638 = vld [vmem:[%s3572 + $0x208] sm:$0xff]
    %v3639 = vld [vmem:[%s3572 + $0x210] sm:$0xff]
    %v3640 = vld [vmem:[%s3572 + $0x218] sm:$0xff]
    %v3641 = vld [vmem:[%s3572 + $0x220] sm:$0xff]
    %v3642 = vld [vmem:[%s3572 + $0x228] sm:$0xff]
    %v3643 = vld [vmem:[%s3572 + $0x230] sm:$0xff]
    %v3644 = vld [vmem:[%s3572 + $0x238] sm:$0xff]
    %v3645 = vld [vmem:[%s3572 + $0x240] sm:$0xff]
    %v3646 = vld [vmem:[%s3572 + $0x248] sm:$0xff]
    %v3647 = vld [vmem:[%s3572 + $0x250] sm:$0xff]
    %v3648 = vld [vmem:[%s3572 + $0x258] sm:$0xff]
    %v3649 = vld [vmem:[%s3572 + $0x260] sm:$0xff]
    %v3650 = vld [vmem:[%s3572 + $0x268] sm:$0xff]
    %v3651 = vld [vmem:[%s3572 + $0x270] sm:$0xff]
    %v3652 = vld [vmem:[%s3572 + $0x278] sm:$0xff]
    %v3653 = vld [vmem:[%s3572 + $0x280] sm:$0xff]
    %v3654 = vld [vmem:[%s3572 + $0x288] sm:$0xff]
    %v3655 = vld [vmem:[%s3572 + $0x290] sm:$0xff]
    %v3656 = vld [vmem:[%s3572 + $0x298] sm:$0xff]
    %v3657 = vld [vmem:[%s3572 + $0x2a0] sm:$0xff]
    %v3658 = vld [vmem:[%s3572 + $0x2a8] sm:$0xff]
    %v3659 = vld [vmem:[%s3572 + $0x2b0] sm:$0xff]
    %v3660 = vld [vmem:[%s3572 + $0x2b8] sm:$0xff]
    %v3661 = vld [vmem:[%s3572 + $0x2c0] sm:$0xff]
    %v3662 = vld [vmem:[%s3572 + $0x2c8] sm:$0xff]
    %v3663 = vld [vmem:[%s3572 + $0x2d0] sm:$0xff]
    %v3664 = vld [vmem:[%s3572 + $0x2d8] sm:$0xff]
    %v3665 = vld [vmem:[%s3572 + $0x2e0] sm:$0xff]
    %v3666 = vld [vmem:[%s3572 + $0x2e8] sm:$0xff]
    %v3667 = vld [vmem:[%s3572 + $0x2f0] sm:$0xff]
    %v3668 = vld [vmem:[%s3572 + $0x2f8] sm:$0xff]
    %v3669 = vld [vmem:[%s3572 + $0x300] sm:$0xff]
    %v3670 = vld [vmem:[%s3572 + $0x308] sm:$0xff]
    %v3671 = vld [vmem:[%s3572 + $0x310] sm:$0xff]
    %v3672 = vld [vmem:[%s3572 + $0x318] sm:$0xff]
    %v3673 = vld [vmem:[%s3572 + $0x320] sm:$0xff]
    %v3674 = vld [vmem:[%s3572 + $0x328] sm:$0xff]
    %v3675 = vld [vmem:[%s3572 + $0x330] sm:$0xff]
    %v3676 = vld [vmem:[%s3572 + $0x338] sm:$0xff]
    %v3677 = vld [vmem:[%s3572 + $0x340] sm:$0xff]
    %v3678 = vld [vmem:[%s3572 + $0x348] sm:$0xff]
    %v3679 = vld [vmem:[%s3572 + $0x350] sm:$0xff]
    %v3680 = vld [vmem:[%s3572 + $0x358] sm:$0xff]
    %v3681 = vld [vmem:[%s3572 + $0x360] sm:$0xff]
    %v3682 = vld [vmem:[%s3572 + $0x368] sm:$0xff]
    %v3683 = vld [vmem:[%s3572 + $0x370] sm:$0xff]
    %v3684 = vld [vmem:[%s3572 + $0x378] sm:$0xff]
    %v3685 = vld [vmem:[%s3572 + $0x380] sm:$0xff]
    %v3686 = vld [vmem:[%s3572 + $0x388] sm:$0xff]
    %v3687 = vld [vmem:[%s3572 + $0x390] sm:$0xff]
    %v3688 = vld [vmem:[%s3572 + $0x398] sm:$0xff]
    %v3689 = vld [vmem:[%s3572 + $0x3a0] sm:$0xff]
    %v3690 = vld [vmem:[%s3572 + $0x3a8] sm:$0xff]
    %v3691 = vld [vmem:[%s3572 + $0x3b0] sm:$0xff]
    %v3692 = vld [vmem:[%s3572 + $0x3b8] sm:$0xff]
    %v3693 = vld [vmem:[%s3572 + $0x3c0] sm:$0xff]
    %v3694 = vld [vmem:[%s3572 + $0x3c8] sm:$0xff]
    %v3695 = vld [vmem:[%s3572 + $0x3d0] sm:$0xff]
    %v3696 = vld [vmem:[%s3572 + $0x3d8] sm:$0xff]
    %v3697 = vld [vmem:[%s3572 + $0x3e0] sm:$0xff]
    %v3698 = vld [vmem:[%s3572 + $0x3e8] sm:$0xff]
    %v3699 = vld [vmem:[%s3572 + $0x3f0] sm:$0xff]
    %v3700 = vld [vmem:[%s3572 + $0x3f8] sm:$0xff]
    %v3701 = vld [vmem:[%s3572 + $0x400] sm:$0xff]
    %v3702 = vld [vmem:[%s3572 + $0x408] sm:$0xff]
    %v3703 = vld [vmem:[%s3572 + $0x410] sm:$0xff]
    %v3704 = vld [vmem:[%s3572 + $0x418] sm:$0xff]
    %v3705 = vld [vmem:[%s3572 + $0x420] sm:$0xff]
    %v3706 = vld [vmem:[%s3572 + $0x428] sm:$0xff]
    %v3707 = vld [vmem:[%s3572 + $0x430] sm:$0xff]
    %v3708 = vld [vmem:[%s3572 + $0x438] sm:$0xff]
    %v3709 = vld [vmem:[%s3572 + $0x440] sm:$0xff]
    %v3710 = vld [vmem:[%s3572 + $0x448] sm:$0xff]
    %v3711 = vld [vmem:[%s3572 + $0x450] sm:$0xff]
    %v3712 = vld [vmem:[%s3572 + $0x458] sm:$0xff]
    %v3713 = vld [vmem:[%s3572 + $0x460] sm:$0xff]
    %v3714 = vld [vmem:[%s3572 + $0x468] sm:$0xff]
    %v3715 = vld [vmem:[%s3572 + $0x470] sm:$0xff]
    %v3716 = vld [vmem:[%s3572 + $0x478] sm:$0xff]
    %v3717 = vld [vmem:[%s3572 + $0x480] sm:$0xff]
    %v3718 = vld [vmem:[%s3572 + $0x488] sm:$0xff]
    %v3719 = vld [vmem:[%s3572 + $0x490] sm:$0xff]
    %v3720 = vld [vmem:[%s3572 + $0x498] sm:$0xff]
    %v3721 = vld [vmem:[%s3572 + $0x4a0] sm:$0xff]
    %v3722 = vld [vmem:[%s3572 + $0x4a8] sm:$0xff]
    %v3723 = vld [vmem:[%s3572 + $0x4b0] sm:$0xff]
    %v3724 = vld [vmem:[%s3572 + $0x4b8] sm:$0xff]
    %v3725 = vld [vmem:[%s3572 + $0x4c0] sm:$0xff]
    %v3726 = vld [vmem:[%s3572 + $0x4c8] sm:$0xff]
    %v3727 = vld [vmem:[%s3572 + $0x4d0] sm:$0xff]
    %v3728 = vld [vmem:[%s3572 + $0x4d8] sm:$0xff]
    %v3729 = vld [vmem:[%s3572 + $0x4e0] sm:$0xff]
    %v3730 = vld [vmem:[%s3572 + $0x4e8] sm:$0xff]
    %v3731 = vld [vmem:[%s3572 + $0x4f0] sm:$0xff]
    %v3732 = vld [vmem:[%s3572 + $0x4f8] sm:$0xff]
    %v3733 = vld [vmem:[%s3572 + $0x500] sm:$0xff]
    %v3734 = vld [vmem:[%s3572 + $0x508] sm:$0xff]
    %v3735 = vld [vmem:[%s3572 + $0x510] sm:$0xff]
    %v3736 = vld [vmem:[%s3572 + $0x518] sm:$0xff]
    %v3737 = vld [vmem:[%s3572 + $0x520] sm:$0xff]
    %v3738 = vld [vmem:[%s3572 + $0x528] sm:$0xff]
    %v3739 = vld [vmem:[%s3572 + $0x530] sm:$0xff]
    %v3740 = vld [vmem:[%s3572 + $0x538] sm:$0xff]
    %v3741 = vld [vmem:[%s3572 + $0x540] sm:$0xff]
    %v3742 = vld [vmem:[%s3572 + $0x548] sm:$0xff]
    %v3743 = vld [vmem:[%s3572 + $0x550] sm:$0xff]
    %v3744 = vld [vmem:[%s3572 + $0x558] sm:$0xff]
    %v3745 = vld [vmem:[%s3572 + $0x560] sm:$0xff]
    %v3746 = vld [vmem:[%s3572 + $0x568] sm:$0xff]
    %v3747 = vld [vmem:[%s3572 + $0x570] sm:$0xff]
    %v3748 = vld [vmem:[%s3572 + $0x578] sm:$0xff]
    %v3749 = vld [vmem:[%s3572 + $0x580] sm:$0xff]
    %v3750 = vld [vmem:[%s3572 + $0x588] sm:$0xff]
    %v3751 = vld [vmem:[%s3572 + $0x590] sm:$0xff]
    %v3752 = vld [vmem:[%s3572 + $0x598] sm:$0xff]
    %v3753 = vld [vmem:[%s3572 + $0x5a0] sm:$0xff]
    %v3754 = vld [vmem:[%s3572 + $0x5a8] sm:$0xff]
    %v3755 = vld [vmem:[%s3572 + $0x5b0] sm:$0xff]
    %v3756 = vld [vmem:[%s3572 + $0x5b8] sm:$0xff]
    %v3757 = vld [vmem:[%s3572 + $0x5c0] sm:$0xff]
    %v3758 = vld [vmem:[%s3572 + $0x5c8] sm:$0xff]
    %v3759 = vld [vmem:[%s3572 + $0x5d0] sm:$0xff]
    %v3760 = vld [vmem:[%s3572 + $0x5d8] sm:$0xff]
    %v3761 = vld [vmem:[%s3572 + $0x5e0] sm:$0xff]
    %v3762 = vld [vmem:[%s3572 + $0x5e8] sm:$0xff]
    %v3763 = vld [vmem:[%s3572 + $0x5f0] sm:$0xff]
    %v3764 = vld [vmem:[%s3572 + $0x5f8] sm:$0xff]
    %3765 = vmatprep.subr.mxu0 %v3574
    %3766 = vmatpush1.msra.mxu0 %v3573
    %3767 = vmatprep.subr.mxu0 %v3578
    %3768 = vmatpush1.msra.mxu0 %v3577
    %3769 = vmatprep.subr.mxu0 %v3582
    %3770 = vmatpush1.msra.mxu0 %v3581
    %3771 = vmatprep.subr.mxu0 %v3586
    %3772 = vmatpush1.msra.mxu0 %v3585
    %3773 = vmatprep.subr.mxu0 %v3590
    %3774 = vmatpush1.msra.mxu0 %v3589
    %3775 = vmatprep.subr.mxu0 %v3594
    %3776 = vmatpush1.msra.mxu0 %v3593
    %3777 = vmatprep.subr.mxu0 %v3598
    %3778 = vmatpush1.msra.mxu0 %v3597
    %3779 = vmatprep.subr.mxu0 %v3602
    %3780 = vmatpush1.msra.mxu0 %v3601
    %3781 = vmatprep.subr.mxu0 %v3606
    %3782 = vmatpush1.msra.mxu0 %v3605
    %3783 = vmatprep.subr.mxu0 %v3610
    %3784 = vmatpush1.msra.mxu0 %v3609
    %3785 = vmatprep.subr.mxu0 %v3614
    %3786 = vmatpush1.msra.mxu0 %v3613
    %3787 = vmatprep.subr.mxu0 %v3618
    %3788 = vmatpush1.msra.mxu0 %v3617
    %3789 = vmatprep.subr.mxu0 %v3622
    %3790 = vmatpush1.msra.mxu0 %v3621
    %3791 = vmatprep.subr.mxu0 %v3626
    %3792 = vmatpush1.msra.mxu0 %v3625
    %3793 = vmatprep.subr.mxu0 %v3630
    %3794 = vmatpush1.msra.mxu0 %v3629
    %3795 = vmatprep.subr.mxu0 %v3634
    %3796 = vmatpush1.msra.mxu0 %v3633
    %3797 = vmatprep.subr.mxu0 %v3638
    %3798 = vmatpush1.msra.mxu0 %v3637
    %3799 = vmatprep.subr.mxu0 %v3642
    %3800 = vmatpush1.msra.mxu0 %v3641
    %3801 = vmatprep.subr.mxu0 %v3646
    %3802 = vmatpush1.msra.mxu0 %v3645
    %3803 = vmatprep.subr.mxu0 %v3650
    %3804 = vmatpush1.msra.mxu0 %v3649
    %3805 = vmatprep.subr.mxu0 %v3654
    %3806 = vmatpush1.msra.mxu0 %v3653
    %3807 = vmatprep.subr.mxu0 %v3658
    %3808 = vmatpush1.msra.mxu0 %v3657
    %3809 = vmatprep.subr.mxu0 %v3662
    %3810 = vmatpush1.msra.mxu0 %v3661
    %3811 = vmatprep.subr.mxu0 %v3666
    %3812 = vmatpush1.msra.mxu0 %v3665
    %3813 = vmatprep.subr.mxu0 %v3670
    %3814 = vmatpush1.msra.mxu0 %v3669
    %3815 = vmatprep.subr.mxu0 %v3674
    %3816 = vmatpush1.msra.mxu0 %v3673
    %3817 = vmatprep.subr.mxu0 %v3678
    %3818 = vmatpush1.msra.mxu0 %v3677
    %3819 = vmatprep.subr.mxu0 %v3682
    %3820 = vmatpush1.msra.mxu0 %v3681
    %3821 = vmatprep.subr.mxu0 %v3686
    %3822 = vmatpush1.msra.mxu0 %v3685
    %3823 = vmatprep.subr.mxu0 %v3690
    %3824 = vmatpush1.msra.mxu0 %v3689
    %3825 = vmatprep.subr.mxu0 %v3694
    %3826 = vmatpush1.msra.mxu0 %v3693
    %3827 = vmatprep.subr.mxu0 %v3698
    %3828 = vmatpush1.msra.mxu0 %v3697
    %3829 = vmatprep.mubr.f32.mxu0 %v3553
    %3830 = vmatmul.mubr.f32.gmra.mrb[0].mxu0 %v3550
    %v3831 = vpop.f32.mrb[0].mxu0
    %v3832 = vadd.f32 0.0, %v3831
    %v3833 = vpop.f32.mrb[0].mxu0
    %v3834 = vadd.f32 0.0, %v3833
    %3835 = vmatprep.mubr.f32.mxu0 %v3562
    %3836 = vmatmul.mubr.f32.gmra.mrb[0].mxu0 %v3559
    %v3837 = vpop.f32.mrb[0].mxu0
    %v3838 = vadd.f32 0.0, %v3837
    %v3839 = vpop.f32.mrb[0].mxu0
    %v3840 = vadd.f32 0.0, %v3839
    %3841 = vdwg.mxu0
    %3842 = vmatprep.subr.mxu0 %v3702
    %3843 = vmatpush1.msra.mxu0 %v3701
    %3844 = vmatprep.subr.mxu0 %v3706
    %3845 = vmatpush1.msra.mxu0 %v3705
    %3846 = vmatprep.subr.mxu0 %v3710
    %3847 = vmatpush1.msra.mxu0 %v3709
    %3848 = vmatprep.subr.mxu0 %v3714
    %3849 = vmatpush1.msra.mxu0 %v3713
    %3850 = vmatprep.subr.mxu0 %v3718
    %3851 = vmatpush1.msra.mxu0 %v3717
    %3852 = vmatprep.subr.mxu0 %v3722
    %3853 = vmatpush1.msra.mxu0 %v3721
    %3854 = vmatprep.subr.mxu0 %v3726
    %3855 = vmatpush1.msra.mxu0 %v3725
    %3856 = vmatprep.subr.mxu0 %v3730
    %3857 = vmatpush1.msra.mxu0 %v3729
    %3858 = vmatprep.subr.mxu0 %v3734
    %3859 = vmatpush1.msra.mxu0 %v3733
    %3860 = vmatprep.subr.mxu0 %v3738
    %3861 = vmatpush1.msra.mxu0 %v3737
    %3862 = vmatprep.subr.mxu0 %v3742
    %3863 = vmatpush1.msra.mxu0 %v3741
    %3864 = vmatprep.subr.mxu0 %v3746
    %3865 = vmatpush1.msra.mxu0 %v3745
    %3866 = vmatprep.subr.mxu0 %v3750
    %3867 = vmatpush1.msra.mxu0 %v3749
    %3868 = vmatprep.subr.mxu0 %v3754
    %3869 = vmatpush1.msra.mxu0 %v3753
    %3870 = vmatprep.subr.mxu0 %v3758
    %3871 = vmatpush1.msra.mxu0 %v3757
    %3872 = vmatprep.subr.mxu0 %v3762
    %3873 = vmatpush1.msra.mxu0 %v3761
    %3874 = vmatprep.subr.mxu0 0.0
    %3875 = vmatpush1.msra.mxu0 0.0
    %3876 = vmatprep.subr.mxu0 0.0
    %3877 = vmatpush1.msra.mxu0 0.0
    %3878 = vmatprep.subr.mxu0 0.0
    %3879 = vmatpush1.msra.mxu0 0.0
    %3880 = vmatprep.subr.mxu0 0.0
    %3881 = vmatpush1.msra.mxu0 0.0
    %3882 = vmatprep.subr.mxu0 0.0
    %3883 = vmatpush1.msra.mxu0 0.0
    %3884 = vmatprep.subr.mxu0 0.0
    %3885 = vmatpush1.msra.mxu0 0.0
    %3886 = vmatprep.subr.mxu0 0.0
    %3887 = vmatpush1.msra.mxu0 0.0
    %3888 = vmatprep.subr.mxu0 0.0
    %3889 = vmatpush1.msra.mxu0 0.0
    %3890 = vmatprep.subr.mxu0 0.0
    %3891 = vmatpush1.msra.mxu0 0.0
    %3892 = vmatprep.subr.mxu0 0.0
    %3893 = vmatpush1.msra.mxu0 0.0
    %3894 = vmatprep.subr.mxu0 0.0
    %3895 = vmatpush1.msra.mxu0 0.0
    %3896 = vmatprep.subr.mxu0 0.0
    %3897 = vmatpush1.msra.mxu0 0.0
    %3898 = vmatprep.subr.mxu0 0.0
    %3899 = vmatpush1.msra.mxu0 0.0
    %3900 = vmatprep.subr.mxu0 0.0
    %3901 = vmatpush1.msra.mxu0 0.0
    %3902 = vmatprep.subr.mxu0 0.0
    %3903 = vmatpush1.msra.mxu0 0.0
    %3904 = vmatprep.subr.mxu0 0.0
    %3905 = vmatpush1.msra.mxu0 0.0
    %3906 = vmatprep.mubr.f32.mxu0 0.0
    %3907 = vmatmul.mubr.f32.gmra.mrb[0].mxu0 %v3556
    %v3908 = vpop.f32.mrb[0].mxu0
    %v3909 = vadd.f32 %v3832, %v3908
    %v3910 = vpop.f32.mrb[0].mxu0
    %v3911 = vadd.f32 %v3834, %v3910
    %3912 = vmatprep.mubr.f32.mxu0 0.0
    %3913 = vmatmul.mubr.f32.gmra.mrb[0].mxu0 %v3565
    %v3914 = vpop.f32.mrb[0].mxu0
    %v3915 = vadd.f32 %v3838, %v3914
    %v3916 = vpop.f32.mrb[0].mxu0
    %v3917 = vadd.f32 %v3840, %v3916
    %3918 = vdwg.mxu0
    %3919 = vmatprep.subr.mxu0 %v3576
    %3920 = vmatpush1.msra.mxu0 %v3575
    %3921 = vmatprep.subr.mxu0 %v3580
    %3922 = vmatpush1.msra.mxu0 %v3579
    %3923 = vmatprep.subr.mxu0 %v3584
    %3924 = vmatpush1.msra.mxu0 %v3583
    %3925 = vmatprep.subr.mxu0 %v3588
    %3926 = vmatpush1.msra.mxu0 %v3587
    %3927 = vmatprep.subr.mxu0 %v3592
    %3928 = vmatpush1.msra.mxu0 %v3591
    %3929 = vmatprep.subr.mxu0 %v3596
    %3930 = vmatpush1.msra.mxu0 %v3595
    %3931 = vmatprep.subr.mxu0 %v3600
    %3932 = vmatpush1.msra.mxu0 %v3599
    %3933 = vmatprep.subr.mxu0 %v3604
    %3934 = vmatpush1.msra.mxu0 %v3603
    %3935 = vmatprep.subr.mxu0 %v3608
    %3936 = vmatpush1.msra.mxu0 %v3607
    %3937 = vmatprep.subr.mxu0 %v3612
    %3938 = vmatpush1.msra.mxu0 %v3611
    %3939 = vmatprep.subr.mxu0 %v3616
    %3940 = vmatpush1.msra.mxu0 %v3615
    %3941 = vmatprep.subr.mxu0 %v3620
    %3942 = vmatpush1.msra.mxu0 %v3619
    %3943 = vmatprep.subr.mxu0 %v3624
    %3944 = vmatpush1.msra.mxu0 %v3623
    %3945 = vmatprep.subr.mxu0 %v3628
    %3946 = vmatpush1.msra.mxu0 %v3627
    %3947 = vmatprep.subr.mxu0 %v3632
    %3948 = vmatpush1.msra.mxu0 %v3631
    %3949 = vmatprep.subr.mxu0 %v3636
    %3950 = vmatpush1.msra.mxu0 %v3635
    %3951 = vmatprep.subr.mxu0 %v3640
    %3952 = vmatpush1.msra.mxu0 %v3639
    %3953 = vmatprep.subr.mxu0 %v3644
    %3954 = vmatpush1.msra.mxu0 %v3643
    %3955 = vmatprep.subr.mxu0 %v3648
    %3956 = vmatpush1.msra.mxu0 %v3647
    %3957 = vmatprep.subr.mxu0 %v3652
    %3958 = vmatpush1.msra.mxu0 %v3651
    %3959 = vmatprep.subr.mxu0 %v3656
    %3960 = vmatpush1.msra.mxu0 %v3655
    %3961 = vmatprep.subr.mxu0 %v3660
    %3962 = vmatpush1.msra.mxu0 %v3659
    %3963 = vmatprep.subr.mxu0 %v3664
    %3964 = vmatpush1.msra.mxu0 %v3663
    %3965 = vmatprep.subr.mxu0 %v3668
    %3966 = vmatpush1.msra.mxu0 %v3667
    %3967 = vmatprep.subr.mxu0 %v3672
    %3968 = vmatpush1.msra.mxu0 %v3671
    %3969 = vmatprep.subr.mxu0 %v3676
    %3970 = vmatpush1.msra.mxu0 %v3675
    %3971 = vmatprep.subr.mxu0 %v3680
    %3972 = vmatpush1.msra.mxu0 %v3679
    %3973 = vmatprep.subr.mxu0 %v3684
    %3974 = vmatpush1.msra.mxu0 %v3683
    %3975 = vmatprep.subr.mxu0 %v3688
    %3976 = vmatpush1.msra.mxu0 %v3687
    %3977 = vmatprep.subr.mxu0 %v3692
    %3978 = vmatpush1.msra.mxu0 %v3691
    %3979 = vmatprep.subr.mxu0 %v3696
    %3980 = vmatpush1.msra.mxu0 %v3695
    %3981 = vmatprep.subr.mxu0 %v3700
    %3982 = vmatpush1.msra.mxu0 %v3699
    %3983 = vmatprep.mubr.f32.mxu0 %v3553
    %3984 = vmatmul.mubr.f32.gmra.mrb[0].mxu0 %v3550
    %v3985 = vpop.f32.mrb[0].mxu0
    %v3986 = vadd.f32 0.0, %v3985
    %v3987 = vpop.f32.mrb[0].mxu0
    %v3988 = vadd.f32 0.0, %v3987
    %3989 = vmatprep.mubr.f32.mxu0 %v3562
    %3990 = vmatmul.mubr.f32.gmra.mrb[0].mxu0 %v3559
    %v3991 = vpop.f32.mrb[0].mxu0
    %v3992 = vadd.f32 0.0, %v3991
    %v3993 = vpop.f32.mrb[0].mxu0
    %v3994 = vadd.f32 0.0, %v3993
    %3995 = vdwg.mxu0
    %3996 = vmatprep.subr.mxu0 %v3704
    %3997 = vmatpush1.msra.mxu0 %v3703
    %3998 = vmatprep.subr.mxu0 %v3708
    %3999 = vmatpush1.msra.mxu0 %v3707
    %4000 = vmatprep.subr.mxu0 %v3712
    %4001 = vmatpush1.msra.mxu0 %v3711
    %4002 = vmatprep.subr.mxu0 %v3716
    %4003 = vmatpush1.msra.mxu0 %v3715
    %4004 = vmatprep.subr.mxu0 %v3720
    %4005 = vmatpush1.msra.mxu0 %v3719
    %4006 = vmatprep.subr.mxu0 %v3724
    %4007 = vmatpush1.msra.mxu0 %v3723
    %4008 = vmatprep.subr.mxu0 %v3728
    %4009 = vmatpush1.msra.mxu0 %v3727
    %4010 = vmatprep.subr.mxu0 %v3732
    %4011 = vmatpush1.msra.mxu0 %v3731
    %4012 = vmatprep.subr.mxu0 %v3736
    %4013 = vmatpush1.msra.mxu0 %v3735
    %4014 = vmatprep.subr.mxu0 %v3740
    %4015 = vmatpush1.msra.mxu0 %v3739
    %4016 = vmatprep.subr.mxu0 %v3744
    %4017 = vmatpush1.msra.mxu0 %v3743
    %4018 = vmatprep.subr.mxu0 %v3748
    %4019 = vmatpush1.msra.mxu0 %v3747
    %4020 = vmatprep.subr.mxu0 %v3752
    %4021 = vmatpush1.msra.mxu0 %v3751
    %4022 = vmatprep.subr.mxu0 %v3756
    %4023 = vmatpush1.msra.mxu0 %v3755
    %4024 = vmatprep.subr.mxu0 %v3760
    %4025 = vmatpush1.msra.mxu0 %v3759
    %4026 = vmatprep.subr.mxu0 %v3764
    %4027 = vmatpush1.msra.mxu0 %v3763
    %4028 = vmatprep.subr.mxu0 0.0
    %4029 = vmatpush1.msra.mxu0 0.0
    %4030 = vmatprep.subr.mxu0 0.0
    %4031 = vmatpush1.msra.mxu0 0.0
    %4032 = vmatprep.subr.mxu0 0.0
    %4033 = vmatpush1.msra.mxu0 0.0
    %4034 = vmatprep.subr.mxu0 0.0
    %4035 = vmatpush1.msra.mxu0 0.0
    %4036 = vmatprep.subr.mxu0 0.0
    %4037 = vmatpush1.msra.mxu0 0.0
    %4038 = vmatprep.subr.mxu0 0.0
    %4039 = vmatpush1.msra.mxu0 0.0
    %4040 = vmatprep.subr.mxu0 0.0
    %4041 = vmatpush1.msra.mxu0 0.0
    %4042 = vmatprep.subr.mxu0 0.0
    %4043 = vmatpush1.msra.mxu0 0.0
    %4044 = vmatprep.subr.mxu0 0.0
    %4045 = vmatpush1.msra.mxu0 0.0
    %4046 = vmatprep.subr.mxu0 0.0
    %4047 = vmatpush1.msra.mxu0 0.0
    %4048 = vmatprep.subr.mxu0 0.0
    %4049 = vmatpush1.msra.mxu0 0.0
    %4050 = vmatprep.subr.mxu0 0.0
    %4051 = vmatpush1.msra.mxu0 0.0
    %4052 = vmatprep.subr.mxu0 0.0
    %4053 = vmatpush1.msra.mxu0 0.0
    %4054 = vmatprep.subr.mxu0 0.0
    %4055 = vmatpush1.msra.mxu0 0.0
    %4056 = vmatprep.subr.mxu0 0.0
    %4057 = vmatpush1.msra.mxu0 0.0
    %4058 = vmatprep.subr.mxu0 0.0
    %4059 = vmatpush1.msra.mxu0 0.0
    %4060 = vmatprep.mubr.f32.mxu0 0.0
    %4061 = vmatmul.mubr.f32.gmra.mrb[0].mxu0 %v3556
    %v4062 = vpop.f32.mrb[0].mxu0
    %v4063 = vadd.f32 %v3986, %v4062
    %v4064 = vpop.f32.mrb[0].mxu0
    %v4065 = vadd.f32 %v3988, %v4064
    %4066 = vmatprep.mubr.f32.mxu0 0.0
    %4067 = vmatmul.mubr.f32.gmra.mrb[0].mxu0 %v3565
    %v4068 = vpop.f32.mrb[0].mxu0
    %v4069 = vadd.f32 %v3992, %v4068
    %v4070 = vpop.f32.mrb[0].mxu0
    %v4071 = vadd.f32 %v3994, %v4070
    %4072 = vdwg.mxu0
    %4073 = vmatprep.subr.mxu0 %v3345
    %4074 = vmatpush1.msra.mxu0 %v3344
    %4075 = vmatprep.subr.mxu0 %v3349
    %4076 = vmatpush1.msra.mxu0 %v3348
    %4077 = vmatprep.subr.mxu0 %v3353
    %4078 = vmatpush1.msra.mxu0 %v3352
    %4079 = vmatprep.subr.mxu0 %v3357
    %4080 = vmatpush1.msra.mxu0 %v3356
    %4081 = vmatprep.subr.mxu0 %v3361
    %4082 = vmatpush1.msra.mxu0 %v3360
    %4083 = vmatprep.subr.mxu0 %v3365
    %4084 = vmatpush1.msra.mxu0 %v3364
    %4085 = vmatprep.subr.mxu0 %v3369
    %4086 = vmatpush1.msra.mxu0 %v3368
    %4087 = vmatprep.subr.mxu0 %v3373
    %4088 = vmatpush1.msra.mxu0 %v3372
    %4089 = vmatprep.subr.mxu0 %v3377
    %4090 = vmatpush1.msra.mxu0 %v3376
    %4091 = vmatprep.subr.mxu0 %v3381
    %4092 = vmatpush1.msra.mxu0 %v3380
    %4093 = vmatprep.subr.mxu0 %v3385
    %4094 = vmatpush1.msra.mxu0 %v3384
    %4095 = vmatprep.subr.mxu0 %v3389
    %4096 = vmatpush1.msra.mxu0 %v3388
    %4097 = vmatprep.subr.mxu0 %v3393
    %4098 = vmatpush1.msra.mxu0 %v3392
    %4099 = vmatprep.subr.mxu0 %v3397
    %4100 = vmatpush1.msra.mxu0 %v3396
    %4101 = vmatprep.subr.mxu0 %v3401
    %4102 = vmatpush1.msra.mxu0 %v3400
    %4103 = vmatprep.subr.mxu0 %v3405
    %4104 = vmatpush1.msra.mxu0 %v3404
    %4105 = vmatprep.subr.mxu0 %v3409
    %4106 = vmatpush1.msra.mxu0 %v3408
    %4107 = vmatprep.subr.mxu0 %v3413
    %4108 = vmatpush1.msra.mxu0 %v3412
    %4109 = vmatprep.subr.mxu0 %v3417
    %4110 = vmatpush1.msra.mxu0 %v3416
    %4111 = vmatprep.subr.mxu0 %v3421
    %4112 = vmatpush1.msra.mxu0 %v3420
    %4113 = vmatprep.subr.mxu0 %v3425
    %4114 = vmatpush1.msra.mxu0 %v3424
    %4115 = vmatprep.subr.mxu0 %v3429
    %4116 = vmatpush1.msra.mxu0 %v3428
    %4117 = vmatprep.subr.mxu0 %v3433
    %4118 = vmatpush1.msra.mxu0 %v3432
    %4119 = vmatprep.subr.mxu0 %v3437
    %4120 = vmatpush1.msra.mxu0 %v3436
    %4121 = vmatprep.subr.mxu0 %v3441
    %4122 = vmatpush1.msra.mxu0 %v3440
    %4123 = vmatprep.subr.mxu0 %v3445
    %4124 = vmatpush1.msra.mxu0 %v3444
    %4125 = vmatprep.subr.mxu0 %v3449
    %4126 = vmatpush1.msra.mxu0 %v3448
    %4127 = vmatprep.subr.mxu0 %v3453
    %4128 = vmatpush1.msra.mxu0 %v3452
    %4129 = vmatprep.subr.mxu0 %v3457
    %4130 = vmatpush1.msra.mxu0 %v3456
    %4131 = vmatprep.subr.mxu0 %v3461
    %4132 = vmatpush1.msra.mxu0 %v3460
    %4133 = vmatprep.subr.mxu0 %v3465
    %4134 = vmatpush1.msra.mxu0 %v3464
    %4135 = vmatprep.subr.mxu0 %v3469
    %4136 = vmatpush1.msra.mxu0 %v3468
    %4137 = vmatprep.mubr.f32.mxu0 %v3333
    %4138 = vmatmul.mubr.f32.gmra.mrb[0].mxu0 %v3332
    %v4139 = vpop.f32.mrb[0].mxu0
    %v4140 = vadd.f32 %v3909, %v4139
    %v4141 = vpop.f32.mrb[0].mxu0
    %v4142 = vadd.f32 %v3911, %v4141
    %4143 = vmatprep.mubr.f32.mxu0 %v3339
    %4144 = vmatmul.mubr.f32.gmra.mrb[0].mxu0 %v3338
    %v4145 = vpop.f32.mrb[0].mxu0
    %v4146 = vadd.f32 %v3915, %v4145
    %v4147 = vpop.f32.mrb[0].mxu0
    %v4148 = vadd.f32 %v3917, %v4147
    %4149 = vdwg.mxu0
    %4150 = vmatprep.subr.mxu0 %v3473
    %4151 = vmatpush1.msra.mxu0 %v3472
    %4152 = vmatprep.subr.mxu0 %v3477
    %4153 = vmatpush1.msra.mxu0 %v3476
    %4154 = vmatprep.subr.mxu0 %v3481
    %4155 = vmatpush1.msra.mxu0 %v3480
    %4156 = vmatprep.subr.mxu0 %v3485
    %4157 = vmatpush1.msra.mxu0 %v3484
    %4158 = vmatprep.subr.mxu0 %v3489
    %4159 = vmatpush1.msra.mxu0 %v3488
    %4160 = vmatprep.subr.mxu0 %v3493
    %4161 = vmatpush1.msra.mxu0 %v3492
    %4162 = vmatprep.subr.mxu0 %v3497
    %4163 = vmatpush1.msra.mxu0 %v3496
    %4164 = vmatprep.subr.mxu0 %v3501
    %4165 = vmatpush1.msra.mxu0 %v3500
    %4166 = vmatprep.subr.mxu0 %v3505
    %4167 = vmatpush1.msra.mxu0 %v3504
    %4168 = vmatprep.subr.mxu0 %v3509
    %4169 = vmatpush1.msra.mxu0 %v3508
    %4170 = vmatprep.subr.mxu0 %v3513
    %4171 = vmatpush1.msra.mxu0 %v3512
    %4172 = vmatprep.subr.mxu0 %v3517
    %4173 = vmatpush1.msra.mxu0 %v3516
    %4174 = vmatprep.subr.mxu0 %v3521
    %4175 = vmatpush1.msra.mxu0 %v3520
    %4176 = vmatprep.subr.mxu0 %v3525
    %4177 = vmatpush1.msra.mxu0 %v3524
    %4178 = vmatprep.subr.mxu0 %v3529
    %4179 = vmatpush1.msra.mxu0 %v3528
    %4180 = vmatprep.subr.mxu0 %v3533
    %4181 = vmatpush1.msra.mxu0 %v3532
    %4182 = vmatprep.subr.mxu0 0.0
    %4183 = vmatpush1.msra.mxu0 0.0
    %4184 = vmatprep.subr.mxu0 0.0
    %4185 = vmatpush1.msra.mxu0 0.0
    %4186 = vmatprep.subr.mxu0 0.0
    %4187 = vmatpush1.msra.mxu0 0.0
    %4188 = vmatprep.subr.mxu0 0.0
    %4189 = vmatpush1.msra.mxu0 0.0
    %4190 = vmatprep.subr.mxu0 0.0
    %4191 = vmatpush1.msra.mxu0 0.0
    %4192 = vmatprep.subr.mxu0 0.0
    %4193 = vmatpush1.msra.mxu0 0.0
    %4194 = vmatprep.subr.mxu0 0.0
    %4195 = vmatpush1.msra.mxu0 0.0
    %4196 = vmatprep.subr.mxu0 0.0
    %4197 = vmatpush1.msra.mxu0 0.0
    %4198 = vmatprep.subr.mxu0 0.0
    %4199 = vmatpush1.msra.mxu0 0.0
    %4200 = vmatprep.subr.mxu0 0.0
    %4201 = vmatpush1.msra.mxu0 0.0
    %4202 = vmatprep.subr.mxu0 0.0
    %4203 = vmatpush1.msra.mxu0 0.0
    %4204 = vmatprep.subr.mxu0 0.0
    %4205 = vmatpush1.msra.mxu0 0.0
    %4206 = vmatprep.subr.mxu0 0.0
    %4207 = vmatpush1.msra.mxu0 0.0
    %4208 = vmatprep.subr.mxu0 0.0
    %4209 = vmatpush1.msra.mxu0 0.0
    %4210 = vmatprep.subr.mxu0 0.0
    %4211 = vmatpush1.msra.mxu0 0.0
    %4212 = vmatprep.subr.mxu0 0.0
    %4213 = vmatpush1.msra.mxu0 0.0
    %4214 = vmatprep.mubr.f32.mxu0 0.0
    %4215 = vmatmul.mubr.f32.gmra.mrb[0].mxu0 %v3334
    %v4216 = vpop.f32.mrb[0].mxu0
    %v4217 = vadd.f32 %v4140, %v4216
    %v4218 = vpop.f32.mrb[0].mxu0
    %v4219 = vadd.f32 %v4142, %v4218
    %4220 = vmatprep.mubr.f32.mxu0 0.0
    %4221 = vmatmul.mubr.f32.gmra.mrb[0].mxu0 %v3340
    %v4222 = vpop.f32.mrb[0].mxu0
    %v4223 = vadd.f32 %v4146, %v4222
    %v4224 = vpop.f32.mrb[0].mxu0
    %v4225 = vadd.f32 %v4148, %v4224
    %4226 = vdwg.mxu0
    %4227 = vmatprep.subr.mxu0 %v3347
    %4228 = vmatpush1.msra.mxu0 %v3346
    %4229 = vmatprep.subr.mxu0 %v3351
    %4230 = vmatpush1.msra.mxu0 %v3350
    %4231 = vmatprep.subr.mxu0 %v3355
    %4232 = vmatpush1.msra.mxu0 %v3354
    %4233 = vmatprep.subr.mxu0 %v3359
    %4234 = vmatpush1.msra.mxu0 %v3358
    %4235 = vmatprep.subr.mxu0 %v3363
    %4236 = vmatpush1.msra.mxu0 %v3362
    %4237 = vmatprep.subr.mxu0 %v3367
    %4238 = vmatpush1.msra.mxu0 %v3366
    %4239 = vmatprep.subr.mxu0 %v3371
    %4240 = vmatpush1.msra.mxu0 %v3370
    %4241 = vmatprep.subr.mxu0 %v3375
    %4242 = vmatpush1.msra.mxu0 %v3374
    %4243 = vmatprep.subr.mxu0 %v3379
    %4244 = vmatpush1.msra.mxu0 %v3378
    %4245 = vmatprep.subr.mxu0 %v3383
    %4246 = vmatpush1.msra.mxu0 %v3382
    %4247 = vmatprep.subr.mxu0 %v3387
    %4248 = vmatpush1.msra.mxu0 %v3386
    %4249 = vmatprep.subr.mxu0 %v3391
    %4250 = vmatpush1.msra.mxu0 %v3390
    %4251 = vmatprep.subr.mxu0 %v3395
    %4252 = vmatpush1.msra.mxu0 %v3394
    %4253 = vmatprep.subr.mxu0 %v3399
    %4254 = vmatpush1.msra.mxu0 %v3398
    %4255 = vmatprep.subr.mxu0 %v3403
    %4256 = vmatpush1.msra.mxu0 %v3402
    %4257 = vmatprep.subr.mxu0 %v3407
    %4258 = vmatpush1.msra.mxu0 %v3406
    %4259 = vmatprep.subr.mxu0 %v3411
    %4260 = vmatpush1.msra.mxu0 %v3410
    %4261 = vmatprep.subr.mxu0 %v3415
    %4262 = vmatpush1.msra.mxu0 %v3414
    %4263 = vmatprep.subr.mxu0 %v3419
    %4264 = vmatpush1.msra.mxu0 %v3418
    %4265 = vmatprep.subr.mxu0 %v3423
    %4266 = vmatpush1.msra.mxu0 %v3422
    %4267 = vmatprep.subr.mxu0 %v3427
    %4268 = vmatpush1.msra.mxu0 %v3426
    %4269 = vmatprep.subr.mxu0 %v3431
    %4270 = vmatpush1.msra.mxu0 %v3430
    %4271 = vmatprep.subr.mxu0 %v3435
    %4272 = vmatpush1.msra.mxu0 %v3434
    %4273 = vmatprep.subr.mxu0 %v3439
    %4274 = vmatpush1.msra.mxu0 %v3438
    %4275 = vmatprep.subr.mxu0 %v3443
    %4276 = vmatpush1.msra.mxu0 %v3442
    %4277 = vmatprep.subr.mxu0 %v3447
    %4278 = vmatpush1.msra.mxu0 %v3446
    %4279 = vmatprep.subr.mxu0 %v3451
    %4280 = vmatpush1.msra.mxu0 %v3450
    %4281 = vmatprep.subr.mxu0 %v3455
    %4282 = vmatpush1.msra.mxu0 %v3454
    %4283 = vmatprep.subr.mxu0 %v3459
    %4284 = vmatpush1.msra.mxu0 %v3458
    %4285 = vmatprep.subr.mxu0 %v3463
    %4286 = vmatpush1.msra.mxu0 %v3462
    %4287 = vmatprep.subr.mxu0 %v3467
    %4288 = vmatpush1.msra.mxu0 %v3466
    %4289 = vmatprep.subr.mxu0 %v3471
    %4290 = vmatpush1.msra.mxu0 %v3470
    %4291 = vmatprep.mubr.f32.mxu0 %v3333
    %4292 = vmatmul.mubr.f32.gmra.mrb[0].mxu0 %v3332
    %v4293 = vpop.f32.mrb[0].mxu0
    %v4294 = vadd.f32 %v4063, %v4293
    %v4295 = vpop.f32.mrb[0].mxu0
    %v4296 = vadd.f32 %v4065, %v4295
    %4297 = vmatprep.mubr.f32.mxu0 %v3339
    %4298 = vmatmul.mubr.f32.gmra.mrb[0].mxu0 %v3338
    %v4299 = vpop.f32.mrb[0].mxu0
    %v4300 = vadd.f32 %v4069, %v4299
    %v4301 = vpop.f32.mrb[0].mxu0
    %v4302 = vadd.f32 %v4071, %v4301
    %4303 = vdwg.mxu0
    %4304 = vmatprep.subr.mxu0 %v3475
    %4305 = vmatpush1.msra.mxu0 %v3474
    %4306 = vmatprep.subr.mxu0 %v3479
    %4307 = vmatpush1.msra.mxu0 %v3478
    %4308 = vmatprep.subr.mxu0 %v3483
    %4309 = vmatpush1.msra.mxu0 %v3482
    %4310 = vmatprep.subr.mxu0 %v3487
    %4311 = vmatpush1.msra.mxu0 %v3486
    %4312 = vmatprep.subr.mxu0 %v3491
    %4313 = vmatpush1.msra.mxu0 %v3490
    %4314 = vmatprep.subr.mxu0 %v3495
    %4315 = vmatpush1.msra.mxu0 %v3494
    %4316 = vmatprep.subr.mxu0 %v3499
    %4317 = vmatpush1.msra.mxu0 %v3498
    %4318 = vmatprep.subr.mxu0 %v3503
    %4319 = vmatpush1.msra.mxu0 %v3502
    %4320 = vmatprep.subr.mxu0 %v3507
    %4321 = vmatpush1.msra.mxu0 %v3506
    %4322 = vmatprep.subr.mxu0 %v3511
    %4323 = vmatpush1.msra.mxu0 %v3510
    %4324 = vmatprep.subr.mxu0 %v3515
    %4325 = vmatpush1.msra.mxu0 %v3514
    %4326 = vmatprep.subr.mxu0 %v3519
    %4327 = vmatpush1.msra.mxu0 %v3518
    %4328 = vmatprep.subr.mxu0 %v3523
    %4329 = vmatpush1.msra.mxu0 %v3522
    %4330 = vmatprep.subr.mxu0 %v3527
    %4331 = vmatpush1.msra.mxu0 %v3526
    %4332 = vmatprep.subr.mxu0 %v3531
    %4333 = vmatpush1.msra.mxu0 %v3530
    %4334 = vmatprep.subr.mxu0 %v3535
    %4335 = vmatpush1.msra.mxu0 %v3534
    %4336 = vmatprep.subr.mxu0 0.0
    %4337 = vmatpush1.msra.mxu0 0.0
    %4338 = vmatprep.subr.mxu0 0.0
    %4339 = vmatpush1.msra.mxu0 0.0
    %4340 = vmatprep.subr.mxu0 0.0
    %4341 = vmatpush1.msra.mxu0 0.0
    %4342 = vmatprep.subr.mxu0 0.0
    %4343 = vmatpush1.msra.mxu0 0.0
    %4344 = vmatprep.subr.mxu0 0.0
    %4345 = vmatpush1.msra.mxu0 0.0
    %4346 = vmatprep.subr.mxu0 0.0
    %4347 = vmatpush1.msra.mxu0 0.0
    %4348 = vmatprep.subr.mxu0 0.0
    %4349 = vmatpush1.msra.mxu0 0.0
    %4350 = vmatprep.subr.mxu0 0.0
    %4351 = vmatpush1.msra.mxu0 0.0
    %4352 = vmatprep.subr.mxu0 0.0
    %4353 = vmatpush1.msra.mxu0 0.0
    %4354 = vmatprep.subr.mxu0 0.0
    %4355 = vmatpush1.msra.mxu0 0.0
    %4356 = vmatprep.subr.mxu0 0.0
    %4357 = vmatpush1.msra.mxu0 0.0
    %4358 = vmatprep.subr.mxu0 0.0
    %4359 = vmatpush1.msra.mxu0 0.0
    %4360 = vmatprep.subr.mxu0 0.0
    %4361 = vmatpush1.msra.mxu0 0.0
    %4362 = vmatprep.subr.mxu0 0.0
    %4363 = vmatpush1.msra.mxu0 0.0
    %4364 = vmatprep.subr.mxu0 0.0
    %4365 = vmatpush1.msra.mxu0 0.0
    %4366 = vmatprep.subr.mxu0 0.0
    %4367 = vmatpush1.msra.mxu0 0.0
    %4368 = vmatprep.mubr.f32.mxu0 0.0
    %4369 = vmatmul.mubr.f32.gmra.mrb[0].mxu0 %v3334
    %v4370 = vpop.f32.mrb[0].mxu0
    %v4371 = vadd.f32 %v4294, %v4370
    %v4372 = vpop.f32.mrb[0].mxu0
    %v4373 = vadd.f32 %v4296, %v4372
    %4374 = vmatprep.mubr.f32.mxu0 0.0
    %4375 = vmatmul.mubr.f32.gmra.mrb[0].mxu0 %v3340
    %v4376 = vpop.f32.mrb[0].mxu0
    %v4377 = vadd.f32 %v4300, %v4376
    %v4378 = vpop.f32.mrb[0].mxu0
    %v4379 = vadd.f32 %v4302, %v4378
    %4380 = vdwg.mxu0
    %v4381 = vrot.slane %v3332, 2
    %v4382 = vrot.slane %v3335, 2
    %v4383 = vsel %vm1501, %v4381, %v4382
    %v4384 = vrot.slane %v3333, 2
    %v4385 = vrot.slane %v3336, 2
    %v4386 = vsel %vm1501, %v4384, %v4385
    %v4387 = vrot.slane %v3334, 2
    %v4388 = vrot.slane %v3337, 2
    %v4389 = vsel %vm1501, %v4387, %v4388
    %v4390 = vrot.slane %v3338, 2
    %v4391 = vrot.slane %v3341, 2
    %v4392 = vsel %vm1501, %v4390, %v4391
    %v4393 = vrot.slane %v3339, 2
    %v4394 = vrot.slane %v3342, 2
    %v4395 = vsel %vm1501, %v4393, %v4394
    %v4396 = vrot.slane %v3340, 2
    %v4397 = vrot.slane %v3343, 2
    %v4398 = vsel %vm1501, %v4396, %v4397
    %s4405 = scalar_lea.vmem [#allocation8], 3072
    %v4406 = vld [vmem:[%s4405] sm:$0xff]
    %v4407 = vld [vmem:[%s4405 + $0x8] sm:$0xff]
    %v4408 = vld [vmem:[%s4405 + $0x10] sm:$0xff]
    %v4409 = vld [vmem:[%s4405 + $0x18] sm:$0xff]
    %v4410 = vld [vmem:[%s4405 + $0x20] sm:$0xff]
    %v4411 = vld [vmem:[%s4405 + $0x28] sm:$0xff]
    %v4412 = vld [vmem:[%s4405 + $0x30] sm:$0xff]
    %v4413 = vld [vmem:[%s4405 + $0x38] sm:$0xff]
    %v4414 = vld [vmem:[%s4405 + $0x40] sm:$0xff]
    %v4415 = vld [vmem:[%s4405 + $0x48] sm:$0xff]
    %v4416 = vld [vmem:[%s4405 + $0x50] sm:$0xff]
    %v4417 = vld [vmem:[%s4405 + $0x58] sm:$0xff]
    %v4418 = vld [vmem:[%s4405 + $0x60] sm:$0xff]
    %v4419 = vld [vmem:[%s4405 + $0x68] sm:$0xff]
    %v4420 = vld [vmem:[%s4405 + $0x70] sm:$0xff]
    %v4421 = vld [vmem:[%s4405 + $0x78] sm:$0xff]
    %v4422 = vld [vmem:[%s4405 + $0x80] sm:$0xff]
    %v4423 = vld [vmem:[%s4405 + $0x88] sm:$0xff]
    %v4424 = vld [vmem:[%s4405 + $0x90] sm:$0xff]
    %v4425 = vld [vmem:[%s4405 + $0x98] sm:$0xff]
    %v4426 = vld [vmem:[%s4405 + $0xa0] sm:$0xff]
    %v4427 = vld [vmem:[%s4405 + $0xa8] sm:$0xff]
    %v4428 = vld [vmem:[%s4405 + $0xb0] sm:$0xff]
    %v4429 = vld [vmem:[%s4405 + $0xb8] sm:$0xff]
    %v4430 = vld [vmem:[%s4405 + $0xc0] sm:$0xff]
    %v4431 = vld [vmem:[%s4405 + $0xc8] sm:$0xff]
    %v4432 = vld [vmem:[%s4405 + $0xd0] sm:$0xff]
    %v4433 = vld [vmem:[%s4405 + $0xd8] sm:$0xff]
    %v4434 = vld [vmem:[%s4405 + $0xe0] sm:$0xff]
    %v4435 = vld [vmem:[%s4405 + $0xe8] sm:$0xff]
    %v4436 = vld [vmem:[%s4405 + $0xf0] sm:$0xff]
    %v4437 = vld [vmem:[%s4405 + $0xf8] sm:$0xff]
    %v4438 = vld [vmem:[%s4405 + $0x100] sm:$0xff]
    %v4439 = vld [vmem:[%s4405 + $0x108] sm:$0xff]
    %v4440 = vld [vmem:[%s4405 + $0x110] sm:$0xff]
    %v4441 = vld [vmem:[%s4405 + $0x118] sm:$0xff]
    %v4442 = vld [vmem:[%s4405 + $0x120] sm:$0xff]
    %v4443 = vld [vmem:[%s4405 + $0x128] sm:$0xff]
    %v4444 = vld [vmem:[%s4405 + $0x130] sm:$0xff]
    %v4445 = vld [vmem:[%s4405 + $0x138] sm:$0xff]
    %v4446 = vld [vmem:[%s4405 + $0x140] sm:$0xff]
    %v4447 = vld [vmem:[%s4405 + $0x148] sm:$0xff]
    %v4448 = vld [vmem:[%s4405 + $0x150] sm:$0xff]
    %v4449 = vld [vmem:[%s4405 + $0x158] sm:$0xff]
    %v4450 = vld [vmem:[%s4405 + $0x160] sm:$0xff]
    %v4451 = vld [vmem:[%s4405 + $0x168] sm:$0xff]
    %v4452 = vld [vmem:[%s4405 + $0x170] sm:$0xff]
    %v4453 = vld [vmem:[%s4405 + $0x178] sm:$0xff]
    %v4454 = vld [vmem:[%s4405 + $0x180] sm:$0xff]
    %v4455 = vld [vmem:[%s4405 + $0x188] sm:$0xff]
    %v4456 = vld [vmem:[%s4405 + $0x190] sm:$0xff]
    %v4457 = vld [vmem:[%s4405 + $0x198] sm:$0xff]
    %v4458 = vld [vmem:[%s4405 + $0x1a0] sm:$0xff]
    %v4459 = vld [vmem:[%s4405 + $0x1a8] sm:$0xff]
    %v4460 = vld [vmem:[%s4405 + $0x1b0] sm:$0xff]
    %v4461 = vld [vmem:[%s4405 + $0x1b8] sm:$0xff]
    %v4462 = vld [vmem:[%s4405 + $0x1c0] sm:$0xff]
    %v4463 = vld [vmem:[%s4405 + $0x1c8] sm:$0xff]
    %v4464 = vld [vmem:[%s4405 + $0x1d0] sm:$0xff]
    %v4465 = vld [vmem:[%s4405 + $0x1d8] sm:$0xff]
    %v4466 = vld [vmem:[%s4405 + $0x1e0] sm:$0xff]
    %v4467 = vld [vmem:[%s4405 + $0x1e8] sm:$0xff]
    %v4468 = vld [vmem:[%s4405 + $0x1f0] sm:$0xff]
    %v4469 = vld [vmem:[%s4405 + $0x1f8] sm:$0xff]
    %v4470 = vld [vmem:[%s4405 + $0x200] sm:$0xff]
    %v4471 = vld [vmem:[%s4405 + $0x208] sm:$0xff]
    %v4472 = vld [vmem:[%s4405 + $0x210] sm:$0xff]
    %v4473 = vld [vmem:[%s4405 + $0x218] sm:$0xff]
    %v4474 = vld [vmem:[%s4405 + $0x220] sm:$0xff]
    %v4475 = vld [vmem:[%s4405 + $0x228] sm:$0xff]
    %v4476 = vld [vmem:[%s4405 + $0x230] sm:$0xff]
    %v4477 = vld [vmem:[%s4405 + $0x238] sm:$0xff]
    %v4478 = vld [vmem:[%s4405 + $0x240] sm:$0xff]
    %v4479 = vld [vmem:[%s4405 + $0x248] sm:$0xff]
    %v4480 = vld [vmem:[%s4405 + $0x250] sm:$0xff]
    %v4481 = vld [vmem:[%s4405 + $0x258] sm:$0xff]
    %v4482 = vld [vmem:[%s4405 + $0x260] sm:$0xff]
    %v4483 = vld [vmem:[%s4405 + $0x268] sm:$0xff]
    %v4484 = vld [vmem:[%s4405 + $0x270] sm:$0xff]
    %v4485 = vld [vmem:[%s4405 + $0x278] sm:$0xff]
    %v4486 = vld [vmem:[%s4405 + $0x280] sm:$0xff]
    %v4487 = vld [vmem:[%s4405 + $0x288] sm:$0xff]
    %v4488 = vld [vmem:[%s4405 + $0x290] sm:$0xff]
    %v4489 = vld [vmem:[%s4405 + $0x298] sm:$0xff]
    %v4490 = vld [vmem:[%s4405 + $0x2a0] sm:$0xff]
    %v4491 = vld [vmem:[%s4405 + $0x2a8] sm:$0xff]
    %v4492 = vld [vmem:[%s4405 + $0x2b0] sm:$0xff]
    %v4493 = vld [vmem:[%s4405 + $0x2b8] sm:$0xff]
    %v4494 = vld [vmem:[%s4405 + $0x2c0] sm:$0xff]
    %v4495 = vld [vmem:[%s4405 + $0x2c8] sm:$0xff]
    %v4496 = vld [vmem:[%s4405 + $0x2d0] sm:$0xff]
    %v4497 = vld [vmem:[%s4405 + $0x2d8] sm:$0xff]
    %v4498 = vld [vmem:[%s4405 + $0x2e0] sm:$0xff]
    %v4499 = vld [vmem:[%s4405 + $0x2e8] sm:$0xff]
    %v4500 = vld [vmem:[%s4405 + $0x2f0] sm:$0xff]
    %v4501 = vld [vmem:[%s4405 + $0x2f8] sm:$0xff]
    %v4502 = vld [vmem:[%s4405 + $0x300] sm:$0xff]
    %v4503 = vld [vmem:[%s4405 + $0x308] sm:$0xff]
    %v4504 = vld [vmem:[%s4405 + $0x310] sm:$0xff]
    %v4505 = vld [vmem:[%s4405 + $0x318] sm:$0xff]
    %v4506 = vld [vmem:[%s4405 + $0x320] sm:$0xff]
    %v4507 = vld [vmem:[%s4405 + $0x328] sm:$0xff]
    %v4508 = vld [vmem:[%s4405 + $0x330] sm:$0xff]
    %v4509 = vld [vmem:[%s4405 + $0x338] sm:$0xff]
    %v4510 = vld [vmem:[%s4405 + $0x340] sm:$0xff]
    %v4511 = vld [vmem:[%s4405 + $0x348] sm:$0xff]
    %v4512 = vld [vmem:[%s4405 + $0x350] sm:$0xff]
    %v4513 = vld [vmem:[%s4405 + $0x358] sm:$0xff]
    %v4514 = vld [vmem:[%s4405 + $0x360] sm:$0xff]
    %v4515 = vld [vmem:[%s4405 + $0x368] sm:$0xff]
    %v4516 = vld [vmem:[%s4405 + $0x370] sm:$0xff]
    %v4517 = vld [vmem:[%s4405 + $0x378] sm:$0xff]
    %v4518 = vld [vmem:[%s4405 + $0x380] sm:$0xff]
    %v4519 = vld [vmem:[%s4405 + $0x388] sm:$0xff]
    %v4520 = vld [vmem:[%s4405 + $0x390] sm:$0xff]
    %v4521 = vld [vmem:[%s4405 + $0x398] sm:$0xff]
    %v4522 = vld [vmem:[%s4405 + $0x3a0] sm:$0xff]
    %v4523 = vld [vmem:[%s4405 + $0x3a8] sm:$0xff]
    %v4524 = vld [vmem:[%s4405 + $0x3b0] sm:$0xff]
    %v4525 = vld [vmem:[%s4405 + $0x3b8] sm:$0xff]
    %v4526 = vld [vmem:[%s4405 + $0x3c0] sm:$0xff]
    %v4527 = vld [vmem:[%s4405 + $0x3c8] sm:$0xff]
    %v4528 = vld [vmem:[%s4405 + $0x3d0] sm:$0xff]
    %v4529 = vld [vmem:[%s4405 + $0x3d8] sm:$0xff]
    %v4530 = vld [vmem:[%s4405 + $0x3e0] sm:$0xff]
    %v4531 = vld [vmem:[%s4405 + $0x3e8] sm:$0xff]
    %v4532 = vld [vmem:[%s4405 + $0x3f0] sm:$0xff]
    %v4533 = vld [vmem:[%s4405 + $0x3f8] sm:$0xff]
    %v4534 = vld [vmem:[%s4405 + $0x400] sm:$0xff]
    %v4535 = vld [vmem:[%s4405 + $0x408] sm:$0xff]
    %v4536 = vld [vmem:[%s4405 + $0x410] sm:$0xff]
    %v4537 = vld [vmem:[%s4405 + $0x418] sm:$0xff]
    %v4538 = vld [vmem:[%s4405 + $0x420] sm:$0xff]
    %v4539 = vld [vmem:[%s4405 + $0x428] sm:$0xff]
    %v4540 = vld [vmem:[%s4405 + $0x430] sm:$0xff]
    %v4541 = vld [vmem:[%s4405 + $0x438] sm:$0xff]
    %v4542 = vld [vmem:[%s4405 + $0x440] sm:$0xff]
    %v4543 = vld [vmem:[%s4405 + $0x448] sm:$0xff]
    %v4544 = vld [vmem:[%s4405 + $0x450] sm:$0xff]
    %v4545 = vld [vmem:[%s4405 + $0x458] sm:$0xff]
    %v4546 = vld [vmem:[%s4405 + $0x460] sm:$0xff]
    %v4547 = vld [vmem:[%s4405 + $0x468] sm:$0xff]
    %v4548 = vld [vmem:[%s4405 + $0x470] sm:$0xff]
    %v4549 = vld [vmem:[%s4405 + $0x478] sm:$0xff]
    %v4550 = vld [vmem:[%s4405 + $0x480] sm:$0xff]
    %v4551 = vld [vmem:[%s4405 + $0x488] sm:$0xff]
    %v4552 = vld [vmem:[%s4405 + $0x490] sm:$0xff]
    %v4553 = vld [vmem:[%s4405 + $0x498] sm:$0xff]
    %v4554 = vld [vmem:[%s4405 + $0x4a0] sm:$0xff]
    %v4555 = vld [vmem:[%s4405 + $0x4a8] sm:$0xff]
    %v4556 = vld [vmem:[%s4405 + $0x4b0] sm:$0xff]
    %v4557 = vld [vmem:[%s4405 + $0x4b8] sm:$0xff]
    %v4558 = vld [vmem:[%s4405 + $0x4c0] sm:$0xff]
    %v4559 = vld [vmem:[%s4405 + $0x4c8] sm:$0xff]
    %v4560 = vld [vmem:[%s4405 + $0x4d0] sm:$0xff]
    %v4561 = vld [vmem:[%s4405 + $0x4d8] sm:$0xff]
    %v4562 = vld [vmem:[%s4405 + $0x4e0] sm:$0xff]
    %v4563 = vld [vmem:[%s4405 + $0x4e8] sm:$0xff]
    %v4564 = vld [vmem:[%s4405 + $0x4f0] sm:$0xff]
    %v4565 = vld [vmem:[%s4405 + $0x4f8] sm:$0xff]
    %v4566 = vld [vmem:[%s4405 + $0x500] sm:$0xff]
    %v4567 = vld [vmem:[%s4405 + $0x508] sm:$0xff]
    %v4568 = vld [vmem:[%s4405 + $0x510] sm:$0xff]
    %v4569 = vld [vmem:[%s4405 + $0x518] sm:$0xff]
    %v4570 = vld [vmem:[%s4405 + $0x520] sm:$0xff]
    %v4571 = vld [vmem:[%s4405 + $0x528] sm:$0xff]
    %v4572 = vld [vmem:[%s4405 + $0x530] sm:$0xff]
    %v4573 = vld [vmem:[%s4405 + $0x538] sm:$0xff]
    %v4574 = vld [vmem:[%s4405 + $0x540] sm:$0xff]
    %v4575 = vld [vmem:[%s4405 + $0x548] sm:$0xff]
    %v4576 = vld [vmem:[%s4405 + $0x550] sm:$0xff]
    %v4577 = vld [vmem:[%s4405 + $0x558] sm:$0xff]
    %v4578 = vld [vmem:[%s4405 + $0x560] sm:$0xff]
    %v4579 = vld [vmem:[%s4405 + $0x568] sm:$0xff]
    %v4580 = vld [vmem:[%s4405 + $0x570] sm:$0xff]
    %v4581 = vld [vmem:[%s4405 + $0x578] sm:$0xff]
    %v4582 = vld [vmem:[%s4405 + $0x580] sm:$0xff]
    %v4583 = vld [vmem:[%s4405 + $0x588] sm:$0xff]
    %v4584 = vld [vmem:[%s4405 + $0x590] sm:$0xff]
    %v4585 = vld [vmem:[%s4405 + $0x598] sm:$0xff]
    %v4586 = vld [vmem:[%s4405 + $0x5a0] sm:$0xff]
    %v4587 = vld [vmem:[%s4405 + $0x5a8] sm:$0xff]
    %v4588 = vld [vmem:[%s4405 + $0x5b0] sm:$0xff]
    %v4589 = vld [vmem:[%s4405 + $0x5b8] sm:$0xff]
    %v4590 = vld [vmem:[%s4405 + $0x5c0] sm:$0xff]
    %v4591 = vld [vmem:[%s4405 + $0x5c8] sm:$0xff]
    %v4592 = vld [vmem:[%s4405 + $0x5d0] sm:$0xff]
    %v4593 = vld [vmem:[%s4405 + $0x5d8] sm:$0xff]
    %v4594 = vld [vmem:[%s4405 + $0x5e0] sm:$0xff]
    %v4595 = vld [vmem:[%s4405 + $0x5e8] sm:$0xff]
    %v4596 = vld [vmem:[%s4405 + $0x5f0] sm:$0xff]
    %v4597 = vld [vmem:[%s4405 + $0x5f8] sm:$0xff]
    %4598 = vmatprep.subr.mxu0 %v4407
    %4599 = vmatpush1.msra.mxu0 %v4406
    %4600 = vmatprep.subr.mxu0 %v4411
    %4601 = vmatpush1.msra.mxu0 %v4410
    %4602 = vmatprep.subr.mxu0 %v4415
    %4603 = vmatpush1.msra.mxu0 %v4414
    %4604 = vmatprep.subr.mxu0 %v4419
    %4605 = vmatpush1.msra.mxu0 %v4418
    %4606 = vmatprep.subr.mxu0 %v4423
    %4607 = vmatpush1.msra.mxu0 %v4422
    %4608 = vmatprep.subr.mxu0 %v4427
    %4609 = vmatpush1.msra.mxu0 %v4426
    %4610 = vmatprep.subr.mxu0 %v4431
    %4611 = vmatpush1.msra.mxu0 %v4430
    %4612 = vmatprep.subr.mxu0 %v4435
    %4613 = vmatpush1.msra.mxu0 %v4434
    %4614 = vmatprep.subr.mxu0 %v4439
    %4615 = vmatpush1.msra.mxu0 %v4438
    %4616 = vmatprep.subr.mxu0 %v4443
    %4617 = vmatpush1.msra.mxu0 %v4442
    %4618 = vmatprep.subr.mxu0 %v4447
    %4619 = vmatpush1.msra.mxu0 %v4446
    %4620 = vmatprep.subr.mxu0 %v4451
    %4621 = vmatpush1.msra.mxu0 %v4450
    %4622 = vmatprep.subr.mxu0 %v4455
    %4623 = vmatpush1.msra.mxu0 %v4454
    %4624 = vmatprep.subr.mxu0 %v4459
    %4625 = vmatpush1.msra.mxu0 %v4458
    %4626 = vmatprep.subr.mxu0 %v4463
    %4627 = vmatpush1.msra.mxu0 %v4462
    %4628 = vmatprep.subr.mxu0 %v4467
    %4629 = vmatpush1.msra.mxu0 %v4466
    %4630 = vmatprep.subr.mxu0 %v4471
    %4631 = vmatpush1.msra.mxu0 %v4470
    %4632 = vmatprep.subr.mxu0 %v4475
    %4633 = vmatpush1.msra.mxu0 %v4474
    %4634 = vmatprep.subr.mxu0 %v4479
    %4635 = vmatpush1.msra.mxu0 %v4478
    %4636 = vmatprep.subr.mxu0 %v4483
    %4637 = vmatpush1.msra.mxu0 %v4482
    %4638 = vmatprep.subr.mxu0 %v4487
    %4639 = vmatpush1.msra.mxu0 %v4486
    %4640 = vmatprep.subr.mxu0 %v4491
    %4641 = vmatpush1.msra.mxu0 %v4490
    %4642 = vmatprep.subr.mxu0 %v4495
    %4643 = vmatpush1.msra.mxu0 %v4494
    %4644 = vmatprep.subr.mxu0 %v4499
    %4645 = vmatpush1.msra.mxu0 %v4498
    %4646 = vmatprep.subr.mxu0 %v4503
    %4647 = vmatpush1.msra.mxu0 %v4502
    %4648 = vmatprep.subr.mxu0 %v4507
    %4649 = vmatpush1.msra.mxu0 %v4506
    %4650 = vmatprep.subr.mxu0 %v4511
    %4651 = vmatpush1.msra.mxu0 %v4510
    %4652 = vmatprep.subr.mxu0 %v4515
    %4653 = vmatpush1.msra.mxu0 %v4514
    %4654 = vmatprep.subr.mxu0 %v4519
    %4655 = vmatpush1.msra.mxu0 %v4518
    %4656 = vmatprep.subr.mxu0 %v4523
    %4657 = vmatpush1.msra.mxu0 %v4522
    %4658 = vmatprep.subr.mxu0 %v4527
    %4659 = vmatpush1.msra.mxu0 %v4526
    %4660 = vmatprep.subr.mxu0 %v4531
    %4661 = vmatpush1.msra.mxu0 %v4530
    %4662 = vmatprep.mubr.f32.mxu0 %v4386
    %4663 = vmatmul.mubr.f32.gmra.mrb[0].mxu0 %v4383
    %v4664 = vpop.f32.mrb[0].mxu0
    %v4665 = vadd.f32 0.0, %v4664
    %v4666 = vpop.f32.mrb[0].mxu0
    %v4667 = vadd.f32 0.0, %v4666
    %4668 = vmatprep.mubr.f32.mxu0 %v4395
    %4669 = vmatmul.mubr.f32.gmra.mrb[0].mxu0 %v4392
    %v4670 = vpop.f32.mrb[0].mxu0
    %v4671 = vadd.f32 0.0, %v4670
    %v4672 = vpop.f32.mrb[0].mxu0
    %v4673 = vadd.f32 0.0, %v4672
    %4674 = vdwg.mxu0
    %4675 = vmatprep.subr.mxu0 %v4535
    %4676 = vmatpush1.msra.mxu0 %v4534
    %4677 = vmatprep.subr.mxu0 %v4539
    %4678 = vmatpush1.msra.mxu0 %v4538
    %4679 = vmatprep.subr.mxu0 %v4543
    %4680 = vmatpush1.msra.mxu0 %v4542
    %4681 = vmatprep.subr.mxu0 %v4547
    %4682 = vmatpush1.msra.mxu0 %v4546
    %4683 = vmatprep.subr.mxu0 %v4551
    %4684 = vmatpush1.msra.mxu0 %v4550
    %4685 = vmatprep.subr.mxu0 %v4555
    %4686 = vmatpush1.msra.mxu0 %v4554
    %4687 = vmatprep.subr.mxu0 %v4559
    %4688 = vmatpush1.msra.mxu0 %v4558
    %4689 = vmatprep.subr.mxu0 %v4563
    %4690 = vmatpush1.msra.mxu0 %v4562
    %4691 = vmatprep.subr.mxu0 %v4567
    %4692 = vmatpush1.msra.mxu0 %v4566
    %4693 = vmatprep.subr.mxu0 %v4571
    %4694 = vmatpush1.msra.mxu0 %v4570
    %4695 = vmatprep.subr.mxu0 %v4575
    %4696 = vmatpush1.msra.mxu0 %v4574
    %4697 = vmatprep.subr.mxu0 %v4579
    %4698 = vmatpush1.msra.mxu0 %v4578
    %4699 = vmatprep.subr.mxu0 %v4583
    %4700 = vmatpush1.msra.mxu0 %v4582
    %4701 = vmatprep.subr.mxu0 %v4587
    %4702 = vmatpush1.msra.mxu0 %v4586
    %4703 = vmatprep.subr.mxu0 %v4591
    %4704 = vmatpush1.msra.mxu0 %v4590
    %4705 = vmatprep.subr.mxu0 %v4595
    %4706 = vmatpush1.msra.mxu0 %v4594
    %4707 = vmatprep.subr.mxu0 0.0
    %4708 = vmatpush1.msra.mxu0 0.0
    %4709 = vmatprep.subr.mxu0 0.0
    %4710 = vmatpush1.msra.mxu0 0.0
    %4711 = vmatprep.subr.mxu0 0.0
    %4712 = vmatpush1.msra.mxu0 0.0
    %4713 = vmatprep.subr.mxu0 0.0
    %4714 = vmatpush1.msra.mxu0 0.0
    %4715 = vmatprep.subr.mxu0 0.0
    %4716 = vmatpush1.msra.mxu0 0.0
    %4717 = vmatprep.subr.mxu0 0.0
    %4718 = vmatpush1.msra.mxu0 0.0
    %4719 = vmatprep.subr.mxu0 0.0
    %4720 = vmatpush1.msra.mxu0 0.0
    %4721 = vmatprep.subr.mxu0 0.0
    %4722 = vmatpush1.msra.mxu0 0.0
    %4723 = vmatprep.subr.mxu0 0.0
    %4724 = vmatpush1.msra.mxu0 0.0
    %4725 = vmatprep.subr.mxu0 0.0
    %4726 = vmatpush1.msra.mxu0 0.0
    %4727 = vmatprep.subr.mxu0 0.0
    %4728 = vmatpush1.msra.mxu0 0.0
    %4729 = vmatprep.subr.mxu0 0.0
    %4730 = vmatpush1.msra.mxu0 0.0
    %4731 = vmatprep.subr.mxu0 0.0
    %4732 = vmatpush1.msra.mxu0 0.0
    %4733 = vmatprep.subr.mxu0 0.0
    %4734 = vmatpush1.msra.mxu0 0.0
    %4735 = vmatprep.subr.mxu0 0.0
    %4736 = vmatpush1.msra.mxu0 0.0
    %4737 = vmatprep.subr.mxu0 0.0
    %4738 = vmatpush1.msra.mxu0 0.0
    %4739 = vmatprep.mubr.f32.mxu0 0.0
    %4740 = vmatmul.mubr.f32.gmra.mrb[0].mxu0 %v4389
    %v4741 = vpop.f32.mrb[0].mxu0
    %v4742 = vadd.f32 %v4665, %v4741
    %v4743 = vpop.f32.mrb[0].mxu0
    %v4744 = vadd.f32 %v4667, %v4743
    %4745 = vmatprep.mubr.f32.mxu0 0.0
    %4746 = vmatmul.mubr.f32.gmra.mrb[0].mxu0 %v4398
    %v4747 = vpop.f32.mrb[0].mxu0
    %v4748 = vadd.f32 %v4671, %v4747
    %v4749 = vpop.f32.mrb[0].mxu0
    %v4750 = vadd.f32 %v4673, %v4749
    %4751 = vdwg.mxu0
    %4752 = vmatprep.subr.mxu0 %v4409
    %4753 = vmatpush1.msra.mxu0 %v4408
    %4754 = vmatprep.subr.mxu0 %v4413
    %4755 = vmatpush1.msra.mxu0 %v4412
    %4756 = vmatprep.subr.mxu0 %v4417
    %4757 = vmatpush1.msra.mxu0 %v4416
    %4758 = vmatprep.subr.mxu0 %v4421
    %4759 = vmatpush1.msra.mxu0 %v4420
    %4760 = vmatprep.subr.mxu0 %v4425
    %4761 = vmatpush1.msra.mxu0 %v4424
    %4762 = vmatprep.subr.mxu0 %v4429
    %4763 = vmatpush1.msra.mxu0 %v4428
    %4764 = vmatprep.subr.mxu0 %v4433
    %4765 = vmatpush1.msra.mxu0 %v4432
    %4766 = vmatprep.subr.mxu0 %v4437
    %4767 = vmatpush1.msra.mxu0 %v4436
    %4768 = vmatprep.subr.mxu0 %v4441
    %4769 = vmatpush1.msra.mxu0 %v4440
    %4770 = vmatprep.subr.mxu0 %v4445
    %4771 = vmatpush1.msra.mxu0 %v4444
    %4772 = vmatprep.subr.mxu0 %v4449
    %4773 = vmatpush1.msra.mxu0 %v4448
    %4774 = vmatprep.subr.mxu0 %v4453
    %4775 = vmatpush1.msra.mxu0 %v4452
    %4776 = vmatprep.subr.mxu0 %v4457
    %4777 = vmatpush1.msra.mxu0 %v4456
    %4778 = vmatprep.subr.mxu0 %v4461
    %4779 = vmatpush1.msra.mxu0 %v4460
    %4780 = vmatprep.subr.mxu0 %v4465
    %4781 = vmatpush1.msra.mxu0 %v4464
    %4782 = vmatprep.subr.mxu0 %v4469
    %4783 = vmatpush1.msra.mxu0 %v4468
    %4784 = vmatprep.subr.mxu0 %v4473
    %4785 = vmatpush1.msra.mxu0 %v4472
    %4786 = vmatprep.subr.mxu0 %v4477
    %4787 = vmatpush1.msra.mxu0 %v4476
    %4788 = vmatprep.subr.mxu0 %v4481
    %4789 = vmatpush1.msra.mxu0 %v4480
    %4790 = vmatprep.subr.mxu0 %v4485
    %4791 = vmatpush1.msra.mxu0 %v4484
    %4792 = vmatprep.subr.mxu0 %v4489
    %4793 = vmatpush1.msra.mxu0 %v4488
    %4794 = vmatprep.subr.mxu0 %v4493
    %4795 = vmatpush1.msra.mxu0 %v4492
    %4796 = vmatprep.subr.mxu0 %v4497
    %4797 = vmatpush1.msra.mxu0 %v4496
    %4798 = vmatprep.subr.mxu0 %v4501
    %4799 = vmatpush1.msra.mxu0 %v4500
    %4800 = vmatprep.subr.mxu0 %v4505
    %4801 = vmatpush1.msra.mxu0 %v4504
    %4802 = vmatprep.subr.mxu0 %v4509
    %4803 = vmatpush1.msra.mxu0 %v4508
    %4804 = vmatprep.subr.mxu0 %v4513
    %4805 = vmatpush1.msra.mxu0 %v4512
    %4806 = vmatprep.subr.mxu0 %v4517
    %4807 = vmatpush1.msra.mxu0 %v4516
    %4808 = vmatprep.subr.mxu0 %v4521
    %4809 = vmatpush1.msra.mxu0 %v4520
    %4810 = vmatprep.subr.mxu0 %v4525
    %4811 = vmatpush1.msra.mxu0 %v4524
    %4812 = vmatprep.subr.mxu0 %v4529
    %4813 = vmatpush1.msra.mxu0 %v4528
    %4814 = vmatprep.subr.mxu0 %v4533
    %4815 = vmatpush1.msra.mxu0 %v4532
    %4816 = vmatprep.mubr.f32.mxu0 %v4386
    %4817 = vmatmul.mubr.f32.gmra.mrb[0].mxu0 %v4383
    %v4818 = vpop.f32.mrb[0].mxu0
    %v4819 = vadd.f32 0.0, %v4818
    %v4820 = vpop.f32.mrb[0].mxu0
    %v4821 = vadd.f32 0.0, %v4820
    %4822 = vmatprep.mubr.f32.mxu0 %v4395
    %4823 = vmatmul.mubr.f32.gmra.mrb[0].mxu0 %v4392
    %v4824 = vpop.f32.mrb[0].mxu0
    %v4825 = vadd.f32 0.0, %v4824
    %v4826 = vpop.f32.mrb[0].mxu0
    %v4827 = vadd.f32 0.0, %v4826
    %4828 = vdwg.mxu0
    %4829 = vmatprep.subr.mxu0 %v4537
    %4830 = vmatpush1.msra.mxu0 %v4536
    %4831 = vmatprep.subr.mxu0 %v4541
    %4832 = vmatpush1.msra.mxu0 %v4540
    %4833 = vmatprep.subr.mxu0 %v4545
    %4834 = vmatpush1.msra.mxu0 %v4544
    %4835 = vmatprep.subr.mxu0 %v4549
    %4836 = vmatpush1.msra.mxu0 %v4548
    %4837 = vmatprep.subr.mxu0 %v4553
    %4838 = vmatpush1.msra.mxu0 %v4552
    %4839 = vmatprep.subr.mxu0 %v4557
    %4840 = vmatpush1.msra.mxu0 %v4556
    %4841 = vmatprep.subr.mxu0 %v4561
    %4842 = vmatpush1.msra.mxu0 %v4560
    %4843 = vmatprep.subr.mxu0 %v4565
    %4844 = vmatpush1.msra.mxu0 %v4564
    %4845 = vmatprep.subr.mxu0 %v4569
    %4846 = vmatpush1.msra.mxu0 %v4568
    %4847 = vmatprep.subr.mxu0 %v4573
    %4848 = vmatpush1.msra.mxu0 %v4572
    %4849 = vmatprep.subr.mxu0 %v4577
    %4850 = vmatpush1.msra.mxu0 %v4576
    %4851 = vmatprep.subr.mxu0 %v4581
    %4852 = vmatpush1.msra.mxu0 %v4580
    %4853 = vmatprep.subr.mxu0 %v4585
    %4854 = vmatpush1.msra.mxu0 %v4584
    %4855 = vmatprep.subr.mxu0 %v4589
    %4856 = vmatpush1.msra.mxu0 %v4588
    %4857 = vmatprep.subr.mxu0 %v4593
    %4858 = vmatpush1.msra.mxu0 %v4592
    %4859 = vmatprep.subr.mxu0 %v4597
    %4860 = vmatpush1.msra.mxu0 %v4596
    %4861 = vmatprep.subr.mxu0 0.0
    %4862 = vmatpush1.msra.mxu0 0.0
    %4863 = vmatprep.subr.mxu0 0.0
    %4864 = vmatpush1.msra.mxu0 0.0
    %4865 = vmatprep.subr.mxu0 0.0
    %4866 = vmatpush1.msra.mxu0 0.0
    %4867 = vmatprep.subr.mxu0 0.0
    %4868 = vmatpush1.msra.mxu0 0.0
    %4869 = vmatprep.subr.mxu0 0.0
    %4870 = vmatpush1.msra.mxu0 0.0
    %4871 = vmatprep.subr.mxu0 0.0
    %4872 = vmatpush1.msra.mxu0 0.0
    %4873 = vmatprep.subr.mxu0 0.0
    %4874 = vmatpush1.msra.mxu0 0.0
    %4875 = vmatprep.subr.mxu0 0.0
    %4876 = vmatpush1.msra.mxu0 0.0
    %4877 = vmatprep.subr.mxu0 0.0
    %4878 = vmatpush1.msra.mxu0 0.0
    %4879 = vmatprep.subr.mxu0 0.0
    %4880 = vmatpush1.msra.mxu0 0.0
    %4881 = vmatprep.subr.mxu0 0.0
    %4882 = vmatpush1.msra.mxu0 0.0
    %4883 = vmatprep.subr.mxu0 0.0
    %4884 = vmatpush1.msra.mxu0 0.0
    %4885 = vmatprep.subr.mxu0 0.0
    %4886 = vmatpush1.msra.mxu0 0.0
    %4887 = vmatprep.subr.mxu0 0.0
    %4888 = vmatpush1.msra.mxu0 0.0
    %4889 = vmatprep.subr.mxu0 0.0
    %4890 = vmatpush1.msra.mxu0 0.0
    %4891 = vmatprep.subr.mxu0 0.0
    %4892 = vmatpush1.msra.mxu0 0.0
    %4893 = vmatprep.mubr.f32.mxu0 0.0
    %4894 = vmatmul.mubr.f32.gmra.mrb[0].mxu0 %v4389
    %v4895 = vpop.f32.mrb[0].mxu0
    %v4896 = vadd.f32 %v4819, %v4895
    %v4897 = vpop.f32.mrb[0].mxu0
    %v4898 = vadd.f32 %v4821, %v4897
    %4899 = vmatprep.mubr.f32.mxu0 0.0
    %4900 = vmatmul.mubr.f32.gmra.mrb[0].mxu0 %v4398
    %v4901 = vpop.f32.mrb[0].mxu0
    %v4902 = vadd.f32 %v4825, %v4901
    %v4903 = vpop.f32.mrb[0].mxu0
    %v4904 = vadd.f32 %v4827, %v4903
    %4905 = vdwg.mxu0
    %v4906 = vadd.f32 %v4217, %v4742
    %v4907 = vadd.f32 %v4219, %v4744
    %v4908 = vadd.f32 %v4371, %v4896
    %v4909 = vadd.f32 %v4373, %v4898
    %v4910 = vadd.f32 %v4223, %v4748
    %v4911 = vadd.f32 %v4225, %v4750
    %v4912 = vadd.f32 %v4377, %v4902
    %v4913 = vadd.f32 %v4379, %v4904
    %vm4914 = vcmask 1044480
    %v4915 = vrot.slane %v3332, 3
    %v4916 = vrot.slane %v3335, 3
    %v4917 = vsel %vm4914, %v4915, %v4916
    %v4918 = vrot.slane %v3333, 3
    %v4919 = vrot.slane %v3336, 3
    %v4920 = vsel %vm4914, %v4918, %v4919
    %v4921 = vrot.slane %v3334, 3
    %v4922 = vrot.slane %v3337, 3
    %v4923 = vsel %vm4914, %v4921, %v4922
    %v4924 = vrot.slane %v3338, 3
    %v4925 = vrot.slane %v3341, 3
    %v4926 = vsel %vm4914, %v4924, %v4925
    %v4927 = vrot.slane %v3339, 3
    %v4928 = vrot.slane %v3342, 3
    %v4929 = vsel %vm4914, %v4927, %v4928
    %v4930 = vrot.slane %v3340, 3
    %v4931 = vrot.slane %v3343, 3
    %v4932 = vsel %vm4914, %v4930, %v4931
    %s4939 = scalar_lea.vmem [#allocation8], 4608
    %v4940 = vld [vmem:[%s4939] sm:$0xff]
    %v4941 = vld [vmem:[%s4939 + $0x8] sm:$0xff]
    %v4942 = vld [vmem:[%s4939 + $0x10] sm:$0xff]
    %v4943 = vld [vmem:[%s4939 + $0x18] sm:$0xff]
    %v4944 = vld [vmem:[%s4939 + $0x20] sm:$0xff]
    %v4945 = vld [vmem:[%s4939 + $0x28] sm:$0xff]
    %v4946 = vld [vmem:[%s4939 + $0x30] sm:$0xff]
    %v4947 = vld [vmem:[%s4939 + $0x38] sm:$0xff]
    %v4948 = vld [vmem:[%s4939 + $0x40] sm:$0xff]
    %v4949 = vld [vmem:[%s4939 + $0x48] sm:$0xff]
    %v4950 = vld [vmem:[%s4939 + $0x50] sm:$0xff]
    %v4951 = vld [vmem:[%s4939 + $0x58] sm:$0xff]
    %v4952 = vld [vmem:[%s4939 + $0x60] sm:$0xff]
    %v4953 = vld [vmem:[%s4939 + $0x68] sm:$0xff]
    %v4954 = vld [vmem:[%s4939 + $0x70] sm:$0xff]
    %v4955 = vld [vmem:[%s4939 + $0x78] sm:$0xff]
    %v4956 = vld [vmem:[%s4939 + $0x80] sm:$0xff]
    %v4957 = vld [vmem:[%s4939 + $0x88] sm:$0xff]
    %v4958 = vld [vmem:[%s4939 + $0x90] sm:$0xff]
    %v4959 = vld [vmem:[%s4939 + $0x98] sm:$0xff]
    %v4960 = vld [vmem:[%s4939 + $0xa0] sm:$0xff]
    %v4961 = vld [vmem:[%s4939 + $0xa8] sm:$0xff]
    %v4962 = vld [vmem:[%s4939 + $0xb0] sm:$0xff]
    %v4963 = vld [vmem:[%s4939 + $0xb8] sm:$0xff]
    %v4964 = vld [vmem:[%s4939 + $0xc0] sm:$0xff]
    %v4965 = vld [vmem:[%s4939 + $0xc8] sm:$0xff]
    %v4966 = vld [vmem:[%s4939 + $0xd0] sm:$0xff]
    %v4967 = vld [vmem:[%s4939 + $0xd8] sm:$0xff]
    %v4968 = vld [vmem:[%s4939 + $0xe0] sm:$0xff]
    %v4969 = vld [vmem:[%s4939 + $0xe8] sm:$0xff]
    %v4970 = vld [vmem:[%s4939 + $0xf0] sm:$0xff]
    %v4971 = vld [vmem:[%s4939 + $0xf8] sm:$0xff]
    %v4972 = vld [vmem:[%s4939 + $0x100] sm:$0xff]
    %v4973 = vld [vmem:[%s4939 + $0x108] sm:$0xff]
    %v4974 = vld [vmem:[%s4939 + $0x110] sm:$0xff]
    %v4975 = vld [vmem:[%s4939 + $0x118] sm:$0xff]
    %v4976 = vld [vmem:[%s4939 + $0x120] sm:$0xff]
    %v4977 = vld [vmem:[%s4939 + $0x128] sm:$0xff]
    %v4978 = vld [vmem:[%s4939 + $0x130] sm:$0xff]
    %v4979 = vld [vmem:[%s4939 + $0x138] sm:$0xff]
    %v4980 = vld [vmem:[%s4939 + $0x140] sm:$0xff]
    %v4981 = vld [vmem:[%s4939 + $0x148] sm:$0xff]
    %v4982 = vld [vmem:[%s4939 + $0x150] sm:$0xff]
    %v4983 = vld [vmem:[%s4939 + $0x158] sm:$0xff]
    %v4984 = vld [vmem:[%s4939 + $0x160] sm:$0xff]
    %v4985 = vld [vmem:[%s4939 + $0x168] sm:$0xff]
    %v4986 = vld [vmem:[%s4939 + $0x170] sm:$0xff]
    %v4987 = vld [vmem:[%s4939 + $0x178] sm:$0xff]
    %v4988 = vld [vmem:[%s4939 + $0x180] sm:$0xff]
    %v4989 = vld [vmem:[%s4939 + $0x188] sm:$0xff]
    %v4990 = vld [vmem:[%s4939 + $0x190] sm:$0xff]
    %v4991 = vld [vmem:[%s4939 + $0x198] sm:$0xff]
    %v4992 = vld [vmem:[%s4939 + $0x1a0] sm:$0xff]
    %v4993 = vld [vmem:[%s4939 + $0x1a8] sm:$0xff]
    %v4994 = vld [vmem:[%s4939 + $0x1b0] sm:$0xff]
    %v4995 = vld [vmem:[%s4939 + $0x1b8] sm:$0xff]
    %v4996 = vld [vmem:[%s4939 + $0x1c0] sm:$0xff]
    %v4997 = vld [vmem:[%s4939 + $0x1c8] sm:$0xff]
    %v4998 = vld [vmem:[%s4939 + $0x1d0] sm:$0xff]
    %v4999 = vld [vmem:[%s4939 + $0x1d8] sm:$0xff]
    %v5000 = vld [vmem:[%s4939 + $0x1e0] sm:$0xff]
    %v5001 = vld [vmem:[%s4939 + $0x1e8] sm:$0xff]
    %v5002 = vld [vmem:[%s4939 + $0x1f0] sm:$0xff]
    %v5003 = vld [vmem:[%s4939 + $0x1f8] sm:$0xff]
    %v5004 = vld [vmem:[%s4939 + $0x200] sm:$0xff]
    %v5005 = vld [vmem:[%s4939 + $0x208] sm:$0xff]
    %v5006 = vld [vmem:[%s4939 + $0x210] sm:$0xff]
    %v5007 = vld [vmem:[%s4939 + $0x218] sm:$0xff]
    %v5008 = vld [vmem:[%s4939 + $0x220] sm:$0xff]
    %v5009 = vld [vmem:[%s4939 + $0x228] sm:$0xff]
    %v5010 = vld [vmem:[%s4939 + $0x230] sm:$0xff]
    %v5011 = vld [vmem:[%s4939 + $0x238] sm:$0xff]
    %v5012 = vld [vmem:[%s4939 + $0x240] sm:$0xff]
    %v5013 = vld [vmem:[%s4939 + $0x248] sm:$0xff]
    %v5014 = vld [vmem:[%s4939 + $0x250] sm:$0xff]
    %v5015 = vld [vmem:[%s4939 + $0x258] sm:$0xff]
    %v5016 = vld [vmem:[%s4939 + $0x260] sm:$0xff]
    %v5017 = vld [vmem:[%s4939 + $0x268] sm:$0xff]
    %v5018 = vld [vmem:[%s4939 + $0x270] sm:$0xff]
    %v5019 = vld [vmem:[%s4939 + $0x278] sm:$0xff]
    %v5020 = vld [vmem:[%s4939 + $0x280] sm:$0xff]
    %v5021 = vld [vmem:[%s4939 + $0x288] sm:$0xff]
    %v5022 = vld [vmem:[%s4939 + $0x290] sm:$0xff]
    %v5023 = vld [vmem:[%s4939 + $0x298] sm:$0xff]
    %v5024 = vld [vmem:[%s4939 + $0x2a0] sm:$0xff]
    %v5025 = vld [vmem:[%s4939 + $0x2a8] sm:$0xff]
    %v5026 = vld [vmem:[%s4939 + $0x2b0] sm:$0xff]
    %v5027 = vld [vmem:[%s4939 + $0x2b8] sm:$0xff]
    %v5028 = vld [vmem:[%s4939 + $0x2c0] sm:$0xff]
    %v5029 = vld [vmem:[%s4939 + $0x2c8] sm:$0xff]
    %v5030 = vld [vmem:[%s4939 + $0x2d0] sm:$0xff]
    %v5031 = vld [vmem:[%s4939 + $0x2d8] sm:$0xff]
    %v5032 = vld [vmem:[%s4939 + $0x2e0] sm:$0xff]
    %v5033 = vld [vmem:[%s4939 + $0x2e8] sm:$0xff]
    %v5034 = vld [vmem:[%s4939 + $0x2f0] sm:$0xff]
    %v5035 = vld [vmem:[%s4939 + $0x2f8] sm:$0xff]
    %v5036 = vld [vmem:[%s4939 + $0x300] sm:$0xff]
    %v5037 = vld [vmem:[%s4939 + $0x308] sm:$0xff]
    %v5038 = vld [vmem:[%s4939 + $0x310] sm:$0xff]
    %v5039 = vld [vmem:[%s4939 + $0x318] sm:$0xff]
    %v5040 = vld [vmem:[%s4939 + $0x320] sm:$0xff]
    %v5041 = vld [vmem:[%s4939 + $0x328] sm:$0xff]
    %v5042 = vld [vmem:[%s4939 + $0x330] sm:$0xff]
    %v5043 = vld [vmem:[%s4939 + $0x338] sm:$0xff]
    %v5044 = vld [vmem:[%s4939 + $0x340] sm:$0xff]
    %v5045 = vld [vmem:[%s4939 + $0x348] sm:$0xff]
    %v5046 = vld [vmem:[%s4939 + $0x350] sm:$0xff]
    %v5047 = vld [vmem:[%s4939 + $0x358] sm:$0xff]
    %v5048 = vld [vmem:[%s4939 + $0x360] sm:$0xff]
    %v5049 = vld [vmem:[%s4939 + $0x368] sm:$0xff]
    %v5050 = vld [vmem:[%s4939 + $0x370] sm:$0xff]
    %v5051 = vld [vmem:[%s4939 + $0x378] sm:$0xff]
    %v5052 = vld [vmem:[%s4939 + $0x380] sm:$0xff]
    %v5053 = vld [vmem:[%s4939 + $0x388] sm:$0xff]
    %v5054 = vld [vmem:[%s4939 + $0x390] sm:$0xff]
    %v5055 = vld [vmem:[%s4939 + $0x398] sm:$0xff]
    %v5056 = vld [vmem:[%s4939 + $0x3a0] sm:$0xff]
    %v5057 = vld [vmem:[%s4939 + $0x3a8] sm:$0xff]
    %v5058 = vld [vmem:[%s4939 + $0x3b0] sm:$0xff]
    %v5059 = vld [vmem:[%s4939 + $0x3b8] sm:$0xff]
    %v5060 = vld [vmem:[%s4939 + $0x3c0] sm:$0xff]
    %v5061 = vld [vmem:[%s4939 + $0x3c8] sm:$0xff]
    %v5062 = vld [vmem:[%s4939 + $0x3d0] sm:$0xff]
    %v5063 = vld [vmem:[%s4939 + $0x3d8] sm:$0xff]
    %v5064 = vld [vmem:[%s4939 + $0x3e0] sm:$0xff]
    %v5065 = vld [vmem:[%s4939 + $0x3e8] sm:$0xff]
    %v5066 = vld [vmem:[%s4939 + $0x3f0] sm:$0xff]
    %v5067 = vld [vmem:[%s4939 + $0x3f8] sm:$0xff]
    %v5068 = vld [vmem:[%s4939 + $0x400] sm:$0xff]
    %v5069 = vld [vmem:[%s4939 + $0x408] sm:$0xff]
    %v5070 = vld [vmem:[%s4939 + $0x410] sm:$0xff]
    %v5071 = vld [vmem:[%s4939 + $0x418] sm:$0xff]
    %v5072 = vld [vmem:[%s4939 + $0x420] sm:$0xff]
    %v5073 = vld [vmem:[%s4939 + $0x428] sm:$0xff]
    %v5074 = vld [vmem:[%s4939 + $0x430] sm:$0xff]
    %v5075 = vld [vmem:[%s4939 + $0x438] sm:$0xff]
    %v5076 = vld [vmem:[%s4939 + $0x440] sm:$0xff]
    %v5077 = vld [vmem:[%s4939 + $0x448] sm:$0xff]
    %v5078 = vld [vmem:[%s4939 + $0x450] sm:$0xff]
    %v5079 = vld [vmem:[%s4939 + $0x458] sm:$0xff]
    %v5080 = vld [vmem:[%s4939 + $0x460] sm:$0xff]
    %v5081 = vld [vmem:[%s4939 + $0x468] sm:$0xff]
    %v5082 = vld [vmem:[%s4939 + $0x470] sm:$0xff]
    %v5083 = vld [vmem:[%s4939 + $0x478] sm:$0xff]
    %v5084 = vld [vmem:[%s4939 + $0x480] sm:$0xff]
    %v5085 = vld [vmem:[%s4939 + $0x488] sm:$0xff]
    %v5086 = vld [vmem:[%s4939 + $0x490] sm:$0xff]
    %v5087 = vld [vmem:[%s4939 + $0x498] sm:$0xff]
    %v5088 = vld [vmem:[%s4939 + $0x4a0] sm:$0xff]
    %v5089 = vld [vmem:[%s4939 + $0x4a8] sm:$0xff]
    %v5090 = vld [vmem:[%s4939 + $0x4b0] sm:$0xff]
    %v5091 = vld [vmem:[%s4939 + $0x4b8] sm:$0xff]
    %v5092 = vld [vmem:[%s4939 + $0x4c0] sm:$0xff]
    %v5093 = vld [vmem:[%s4939 + $0x4c8] sm:$0xff]
    %v5094 = vld [vmem:[%s4939 + $0x4d0] sm:$0xff]
    %v5095 = vld [vmem:[%s4939 + $0x4d8] sm:$0xff]
    %v5096 = vld [vmem:[%s4939 + $0x4e0] sm:$0xff]
    %v5097 = vld [vmem:[%s4939 + $0x4e8] sm:$0xff]
    %v5098 = vld [vmem:[%s4939 + $0x4f0] sm:$0xff]
    %v5099 = vld [vmem:[%s4939 + $0x4f8] sm:$0xff]
    %v5100 = vld [vmem:[%s4939 + $0x500] sm:$0xff]
    %v5101 = vld [vmem:[%s4939 + $0x508] sm:$0xff]
    %v5102 = vld [vmem:[%s4939 + $0x510] sm:$0xff]
    %v5103 = vld [vmem:[%s4939 + $0x518] sm:$0xff]
    %v5104 = vld [vmem:[%s4939 + $0x520] sm:$0xff]
    %v5105 = vld [vmem:[%s4939 + $0x528] sm:$0xff]
    %v5106 = vld [vmem:[%s4939 + $0x530] sm:$0xff]
    %v5107 = vld [vmem:[%s4939 + $0x538] sm:$0xff]
    %v5108 = vld [vmem:[%s4939 + $0x540] sm:$0xff]
    %v5109 = vld [vmem:[%s4939 + $0x548] sm:$0xff]
    %v5110 = vld [vmem:[%s4939 + $0x550] sm:$0xff]
    %v5111 = vld [vmem:[%s4939 + $0x558] sm:$0xff]
    %v5112 = vld [vmem:[%s4939 + $0x560] sm:$0xff]
    %v5113 = vld [vmem:[%s4939 + $0x568] sm:$0xff]
    %v5114 = vld [vmem:[%s4939 + $0x570] sm:$0xff]
    %v5115 = vld [vmem:[%s4939 + $0x578] sm:$0xff]
    %v5116 = vld [vmem:[%s4939 + $0x580] sm:$0xff]
    %v5117 = vld [vmem:[%s4939 + $0x588] sm:$0xff]
    %v5118 = vld [vmem:[%s4939 + $0x590] sm:$0xff]
    %v5119 = vld [vmem:[%s4939 + $0x598] sm:$0xff]
    %v5120 = vld [vmem:[%s4939 + $0x5a0] sm:$0xff]
    %v5121 = vld [vmem:[%s4939 + $0x5a8] sm:$0xff]
    %v5122 = vld [vmem:[%s4939 + $0x5b0] sm:$0xff]
    %v5123 = vld [vmem:[%s4939 + $0x5b8] sm:$0xff]
    %v5124 = vld [vmem:[%s4939 + $0x5c0] sm:$0xff]
    %v5125 = vld [vmem:[%s4939 + $0x5c8] sm:$0xff]
    %v5126 = vld [vmem:[%s4939 + $0x5d0] sm:$0xff]
    %v5127 = vld [vmem:[%s4939 + $0x5d8] sm:$0xff]
    %v5128 = vld [vmem:[%s4939 + $0x5e0] sm:$0xff]
    %v5129 = vld [vmem:[%s4939 + $0x5e8] sm:$0xff]
    %v5130 = vld [vmem:[%s4939 + $0x5f0] sm:$0xff]
    %v5131 = vld [vmem:[%s4939 + $0x5f8] sm:$0xff]
    %5132 = vmatprep.subr.mxu0 %v4941
    %5133 = vmatpush1.msra.mxu0 %v4940
    %5134 = vmatprep.subr.mxu0 %v4945
    %5135 = vmatpush1.msra.mxu0 %v4944
    %5136 = vmatprep.subr.mxu0 %v4949
    %5137 = vmatpush1.msra.mxu0 %v4948
    %5138 = vmatprep.subr.mxu0 %v4953
    %5139 = vmatpush1.msra.mxu0 %v4952
    %5140 = vmatprep.subr.mxu0 %v4957
    %5141 = vmatpush1.msra.mxu0 %v4956
    %5142 = vmatprep.subr.mxu0 %v4961
    %5143 = vmatpush1.msra.mxu0 %v4960
    %5144 = vmatprep.subr.mxu0 %v4965
    %5145 = vmatpush1.msra.mxu0 %v4964
    %5146 = vmatprep.subr.mxu0 %v4969
    %5147 = vmatpush1.msra.mxu0 %v4968
    %5148 = vmatprep.subr.mxu0 %v4973
    %5149 = vmatpush1.msra.mxu0 %v4972
    %5150 = vmatprep.subr.mxu0 %v4977
    %5151 = vmatpush1.msra.mxu0 %v4976
    %5152 = vmatprep.subr.mxu0 %v4981
    %5153 = vmatpush1.msra.mxu0 %v4980
    %5154 = vmatprep.subr.mxu0 %v4985
    %5155 = vmatpush1.msra.mxu0 %v4984
    %5156 = vmatprep.subr.mxu0 %v4989
    %5157 = vmatpush1.msra.mxu0 %v4988
    %5158 = vmatprep.subr.mxu0 %v4993
    %5159 = vmatpush1.msra.mxu0 %v4992
    %5160 = vmatprep.subr.mxu0 %v4997
    %5161 = vmatpush1.msra.mxu0 %v4996
    %5162 = vmatprep.subr.mxu0 %v5001
    %5163 = vmatpush1.msra.mxu0 %v5000
    %5164 = vmatprep.subr.mxu0 %v5005
    %5165 = vmatpush1.msra.mxu0 %v5004
    %5166 = vmatprep.subr.mxu0 %v5009
    %5167 = vmatpush1.msra.mxu0 %v5008
    %5168 = vmatprep.subr.mxu0 %v5013
    %5169 = vmatpush1.msra.mxu0 %v5012
    %5170 = vmatprep.subr.mxu0 %v5017
    %5171 = vmatpush1.msra.mxu0 %v5016
    %5172 = vmatprep.subr.mxu0 %v5021
    %5173 = vmatpush1.msra.mxu0 %v5020
    %5174 = vmatprep.subr.mxu0 %v5025
    %5175 = vmatpush1.msra.mxu0 %v5024
    %5176 = vmatprep.subr.mxu0 %v5029
    %5177 = vmatpush1.msra.mxu0 %v5028
    %5178 = vmatprep.subr.mxu0 %v5033
    %5179 = vmatpush1.msra.mxu0 %v5032
    %5180 = vmatprep.subr.mxu0 %v5037
    %5181 = vmatpush1.msra.mxu0 %v5036
    %5182 = vmatprep.subr.mxu0 %v5041
    %5183 = vmatpush1.msra.mxu0 %v5040
    %5184 = vmatprep.subr.mxu0 %v5045
    %5185 = vmatpush1.msra.mxu0 %v5044
    %5186 = vmatprep.subr.mxu0 %v5049
    %5187 = vmatpush1.msra.mxu0 %v5048
    %5188 = vmatprep.subr.mxu0 %v5053
    %5189 = vmatpush1.msra.mxu0 %v5052
    %5190 = vmatprep.subr.mxu0 %v5057
    %5191 = vmatpush1.msra.mxu0 %v5056
    %5192 = vmatprep.subr.mxu0 %v5061
    %5193 = vmatpush1.msra.mxu0 %v5060
    %5194 = vmatprep.subr.mxu0 %v5065
    %5195 = vmatpush1.msra.mxu0 %v5064
    %5196 = vmatprep.mubr.f32.mxu0 %v4920
    %5197 = vmatmul.mubr.f32.gmra.mrb[0].mxu0 %v4917
    %v5198 = vpop.f32.mrb[0].mxu0
    %v5199 = vadd.f32 0.0, %v5198
    %v5200 = vpop.f32.mrb[0].mxu0
    %v5201 = vadd.f32 0.0, %v5200
    %5202 = vmatprep.mubr.f32.mxu0 %v4929
    %5203 = vmatmul.mubr.f32.gmra.mrb[0].mxu0 %v4926
    %v5204 = vpop.f32.mrb[0].mxu0
    %v5205 = vadd.f32 0.0, %v5204
    %v5206 = vpop.f32.mrb[0].mxu0
    %v5207 = vadd.f32 0.0, %v5206
    %5208 = vdwg.mxu0
    %5209 = vmatprep.subr.mxu0 %v5069
    %5210 = vmatpush1.msra.mxu0 %v5068
    %5211 = vmatprep.subr.mxu0 %v5073
    %5212 = vmatpush1.msra.mxu0 %v5072
    %5213 = vmatprep.subr.mxu0 %v5077
    %5214 = vmatpush1.msra.mxu0 %v5076
    %5215 = vmatprep.subr.mxu0 %v5081
    %5216 = vmatpush1.msra.mxu0 %v5080
    %5217 = vmatprep.subr.mxu0 %v5085
    %5218 = vmatpush1.msra.mxu0 %v5084
    %5219 = vmatprep.subr.mxu0 %v5089
    %5220 = vmatpush1.msra.mxu0 %v5088
    %5221 = vmatprep.subr.mxu0 %v5093
    %5222 = vmatpush1.msra.mxu0 %v5092
    %5223 = vmatprep.subr.mxu0 %v5097
    %5224 = vmatpush1.msra.mxu0 %v5096
    %5225 = vmatprep.subr.mxu0 %v5101
    %5226 = vmatpush1.msra.mxu0 %v5100
    %5227 = vmatprep.subr.mxu0 %v5105
    %5228 = vmatpush1.msra.mxu0 %v5104
    %5229 = vmatprep.subr.mxu0 %v5109
    %5230 = vmatpush1.msra.mxu0 %v5108
    %5231 = vmatprep.subr.mxu0 %v5113
    %5232 = vmatpush1.msra.mxu0 %v5112
    %5233 = vmatprep.subr.mxu0 %v5117
    %5234 = vmatpush1.msra.mxu0 %v5116
    %5235 = vmatprep.subr.mxu0 %v5121
    %5236 = vmatpush1.msra.mxu0 %v5120
    %5237 = vmatprep.subr.mxu0 %v5125
    %5238 = vmatpush1.msra.mxu0 %v5124
    %5239 = vmatprep.subr.mxu0 %v5129
    %5240 = vmatpush1.msra.mxu0 %v5128
    %5241 = vmatprep.subr.mxu0 0.0
    %5242 = vmatpush1.msra.mxu0 0.0
    %5243 = vmatprep.subr.mxu0 0.0
    %5244 = vmatpush1.msra.mxu0 0.0
    %5245 = vmatprep.subr.mxu0 0.0
    %5246 = vmatpush1.msra.mxu0 0.0
    %5247 = vmatprep.subr.mxu0 0.0
    %5248 = vmatpush1.msra.mxu0 0.0
    %5249 = vmatprep.subr.mxu0 0.0
    %5250 = vmatpush1.msra.mxu0 0.0
    %5251 = vmatprep.subr.mxu0 0.0
    %5252 = vmatpush1.msra.mxu0 0.0
    %5253 = vmatprep.subr.mxu0 0.0
    %5254 = vmatpush1.msra.mxu0 0.0
    %5255 = vmatprep.subr.mxu0 0.0
    %5256 = vmatpush1.msra.mxu0 0.0
    %5257 = vmatprep.subr.mxu0 0.0
    %5258 = vmatpush1.msra.mxu0 0.0
    %5259 = vmatprep.subr.mxu0 0.0
    %5260 = vmatpush1.msra.mxu0 0.0
    %5261 = vmatprep.subr.mxu0 0.0
    %5262 = vmatpush1.msra.mxu0 0.0
    %5263 = vmatprep.subr.mxu0 0.0
    %5264 = vmatpush1.msra.mxu0 0.0
    %5265 = vmatprep.subr.mxu0 0.0
    %5266 = vmatpush1.msra.mxu0 0.0
    %5267 = vmatprep.subr.mxu0 0.0
    %5268 = vmatpush1.msra.mxu0 0.0
    %5269 = vmatprep.subr.mxu0 0.0
    %5270 = vmatpush1.msra.mxu0 0.0
    %5271 = vmatprep.subr.mxu0 0.0
    %5272 = vmatpush1.msra.mxu0 0.0
    %5273 = vmatprep.mubr.f32.mxu0 0.0
    %5274 = vmatmul.mubr.f32.gmra.mrb[0].mxu0 %v4923
    %v5275 = vpop.f32.mrb[0].mxu0
    %v5276 = vadd.f32 %v5199, %v5275
    %v5277 = vpop.f32.mrb[0].mxu0
    %v5278 = vadd.f32 %v5201, %v5277
    %5279 = vmatprep.mubr.f32.mxu0 0.0
    %5280 = vmatmul.mubr.f32.gmra.mrb[0].mxu0 %v4932
    %v5281 = vpop.f32.mrb[0].mxu0
    %v5282 = vadd.f32 %v5205, %v5281
    %v5283 = vpop.f32.mrb[0].mxu0
    %v5284 = vadd.f32 %v5207, %v5283
    %5285 = vdwg.mxu0
    %5286 = vmatprep.subr.mxu0 %v4943
    %5287 = vmatpush1.msra.mxu0 %v4942
    %5288 = vmatprep.subr.mxu0 %v4947
    %5289 = vmatpush1.msra.mxu0 %v4946
    %5290 = vmatprep.subr.mxu0 %v4951
    %5291 = vmatpush1.msra.mxu0 %v4950
    %5292 = vmatprep.subr.mxu0 %v4955
    %5293 = vmatpush1.msra.mxu0 %v4954
    %5294 = vmatprep.subr.mxu0 %v4959
    %5295 = vmatpush1.msra.mxu0 %v4958
    %5296 = vmatprep.subr.mxu0 %v4963
    %5297 = vmatpush1.msra.mxu0 %v4962
    %5298 = vmatprep.subr.mxu0 %v4967
    %5299 = vmatpush1.msra.mxu0 %v4966
    %5300 = vmatprep.subr.mxu0 %v4971
    %5301 = vmatpush1.msra.mxu0 %v4970
    %5302 = vmatprep.subr.mxu0 %v4975
    %5303 = vmatpush1.msra.mxu0 %v4974
    %5304 = vmatprep.subr.mxu0 %v4979
    %5305 = vmatpush1.msra.mxu0 %v4978
    %5306 = vmatprep.subr.mxu0 %v4983
    %5307 = vmatpush1.msra.mxu0 %v4982
    %5308 = vmatprep.subr.mxu0 %v4987
    %5309 = vmatpush1.msra.mxu0 %v4986
    %5310 = vmatprep.subr.mxu0 %v4991
    %5311 = vmatpush1.msra.mxu0 %v4990
    %5312 = vmatprep.subr.mxu0 %v4995
    %5313 = vmatpush1.msra.mxu0 %v4994
    %5314 = vmatprep.subr.mxu0 %v4999
    %5315 = vmatpush1.msra.mxu0 %v4998
    %5316 = vmatprep.subr.mxu0 %v5003
    %5317 = vmatpush1.msra.mxu0 %v5002
    %5318 = vmatprep.subr.mxu0 %v5007
    %5319 = vmatpush1.msra.mxu0 %v5006
    %5320 = vmatprep.subr.mxu0 %v5011
    %5321 = vmatpush1.msra.mxu0 %v5010
    %5322 = vmatprep.subr.mxu0 %v5015
    %5323 = vmatpush1.msra.mxu0 %v5014
    %5324 = vmatprep.subr.mxu0 %v5019
    %5325 = vmatpush1.msra.mxu0 %v5018
    %5326 = vmatprep.subr.mxu0 %v5023
    %5327 = vmatpush1.msra.mxu0 %v5022
    %5328 = vmatprep.subr.mxu0 %v5027
    %5329 = vmatpush1.msra.mxu0 %v5026
    %5330 = vmatprep.subr.mxu0 %v5031
    %5331 = vmatpush1.msra.mxu0 %v5030
    %5332 = vmatprep.subr.mxu0 %v5035
    %5333 = vmatpush1.msra.mxu0 %v5034
    %5334 = vmatprep.subr.mxu0 %v5039
    %5335 = vmatpush1.msra.mxu0 %v5038
    %5336 = vmatprep.subr.mxu0 %v5043
    %5337 = vmatpush1.msra.mxu0 %v5042
    %5338 = vmatprep.subr.mxu0 %v5047
    %5339 = vmatpush1.msra.mxu0 %v5046
    %5340 = vmatprep.subr.mxu0 %v5051
    %5341 = vmatpush1.msra.mxu0 %v5050
    %5342 = vmatprep.subr.mxu0 %v5055
    %5343 = vmatpush1.msra.mxu0 %v5054
    %5344 = vmatprep.subr.mxu0 %v5059
    %5345 = vmatpush1.msra.mxu0 %v5058
    %5346 = vmatprep.subr.mxu0 %v5063
    %5347 = vmatpush1.msra.mxu0 %v5062
    %5348 = vmatprep.subr.mxu0 %v5067
    %5349 = vmatpush1.msra.mxu0 %v5066
    %5350 = vmatprep.mubr.f32.mxu0 %v4920
    %5351 = vmatmul.mubr.f32.gmra.mrb[0].mxu0 %v4917
    %v5352 = vpop.f32.mrb[0].mxu0
    %v5353 = vadd.f32 0.0, %v5352
    %v5354 = vpop.f32.mrb[0].mxu0
    %v5355 = vadd.f32 0.0, %v5354
    %5356 = vmatprep.mubr.f32.mxu0 %v4929
    %5357 = vmatmul.mubr.f32.gmra.mrb[0].mxu0 %v4926
    %v5358 = vpop.f32.mrb[0].mxu0
    %v5359 = vadd.f32 0.0, %v5358
    %v5360 = vpop.f32.mrb[0].mxu0
    %v5361 = vadd.f32 0.0, %v5360
    %5362 = vdwg.mxu0
    %5363 = vmatprep.subr.mxu0 %v5071
    %5364 = vmatpush1.msra.mxu0 %v5070
    %5365 = vmatprep.subr.mxu0 %v5075
    %5366 = vmatpush1.msra.mxu0 %v5074
    %5367 = vmatprep.subr.mxu0 %v5079
    %5368 = vmatpush1.msra.mxu0 %v5078
    %5369 = vmatprep.subr.mxu0 %v5083
    %5370 = vmatpush1.msra.mxu0 %v5082
    %5371 = vmatprep.subr.mxu0 %v5087
    %5372 = vmatpush1.msra.mxu0 %v5086
    %5373 = vmatprep.subr.mxu0 %v5091
    %5374 = vmatpush1.msra.mxu0 %v5090
    %5375 = vmatprep.subr.mxu0 %v5095
    %5376 = vmatpush1.msra.mxu0 %v5094
    %5377 = vmatprep.subr.mxu0 %v5099
    %5378 = vmatpush1.msra.mxu0 %v5098
    %5379 = vmatprep.subr.mxu0 %v5103
    %5380 = vmatpush1.msra.mxu0 %v5102
    %5381 = vmatprep.subr.mxu0 %v5107
    %5382 = vmatpush1.msra.mxu0 %v5106
    %5383 = vmatprep.subr.mxu0 %v5111
    %5384 = vmatpush1.msra.mxu0 %v5110
    %5385 = vmatprep.subr.mxu0 %v5115
    %5386 = vmatpush1.msra.mxu0 %v5114
    %5387 = vmatprep.subr.mxu0 %v5119
    %5388 = vmatpush1.msra.mxu0 %v5118
    %5389 = vmatprep.subr.mxu0 %v5123
    %5390 = vmatpush1.msra.mxu0 %v5122
    %5391 = vmatprep.subr.mxu0 %v5127
    %5392 = vmatpush1.msra.mxu0 %v5126
    %5393 = vmatprep.subr.mxu0 %v5131
    %5394 = vmatpush1.msra.mxu0 %v5130
    %5395 = vmatprep.subr.mxu0 0.0
    %5396 = vmatpush1.msra.mxu0 0.0
    %5397 = vmatprep.subr.mxu0 0.0
    %5398 = vmatpush1.msra.mxu0 0.0
    %5399 = vmatprep.subr.mxu0 0.0
    %5400 = vmatpush1.msra.mxu0 0.0
    %5401 = vmatprep.subr.mxu0 0.0
    %5402 = vmatpush1.msra.mxu0 0.0
    %5403 = vmatprep.subr.mxu0 0.0
    %5404 = vmatpush1.msra.mxu0 0.0
    %5405 = vmatprep.subr.mxu0 0.0
    %5406 = vmatpush1.msra.mxu0 0.0
    %5407 = vmatprep.subr.mxu0 0.0
    %5408 = vmatpush1.msra.mxu0 0.0
    %5409 = vmatprep.subr.mxu0 0.0
    %5410 = vmatpush1.msra.mxu0 0.0
    %5411 = vmatprep.subr.mxu0 0.0
    %5412 = vmatpush1.msra.mxu0 0.0
    %5413 = vmatprep.subr.mxu0 0.0
    %5414 = vmatpush1.msra.mxu0 0.0
    %5415 = vmatprep.subr.mxu0 0.0
    %5416 = vmatpush1.msra.mxu0 0.0
    %5417 = vmatprep.subr.mxu0 0.0
    %5418 = vmatpush1.msra.mxu0 0.0
    %5419 = vmatprep.subr.mxu0 0.0
    %5420 = vmatpush1.msra.mxu0 0.0
    %5421 = vmatprep.subr.mxu0 0.0
    %5422 = vmatpush1.msra.mxu0 0.0
    %5423 = vmatprep.subr.mxu0 0.0
    %5424 = vmatpush1.msra.mxu0 0.0
    %5425 = vmatprep.subr.mxu0 0.0
    %5426 = vmatpush1.msra.mxu0 0.0
    %5427 = vmatprep.mubr.f32.mxu0 0.0
    %5428 = vmatmul.mubr.f32.gmra.mrb[0].mxu0 %v4923
    %v5429 = vpop.f32.mrb[0].mxu0
    %v5430 = vadd.f32 %v5353, %v5429
    %v5431 = vpop.f32.mrb[0].mxu0
    %v5432 = vadd.f32 %v5355, %v5431
    %5433 = vmatprep.mubr.f32.mxu0 0.0
    %5434 = vmatmul.mubr.f32.gmra.mrb[0].mxu0 %v4932
    %v5435 = vpop.f32.mrb[0].mxu0
    %v5436 = vadd.f32 %v5359, %v5435
    %v5437 = vpop.f32.mrb[0].mxu0
    %v5438 = vadd.f32 %v5361, %v5437
    %5439 = vdwg.mxu0
    %v5440 = vadd.f32 %v4906, %v5276
    %v5441 = vadd.f32 %v4907, %v5278
    %v5442 = vadd.f32 %v4908, %v5430
    %v5443 = vadd.f32 %v4909, %v5432
    %v5444 = vadd.f32 %v4910, %v5282
    %v5445 = vadd.f32 %v4911, %v5284
    %v5446 = vadd.f32 %v4912, %v5436
    %v5447 = vadd.f32 %v4913, %v5438
    %v5448 = vrot.slane %v3332, 4
    %v5449 = vrot.slane %v3335, 4
    %v5450 = vsel %vm209, %v5448, %v5449
    %v5451 = vrot.slane %v3333, 4
    %v5452 = vrot.slane %v3336, 4
    %v5453 = vsel %vm209, %v5451, %v5452
    %v5454 = vrot.slane %v3334, 4
    %v5455 = vrot.slane %v3337, 4
    %v5456 = vsel %vm209, %v5454, %v5455
    %v5457 = vrot.slane %v3338, 4
    %v5458 = vrot.slane %v3341, 4
    %v5459 = vsel %vm209, %v5457, %v5458
    %v5460 = vrot.slane %v3339, 4
    %v5461 = vrot.slane %v3342, 4
    %v5462 = vsel %vm209, %v5460, %v5461
    %v5463 = vrot.slane %v3340, 4
    %v5464 = vrot.slane %v3343, 4
    %v5465 = vsel %vm209, %v5463, %v5464
    %s5472 = scalar_lea.vmem [#allocation8], 6144
    %v5473 = vld [vmem:[%s5472] sm:$0xff]
    %v5474 = vld [vmem:[%s5472 + $0x8] sm:$0xff]
    %v5475 = vld [vmem:[%s5472 + $0x10] sm:$0xff]
    %v5476 = vld [vmem:[%s5472 + $0x18] sm:$0xff]
    %v5477 = vld [vmem:[%s5472 + $0x20] sm:$0xff]
    %v5478 = vld [vmem:[%s5472 + $0x28] sm:$0xff]
    %v5479 = vld [vmem:[%s5472 + $0x30] sm:$0xff]
    %v5480 = vld [vmem:[%s5472 + $0x38] sm:$0xff]
    %v5481 = vld [vmem:[%s5472 + $0x40] sm:$0xff]
    %v5482 = vld [vmem:[%s5472 + $0x48] sm:$0xff]
    %v5483 = vld [vmem:[%s5472 + $0x50] sm:$0xff]
    %v5484 = vld [vmem:[%s5472 + $0x58] sm:$0xff]
    %v5485 = vld [vmem:[%s5472 + $0x60] sm:$0xff]
    %v5486 = vld [vmem:[%s5472 + $0x68] sm:$0xff]
    %v5487 = vld [vmem:[%s5472 + $0x70] sm:$0xff]
    %v5488 = vld [vmem:[%s5472 + $0x78] sm:$0xff]
    %v5489 = vld [vmem:[%s5472 + $0x80] sm:$0xff]
    %v5490 = vld [vmem:[%s5472 + $0x88] sm:$0xff]
    %v5491 = vld [vmem:[%s5472 + $0x90] sm:$0xff]
    %v5492 = vld [vmem:[%s5472 + $0x98] sm:$0xff]
    %v5493 = vld [vmem:[%s5472 + $0xa0] sm:$0xff]
    %v5494 = vld [vmem:[%s5472 + $0xa8] sm:$0xff]
    %v5495 = vld [vmem:[%s5472 + $0xb0] sm:$0xff]
    %v5496 = vld [vmem:[%s5472 + $0xb8] sm:$0xff]
    %v5497 = vld [vmem:[%s5472 + $0xc0] sm:$0xff]
    %v5498 = vld [vmem:[%s5472 + $0xc8] sm:$0xff]
    %v5499 = vld [vmem:[%s5472 + $0xd0] sm:$0xff]
    %v5500 = vld [vmem:[%s5472 + $0xd8] sm:$0xff]
    %v5501 = vld [vmem:[%s5472 + $0xe0] sm:$0xff]
    %v5502 = vld [vmem:[%s5472 + $0xe8] sm:$0xff]
    %v5503 = vld [vmem:[%s5472 + $0xf0] sm:$0xff]
    %v5504 = vld [vmem:[%s5472 + $0xf8] sm:$0xff]
    %v5505 = vld [vmem:[%s5472 + $0x100] sm:$0xff]
    %v5506 = vld [vmem:[%s5472 + $0x108] sm:$0xff]
    %v5507 = vld [vmem:[%s5472 + $0x110] sm:$0xff]
    %v5508 = vld [vmem:[%s5472 + $0x118] sm:$0xff]
    %v5509 = vld [vmem:[%s5472 + $0x120] sm:$0xff]
    %v5510 = vld [vmem:[%s5472 + $0x128] sm:$0xff]
    %v5511 = vld [vmem:[%s5472 + $0x130] sm:$0xff]
    %v5512 = vld [vmem:[%s5472 + $0x138] sm:$0xff]
    %v5513 = vld [vmem:[%s5472 + $0x140] sm:$0xff]
    %v5514 = vld [vmem:[%s5472 + $0x148] sm:$0xff]
    %v5515 = vld [vmem:[%s5472 + $0x150] sm:$0xff]
    %v5516 = vld [vmem:[%s5472 + $0x158] sm:$0xff]
    %v5517 = vld [vmem:[%s5472 + $0x160] sm:$0xff]
    %v5518 = vld [vmem:[%s5472 + $0x168] sm:$0xff]
    %v5519 = vld [vmem:[%s5472 + $0x170] sm:$0xff]
    %v5520 = vld [vmem:[%s5472 + $0x178] sm:$0xff]
    %v5521 = vld [vmem:[%s5472 + $0x180] sm:$0xff]
    %v5522 = vld [vmem:[%s5472 + $0x188] sm:$0xff]
    %v5523 = vld [vmem:[%s5472 + $0x190] sm:$0xff]
    %v5524 = vld [vmem:[%s5472 + $0x198] sm:$0xff]
    %v5525 = vld [vmem:[%s5472 + $0x1a0] sm:$0xff]
    %v5526 = vld [vmem:[%s5472 + $0x1a8] sm:$0xff]
    %v5527 = vld [vmem:[%s5472 + $0x1b0] sm:$0xff]
    %v5528 = vld [vmem:[%s5472 + $0x1b8] sm:$0xff]
    %v5529 = vld [vmem:[%s5472 + $0x1c0] sm:$0xff]
    %v5530 = vld [vmem:[%s5472 + $0x1c8] sm:$0xff]
    %v5531 = vld [vmem:[%s5472 + $0x1d0] sm:$0xff]
    %v5532 = vld [vmem:[%s5472 + $0x1d8] sm:$0xff]
    %v5533 = vld [vmem:[%s5472 + $0x1e0] sm:$0xff]
    %v5534 = vld [vmem:[%s5472 + $0x1e8] sm:$0xff]
    %v5535 = vld [vmem:[%s5472 + $0x1f0] sm:$0xff]
    %v5536 = vld [vmem:[%s5472 + $0x1f8] sm:$0xff]
    %v5537 = vld [vmem:[%s5472 + $0x200] sm:$0xff]
    %v5538 = vld [vmem:[%s5472 + $0x208] sm:$0xff]
    %v5539 = vld [vmem:[%s5472 + $0x210] sm:$0xff]
    %v5540 = vld [vmem:[%s5472 + $0x218] sm:$0xff]
    %v5541 = vld [vmem:[%s5472 + $0x220] sm:$0xff]
    %v5542 = vld [vmem:[%s5472 + $0x228] sm:$0xff]
    %v5543 = vld [vmem:[%s5472 + $0x230] sm:$0xff]
    %v5544 = vld [vmem:[%s5472 + $0x238] sm:$0xff]
    %v5545 = vld [vmem:[%s5472 + $0x240] sm:$0xff]
    %v5546 = vld [vmem:[%s5472 + $0x248] sm:$0xff]
    %v5547 = vld [vmem:[%s5472 + $0x250] sm:$0xff]
    %v5548 = vld [vmem:[%s5472 + $0x258] sm:$0xff]
    %v5549 = vld [vmem:[%s5472 + $0x260] sm:$0xff]
    %v5550 = vld [vmem:[%s5472 + $0x268] sm:$0xff]
    %v5551 = vld [vmem:[%s5472 + $0x270] sm:$0xff]
    %v5552 = vld [vmem:[%s5472 + $0x278] sm:$0xff]
    %v5553 = vld [vmem:[%s5472 + $0x280] sm:$0xff]
    %v5554 = vld [vmem:[%s5472 + $0x288] sm:$0xff]
    %v5555 = vld [vmem:[%s5472 + $0x290] sm:$0xff]
    %v5556 = vld [vmem:[%s5472 + $0x298] sm:$0xff]
    %v5557 = vld [vmem:[%s5472 + $0x2a0] sm:$0xff]
    %v5558 = vld [vmem:[%s5472 + $0x2a8] sm:$0xff]
    %v5559 = vld [vmem:[%s5472 + $0x2b0] sm:$0xff]
    %v5560 = vld [vmem:[%s5472 + $0x2b8] sm:$0xff]
    %v5561 = vld [vmem:[%s5472 + $0x2c0] sm:$0xff]
    %v5562 = vld [vmem:[%s5472 + $0x2c8] sm:$0xff]
    %v5563 = vld [vmem:[%s5472 + $0x2d0] sm:$0xff]
    %v5564 = vld [vmem:[%s5472 + $0x2d8] sm:$0xff]
    %v5565 = vld [vmem:[%s5472 + $0x2e0] sm:$0xff]
    %v5566 = vld [vmem:[%s5472 + $0x2e8] sm:$0xff]
    %v5567 = vld [vmem:[%s5472 + $0x2f0] sm:$0xff]
    %v5568 = vld [vmem:[%s5472 + $0x2f8] sm:$0xff]
    %v5569 = vld [vmem:[%s5472 + $0x300] sm:$0xff]
    %v5570 = vld [vmem:[%s5472 + $0x308] sm:$0xff]
    %v5571 = vld [vmem:[%s5472 + $0x310] sm:$0xff]
    %v5572 = vld [vmem:[%s5472 + $0x318] sm:$0xff]
    %v5573 = vld [vmem:[%s5472 + $0x320] sm:$0xff]
    %v5574 = vld [vmem:[%s5472 + $0x328] sm:$0xff]
    %v5575 = vld [vmem:[%s5472 + $0x330] sm:$0xff]
    %v5576 = vld [vmem:[%s5472 + $0x338] sm:$0xff]
    %v5577 = vld [vmem:[%s5472 + $0x340] sm:$0xff]
    %v5578 = vld [vmem:[%s5472 + $0x348] sm:$0xff]
    %v5579 = vld [vmem:[%s5472 + $0x350] sm:$0xff]
    %v5580 = vld [vmem:[%s5472 + $0x358] sm:$0xff]
    %v5581 = vld [vmem:[%s5472 + $0x360] sm:$0xff]
    %v5582 = vld [vmem:[%s5472 + $0x368] sm:$0xff]
    %v5583 = vld [vmem:[%s5472 + $0x370] sm:$0xff]
    %v5584 = vld [vmem:[%s5472 + $0x378] sm:$0xff]
    %v5585 = vld [vmem:[%s5472 + $0x380] sm:$0xff]
    %v5586 = vld [vmem:[%s5472 + $0x388] sm:$0xff]
    %v5587 = vld [vmem:[%s5472 + $0x390] sm:$0xff]
    %v5588 = vld [vmem:[%s5472 + $0x398] sm:$0xff]
    %v5589 = vld [vmem:[%s5472 + $0x3a0] sm:$0xff]
    %v5590 = vld [vmem:[%s5472 + $0x3a8] sm:$0xff]
    %v5591 = vld [vmem:[%s5472 + $0x3b0] sm:$0xff]
    %v5592 = vld [vmem:[%s5472 + $0x3b8] sm:$0xff]
    %v5593 = vld [vmem:[%s5472 + $0x3c0] sm:$0xff]
    %v5594 = vld [vmem:[%s5472 + $0x3c8] sm:$0xff]
    %v5595 = vld [vmem:[%s5472 + $0x3d0] sm:$0xff]
    %v5596 = vld [vmem:[%s5472 + $0x3d8] sm:$0xff]
    %v5597 = vld [vmem:[%s5472 + $0x3e0] sm:$0xff]
    %v5598 = vld [vmem:[%s5472 + $0x3e8] sm:$0xff]
    %v5599 = vld [vmem:[%s5472 + $0x3f0] sm:$0xff]
    %v5600 = vld [vmem:[%s5472 + $0x3f8] sm:$0xff]
    %v5601 = vld [vmem:[%s5472 + $0x400] sm:$0xff]
    %v5602 = vld [vmem:[%s5472 + $0x408] sm:$0xff]
    %v5603 = vld [vmem:[%s5472 + $0x410] sm:$0xff]
    %v5604 = vld [vmem:[%s5472 + $0x418] sm:$0xff]
    %v5605 = vld [vmem:[%s5472 + $0x420] sm:$0xff]
    %v5606 = vld [vmem:[%s5472 + $0x428] sm:$0xff]
    %v5607 = vld [vmem:[%s5472 + $0x430] sm:$0xff]
    %v5608 = vld [vmem:[%s5472 + $0x438] sm:$0xff]
    %v5609 = vld [vmem:[%s5472 + $0x440] sm:$0xff]
    %v5610 = vld [vmem:[%s5472 + $0x448] sm:$0xff]
    %v5611 = vld [vmem:[%s5472 + $0x450] sm:$0xff]
    %v5612 = vld [vmem:[%s5472 + $0x458] sm:$0xff]
    %v5613 = vld [vmem:[%s5472 + $0x460] sm:$0xff]
    %v5614 = vld [vmem:[%s5472 + $0x468] sm:$0xff]
    %v5615 = vld [vmem:[%s5472 + $0x470] sm:$0xff]
    %v5616 = vld [vmem:[%s5472 + $0x478] sm:$0xff]
    %v5617 = vld [vmem:[%s5472 + $0x480] sm:$0xff]
    %v5618 = vld [vmem:[%s5472 + $0x488] sm:$0xff]
    %v5619 = vld [vmem:[%s5472 + $0x490] sm:$0xff]
    %v5620 = vld [vmem:[%s5472 + $0x498] sm:$0xff]
    %v5621 = vld [vmem:[%s5472 + $0x4a0] sm:$0xff]
    %v5622 = vld [vmem:[%s5472 + $0x4a8] sm:$0xff]
    %v5623 = vld [vmem:[%s5472 + $0x4b0] sm:$0xff]
    %v5624 = vld [vmem:[%s5472 + $0x4b8] sm:$0xff]
    %v5625 = vld [vmem:[%s5472 + $0x4c0] sm:$0xff]
    %v5626 = vld [vmem:[%s5472 + $0x4c8] sm:$0xff]
    %v5627 = vld [vmem:[%s5472 + $0x4d0] sm:$0xff]
    %v5628 = vld [vmem:[%s5472 + $0x4d8] sm:$0xff]
    %v5629 = vld [vmem:[%s5472 + $0x4e0] sm:$0xff]
    %v5630 = vld [vmem:[%s5472 + $0x4e8] sm:$0xff]
    %v5631 = vld [vmem:[%s5472 + $0x4f0] sm:$0xff]
    %v5632 = vld [vmem:[%s5472 + $0x4f8] sm:$0xff]
    %v5633 = vld [vmem:[%s5472 + $0x500] sm:$0xff]
    %v5634 = vld [vmem:[%s5472 + $0x508] sm:$0xff]
    %v5635 = vld [vmem:[%s5472 + $0x510] sm:$0xff]
    %v5636 = vld [vmem:[%s5472 + $0x518] sm:$0xff]
    %v5637 = vld [vmem:[%s5472 + $0x520] sm:$0xff]
    %v5638 = vld [vmem:[%s5472 + $0x528] sm:$0xff]
    %v5639 = vld [vmem:[%s5472 + $0x530] sm:$0xff]
    %v5640 = vld [vmem:[%s5472 + $0x538] sm:$0xff]
    %v5641 = vld [vmem:[%s5472 + $0x540] sm:$0xff]
    %v5642 = vld [vmem:[%s5472 + $0x548] sm:$0xff]
    %v5643 = vld [vmem:[%s5472 + $0x550] sm:$0xff]
    %v5644 = vld [vmem:[%s5472 + $0x558] sm:$0xff]
    %v5645 = vld [vmem:[%s5472 + $0x560] sm:$0xff]
    %v5646 = vld [vmem:[%s5472 + $0x568] sm:$0xff]
    %v5647 = vld [vmem:[%s5472 + $0x570] sm:$0xff]
    %v5648 = vld [vmem:[%s5472 + $0x578] sm:$0xff]
    %v5649 = vld [vmem:[%s5472 + $0x580] sm:$0xff]
    %v5650 = vld [vmem:[%s5472 + $0x588] sm:$0xff]
    %v5651 = vld [vmem:[%s5472 + $0x590] sm:$0xff]
    %v5652 = vld [vmem:[%s5472 + $0x598] sm:$0xff]
    %v5653 = vld [vmem:[%s5472 + $0x5a0] sm:$0xff]
    %v5654 = vld [vmem:[%s5472 + $0x5a8] sm:$0xff]
    %v5655 = vld [vmem:[%s5472 + $0x5b0] sm:$0xff]
    %v5656 = vld [vmem:[%s5472 + $0x5b8] sm:$0xff]
    %v5657 = vld [vmem:[%s5472 + $0x5c0] sm:$0xff]
    %v5658 = vld [vmem:[%s5472 + $0x5c8] sm:$0xff]
    %v5659 = vld [vmem:[%s5472 + $0x5d0] sm:$0xff]
    %v5660 = vld [vmem:[%s5472 + $0x5d8] sm:$0xff]
    %v5661 = vld [vmem:[%s5472 + $0x5e0] sm:$0xff]
    %v5662 = vld [vmem:[%s5472 + $0x5e8] sm:$0xff]
    %v5663 = vld [vmem:[%s5472 + $0x5f0] sm:$0xff]
    %v5664 = vld [vmem:[%s5472 + $0x5f8] sm:$0xff]
    %5665 = vmatprep.subr.mxu0 %v5474
    %5666 = vmatpush1.msra.mxu0 %v5473
    %5667 = vmatprep.subr.mxu0 %v5478
    %5668 = vmatpush1.msra.mxu0 %v5477
    %5669 = vmatprep.subr.mxu0 %v5482
    %5670 = vmatpush1.msra.mxu0 %v5481
    %5671 = vmatprep.subr.mxu0 %v5486
    %5672 = vmatpush1.msra.mxu0 %v5485
    %5673 = vmatprep.subr.mxu0 %v5490
    %5674 = vmatpush1.msra.mxu0 %v5489
    %5675 = vmatprep.subr.mxu0 %v5494
    %5676 = vmatpush1.msra.mxu0 %v5493
    %5677 = vmatprep.subr.mxu0 %v5498
    %5678 = vmatpush1.msra.mxu0 %v5497
    %5679 = vmatprep.subr.mxu0 %v5502
    %5680 = vmatpush1.msra.mxu0 %v5501
    %5681 = vmatprep.subr.mxu0 %v5506
    %5682 = vmatpush1.msra.mxu0 %v5505
    %5683 = vmatprep.subr.mxu0 %v5510
    %5684 = vmatpush1.msra.mxu0 %v5509
    %5685 = vmatprep.subr.mxu0 %v5514
    %5686 = vmatpush1.msra.mxu0 %v5513
    %5687 = vmatprep.subr.mxu0 %v5518
    %5688 = vmatpush1.msra.mxu0 %v5517
    %5689 = vmatprep.subr.mxu0 %v5522
    %5690 = vmatpush1.msra.mxu0 %v5521
    %5691 = vmatprep.subr.mxu0 %v5526
    %5692 = vmatpush1.msra.mxu0 %v5525
    %5693 = vmatprep.subr.mxu0 %v5530
    %5694 = vmatpush1.msra.mxu0 %v5529
    %5695 = vmatprep.subr.mxu0 %v5534
    %5696 = vmatpush1.msra.mxu0 %v5533
    %5697 = vmatprep.subr.mxu0 %v5538
    %5698 = vmatpush1.msra.mxu0 %v5537
    %5699 = vmatprep.subr.mxu0 %v5542
    %5700 = vmatpush1.msra.mxu0 %v5541
    %5701 = vmatprep.subr.mxu0 %v5546
    %5702 = vmatpush1.msra.mxu0 %v5545
    %5703 = vmatprep.subr.mxu0 %v5550
    %5704 = vmatpush1.msra.mxu0 %v5549
    %5705 = vmatprep.subr.mxu0 %v5554
    %5706 = vmatpush1.msra.mxu0 %v5553
    %5707 = vmatprep.subr.mxu0 %v5558
    %5708 = vmatpush1.msra.mxu0 %v5557
    %5709 = vmatprep.subr.mxu0 %v5562
    %5710 = vmatpush1.msra.mxu0 %v5561
    %5711 = vmatprep.subr.mxu0 %v5566
    %5712 = vmatpush1.msra.mxu0 %v5565
    %5713 = vmatprep.subr.mxu0 %v5570
    %5714 = vmatpush1.msra.mxu0 %v5569
    %5715 = vmatprep.subr.mxu0 %v5574
    %5716 = vmatpush1.msra.mxu0 %v5573
    %5717 = vmatprep.subr.mxu0 %v5578
    %5718 = vmatpush1.msra.mxu0 %v5577
    %5719 = vmatprep.subr.mxu0 %v5582
    %5720 = vmatpush1.msra.mxu0 %v5581
    %5721 = vmatprep.subr.mxu0 %v5586
    %5722 = vmatpush1.msra.mxu0 %v5585
    %5723 = vmatprep.subr.mxu0 %v5590
    %5724 = vmatpush1.msra.mxu0 %v5589
    %5725 = vmatprep.subr.mxu0 %v5594
    %5726 = vmatpush1.msra.mxu0 %v5593
    %5727 = vmatprep.subr.mxu0 %v5598
    %5728 = vmatpush1.msra.mxu0 %v5597
    %5729 = vmatprep.mubr.f32.mxu0 %v5453
    %5730 = vmatmul.mubr.f32.gmra.mrb[0].mxu0 %v5450
    %v5731 = vpop.f32.mrb[0].mxu0
    %v5732 = vadd.f32 0.0, %v5731
    %v5733 = vpop.f32.mrb[0].mxu0
    %v5734 = vadd.f32 0.0, %v5733
    %5735 = vmatprep.mubr.f32.mxu0 %v5462
    %5736 = vmatmul.mubr.f32.gmra.mrb[0].mxu0 %v5459
    %v5737 = vpop.f32.mrb[0].mxu0
    %v5738 = vadd.f32 0.0, %v5737
    %v5739 = vpop.f32.mrb[0].mxu0
    %v5740 = vadd.f32 0.0, %v5739
    %5741 = vdwg.mxu0
    %5742 = vmatprep.subr.mxu0 %v5602
    %5743 = vmatpush1.msra.mxu0 %v5601
    %5744 = vmatprep.subr.mxu0 %v5606
    %5745 = vmatpush1.msra.mxu0 %v5605
    %5746 = vmatprep.subr.mxu0 %v5610
    %5747 = vmatpush1.msra.mxu0 %v5609
    %5748 = vmatprep.subr.mxu0 %v5614
    %5749 = vmatpush1.msra.mxu0 %v5613
    %5750 = vmatprep.subr.mxu0 %v5618
    %5751 = vmatpush1.msra.mxu0 %v5617
    %5752 = vmatprep.subr.mxu0 %v5622
    %5753 = vmatpush1.msra.mxu0 %v5621
    %5754 = vmatprep.subr.mxu0 %v5626
    %5755 = vmatpush1.msra.mxu0 %v5625
    %5756 = vmatprep.subr.mxu0 %v5630
    %5757 = vmatpush1.msra.mxu0 %v5629
    %5758 = vmatprep.subr.mxu0 %v5634
    %5759 = vmatpush1.msra.mxu0 %v5633
    %5760 = vmatprep.subr.mxu0 %v5638
    %5761 = vmatpush1.msra.mxu0 %v5637
    %5762 = vmatprep.subr.mxu0 %v5642
    %5763 = vmatpush1.msra.mxu0 %v5641
    %5764 = vmatprep.subr.mxu0 %v5646
    %5765 = vmatpush1.msra.mxu0 %v5645
    %5766 = vmatprep.subr.mxu0 %v5650
    %5767 = vmatpush1.msra.mxu0 %v5649
    %5768 = vmatprep.subr.mxu0 %v5654
    %5769 = vmatpush1.msra.mxu0 %v5653
    %5770 = vmatprep.subr.mxu0 %v5658
    %5771 = vmatpush1.msra.mxu0 %v5657
    %5772 = vmatprep.subr.mxu0 %v5662
    %5773 = vmatpush1.msra.mxu0 %v5661
    %5774 = vmatprep.subr.mxu0 0.0
    %5775 = vmatpush1.msra.mxu0 0.0
    %5776 = vmatprep.subr.mxu0 0.0
    %5777 = vmatpush1.msra.mxu0 0.0
    %5778 = vmatprep.subr.mxu0 0.0
    %5779 = vmatpush1.msra.mxu0 0.0
    %5780 = vmatprep.subr.mxu0 0.0
    %5781 = vmatpush1.msra.mxu0 0.0
    %5782 = vmatprep.subr.mxu0 0.0
    %5783 = vmatpush1.msra.mxu0 0.0
    %5784 = vmatprep.subr.mxu0 0.0
    %5785 = vmatpush1.msra.mxu0 0.0
    %5786 = vmatprep.subr.mxu0 0.0
    %5787 = vmatpush1.msra.mxu0 0.0
    %5788 = vmatprep.subr.mxu0 0.0
    %5789 = vmatpush1.msra.mxu0 0.0
    %5790 = vmatprep.subr.mxu0 0.0
    %5791 = vmatpush1.msra.mxu0 0.0
    %5792 = vmatprep.subr.mxu0 0.0
    %5793 = vmatpush1.msra.mxu0 0.0
    %5794 = vmatprep.subr.mxu0 0.0
    %5795 = vmatpush1.msra.mxu0 0.0
    %5796 = vmatprep.subr.mxu0 0.0
    %5797 = vmatpush1.msra.mxu0 0.0
    %5798 = vmatprep.subr.mxu0 0.0
    %5799 = vmatpush1.msra.mxu0 0.0
    %5800 = vmatprep.subr.mxu0 0.0
    %5801 = vmatpush1.msra.mxu0 0.0
    %5802 = vmatprep.subr.mxu0 0.0
    %5803 = vmatpush1.msra.mxu0 0.0
    %5804 = vmatprep.subr.mxu0 0.0
    %5805 = vmatpush1.msra.mxu0 0.0
    %5806 = vmatprep.mubr.f32.mxu0 0.0
    %5807 = vmatmul.mubr.f32.gmra.mrb[0].mxu0 %v5456
    %v5808 = vpop.f32.mrb[0].mxu0
    %v5809 = vadd.f32 %v5732, %v5808
    %v5810 = vpop.f32.mrb[0].mxu0
    %v5811 = vadd.f32 %v5734, %v5810
    %5812 = vmatprep.mubr.f32.mxu0 0.0
    %5813 = vmatmul.mubr.f32.gmra.mrb[0].mxu0 %v5465
    %v5814 = vpop.f32.mrb[0].mxu0
    %v5815 = vadd.f32 %v5738, %v5814
    %v5816 = vpop.f32.mrb[0].mxu0
    %v5817 = vadd.f32 %v5740, %v5816
    %5818 = vdwg.mxu0
    %5819 = vmatprep.subr.mxu0 %v5476
    %5820 = vmatpush1.msra.mxu0 %v5475
    %5821 = vmatprep.subr.mxu0 %v5480
    %5822 = vmatpush1.msra.mxu0 %v5479
    %5823 = vmatprep.subr.mxu0 %v5484
    %5824 = vmatpush1.msra.mxu0 %v5483
    %5825 = vmatprep.subr.mxu0 %v5488
    %5826 = vmatpush1.msra.mxu0 %v5487
    %5827 = vmatprep.subr.mxu0 %v5492
    %5828 = vmatpush1.msra.mxu0 %v5491
    %5829 = vmatprep.subr.mxu0 %v5496
    %5830 = vmatpush1.msra.mxu0 %v5495
    %5831 = vmatprep.subr.mxu0 %v5500
    %5832 = vmatpush1.msra.mxu0 %v5499
    %5833 = vmatprep.subr.mxu0 %v5504
    %5834 = vmatpush1.msra.mxu0 %v5503
    %5835 = vmatprep.subr.mxu0 %v5508
    %5836 = vmatpush1.msra.mxu0 %v5507
    %5837 = vmatprep.subr.mxu0 %v5512
    %5838 = vmatpush1.msra.mxu0 %v5511
    %5839 = vmatprep.subr.mxu0 %v5516
    %5840 = vmatpush1.msra.mxu0 %v5515
    %5841 = vmatprep.subr.mxu0 %v5520
    %5842 = vmatpush1.msra.mxu0 %v5519
    %5843 = vmatprep.subr.mxu0 %v5524
    %5844 = vmatpush1.msra.mxu0 %v5523
    %5845 = vmatprep.subr.mxu0 %v5528
    %5846 = vmatpush1.msra.mxu0 %v5527
    %5847 = vmatprep.subr.mxu0 %v5532
    %5848 = vmatpush1.msra.mxu0 %v5531
    %5849 = vmatprep.subr.mxu0 %v5536
    %5850 = vmatpush1.msra.mxu0 %v5535
    %5851 = vmatprep.subr.mxu0 %v5540
    %5852 = vmatpush1.msra.mxu0 %v5539
    %5853 = vmatprep.subr.mxu0 %v5544
    %5854 = vmatpush1.msra.mxu0 %v5543
    %5855 = vmatprep.subr.mxu0 %v5548
    %5856 = vmatpush1.msra.mxu0 %v5547
    %5857 = vmatprep.subr.mxu0 %v5552
    %5858 = vmatpush1.msra.mxu0 %v5551
    %5859 = vmatprep.subr.mxu0 %v5556
    %5860 = vmatpush1.msra.mxu0 %v5555
    %5861 = vmatprep.subr.mxu0 %v5560
    %5862 = vmatpush1.msra.mxu0 %v5559
    %5863 = vmatprep.subr.mxu0 %v5564
    %5864 = vmatpush1.msra.mxu0 %v5563
    %5865 = vmatprep.subr.mxu0 %v5568
    %5866 = vmatpush1.msra.mxu0 %v5567
    %5867 = vmatprep.subr.mxu0 %v5572
    %5868 = vmatpush1.msra.mxu0 %v5571
    %5869 = vmatprep.subr.mxu0 %v5576
    %5870 = vmatpush1.msra.mxu0 %v5575
    %5871 = vmatprep.subr.mxu0 %v5580
    %5872 = vmatpush1.msra.mxu0 %v5579
    %5873 = vmatprep.subr.mxu0 %v5584
    %5874 = vmatpush1.msra.mxu0 %v5583
    %5875 = vmatprep.subr.mxu0 %v5588
    %5876 = vmatpush1.msra.mxu0 %v5587
    %5877 = vmatprep.subr.mxu0 %v5592
    %5878 = vmatpush1.msra.mxu0 %v5591
    %5879 = vmatprep.subr.mxu0 %v5596
    %5880 = vmatpush1.msra.mxu0 %v5595
    %5881 = vmatprep.subr.mxu0 %v5600
    %5882 = vmatpush1.msra.mxu0 %v5599
    %5883 = vmatprep.mubr.f32.mxu0 %v5453
    %5884 = vmatmul.mubr.f32.gmra.mrb[0].mxu0 %v5450
    %v5885 = vpop.f32.mrb[0].mxu0
    %v5886 = vadd.f32 0.0, %v5885
    %v5887 = vpop.f32.mrb[0].mxu0
    %v5888 = vadd.f32 0.0, %v5887
    %5889 = vmatprep.mubr.f32.mxu0 %v5462
    %5890 = vmatmul.mubr.f32.gmra.mrb[0].mxu0 %v5459
    %v5891 = vpop.f32.mrb[0].mxu0
    %v5892 = vadd.f32 0.0, %v5891
    %v5893 = vpop.f32.mrb[0].mxu0
    %v5894 = vadd.f32 0.0, %v5893
    %5895 = vdwg.mxu0
    %5896 = vmatprep.subr.mxu0 %v5604
    %5897 = vmatpush1.msra.mxu0 %v5603
    %5898 = vmatprep.subr.mxu0 %v5608
    %5899 = vmatpush1.msra.mxu0 %v5607
    %5900 = vmatprep.subr.mxu0 %v5612
    %5901 = vmatpush1.msra.mxu0 %v5611
    %5902 = vmatprep.subr.mxu0 %v5616
    %5903 = vmatpush1.msra.mxu0 %v5615
    %5904 = vmatprep.subr.mxu0 %v5620
    %5905 = vmatpush1.msra.mxu0 %v5619
    %5906 = vmatprep.subr.mxu0 %v5624
    %5907 = vmatpush1.msra.mxu0 %v5623
    %5908 = vmatprep.subr.mxu0 %v5628
    %5909 = vmatpush1.msra.mxu0 %v5627
    %5910 = vmatprep.subr.mxu0 %v5632
    %5911 = vmatpush1.msra.mxu0 %v5631
    %5912 = vmatprep.subr.mxu0 %v5636
    %5913 = vmatpush1.msra.mxu0 %v5635
    %5914 = vmatprep.subr.mxu0 %v5640
    %5915 = vmatpush1.msra.mxu0 %v5639
    %5916 = vmatprep.subr.mxu0 %v5644
    %5917 = vmatpush1.msra.mxu0 %v5643
    %5918 = vmatprep.subr.mxu0 %v5648
    %5919 = vmatpush1.msra.mxu0 %v5647
    %5920 = vmatprep.subr.mxu0 %v5652
    %5921 = vmatpush1.msra.mxu0 %v5651
    %5922 = vmatprep.subr.mxu0 %v5656
    %5923 = vmatpush1.msra.mxu0 %v5655
    %5924 = vmatprep.subr.mxu0 %v5660
    %5925 = vmatpush1.msra.mxu0 %v5659
    %5926 = vmatprep.subr.mxu0 %v5664
    %5927 = vmatpush1.msra.mxu0 %v5663
    %5928 = vmatprep.subr.mxu0 0.0
    %5929 = vmatpush1.msra.mxu0 0.0
    %5930 = vmatprep.subr.mxu0 0.0
    %5931 = vmatpush1.msra.mxu0 0.0
    %5932 = vmatprep.subr.mxu0 0.0
    %5933 = vmatpush1.msra.mxu0 0.0
    %5934 = vmatprep.subr.mxu0 0.0
    %5935 = vmatpush1.msra.mxu0 0.0
    %5936 = vmatprep.subr.mxu0 0.0
    %5937 = vmatpush1.msra.mxu0 0.0
    %5938 = vmatprep.subr.mxu0 0.0
    %5939 = vmatpush1.msra.mxu0 0.0
    %5940 = vmatprep.subr.mxu0 0.0
    %5941 = vmatpush1.msra.mxu0 0.0
    %5942 = vmatprep.subr.mxu0 0.0
    %5943 = vmatpush1.msra.mxu0 0.0
    %5944 = vmatprep.subr.mxu0 0.0
    %5945 = vmatpush1.msra.mxu0 0.0
    %5946 = vmatprep.subr.mxu0 0.0
    %5947 = vmatpush1.msra.mxu0 0.0
    %5948 = vmatprep.subr.mxu0 0.0
    %5949 = vmatpush1.msra.mxu0 0.0
    %5950 = vmatprep.subr.mxu0 0.0
    %5951 = vmatpush1.msra.mxu0 0.0
    %5952 = vmatprep.subr.mxu0 0.0
    %5953 = vmatpush1.msra.mxu0 0.0
    %5954 = vmatprep.subr.mxu0 0.0
    %5955 = vmatpush1.msra.mxu0 0.0
    %5956 = vmatprep.subr.mxu0 0.0
    %5957 = vmatpush1.msra.mxu0 0.0
    %5958 = vmatprep.subr.mxu0 0.0
    %5959 = vmatpush1.msra.mxu0 0.0
    %5960 = vmatprep.mubr.f32.mxu0 0.0
    %5961 = vmatmul.mubr.f32.gmra.mrb[0].mxu0 %v5456
    %v5962 = vpop.f32.mrb[0].mxu0
    %v5963 = vadd.f32 %v5886, %v5962
    %v5964 = vpop.f32.mrb[0].mxu0
    %v5965 = vadd.f32 %v5888, %v5964
    %5966 = vmatprep.mubr.f32.mxu0 0.0
    %5967 = vmatmul.mubr.f32.gmra.mrb[0].mxu0 %v5465
    %v5968 = vpop.f32.mrb[0].mxu0
    %v5969 = vadd.f32 %v5892, %v5968
    %v5970 = vpop.f32.mrb[0].mxu0
    %v5971 = vadd.f32 %v5894, %v5970
    %5972 = vdwg.mxu0
    %v5973 = vadd.f32 %v5440, %v5809
    %v5974 = vadd.f32 %v5441, %v5811
    %v5975 = vadd.f32 %v5442, %v5963
    %v5976 = vadd.f32 %v5443, %v5965
    %v5977 = vadd.f32 %v5444, %v5815
    %v5978 = vadd.f32 %v5445, %v5817
    %v5979 = vadd.f32 %v5446, %v5969
    %v5980 = vadd.f32 %v5447, %v5971
    %5983 = vrot.lane.b32.xlu0 %v5973, 64
    %v5984 = vpop.permute.xlu0 %5983
    %5985 = vrot.lane.b32.xlu0 %v5977, 64
    %v5986 = vpop.permute.xlu0 %5985
    %v5989 = vmax.f32 %v5973, %v5984
    %v5990 = vmax.f32 %v5977, %v5986
    %v5991 = vld [vmem:[#allocation9] sm:$0x1]
    %v5993 = vlaneseq
    %v5994 = vshrl.u32 %v5993, 7
    %v5995 = vsub.s32 0, %v5994
    %v5996 = vrot.slane %v5991, %v5995
    %v5998 = vadd.f32 %v5989, %v5996
    %v5999 = vadd.f32 %v5990, %v5996
    %vm6000 = vcmask 517120
    %v6001 = vsel %vm6000, %v5998, -inf
    %v6002 = vrot.slane %v6001, 4
    %v6003 = vmax.f32 %v6001, %v6002
    %v6004 = vrot.slane %v6003, 2
    %v6005 = vmax.f32 %v6003, %v6004
    %v6006 = vrot.slane %v6005, 1
    %v6007 = vmax.f32 %v6005, %v6006
    %v6008 = vsel %vm6000, %v5999, -inf
    %v6009 = vrot.slane %v6008, 4
    %v6010 = vmax.f32 %v6008, %v6009
    %v6011 = vrot.slane %v6010, 2
    %v6012 = vmax.f32 %v6010, %v6011
    %v6013 = vrot.slane %v6012, 1
    %v6014 = vmax.f32 %v6012, %v6013
    %v6018 = vunpack.c.l.s4 1983009808
    %v6019 = vunpack.c.0.s8 %v6018
    %v6020 = vlaneseq
    %v6021 = vshrl.u32 %v6020, 7
    %v6022 = vsub.s32 %v6019, %v6021
    %v6023 = vrot.slane %v6007, %v6022
    %v6025 = vunpack.c.l.s4 1983009808
    %v6026 = vunpack.c.0.s8 %v6025
    %v6027 = vlaneseq
    %v6028 = vshrl.u32 %v6027, 7
    %v6029 = vsub.s32 %v6026, %v6028
    %v6030 = vrot.slane %v6014, %v6029
    %vm6031 = vcmask 1044484
    %v6032 = vsel %vm6031, %v6023, %v6023
    %vm6033 = vcmask 1046534
    %v6034 = vsel %vm6033, %v6023, %v6032
    %v6035 = vrot.slane %v6030, 7
    %vm6036 = vcmask 1041409
    %v6037 = vsel %vm6036, %v6035, %v6034
    %vm6038 = vcmask 1043459
    %v6039 = vsel %vm6038, %v6035, %v6037
    %vm6040 = vcmask 1045509
    %v6041 = vsel %vm6040, %v6035, %v6039
    %vm6042 = vcmask 1047559
    %v6043 = vsel %vm6042, %v6035, %v6041
    %6045 = vst.msk [vmem:[#allocation2] sm:$0x3] %vm6000, %v6043
    %vm6046 = vcmask 519170
    %v6047 = vsel %vm6046, %v5998, -inf
    %v6048 = vrot.slane %v6047, 4
    %v6049 = vmax.f32 %v6047, %v6048
    %v6050 = vrot.slane %v6049, 2
    %v6051 = vmax.f32 %v6049, %v6050
    %v6052 = vrot.slane %v6051, 1
    %v6053 = vmax.f32 %v6051, %v6052
    %v6054 = vsel %vm6046, %v5999, -inf
    %v6055 = vrot.slane %v6054, 4
    %v6056 = vmax.f32 %v6054, %v6055
    %v6057 = vrot.slane %v6056, 2
    %v6058 = vmax.f32 %v6056, %v6057
    %v6059 = vrot.slane %v6058, 1
    %v6060 = vmax.f32 %v6058, %v6059
    %v6064 = vunpack.c.l.s4 1983009808
    %v6065 = vunpack.c.0.s8 %v6064
    %v6066 = vlaneseq
    %v6067 = vshrl.u32 %v6066, 7
    %v6068 = vsub.s32 %v6065, %v6067
    %v6069 = vrot.slane %v6053, %v6068
    %v6071 = vunpack.c.l.s4 1983009808
    %v6072 = vunpack.c.0.s8 %v6071
    %v6073 = vlaneseq
    %v6074 = vshrl.u32 %v6073, 7
    %v6075 = vsub.s32 %v6072, %v6074
    %v6076 = vrot.slane %v6060, %v6075
    %v6077 = vsel %vm6031, %v6069, %v6069
    %v6078 = vsel %vm6033, %v6069, %v6077
    %v6079 = vrot.slane %v6076, 7
    %v6080 = vsel %vm6036, %v6079, %v6078
    %v6081 = vsel %vm6038, %v6079, %v6080
    %v6082 = vsel %vm6040, %v6079, %v6081
    %v6083 = vsel %vm6042, %v6079, %v6082
    %6085 = vst.msk [vmem:[#allocation2 + $0x4] sm:$0x3] %vm6000, %v6083
    %vm6086 = vcmask 521220
    %v6087 = vsel %vm6086, %v5998, -inf
    %v6088 = vrot.slane %v6087, 4
    %v6089 = vmax.f32 %v6087, %v6088
    %v6090 = vrot.slane %v6089, 2
    %v6091 = vmax.f32 %v6089, %v6090
    %v6092 = vrot.slane %v6091, 1
    %v6093 = vmax.f32 %v6091, %v6092
    %v6094 = vsel %vm6086, %v5999, -inf
    %v6095 = vrot.slane %v6094, 4
    %v6096 = vmax.f32 %v6094, %v6095
    %v6097 = vrot.slane %v6096, 2
    %v6098 = vmax.f32 %v6096, %v6097
    %v6099 = vrot.slane %v6098, 1
    %v6100 = vmax.f32 %v6098, %v6099
    %v6104 = vunpack.c.l.s4 1983009808
    %v6105 = vunpack.c.0.s8 %v6104
    %v6106 = vlaneseq
    %v6107 = vshrl.u32 %v6106, 7
    %v6108 = vsub.s32 %v6105, %v6107
    %v6109 = vrot.slane %v6093, %v6108
    %v6111 = vunpack.c.l.s4 1983009808
    %v6112 = vunpack.c.0.s8 %v6111
    %v6113 = vlaneseq
    %v6114 = vshrl.u32 %v6113, 7
    %v6115 = vsub.s32 %v6112, %v6114
    %v6116 = vrot.slane %v6100, %v6115
    %v6117 = vsel %vm6031, %v6109, %v6109
    %v6118 = vsel %vm6033, %v6109, %v6117
    %v6119 = vrot.slane %v6116, 7
    %v6120 = vsel %vm6036, %v6119, %v6118
    %v6121 = vsel %vm6038, %v6119, %v6120
    %v6122 = vsel %vm6040, %v6119, %v6121
    %v6123 = vsel %vm6042, %v6119, %v6122
    %6125 = vst.msk [vmem:[#allocation2 + $0x8] sm:$0x3] %vm6000, %v6123
    %vm6126 = vcmask 523270
    %v6127 = vsel %vm6126, %v5998, -inf
    %v6128 = vrot.slane %v6127, 4
    %v6129 = vmax.f32 %v6127, %v6128
    %v6130 = vrot.slane %v6129, 2
    %v6131 = vmax.f32 %v6129, %v6130
    %v6132 = vrot.slane %v6131, 1
    %v6133 = vmax.f32 %v6131, %v6132
    %v6134 = vsel %vm6126, %v5999, -inf
    %v6135 = vrot.slane %v6134, 4
    %v6136 = vmax.f32 %v6134, %v6135
    %v6137 = vrot.slane %v6136, 2
    %v6138 = vmax.f32 %v6136, %v6137
    %v6139 = vrot.slane %v6138, 1
    %v6140 = vmax.f32 %v6138, %v6139
    %v6144 = vunpack.c.l.s4 1983009808
    %v6145 = vunpack.c.0.s8 %v6144
    %v6146 = vlaneseq
    %v6147 = vshrl.u32 %v6146, 7
    %v6148 = vsub.s32 %v6145, %v6147
    %v6149 = vrot.slane %v6133, %v6148
    %v6151 = vunpack.c.l.s4 1983009808
    %v6152 = vunpack.c.0.s8 %v6151
    %v6153 = vlaneseq
    %v6154 = vshrl.u32 %v6153, 7
    %v6155 = vsub.s32 %v6152, %v6154
    %v6156 = vrot.slane %v6140, %v6155
    %v6157 = vsel %vm6031, %v6149, %v6149
    %v6158 = vsel %vm6033, %v6149, %v6157
    %v6159 = vrot.slane %v6156, 7
    %v6160 = vsel %vm6036, %v6159, %v6158
    %v6161 = vsel %vm6038, %v6159, %v6160
    %v6162 = vsel %vm6040, %v6159, %v6161
    %v6163 = vsel %vm6042, %v6159, %v6162
    %6165 = vst.msk [vmem:[#allocation2 + $0xc] sm:$0x3] %vm6000, %v6163
    %6168 = vrot.lane.b32.xlu0 %v5974, 64
    %v6169 = vpop.permute.xlu0 %6168
    %6170 = vrot.lane.b32.xlu0 %v5978, 64
    %v6171 = vpop.permute.xlu0 %6170
    %v6174 = vmax.f32 %v5974, %v6169
    %v6175 = vmax.f32 %v5978, %v6171
    %v6176 = vld [vmem:[#allocation9] sm:$0x1]
    %v6178 = vlaneseq
    %v6179 = vshrl.u32 %v6178, 7
    %v6180 = vsub.s32 0, %v6179
    %v6181 = vrot.slane %v6176, %v6180
    %v6183 = vadd.f32 %v6174, %v6181
    %v6184 = vadd.f32 %v6175, %v6181
    %v6185 = vsel %vm6000, %v6183, -inf
    %v6186 = vrot.slane %v6185, 4
    %v6187 = vmax.f32 %v6185, %v6186
    %v6188 = vrot.slane %v6187, 2
    %v6189 = vmax.f32 %v6187, %v6188
    %v6190 = vrot.slane %v6189, 1
    %v6191 = vmax.f32 %v6189, %v6190
    %v6192 = vsel %vm6000, %v6184, -inf
    %v6193 = vrot.slane %v6192, 4
    %v6194 = vmax.f32 %v6192, %v6193
    %v6195 = vrot.slane %v6194, 2
    %v6196 = vmax.f32 %v6194, %v6195
    %v6197 = vrot.slane %v6196, 1
    %v6198 = vmax.f32 %v6196, %v6197
    %v6202 = vunpack.c.l.s4 1983009808
    %v6203 = vunpack.c.0.s8 %v6202
    %v6204 = vlaneseq
    %v6205 = vshrl.u32 %v6204, 7
    %v6206 = vsub.s32 %v6203, %v6205
    %v6207 = vrot.slane %v6191, %v6206
    %v6209 = vunpack.c.l.s4 1983009808
    %v6210 = vunpack.c.0.s8 %v6209
    %v6211 = vlaneseq
    %v6212 = vshrl.u32 %v6211, 7
    %v6213 = vsub.s32 %v6210, %v6212
    %v6214 = vrot.slane %v6198, %v6213
    %v6215 = vsel %vm6031, %v6207, %v6207
    %v6216 = vsel %vm6033, %v6207, %v6215
    %v6217 = vrot.slane %v6214, 7
    %v6218 = vsel %vm6036, %v6217, %v6216
    %v6219 = vsel %vm6038, %v6217, %v6218
    %v6220 = vsel %vm6040, %v6217, %v6219
    %v6221 = vsel %vm6042, %v6217, %v6220
    %6222 = vrot.lane.b32.xlu0 %v6221, 64
    %v6223 = vpop.permute.xlu0 %6222
    %vm6225 = vcmask 1041920
    %6226 = vst.msk [vmem:[#allocation2] sm:$0x3] %vm6225, %v6223
    %v6227 = vsel %vm6046, %v6183, -inf
    %v6228 = vrot.slane %v6227, 4
    %v6229 = vmax.f32 %v6227, %v6228
    %v6230 = vrot.slane %v6229, 2
    %v6231 = vmax.f32 %v6229, %v6230
    %v6232 = vrot.slane %v6231, 1
    %v6233 = vmax.f32 %v6231, %v6232
    %v6234 = vsel %vm6046, %v6184, -inf
    %v6235 = vrot.slane %v6234, 4
    %v6236 = vmax.f32 %v6234, %v6235
    %v6237 = vrot.slane %v6236, 2
    %v6238 = vmax.f32 %v6236, %v6237
    %v6239 = vrot.slane %v6238, 1
    %v6240 = vmax.f32 %v6238, %v6239
    %v6244 = vunpack.c.l.s4 1983009808
    %v6245 = vunpack.c.0.s8 %v6244
    %v6246 = vlaneseq
    %v6247 = vshrl.u32 %v6246, 7
    %v6248 = vsub.s32 %v6245, %v6247
    %v6249 = vrot.slane %v6233, %v6248
    %v6251 = vunpack.c.l.s4 1983009808
    %v6252 = vunpack.c.0.s8 %v6251
    %v6253 = vlaneseq
    %v6254 = vshrl.u32 %v6253, 7
    %v6255 = vsub.s32 %v6252, %v6254
    %v6256 = vrot.slane %v6240, %v6255
    %v6257 = vsel %vm6031, %v6249, %v6249
    %v6258 = vsel %vm6033, %v6249, %v6257
    %v6259 = vrot.slane %v6256, 7
    %v6260 = vsel %vm6036, %v6259, %v6258
    %v6261 = vsel %vm6038, %v6259, %v6260
    %v6262 = vsel %vm6040, %v6259, %v6261
    %v6263 = vsel %vm6042, %v6259, %v6262
    %6264 = vrot.lane.b32.xlu0 %v6263, 64
    %v6265 = vpop.permute.xlu0 %6264
    %6267 = vst.msk [vmem:[#allocation2 + $0x4] sm:$0x3] %vm6225, %v6265
    %v6268 = vsel %vm6086, %v6183, -inf
    %v6269 = vrot.slane %v6268, 4
    %v6270 = vmax.f32 %v6268, %v6269
    %v6271 = vrot.slane %v6270, 2
    %v6272 = vmax.f32 %v6270, %v6271
    %v6273 = vrot.slane %v6272, 1
    %v6274 = vmax.f32 %v6272, %v6273
    %v6275 = vsel %vm6086, %v6184, -inf
    %v6276 = vrot.slane %v6275, 4
    %v6277 = vmax.f32 %v6275, %v6276
    %v6278 = vrot.slane %v6277, 2
    %v6279 = vmax.f32 %v6277, %v6278
    %v6280 = vrot.slane %v6279, 1
    %v6281 = vmax.f32 %v6279, %v6280
    %v6285 = vunpack.c.l.s4 1983009808
    %v6286 = vunpack.c.0.s8 %v6285
    %v6287 = vlaneseq
    %v6288 = vshrl.u32 %v6287, 7
    %v6289 = vsub.s32 %v6286, %v6288
    %v6290 = vrot.slane %v6274, %v6289
    %v6292 = vunpack.c.l.s4 1983009808
    %v6293 = vunpack.c.0.s8 %v6292
    %v6294 = vlaneseq
    %v6295 = vshrl.u32 %v6294, 7
    %v6296 = vsub.s32 %v6293, %v6295
    %v6297 = vrot.slane %v6281, %v6296
    %v6298 = vsel %vm6031, %v6290, %v6290
    %v6299 = vsel %vm6033, %v6290, %v6298
    %v6300 = vrot.slane %v6297, 7
    %v6301 = vsel %vm6036, %v6300, %v6299
    %v6302 = vsel %vm6038, %v6300, %v6301
    %v6303 = vsel %vm6040, %v6300, %v6302
    %v6304 = vsel %vm6042, %v6300, %v6303
    %6305 = vrot.lane.b32.xlu0 %v6304, 64
    %v6306 = vpop.permute.xlu0 %6305
    %6308 = vst.msk [vmem:[#allocation2 + $0x8] sm:$0x3] %vm6225, %v6306
    %v6309 = vsel %vm6126, %v6183, -inf
    %v6310 = vrot.slane %v6309, 4
    %v6311 = vmax.f32 %v6309, %v6310
    %v6312 = vrot.slane %v6311, 2
    %v6313 = vmax.f32 %v6311, %v6312
    %v6314 = vrot.slane %v6313, 1
    %v6315 = vmax.f32 %v6313, %v6314
    %v6316 = vsel %vm6126, %v6184, -inf
    %v6317 = vrot.slane %v6316, 4
    %v6318 = vmax.f32 %v6316, %v6317
    %v6319 = vrot.slane %v6318, 2
    %v6320 = vmax.f32 %v6318, %v6319
    %v6321 = vrot.slane %v6320, 1
    %v6322 = vmax.f32 %v6320, %v6321
    %v6326 = vunpack.c.l.s4 1983009808
    %v6327 = vunpack.c.0.s8 %v6326
    %v6328 = vlaneseq
    %v6329 = vshrl.u32 %v6328, 7
    %v6330 = vsub.s32 %v6327, %v6329
    %v6331 = vrot.slane %v6315, %v6330
    %v6333 = vunpack.c.l.s4 1983009808
    %v6334 = vunpack.c.0.s8 %v6333
    %v6335 = vlaneseq
    %v6336 = vshrl.u32 %v6335, 7
    %v6337 = vsub.s32 %v6334, %v6336
    %v6338 = vrot.slane %v6322, %v6337
    %v6339 = vsel %vm6031, %v6331, %v6331
    %v6340 = vsel %vm6033, %v6331, %v6339
    %v6341 = vrot.slane %v6338, 7
    %v6342 = vsel %vm6036, %v6341, %v6340
    %v6343 = vsel %vm6038, %v6341, %v6342
    %v6344 = vsel %vm6040, %v6341, %v6343
    %v6345 = vsel %vm6042, %v6341, %v6344
    %6346 = vrot.lane.b32.xlu0 %v6345, 64
    %v6347 = vpop.permute.xlu0 %6346
    %6349 = vst.msk [vmem:[#allocation2 + $0xc] sm:$0x3] %vm6225, %v6347
    %6352 = vrot.lane.b32.xlu0 %v5975, 64
    %v6353 = vpop.permute.xlu0 %6352
    %6354 = vrot.lane.b32.xlu0 %v5979, 64
    %v6355 = vpop.permute.xlu0 %6354
    %v6358 = vmax.f32 %v5975, %v6353
    %v6359 = vmax.f32 %v5979, %v6355
    %v6360 = vld [vmem:[#allocation9] sm:$0x1]
    %v6362 = vlaneseq
    %v6363 = vshrl.u32 %v6362, 7
    %v6364 = vsub.s32 0, %v6363
    %v6365 = vrot.slane %v6360, %v6364
    %v6367 = vadd.f32 %v6358, %v6365
    %v6368 = vadd.f32 %v6359, %v6365
    %v6369 = vsel %vm6000, %v6367, -inf
    %v6370 = vrot.slane %v6369, 4
    %v6371 = vmax.f32 %v6369, %v6370
    %v6372 = vrot.slane %v6371, 2
    %v6373 = vmax.f32 %v6371, %v6372
    %v6374 = vrot.slane %v6373, 1
    %v6375 = vmax.f32 %v6373, %v6374
    %v6376 = vsel %vm6000, %v6368, -inf
    %v6377 = vrot.slane %v6376, 4
    %v6378 = vmax.f32 %v6376, %v6377
    %v6379 = vrot.slane %v6378, 2
    %v6380 = vmax.f32 %v6378, %v6379
    %v6381 = vrot.slane %v6380, 1
    %v6382 = vmax.f32 %v6380, %v6381
    %v6386 = vunpack.c.l.s4 1983009808
    %v6387 = vunpack.c.0.s8 %v6386
    %v6388 = vlaneseq
    %v6389 = vshrl.u32 %v6388, 7
    %v6390 = vsub.s32 %v6387, %v6389
    %v6391 = vrot.slane %v6375, %v6390
    %v6393 = vunpack.c.l.s4 1983009808
    %v6394 = vunpack.c.0.s8 %v6393
    %v6395 = vlaneseq
    %v6396 = vshrl.u32 %v6395, 7
    %v6397 = vsub.s32 %v6394, %v6396
    %v6398 = vrot.slane %v6382, %v6397
    %v6399 = vsel %vm6031, %v6391, %v6391
    %v6400 = vsel %vm6033, %v6391, %v6399
    %v6401 = vrot.slane %v6398, 7
    %v6402 = vsel %vm6036, %v6401, %v6400
    %v6403 = vsel %vm6038, %v6401, %v6402
    %v6404 = vsel %vm6040, %v6401, %v6403
    %v6405 = vsel %vm6042, %v6401, %v6404
    %6407 = vst.msk [vmem:[#allocation2 + $0x2] sm:$0x3] %vm6000, %v6405
    %v6408 = vsel %vm6046, %v6367, -inf
    %v6409 = vrot.slane %v6408, 4
    %v6410 = vmax.f32 %v6408, %v6409
    %v6411 = vrot.slane %v6410, 2
    %v6412 = vmax.f32 %v6410, %v6411
    %v6413 = vrot.slane %v6412, 1
    %v6414 = vmax.f32 %v6412, %v6413
    %v6415 = vsel %vm6046, %v6368, -inf
    %v6416 = vrot.slane %v6415, 4
    %v6417 = vmax.f32 %v6415, %v6416
    %v6418 = vrot.slane %v6417, 2
    %v6419 = vmax.f32 %v6417, %v6418
    %v6420 = vrot.slane %v6419, 1
    %v6421 = vmax.f32 %v6419, %v6420
    %v6425 = vunpack.c.l.s4 1983009808
    %v6426 = vunpack.c.0.s8 %v6425
    %v6427 = vlaneseq
    %v6428 = vshrl.u32 %v6427, 7
    %v6429 = vsub.s32 %v6426, %v6428
    %v6430 = vrot.slane %v6414, %v6429
    %v6432 = vunpack.c.l.s4 1983009808
    %v6433 = vunpack.c.0.s8 %v6432
    %v6434 = vlaneseq
    %v6435 = vshrl.u32 %v6434, 7
    %v6436 = vsub.s32 %v6433, %v6435
    %v6437 = vrot.slane %v6421, %v6436
    %v6438 = vsel %vm6031, %v6430, %v6430
    %v6439 = vsel %vm6033, %v6430, %v6438
    %v6440 = vrot.slane %v6437, 7
    %v6441 = vsel %vm6036, %v6440, %v6439
    %v6442 = vsel %vm6038, %v6440, %v6441
    %v6443 = vsel %vm6040, %v6440, %v6442
    %v6444 = vsel %vm6042, %v6440, %v6443
    %6446 = vst.msk [vmem:[#allocation2 + $0x6] sm:$0x3] %vm6000, %v6444
    %v6447 = vsel %vm6086, %v6367, -inf
    %v6448 = vrot.slane %v6447, 4
    %v6449 = vmax.f32 %v6447, %v6448
    %v6450 = vrot.slane %v6449, 2
    %v6451 = vmax.f32 %v6449, %v6450
    %v6452 = vrot.slane %v6451, 1
    %v6453 = vmax.f32 %v6451, %v6452
    %v6454 = vsel %vm6086, %v6368, -inf
    %v6455 = vrot.slane %v6454, 4
    %v6456 = vmax.f32 %v6454, %v6455
    %v6457 = vrot.slane %v6456, 2
    %v6458 = vmax.f32 %v6456, %v6457
    %v6459 = vrot.slane %v6458, 1
    %v6460 = vmax.f32 %v6458, %v6459
    %v6464 = vunpack.c.l.s4 1983009808
    %v6465 = vunpack.c.0.s8 %v6464
    %v6466 = vlaneseq
    %v6467 = vshrl.u32 %v6466, 7
    %v6468 = vsub.s32 %v6465, %v6467
    %v6469 = vrot.slane %v6453, %v6468
    %v6471 = vunpack.c.l.s4 1983009808
    %v6472 = vunpack.c.0.s8 %v6471
    %v6473 = vlaneseq
    %v6474 = vshrl.u32 %v6473, 7
    %v6475 = vsub.s32 %v6472, %v6474
    %v6476 = vrot.slane %v6460, %v6475
    %v6477 = vsel %vm6031, %v6469, %v6469
    %v6478 = vsel %vm6033, %v6469, %v6477
    %v6479 = vrot.slane %v6476, 7
    %v6480 = vsel %vm6036, %v6479, %v6478
    %v6481 = vsel %vm6038, %v6479, %v6480
    %v6482 = vsel %vm6040, %v6479, %v6481
    %v6483 = vsel %vm6042, %v6479, %v6482
    %6485 = vst.msk [vmem:[#allocation2 + $0xa] sm:$0x3] %vm6000, %v6483
    %v6486 = vsel %vm6126, %v6367, -inf
    %v6487 = vrot.slane %v6486, 4
    %v6488 = vmax.f32 %v6486, %v6487
    %v6489 = vrot.slane %v6488, 2
    %v6490 = vmax.f32 %v6488, %v6489
    %v6491 = vrot.slane %v6490, 1
    %v6492 = vmax.f32 %v6490, %v6491
    %v6493 = vsel %vm6126, %v6368, -inf
    %v6494 = vrot.slane %v6493, 4
    %v6495 = vmax.f32 %v6493, %v6494
    %v6496 = vrot.slane %v6495, 2
    %v6497 = vmax.f32 %v6495, %v6496
    %v6498 = vrot.slane %v6497, 1
    %v6499 = vmax.f32 %v6497, %v6498
    %v6503 = vunpack.c.l.s4 1983009808
    %v6504 = vunpack.c.0.s8 %v6503
    %v6505 = vlaneseq
    %v6506 = vshrl.u32 %v6505, 7
    %v6507 = vsub.s32 %v6504, %v6506
    %v6508 = vrot.slane %v6492, %v6507
    %v6510 = vunpack.c.l.s4 1983009808
    %v6511 = vunpack.c.0.s8 %v6510
    %v6512 = vlaneseq
    %v6513 = vshrl.u32 %v6512, 7
    %v6514 = vsub.s32 %v6511, %v6513
    %v6515 = vrot.slane %v6499, %v6514
    %v6516 = vsel %vm6031, %v6508, %v6508
    %v6517 = vsel %vm6033, %v6508, %v6516
    %v6518 = vrot.slane %v6515, 7
    %v6519 = vsel %vm6036, %v6518, %v6517
    %v6520 = vsel %vm6038, %v6518, %v6519
    %v6521 = vsel %vm6040, %v6518, %v6520
    %v6522 = vsel %vm6042, %v6518, %v6521
    %6524 = vst.msk [vmem:[#allocation2 + $0xe] sm:$0x3] %vm6000, %v6522
    %6527 = vrot.lane.b32.xlu0 %v5976, 64
    %v6528 = vpop.permute.xlu0 %6527
    %6529 = vrot.lane.b32.xlu0 %v5980, 64
    %v6530 = vpop.permute.xlu0 %6529
    %v6533 = vmax.f32 %v5976, %v6528
    %v6534 = vmax.f32 %v5980, %v6530
    %v6535 = vld [vmem:[#allocation9] sm:$0x1]
    %v6537 = vlaneseq
    %v6538 = vshrl.u32 %v6537, 7
    %v6539 = vsub.s32 0, %v6538
    %v6540 = vrot.slane %v6535, %v6539
    %v6542 = vadd.f32 %v6533, %v6540
    %v6543 = vadd.f32 %v6534, %v6540
    %v6544 = vsel %vm6000, %v6542, -inf
    %v6545 = vrot.slane %v6544, 4
    %v6546 = vmax.f32 %v6544, %v6545
    %v6547 = vrot.slane %v6546, 2
    %v6548 = vmax.f32 %v6546, %v6547
    %v6549 = vrot.slane %v6548, 1
    %v6550 = vmax.f32 %v6548, %v6549
    %v6551 = vsel %vm6000, %v6543, -inf
    %v6552 = vrot.slane %v6551, 4
    %v6553 = vmax.f32 %v6551, %v6552
    %v6554 = vrot.slane %v6553, 2
    %v6555 = vmax.f32 %v6553, %v6554
    %v6556 = vrot.slane %v6555, 1
    %v6557 = vmax.f32 %v6555, %v6556
    %v6561 = vunpack.c.l.s4 1983009808
    %v6562 = vunpack.c.0.s8 %v6561
    %v6563 = vlaneseq
    %v6564 = vshrl.u32 %v6563, 7
    %v6565 = vsub.s32 %v6562, %v6564
    %v6566 = vrot.slane %v6550, %v6565
    %v6568 = vunpack.c.l.s4 1983009808
    %v6569 = vunpack.c.0.s8 %v6568
    %v6570 = vlaneseq
    %v6571 = vshrl.u32 %v6570, 7
    %v6572 = vsub.s32 %v6569, %v6571
    %v6573 = vrot.slane %v6557, %v6572
    %v6574 = vsel %vm6031, %v6566, %v6566
    %v6575 = vsel %vm6033, %v6566, %v6574
    %v6576 = vrot.slane %v6573, 7
    %v6577 = vsel %vm6036, %v6576, %v6575
    %v6578 = vsel %vm6038, %v6576, %v6577
    %v6579 = vsel %vm6040, %v6576, %v6578
    %v6580 = vsel %vm6042, %v6576, %v6579
    %6581 = vrot.lane.b32.xlu0 %v6580, 64
    %v6582 = vpop.permute.xlu0 %6581
    %6584 = vst.msk [vmem:[#allocation2 + $0x2] sm:$0x3] %vm6225, %v6582
    %v6585 = vsel %vm6046, %v6542, -inf
    %v6586 = vrot.slane %v6585, 4
    %v6587 = vmax.f32 %v6585, %v6586
    %v6588 = vrot.slane %v6587, 2
    %v6589 = vmax.f32 %v6587, %v6588
    %v6590 = vrot.slane %v6589, 1
    %v6591 = vmax.f32 %v6589, %v6590
    %v6592 = vsel %vm6046, %v6543, -inf
    %v6593 = vrot.slane %v6592, 4
    %v6594 = vmax.f32 %v6592, %v6593
    %v6595 = vrot.slane %v6594, 2
    %v6596 = vmax.f32 %v6594, %v6595
    %v6597 = vrot.slane %v6596, 1
    %v6598 = vmax.f32 %v6596, %v6597
    %v6602 = vunpack.c.l.s4 1983009808
    %v6603 = vunpack.c.0.s8 %v6602
    %v6604 = vlaneseq
    %v6605 = vshrl.u32 %v6604, 7
    %v6606 = vsub.s32 %v6603, %v6605
    %v6607 = vrot.slane %v6591, %v6606
    %v6609 = vunpack.c.l.s4 1983009808
    %v6610 = vunpack.c.0.s8 %v6609
    %v6611 = vlaneseq
    %v6612 = vshrl.u32 %v6611, 7
    %v6613 = vsub.s32 %v6610, %v6612
    %v6614 = vrot.slane %v6598, %v6613
    %v6615 = vsel %vm6031, %v6607, %v6607
    %v6616 = vsel %vm6033, %v6607, %v6615
    %v6617 = vrot.slane %v6614, 7
    %v6618 = vsel %vm6036, %v6617, %v6616
    %v6619 = vsel %vm6038, %v6617, %v6618
    %v6620 = vsel %vm6040, %v6617, %v6619
    %v6621 = vsel %vm6042, %v6617, %v6620
    %6622 = vrot.lane.b32.xlu0 %v6621, 64
    %v6623 = vpop.permute.xlu0 %6622
    %6625 = vst.msk [vmem:[#allocation2 + $0x6] sm:$0x3] %vm6225, %v6623
    %v6626 = vsel %vm6086, %v6542, -inf
    %v6627 = vrot.slane %v6626, 4
    %v6628 = vmax.f32 %v6626, %v6627
    %v6629 = vrot.slane %v6628, 2
    %v6630 = vmax.f32 %v6628, %v6629
    %v6631 = vrot.slane %v6630, 1
    %v6632 = vmax.f32 %v6630, %v6631
    %v6633 = vsel %vm6086, %v6543, -inf
    %v6634 = vrot.slane %v6633, 4
    %v6635 = vmax.f32 %v6633, %v6634
    %v6636 = vrot.slane %v6635, 2
    %v6637 = vmax.f32 %v6635, %v6636
    %v6638 = vrot.slane %v6637, 1
    %v6639 = vmax.f32 %v6637, %v6638
    %v6643 = vunpack.c.l.s4 1983009808
    %v6644 = vunpack.c.0.s8 %v6643
    %v6645 = vlaneseq
    %v6646 = vshrl.u32 %v6645, 7
    %v6647 = vsub.s32 %v6644, %v6646
    %v6648 = vrot.slane %v6632, %v6647
    %v6650 = vunpack.c.l.s4 1983009808
    %v6651 = vunpack.c.0.s8 %v6650
    %v6652 = vlaneseq
    %v6653 = vshrl.u32 %v6652, 7
    %v6654 = vsub.s32 %v6651, %v6653
    %v6655 = vrot.slane %v6639, %v6654
    %v6656 = vsel %vm6031, %v6648, %v6648
    %v6657 = vsel %vm6033, %v6648, %v6656
    %v6658 = vrot.slane %v6655, 7
    %v6659 = vsel %vm6036, %v6658, %v6657
    %v6660 = vsel %vm6038, %v6658, %v6659
    %v6661 = vsel %vm6040, %v6658, %v6660
    %v6662 = vsel %vm6042, %v6658, %v6661
    %6663 = vrot.lane.b32.xlu0 %v6662, 64
    %v6664 = vpop.permute.xlu0 %6663
    %6666 = vst.msk [vmem:[#allocation2 + $0xa] sm:$0x3] %vm6225, %v6664
    %v6667 = vsel %vm6126, %v6542, -inf
    %v6668 = vrot.slane %v6667, 4
    %v6669 = vmax.f32 %v6667, %v6668
    %v6670 = vrot.slane %v6669, 2
    %v6671 = vmax.f32 %v6669, %v6670
    %v6672 = vrot.slane %v6671, 1
    %v6673 = vmax.f32 %v6671, %v6672
    %v6674 = vsel %vm6126, %v6543, -inf
    %v6675 = vrot.slane %v6674, 4
    %v6676 = vmax.f32 %v6674, %v6675
    %v6677 = vrot.slane %v6676, 2
    %v6678 = vmax.f32 %v6676, %v6677
    %v6679 = vrot.slane %v6678, 1
    %v6680 = vmax.f32 %v6678, %v6679
    %v6684 = vunpack.c.l.s4 1983009808
    %v6685 = vunpack.c.0.s8 %v6684
    %v6686 = vlaneseq
    %v6687 = vshrl.u32 %v6686, 7
    %v6688 = vsub.s32 %v6685, %v6687
    %v6689 = vrot.slane %v6673, %v6688
    %v6691 = vunpack.c.l.s4 1983009808
    %v6692 = vunpack.c.0.s8 %v6691
    %v6693 = vlaneseq
    %v6694 = vshrl.u32 %v6693, 7
    %v6695 = vsub.s32 %v6692, %v6694
    %v6696 = vrot.slane %v6680, %v6695
    %v6697 = vsel %vm6031, %v6689, %v6689
    %v6698 = vsel %vm6033, %v6689, %v6697
    %v6699 = vrot.slane %v6696, 7
    %v6700 = vsel %vm6036, %v6699, %v6698
    %v6701 = vsel %vm6038, %v6699, %v6700
    %v6702 = vsel %vm6040, %v6699, %v6701
    %v6703 = vsel %vm6042, %v6699, %v6702
    %6704 = vrot.lane.b32.xlu0 %v6703, 64
    %v6705 = vpop.permute.xlu0 %6704
    %6707 = vst.msk [vmem:[#allocation2 + $0xe] sm:$0x3] %vm6225, %v6705
    %v6708 = vld [vmem:[#allocation2] sm:$0xff]
    %v6709 = vld [vmem:[#allocation2 + $0x8] sm:$0xff]
    %v6710 = vld [vmem:[#allocation11] sm:$0xff]
    %v6711 = vld [vmem:[#allocation11 + $0x8] sm:$0xff]
    %v6712 = vld [vmem:[#allocation11 + $0x10] sm:$0xff]
    %v6713 = vld [vmem:[#allocation11 + $0x18] sm:$0xff]
    %v6714 = vld [vmem:[#allocation11 + $0x20] sm:$0xff]
    %v6715 = vld [vmem:[#allocation11 + $0x28] sm:$0xff]
    %v6716 = vld [vmem:[#allocation11 + $0x30] sm:$0xff]
    %v6717 = vld [vmem:[#allocation11 + $0x38] sm:$0xff]
    %v6718 = vld [vmem:[#allocation11 + $0x40] sm:$0xff]
    %v6719 = vld [vmem:[#allocation11 + $0x48] sm:$0xff]
    %v6720 = vld [vmem:[#allocation11 + $0x50] sm:$0xff]
    %v6721 = vld [vmem:[#allocation11 + $0x58] sm:$0xff]
    %v6722 = vld [vmem:[#allocation11 + $0x60] sm:$0xff]
    %v6723 = vld [vmem:[#allocation11 + $0x68] sm:$0xff]
    %v6724 = vld [vmem:[#allocation11 + $0x70] sm:$0xff]
    %v6725 = vld [vmem:[#allocation11 + $0x78] sm:$0xff]
    %v6726 = vld [vmem:[#allocation11 + $0x80] sm:$0xff]
    %v6727 = vld [vmem:[#allocation11 + $0x88] sm:$0xff]
    %v6728 = vld [vmem:[#allocation11 + $0x90] sm:$0xff]
    %v6729 = vld [vmem:[#allocation11 + $0x98] sm:$0xff]
    %v6730 = vld [vmem:[#allocation11 + $0xa0] sm:$0xff]
    %v6731 = vld [vmem:[#allocation11 + $0xa8] sm:$0xff]
    %v6732 = vld [vmem:[#allocation11 + $0xb0] sm:$0xff]
    %v6733 = vld [vmem:[#allocation11 + $0xb8] sm:$0xff]
    %v6734 = vld [vmem:[#allocation11 + $0xc0] sm:$0xff]
    %v6735 = vld [vmem:[#allocation11 + $0xc8] sm:$0xff]
    %v6736 = vld [vmem:[#allocation11 + $0xd0] sm:$0xff]
    %v6737 = vld [vmem:[#allocation11 + $0xd8] sm:$0xff]
    %v6738 = vld [vmem:[#allocation11 + $0xe0] sm:$0xff]
    %v6739 = vld [vmem:[#allocation11 + $0xe8] sm:$0xff]
    %v6740 = vld [vmem:[#allocation11 + $0xf0] sm:$0xff]
    %v6741 = vld [vmem:[#allocation11 + $0xf8] sm:$0xff]
    %v6742 = vld [vmem:[#allocation11 + $0x100] sm:$0xff]
    %v6743 = vld [vmem:[#allocation11 + $0x108] sm:$0xff]
    %v6744 = vld [vmem:[#allocation11 + $0x110] sm:$0xff]
    %v6745 = vld [vmem:[#allocation11 + $0x118] sm:$0xff]
    %v6746 = vld [vmem:[#allocation11 + $0x120] sm:$0xff]
    %v6747 = vld [vmem:[#allocation11 + $0x128] sm:$0xff]
    %v6748 = vld [vmem:[#allocation11 + $0x130] sm:$0xff]
    %v6749 = vld [vmem:[#allocation11 + $0x138] sm:$0xff]
    %v6750 = vld [vmem:[#allocation11 + $0x140] sm:$0xff]
    %v6751 = vld [vmem:[#allocation11 + $0x148] sm:$0xff]
    %v6752 = vld [vmem:[#allocation11 + $0x150] sm:$0xff]
    %v6753 = vld [vmem:[#allocation11 + $0x158] sm:$0xff]
    %v6754 = vld [vmem:[#allocation11 + $0x160] sm:$0xff]
    %v6755 = vld [vmem:[#allocation11 + $0x168] sm:$0xff]
    %v6756 = vld [vmem:[#allocation11 + $0x170] sm:$0xff]
    %v6757 = vld [vmem:[#allocation11 + $0x178] sm:$0xff]
    %v6758 = vld [vmem:[#allocation11 + $0x180] sm:$0xff]
    %v6759 = vld [vmem:[#allocation11 + $0x188] sm:$0xff]
    %v6760 = vld [vmem:[#allocation11 + $0x190] sm:$0xff]
    %v6761 = vld [vmem:[#allocation11 + $0x198] sm:$0xff]
    %v6762 = vld [vmem:[#allocation11 + $0x1a0] sm:$0xff]
    %v6763 = vld [vmem:[#allocation11 + $0x1a8] sm:$0xff]
    %v6764 = vld [vmem:[#allocation11 + $0x1b0] sm:$0xff]
    %v6765 = vld [vmem:[#allocation11 + $0x1b8] sm:$0xff]
    %v6766 = vld [vmem:[#allocation11 + $0x1c0] sm:$0xff]
    %v6767 = vld [vmem:[#allocation11 + $0x1c8] sm:$0xff]
    %v6768 = vld [vmem:[#allocation11 + $0x1d0] sm:$0xff]
    %v6769 = vld [vmem:[#allocation11 + $0x1d8] sm:$0xff]
    %v6770 = vld [vmem:[#allocation11 + $0x1e0] sm:$0xff]
    %v6771 = vld [vmem:[#allocation11 + $0x1e8] sm:$0xff]
    %v6772 = vld [vmem:[#allocation11 + $0x1f0] sm:$0xff]
    %v6773 = vld [vmem:[#allocation11 + $0x1f8] sm:$0xff]
    %v6774 = vld [vmem:[#allocation11 + $0x200] sm:$0xff]
    %v6775 = vld [vmem:[#allocation11 + $0x208] sm:$0xff]
    %v6776 = vld [vmem:[#allocation11 + $0x210] sm:$0xff]
    %v6777 = vld [vmem:[#allocation11 + $0x218] sm:$0xff]
    %v6778 = vld [vmem:[#allocation11 + $0x220] sm:$0xff]
    %v6779 = vld [vmem:[#allocation11 + $0x228] sm:$0xff]
    %v6780 = vld [vmem:[#allocation11 + $0x230] sm:$0xff]
    %v6781 = vld [vmem:[#allocation11 + $0x238] sm:$0xff]
    %v6782 = vld [vmem:[#allocation11 + $0x240] sm:$0xff]
    %v6783 = vld [vmem:[#allocation11 + $0x248] sm:$0xff]
    %v6784 = vld [vmem:[#allocation11 + $0x250] sm:$0xff]
    %v6785 = vld [vmem:[#allocation11 + $0x258] sm:$0xff]
    %v6786 = vld [vmem:[#allocation11 + $0x260] sm:$0xff]
    %v6787 = vld [vmem:[#allocation11 + $0x268] sm:$0xff]
    %v6788 = vld [vmem:[#allocation11 + $0x270] sm:$0xff]
    %v6789 = vld [vmem:[#allocation11 + $0x278] sm:$0xff]
    %v6790 = vld [vmem:[#allocation11 + $0x280] sm:$0xff]
    %v6791 = vld [vmem:[#allocation11 + $0x288] sm:$0xff]
    %v6792 = vld [vmem:[#allocation11 + $0x290] sm:$0xff]
    %v6793 = vld [vmem:[#allocation11 + $0x298] sm:$0xff]
    %v6794 = vld [vmem:[#allocation11 + $0x2a0] sm:$0xff]
    %v6795 = vld [vmem:[#allocation11 + $0x2a8] sm:$0xff]
    %v6796 = vld [vmem:[#allocation11 + $0x2b0] sm:$0xff]
    %v6797 = vld [vmem:[#allocation11 + $0x2b8] sm:$0xff]
    %v6798 = vld [vmem:[#allocation11 + $0x2c0] sm:$0xff]
    %v6799 = vld [vmem:[#allocation11 + $0x2c8] sm:$0xff]
    %v6800 = vld [vmem:[#allocation11 + $0x2d0] sm:$0xff]
    %v6801 = vld [vmem:[#allocation11 + $0x2d8] sm:$0xff]
    %v6802 = vld [vmem:[#allocation11 + $0x2e0] sm:$0xff]
    %v6803 = vld [vmem:[#allocation11 + $0x2e8] sm:$0xff]
    %v6804 = vld [vmem:[#allocation11 + $0x2f0] sm:$0xff]
    %v6805 = vld [vmem:[#allocation11 + $0x2f8] sm:$0xff]
    %v6806 = vld [vmem:[#allocation11 + $0x300] sm:$0xff]
    %v6807 = vld [vmem:[#allocation11 + $0x308] sm:$0xff]
    %v6808 = vld [vmem:[#allocation11 + $0x310] sm:$0xff]
    %v6809 = vld [vmem:[#allocation11 + $0x318] sm:$0xff]
    %v6810 = vld [vmem:[#allocation11 + $0x320] sm:$0xff]
    %v6811 = vld [vmem:[#allocation11 + $0x328] sm:$0xff]
    %v6812 = vld [vmem:[#allocation11 + $0x330] sm:$0xff]
    %v6813 = vld [vmem:[#allocation11 + $0x338] sm:$0xff]
    %v6814 = vld [vmem:[#allocation11 + $0x340] sm:$0xff]
    %v6815 = vld [vmem:[#allocation11 + $0x348] sm:$0xff]
    %v6816 = vld [vmem:[#allocation11 + $0x350] sm:$0xff]
    %v6817 = vld [vmem:[#allocation11 + $0x358] sm:$0xff]
    %v6818 = vld [vmem:[#allocation11 + $0x360] sm:$0xff]
    %v6819 = vld [vmem:[#allocation11 + $0x368] sm:$0xff]
    %v6820 = vld [vmem:[#allocation11 + $0x370] sm:$0xff]
    %v6821 = vld [vmem:[#allocation11 + $0x378] sm:$0xff]
    %v6822 = vld [vmem:[#allocation11 + $0x380] sm:$0xff]
    %v6823 = vld [vmem:[#allocation11 + $0x388] sm:$0xff]
    %v6824 = vld [vmem:[#allocation11 + $0x390] sm:$0xff]
    %v6825 = vld [vmem:[#allocation11 + $0x398] sm:$0xff]
    %v6826 = vld [vmem:[#allocation11 + $0x3a0] sm:$0xff]
    %v6827 = vld [vmem:[#allocation11 + $0x3a8] sm:$0xff]
    %v6828 = vld [vmem:[#allocation11 + $0x3b0] sm:$0xff]
    %v6829 = vld [vmem:[#allocation11 + $0x3b8] sm:$0xff]
    %v6830 = vld [vmem:[#allocation11 + $0x3c0] sm:$0xff]
    %v6831 = vld [vmem:[#allocation11 + $0x3c8] sm:$0xff]
    %v6832 = vld [vmem:[#allocation11 + $0x3d0] sm:$0xff]
    %v6833 = vld [vmem:[#allocation11 + $0x3d8] sm:$0xff]
    %v6834 = vld [vmem:[#allocation11 + $0x3e0] sm:$0xff]
    %v6835 = vld [vmem:[#allocation11 + $0x3e8] sm:$0xff]
    %v6836 = vld [vmem:[#allocation11 + $0x3f0] sm:$0xff]
    %v6837 = vld [vmem:[#allocation11 + $0x3f8] sm:$0xff]
    %v6838 = vld [vmem:[#allocation11 + $0x400] sm:$0xff]
    %v6839 = vld [vmem:[#allocation11 + $0x408] sm:$0xff]
    %v6840 = vld [vmem:[#allocation11 + $0x410] sm:$0xff]
    %v6841 = vld [vmem:[#allocation11 + $0x418] sm:$0xff]
    %v6842 = vld [vmem:[#allocation11 + $0x420] sm:$0xff]
    %v6843 = vld [vmem:[#allocation11 + $0x428] sm:$0xff]
    %v6844 = vld [vmem:[#allocation11 + $0x430] sm:$0xff]
    %v6845 = vld [vmem:[#allocation11 + $0x438] sm:$0xff]
    %v6846 = vld [vmem:[#allocation11 + $0x440] sm:$0xff]
    %v6847 = vld [vmem:[#allocation11 + $0x448] sm:$0xff]
    %v6848 = vld [vmem:[#allocation11 + $0x450] sm:$0xff]
    %v6849 = vld [vmem:[#allocation11 + $0x458] sm:$0xff]
    %v6850 = vld [vmem:[#allocation11 + $0x460] sm:$0xff]
    %v6851 = vld [vmem:[#allocation11 + $0x468] sm:$0xff]
    %v6852 = vld [vmem:[#allocation11 + $0x470] sm:$0xff]
    %v6853 = vld [vmem:[#allocation11 + $0x478] sm:$0xff]
    %v6854 = vld [vmem:[#allocation11 + $0x480] sm:$0xff]
    %v6855 = vld [vmem:[#allocation11 + $0x488] sm:$0xff]
    %v6856 = vld [vmem:[#allocation11 + $0x490] sm:$0xff]
    %v6857 = vld [vmem:[#allocation11 + $0x498] sm:$0xff]
    %v6858 = vld [vmem:[#allocation11 + $0x4a0] sm:$0xff]
    %v6859 = vld [vmem:[#allocation11 + $0x4a8] sm:$0xff]
    %v6860 = vld [vmem:[#allocation11 + $0x4b0] sm:$0xff]
    %v6861 = vld [vmem:[#allocation11 + $0x4b8] sm:$0xff]
    %v6862 = vld [vmem:[#allocation11 + $0x4c0] sm:$0xff]
    %v6863 = vld [vmem:[#allocation11 + $0x4c8] sm:$0xff]
    %v6864 = vld [vmem:[#allocation11 + $0x4d0] sm:$0xff]
    %v6865 = vld [vmem:[#allocation11 + $0x4d8] sm:$0xff]
    %v6866 = vld [vmem:[#allocation11 + $0x4e0] sm:$0xff]
    %v6867 = vld [vmem:[#allocation11 + $0x4e8] sm:$0xff]
    %v6868 = vld [vmem:[#allocation11 + $0x4f0] sm:$0xff]
    %v6869 = vld [vmem:[#allocation11 + $0x4f8] sm:$0xff]
    %v6870 = vld [vmem:[#allocation11 + $0x500] sm:$0xff]
    %v6871 = vld [vmem:[#allocation11 + $0x508] sm:$0xff]
    %v6872 = vld [vmem:[#allocation11 + $0x510] sm:$0xff]
    %v6873 = vld [vmem:[#allocation11 + $0x518] sm:$0xff]
    %v6874 = vld [vmem:[#allocation11 + $0x520] sm:$0xff]
    %v6875 = vld [vmem:[#allocation11 + $0x528] sm:$0xff]
    %v6876 = vld [vmem:[#allocation11 + $0x530] sm:$0xff]
    %v6877 = vld [vmem:[#allocation11 + $0x538] sm:$0xff]
    %v6878 = vld [vmem:[#allocation11 + $0x540] sm:$0xff]
    %v6879 = vld [vmem:[#allocation11 + $0x548] sm:$0xff]
    %v6880 = vld [vmem:[#allocation11 + $0x550] sm:$0xff]
    %v6881 = vld [vmem:[#allocation11 + $0x558] sm:$0xff]
    %v6882 = vld [vmem:[#allocation11 + $0x560] sm:$0xff]
    %v6883 = vld [vmem:[#allocation11 + $0x568] sm:$0xff]
    %v6884 = vld [vmem:[#allocation11 + $0x570] sm:$0xff]
    %v6885 = vld [vmem:[#allocation11 + $0x578] sm:$0xff]
    %v6886 = vld [vmem:[#allocation11 + $0x580] sm:$0xff]
    %v6887 = vld [vmem:[#allocation11 + $0x588] sm:$0xff]
    %v6888 = vld [vmem:[#allocation11 + $0x590] sm:$0xff]
    %v6889 = vld [vmem:[#allocation11 + $0x598] sm:$0xff]
    %v6890 = vld [vmem:[#allocation11 + $0x5a0] sm:$0xff]
    %v6891 = vld [vmem:[#allocation11 + $0x5a8] sm:$0xff]
    %v6892 = vld [vmem:[#allocation11 + $0x5b0] sm:$0xff]
    %v6893 = vld [vmem:[#allocation11 + $0x5b8] sm:$0xff]
    %v6894 = vld [vmem:[#allocation11 + $0x5c0] sm:$0xff]
    %v6895 = vld [vmem:[#allocation11 + $0x5c8] sm:$0xff]
    %v6896 = vld [vmem:[#allocation11 + $0x5d0] sm:$0xff]
    %v6897 = vld [vmem:[#allocation11 + $0x5d8] sm:$0xff]
    %v6898 = vld [vmem:[#allocation11 + $0x5e0] sm:$0xff]
    %v6899 = vld [vmem:[#allocation11 + $0x5e8] sm:$0xff]
    %v6900 = vld [vmem:[#allocation11 + $0x5f0] sm:$0xff]
    %v6901 = vld [vmem:[#allocation11 + $0x5f8] sm:$0xff]
    %v6902 = vld [vmem:[#allocation11 + $0x600] sm:$0xff]
    %v6903 = vld [vmem:[#allocation11 + $0x608] sm:$0xff]
    %v6904 = vld [vmem:[#allocation11 + $0x610] sm:$0xff]
    %v6905 = vld [vmem:[#allocation11 + $0x618] sm:$0xff]
    %v6906 = vld [vmem:[#allocation11 + $0x620] sm:$0xff]
    %v6907 = vld [vmem:[#allocation11 + $0x628] sm:$0xff]
    %v6908 = vld [vmem:[#allocation11 + $0x630] sm:$0xff]
    %v6909 = vld [vmem:[#allocation11 + $0x638] sm:$0xff]
    %v6910 = vld [vmem:[#allocation11 + $0x640] sm:$0xff]
    %v6911 = vld [vmem:[#allocation11 + $0x648] sm:$0xff]
    %v6912 = vld [vmem:[#allocation11 + $0x650] sm:$0xff]
    %v6913 = vld [vmem:[#allocation11 + $0x658] sm:$0xff]
    %v6914 = vld [vmem:[#allocation11 + $0x660] sm:$0xff]
    %v6915 = vld [vmem:[#allocation11 + $0x668] sm:$0xff]
    %v6916 = vld [vmem:[#allocation11 + $0x670] sm:$0xff]
    %v6917 = vld [vmem:[#allocation11 + $0x678] sm:$0xff]
    %v6918 = vld [vmem:[#allocation11 + $0x680] sm:$0xff]
    %v6919 = vld [vmem:[#allocation11 + $0x688] sm:$0xff]
    %v6920 = vld [vmem:[#allocation11 + $0x690] sm:$0xff]
    %v6921 = vld [vmem:[#allocation11 + $0x698] sm:$0xff]
    %v6922 = vld [vmem:[#allocation11 + $0x6a0] sm:$0xff]
    %v6923 = vld [vmem:[#allocation11 + $0x6a8] sm:$0xff]
    %v6924 = vld [vmem:[#allocation11 + $0x6b0] sm:$0xff]
    %v6925 = vld [vmem:[#allocation11 + $0x6b8] sm:$0xff]
    %v6926 = vld [vmem:[#allocation11 + $0x6c0] sm:$0xff]
    %v6927 = vld [vmem:[#allocation11 + $0x6c8] sm:$0xff]
    %v6928 = vld [vmem:[#allocation11 + $0x6d0] sm:$0xff]
    %v6929 = vld [vmem:[#allocation11 + $0x6d8] sm:$0xff]
    %v6930 = vld [vmem:[#allocation11 + $0x6e0] sm:$0xff]
    %v6931 = vld [vmem:[#allocation11 + $0x6e8] sm:$0xff]
    %v6932 = vld [vmem:[#allocation11 + $0x6f0] sm:$0xff]
    %v6933 = vld [vmem:[#allocation11 + $0x6f8] sm:$0xff]
    %v6934 = vld [vmem:[#allocation11 + $0x700] sm:$0xff]
    %v6935 = vld [vmem:[#allocation11 + $0x708] sm:$0xff]
    %v6936 = vld [vmem:[#allocation11 + $0x710] sm:$0xff]
    %v6937 = vld [vmem:[#allocation11 + $0x718] sm:$0xff]
    %v6938 = vld [vmem:[#allocation11 + $0x720] sm:$0xff]
    %v6939 = vld [vmem:[#allocation11 + $0x728] sm:$0xff]
    %v6940 = vld [vmem:[#allocation11 + $0x730] sm:$0xff]
    %v6941 = vld [vmem:[#allocation11 + $0x738] sm:$0xff]
    %v6942 = vld [vmem:[#allocation11 + $0x740] sm:$0xff]
    %v6943 = vld [vmem:[#allocation11 + $0x748] sm:$0xff]
    %v6944 = vld [vmem:[#allocation11 + $0x750] sm:$0xff]
    %v6945 = vld [vmem:[#allocation11 + $0x758] sm:$0xff]
    %v6946 = vld [vmem:[#allocation11 + $0x760] sm:$0xff]
    %v6947 = vld [vmem:[#allocation11 + $0x768] sm:$0xff]
    %v6948 = vld [vmem:[#allocation11 + $0x770] sm:$0xff]
    %v6949 = vld [vmem:[#allocation11 + $0x778] sm:$0xff]
    %v6950 = vld [vmem:[#allocation11 + $0x780] sm:$0xff]
    %v6951 = vld [vmem:[#allocation11 + $0x788] sm:$0xff]
    %v6952 = vld [vmem:[#allocation11 + $0x790] sm:$0xff]
    %v6953 = vld [vmem:[#allocation11 + $0x798] sm:$0xff]
    %v6954 = vld [vmem:[#allocation11 + $0x7a0] sm:$0xff]
    %v6955 = vld [vmem:[#allocation11 + $0x7a8] sm:$0xff]
    %v6956 = vld [vmem:[#allocation11 + $0x7b0] sm:$0xff]
    %v6957 = vld [vmem:[#allocation11 + $0x7b8] sm:$0xff]
    %v6958 = vld [vmem:[#allocation11 + $0x7c0] sm:$0xff]
    %v6959 = vld [vmem:[#allocation11 + $0x7c8] sm:$0xff]
    %v6960 = vld [vmem:[#allocation11 + $0x7d0] sm:$0xff]
    %v6961 = vld [vmem:[#allocation11 + $0x7d8] sm:$0xff]
    %v6962 = vld [vmem:[#allocation11 + $0x7e0] sm:$0xff]
    %v6963 = vld [vmem:[#allocation11 + $0x7e8] sm:$0xff]
    %v6964 = vld [vmem:[#allocation11 + $0x7f0] sm:$0xff]
    %v6965 = vld [vmem:[#allocation11 + $0x7f8] sm:$0xff]
    %v6966 = vld [vmem:[#allocation11 + $0x800] sm:$0xff]
    %v6967 = vld [vmem:[#allocation11 + $0x808] sm:$0xff]
    %v6968 = vld [vmem:[#allocation11 + $0x810] sm:$0xff]
    %v6969 = vld [vmem:[#allocation11 + $0x818] sm:$0xff]
    %v6970 = vld [vmem:[#allocation11 + $0x820] sm:$0xff]
    %v6971 = vld [vmem:[#allocation11 + $0x828] sm:$0xff]
    %v6972 = vld [vmem:[#allocation11 + $0x830] sm:$0xff]
    %v6973 = vld [vmem:[#allocation11 + $0x838] sm:$0xff]
    %v6974 = vld [vmem:[#allocation11 + $0x840] sm:$0xff]
    %v6975 = vld [vmem:[#allocation11 + $0x848] sm:$0xff]
    %v6976 = vld [vmem:[#allocation11 + $0x850] sm:$0xff]
    %v6977 = vld [vmem:[#allocation11 + $0x858] sm:$0xff]
    %v6978 = vld [vmem:[#allocation11 + $0x860] sm:$0xff]
    %v6979 = vld [vmem:[#allocation11 + $0x868] sm:$0xff]
    %v6980 = vld [vmem:[#allocation11 + $0x870] sm:$0xff]
    %v6981 = vld [vmem:[#allocation11 + $0x878] sm:$0xff]
    %v6982 = vld [vmem:[#allocation11 + $0x880] sm:$0xff]
    %v6983 = vld [vmem:[#allocation11 + $0x888] sm:$0xff]
    %v6984 = vld [vmem:[#allocation11 + $0x890] sm:$0xff]
    %v6985 = vld [vmem:[#allocation11 + $0x898] sm:$0xff]
    %v6986 = vld [vmem:[#allocation11 + $0x8a0] sm:$0xff]
    %v6987 = vld [vmem:[#allocation11 + $0x8a8] sm:$0xff]
    %v6988 = vld [vmem:[#allocation11 + $0x8b0] sm:$0xff]
    %v6989 = vld [vmem:[#allocation11 + $0x8b8] sm:$0xff]
    %v6990 = vld [vmem:[#allocation11 + $0x8c0] sm:$0xff]
    %v6991 = vld [vmem:[#allocation11 + $0x8c8] sm:$0xff]
    %v6992 = vld [vmem:[#allocation11 + $0x8d0] sm:$0xff]
    %v6993 = vld [vmem:[#allocation11 + $0x8d8] sm:$0xff]
    %v6994 = vld [vmem:[#allocation11 + $0x8e0] sm:$0xff]
    %v6995 = vld [vmem:[#allocation11 + $0x8e8] sm:$0xff]
    %v6996 = vld [vmem:[#allocation11 + $0x8f0] sm:$0xff]
    %v6997 = vld [vmem:[#allocation11 + $0x8f8] sm:$0xff]
    %v6998 = vld [vmem:[#allocation11 + $0x900] sm:$0xff]
    %v6999 = vld [vmem:[#allocation11 + $0x908] sm:$0xff]
    %v7000 = vld [vmem:[#allocation11 + $0x910] sm:$0xff]
    %v7001 = vld [vmem:[#allocation11 + $0x918] sm:$0xff]
    %v7002 = vld [vmem:[#allocation11 + $0x920] sm:$0xff]
    %v7003 = vld [vmem:[#allocation11 + $0x928] sm:$0xff]
    %v7004 = vld [vmem:[#allocation11 + $0x930] sm:$0xff]
    %v7005 = vld [vmem:[#allocation11 + $0x938] sm:$0xff]
    %v7006 = vld [vmem:[#allocation11 + $0x940] sm:$0xff]
    %v7007 = vld [vmem:[#allocation11 + $0x948] sm:$0xff]
    %v7008 = vld [vmem:[#allocation11 + $0x950] sm:$0xff]
    %v7009 = vld [vmem:[#allocation11 + $0x958] sm:$0xff]
    %v7010 = vld [vmem:[#allocation11 + $0x960] sm:$0xff]
    %v7011 = vld [vmem:[#allocation11 + $0x968] sm:$0xff]
    %v7012 = vld [vmem:[#allocation11 + $0x970] sm:$0xff]
    %v7013 = vld [vmem:[#allocation11 + $0x978] sm:$0xff]
    %v7014 = vld [vmem:[#allocation11 + $0x980] sm:$0xff]
    %v7015 = vld [vmem:[#allocation11 + $0x988] sm:$0xff]
    %v7016 = vld [vmem:[#allocation11 + $0x990] sm:$0xff]
    %v7017 = vld [vmem:[#allocation11 + $0x998] sm:$0xff]
    %v7018 = vld [vmem:[#allocation11 + $0x9a0] sm:$0xff]
    %v7019 = vld [vmem:[#allocation11 + $0x9a8] sm:$0xff]
    %v7020 = vld [vmem:[#allocation11 + $0x9b0] sm:$0xff]
    %v7021 = vld [vmem:[#allocation11 + $0x9b8] sm:$0xff]
    %v7022 = vld [vmem:[#allocation11 + $0x9c0] sm:$0xff]
    %v7023 = vld [vmem:[#allocation11 + $0x9c8] sm:$0xff]
    %v7024 = vld [vmem:[#allocation11 + $0x9d0] sm:$0xff]
    %v7025 = vld [vmem:[#allocation11 + $0x9d8] sm:$0xff]
    %v7026 = vld [vmem:[#allocation11 + $0x9e0] sm:$0xff]
    %v7027 = vld [vmem:[#allocation11 + $0x9e8] sm:$0xff]
    %v7028 = vld [vmem:[#allocation11 + $0x9f0] sm:$0xff]
    %v7029 = vld [vmem:[#allocation11 + $0x9f8] sm:$0xff]
    %v7030 = vld [vmem:[#allocation11 + $0xa00] sm:$0xff]
    %v7031 = vld [vmem:[#allocation11 + $0xa08] sm:$0xff]
    %v7032 = vld [vmem:[#allocation11 + $0xa10] sm:$0xff]
    %v7033 = vld [vmem:[#allocation11 + $0xa18] sm:$0xff]
    %v7034 = vld [vmem:[#allocation11 + $0xa20] sm:$0xff]
    %v7035 = vld [vmem:[#allocation11 + $0xa28] sm:$0xff]
    %v7036 = vld [vmem:[#allocation11 + $0xa30] sm:$0xff]
    %v7037 = vld [vmem:[#allocation11 + $0xa38] sm:$0xff]
    %v7038 = vld [vmem:[#allocation11 + $0xa40] sm:$0xff]
    %v7039 = vld [vmem:[#allocation11 + $0xa48] sm:$0xff]
    %v7040 = vld [vmem:[#allocation11 + $0xa50] sm:$0xff]
    %v7041 = vld [vmem:[#allocation11 + $0xa58] sm:$0xff]
    %v7042 = vld [vmem:[#allocation11 + $0xa60] sm:$0xff]
    %v7043 = vld [vmem:[#allocation11 + $0xa68] sm:$0xff]
    %v7044 = vld [vmem:[#allocation11 + $0xa70] sm:$0xff]
    %v7045 = vld [vmem:[#allocation11 + $0xa78] sm:$0xff]
    %v7046 = vld [vmem:[#allocation11 + $0xa80] sm:$0xff]
    %v7047 = vld [vmem:[#allocation11 + $0xa88] sm:$0xff]
    %v7048 = vld [vmem:[#allocation11 + $0xa90] sm:$0xff]
    %v7049 = vld [vmem:[#allocation11 + $0xa98] sm:$0xff]
    %v7050 = vld [vmem:[#allocation11 + $0xaa0] sm:$0xff]
    %v7051 = vld [vmem:[#allocation11 + $0xaa8] sm:$0xff]
    %v7052 = vld [vmem:[#allocation11 + $0xab0] sm:$0xff]
    %v7053 = vld [vmem:[#allocation11 + $0xab8] sm:$0xff]
    %v7054 = vld [vmem:[#allocation11 + $0xac0] sm:$0xff]
    %v7055 = vld [vmem:[#allocation11 + $0xac8] sm:$0xff]
    %v7056 = vld [vmem:[#allocation11 + $0xad0] sm:$0xff]
    %v7057 = vld [vmem:[#allocation11 + $0xad8] sm:$0xff]
    %v7058 = vld [vmem:[#allocation11 + $0xae0] sm:$0xff]
    %v7059 = vld [vmem:[#allocation11 + $0xae8] sm:$0xff]
    %v7060 = vld [vmem:[#allocation11 + $0xaf0] sm:$0xff]
    %v7061 = vld [vmem:[#allocation11 + $0xaf8] sm:$0xff]
    %v7062 = vld [vmem:[#allocation11 + $0xb00] sm:$0xff]
    %v7063 = vld [vmem:[#allocation11 + $0xb08] sm:$0xff]
    %v7064 = vld [vmem:[#allocation11 + $0xb10] sm:$0xff]
    %v7065 = vld [vmem:[#allocation11 + $0xb18] sm:$0xff]
    %v7066 = vld [vmem:[#allocation11 + $0xb20] sm:$0xff]
    %v7067 = vld [vmem:[#allocation11 + $0xb28] sm:$0xff]
    %v7068 = vld [vmem:[#allocation11 + $0xb30] sm:$0xff]
    %v7069 = vld [vmem:[#allocation11 + $0xb38] sm:$0xff]
    %v7070 = vld [vmem:[#allocation11 + $0xb40] sm:$0xff]
    %v7071 = vld [vmem:[#allocation11 + $0xb48] sm:$0xff]
    %v7072 = vld [vmem:[#allocation11 + $0xb50] sm:$0xff]
    %v7073 = vld [vmem:[#allocation11 + $0xb58] sm:$0xff]
    %v7074 = vld [vmem:[#allocation11 + $0xb60] sm:$0xff]
    %v7075 = vld [vmem:[#allocation11 + $0xb68] sm:$0xff]
    %v7076 = vld [vmem:[#allocation11 + $0xb70] sm:$0xff]
    %v7077 = vld [vmem:[#allocation11 + $0xb78] sm:$0xff]
    %v7078 = vld [vmem:[#allocation11 + $0xb80] sm:$0xff]
    %v7079 = vld [vmem:[#allocation11 + $0xb88] sm:$0xff]
    %v7080 = vld [vmem:[#allocation11 + $0xb90] sm:$0xff]
    %v7081 = vld [vmem:[#allocation11 + $0xb98] sm:$0xff]
    %v7082 = vld [vmem:[#allocation11 + $0xba0] sm:$0xff]
    %v7083 = vld [vmem:[#allocation11 + $0xba8] sm:$0xff]
    %v7084 = vld [vmem:[#allocation11 + $0xbb0] sm:$0xff]
    %v7085 = vld [vmem:[#allocation11 + $0xbb8] sm:$0xff]
    %v7086 = vld [vmem:[#allocation11 + $0xbc0] sm:$0xff]
    %v7087 = vld [vmem:[#allocation11 + $0xbc8] sm:$0xff]
    %v7088 = vld [vmem:[#allocation11 + $0xbd0] sm:$0xff]
    %v7089 = vld [vmem:[#allocation11 + $0xbd8] sm:$0xff]
    %v7090 = vld [vmem:[#allocation11 + $0xbe0] sm:$0xff]
    %v7091 = vld [vmem:[#allocation11 + $0xbe8] sm:$0xff]
    %v7092 = vld [vmem:[#allocation11 + $0xbf0] sm:$0xff]
    %v7093 = vld [vmem:[#allocation11 + $0xbf8] sm:$0xff]
    %v7094 = vld [vmem:[#allocation11 + $0xc00] sm:$0xff]
    %v7095 = vld [vmem:[#allocation11 + $0xc08] sm:$0xff]
    %v7096 = vld [vmem:[#allocation11 + $0xc10] sm:$0xff]
    %v7097 = vld [vmem:[#allocation11 + $0xc18] sm:$0xff]
    %v7098 = vld [vmem:[#allocation11 + $0xc20] sm:$0xff]
    %v7099 = vld [vmem:[#allocation11 + $0xc28] sm:$0xff]
    %v7100 = vld [vmem:[#allocation11 + $0xc30] sm:$0xff]
    %v7101 = vld [vmem:[#allocation11 + $0xc38] sm:$0xff]
    %v7102 = vld [vmem:[#allocation11 + $0xc40] sm:$0xff]
    %v7103 = vld [vmem:[#allocation11 + $0xc48] sm:$0xff]
    %v7104 = vld [vmem:[#allocation11 + $0xc50] sm:$0xff]
    %v7105 = vld [vmem:[#allocation11 + $0xc58] sm:$0xff]
    %v7106 = vld [vmem:[#allocation11 + $0xc60] sm:$0xff]
    %v7107 = vld [vmem:[#allocation11 + $0xc68] sm:$0xff]
    %v7108 = vld [vmem:[#allocation11 + $0xc70] sm:$0xff]
    %v7109 = vld [vmem:[#allocation11 + $0xc78] sm:$0xff]
    %v7110 = vld [vmem:[#allocation11 + $0xc80] sm:$0xff]
    %v7111 = vld [vmem:[#allocation11 + $0xc88] sm:$0xff]
    %v7112 = vld [vmem:[#allocation11 + $0xc90] sm:$0xff]
    %v7113 = vld [vmem:[#allocation11 + $0xc98] sm:$0xff]
    %v7114 = vld [vmem:[#allocation11 + $0xca0] sm:$0xff]
    %v7115 = vld [vmem:[#allocation11 + $0xca8] sm:$0xff]
    %v7116 = vld [vmem:[#allocation11 + $0xcb0] sm:$0xff]
    %v7117 = vld [vmem:[#allocation11 + $0xcb8] sm:$0xff]
    %v7118 = vld [vmem:[#allocation11 + $0xcc0] sm:$0xff]
    %v7119 = vld [vmem:[#allocation11 + $0xcc8] sm:$0xff]
    %v7120 = vld [vmem:[#allocation11 + $0xcd0] sm:$0xff]
    %v7121 = vld [vmem:[#allocation11 + $0xcd8] sm:$0xff]
    %v7122 = vld [vmem:[#allocation11 + $0xce0] sm:$0xff]
    %v7123 = vld [vmem:[#allocation11 + $0xce8] sm:$0xff]
    %v7124 = vld [vmem:[#allocation11 + $0xcf0] sm:$0xff]
    %v7125 = vld [vmem:[#allocation11 + $0xcf8] sm:$0xff]
    %v7126 = vld [vmem:[#allocation11 + $0xd00] sm:$0xff]
    %v7127 = vld [vmem:[#allocation11 + $0xd08] sm:$0xff]
    %v7128 = vld [vmem:[#allocation11 + $0xd10] sm:$0xff]
    %v7129 = vld [vmem:[#allocation11 + $0xd18] sm:$0xff]
    %v7130 = vld [vmem:[#allocation11 + $0xd20] sm:$0xff]
    %v7131 = vld [vmem:[#allocation11 + $0xd28] sm:$0xff]
    %v7132 = vld [vmem:[#allocation11 + $0xd30] sm:$0xff]
    %v7133 = vld [vmem:[#allocation11 + $0xd38] sm:$0xff]
    %v7134 = vld [vmem:[#allocation11 + $0xd40] sm:$0xff]
    %v7135 = vld [vmem:[#allocation11 + $0xd48] sm:$0xff]
    %v7136 = vld [vmem:[#allocation11 + $0xd50] sm:$0xff]
    %v7137 = vld [vmem:[#allocation11 + $0xd58] sm:$0xff]
    %v7138 = vld [vmem:[#allocation11 + $0xd60] sm:$0xff]
    %v7139 = vld [vmem:[#allocation11 + $0xd68] sm:$0xff]
    %v7140 = vld [vmem:[#allocation11 + $0xd70] sm:$0xff]
    %v7141 = vld [vmem:[#allocation11 + $0xd78] sm:$0xff]
    %v7142 = vld [vmem:[#allocation11 + $0xd80] sm:$0xff]
    %v7143 = vld [vmem:[#allocation11 + $0xd88] sm:$0xff]
    %v7144 = vld [vmem:[#allocation11 + $0xd90] sm:$0xff]
    %v7145 = vld [vmem:[#allocation11 + $0xd98] sm:$0xff]
    %v7146 = vld [vmem:[#allocation11 + $0xda0] sm:$0xff]
    %v7147 = vld [vmem:[#allocation11 + $0xda8] sm:$0xff]
    %v7148 = vld [vmem:[#allocation11 + $0xdb0] sm:$0xff]
    %v7149 = vld [vmem:[#allocation11 + $0xdb8] sm:$0xff]
    %v7150 = vld [vmem:[#allocation11 + $0xdc0] sm:$0xff]
    %v7151 = vld [vmem:[#allocation11 + $0xdc8] sm:$0xff]
    %v7152 = vld [vmem:[#allocation11 + $0xdd0] sm:$0xff]
    %v7153 = vld [vmem:[#allocation11 + $0xdd8] sm:$0xff]
    %v7154 = vld [vmem:[#allocation11 + $0xde0] sm:$0xff]
    %v7155 = vld [vmem:[#allocation11 + $0xde8] sm:$0xff]
    %v7156 = vld [vmem:[#allocation11 + $0xdf0] sm:$0xff]
    %v7157 = vld [vmem:[#allocation11 + $0xdf8] sm:$0xff]
    %v7158 = vld [vmem:[#allocation11 + $0xe00] sm:$0xff]
    %v7159 = vld [vmem:[#allocation11 + $0xe08] sm:$0xff]
    %v7160 = vld [vmem:[#allocation11 + $0xe10] sm:$0xff]
    %v7161 = vld [vmem:[#allocation11 + $0xe18] sm:$0xff]
    %v7162 = vld [vmem:[#allocation11 + $0xe20] sm:$0xff]
    %v7163 = vld [vmem:[#allocation11 + $0xe28] sm:$0xff]
    %v7164 = vld [vmem:[#allocation11 + $0xe30] sm:$0xff]
    %v7165 = vld [vmem:[#allocation11 + $0xe38] sm:$0xff]
    %v7166 = vld [vmem:[#allocation11 + $0xe40] sm:$0xff]
    %v7167 = vld [vmem:[#allocation11 + $0xe48] sm:$0xff]
    %v7168 = vld [vmem:[#allocation11 + $0xe50] sm:$0xff]
    %v7169 = vld [vmem:[#allocation11 + $0xe58] sm:$0xff]
    %v7170 = vld [vmem:[#allocation11 + $0xe60] sm:$0xff]
    %v7171 = vld [vmem:[#allocation11 + $0xe68] sm:$0xff]
    %v7172 = vld [vmem:[#allocation11 + $0xe70] sm:$0xff]
    %v7173 = vld [vmem:[#allocation11 + $0xe78] sm:$0xff]
    %v7174 = vld [vmem:[#allocation11 + $0xe80] sm:$0xff]
    %v7175 = vld [vmem:[#allocation11 + $0xe88] sm:$0xff]
    %v7176 = vld [vmem:[#allocation11 + $0xe90] sm:$0xff]
    %v7177 = vld [vmem:[#allocation11 + $0xe98] sm:$0xff]
    %v7178 = vld [vmem:[#allocation11 + $0xea0] sm:$0xff]
    %v7179 = vld [vmem:[#allocation11 + $0xea8] sm:$0xff]
    %v7180 = vld [vmem:[#allocation11 + $0xeb0] sm:$0xff]
    %v7181 = vld [vmem:[#allocation11 + $0xeb8] sm:$0xff]
    %v7182 = vld [vmem:[#allocation11 + $0xec0] sm:$0xff]
    %v7183 = vld [vmem:[#allocation11 + $0xec8] sm:$0xff]
    %v7184 = vld [vmem:[#allocation11 + $0xed0] sm:$0xff]
    %v7185 = vld [vmem:[#allocation11 + $0xed8] sm:$0xff]
    %v7186 = vld [vmem:[#allocation11 + $0xee0] sm:$0xff]
    %v7187 = vld [vmem:[#allocation11 + $0xee8] sm:$0xff]
    %v7188 = vld [vmem:[#allocation11 + $0xef0] sm:$0xff]
    %v7189 = vld [vmem:[#allocation11 + $0xef8] sm:$0xff]
    %v7190 = vld [vmem:[#allocation11 + $0xf00] sm:$0xff]
    %v7191 = vld [vmem:[#allocation11 + $0xf08] sm:$0xff]
    %v7192 = vld [vmem:[#allocation11 + $0xf10] sm:$0xff]
    %v7193 = vld [vmem:[#allocation11 + $0xf18] sm:$0xff]
    %v7194 = vld [vmem:[#allocation11 + $0xf20] sm:$0xff]
    %v7195 = vld [vmem:[#allocation11 + $0xf28] sm:$0xff]
    %v7196 = vld [vmem:[#allocation11 + $0xf30] sm:$0xff]
    %v7197 = vld [vmem:[#allocation11 + $0xf38] sm:$0xff]
    %v7198 = vld [vmem:[#allocation11 + $0xf40] sm:$0xff]
    %v7199 = vld [vmem:[#allocation11 + $0xf48] sm:$0xff]
    %v7200 = vld [vmem:[#allocation11 + $0xf50] sm:$0xff]
    %v7201 = vld [vmem:[#allocation11 + $0xf58] sm:$0xff]
    %v7202 = vld [vmem:[#allocation11 + $0xf60] sm:$0xff]
    %v7203 = vld [vmem:[#allocation11 + $0xf68] sm:$0xff]
    %v7204 = vld [vmem:[#allocation11 + $0xf70] sm:$0xff]
    %v7205 = vld [vmem:[#allocation11 + $0xf78] sm:$0xff]
    %v7206 = vld [vmem:[#allocation11 + $0xf80] sm:$0xff]
    %v7207 = vld [vmem:[#allocation11 + $0xf88] sm:$0xff]
    %v7208 = vld [vmem:[#allocation11 + $0xf90] sm:$0xff]
    %v7209 = vld [vmem:[#allocation11 + $0xf98] sm:$0xff]
    %v7210 = vld [vmem:[#allocation11 + $0xfa0] sm:$0xff]
    %v7211 = vld [vmem:[#allocation11 + $0xfa8] sm:$0xff]
    %v7212 = vld [vmem:[#allocation11 + $0xfb0] sm:$0xff]
    %v7213 = vld [vmem:[#allocation11 + $0xfb8] sm:$0xff]
    %v7214 = vld [vmem:[#allocation11 + $0xfc0] sm:$0xff]
    %v7215 = vld [vmem:[#allocation11 + $0xfc8] sm:$0xff]
    %v7216 = vld [vmem:[#allocation11 + $0xfd0] sm:$0xff]
    %v7217 = vld [vmem:[#allocation11 + $0xfd8] sm:$0xff]
    %v7218 = vld [vmem:[#allocation11 + $0xfe0] sm:$0xff]
    %v7219 = vld [vmem:[#allocation11 + $0xfe8] sm:$0xff]
    %v7220 = vld [vmem:[#allocation11 + $0xff0] sm:$0xff]
    %v7221 = vld [vmem:[#allocation11 + $0xff8] sm:$0xff]
    %v7222 = vld [vmem:[#allocation11 + $0x1000] sm:$0xff]
    %v7223 = vld [vmem:[#allocation11 + $0x1008] sm:$0xff]
    %v7224 = vld [vmem:[#allocation11 + $0x1010] sm:$0xff]
    %v7225 = vld [vmem:[#allocation11 + $0x1018] sm:$0xff]
    %v7226 = vld [vmem:[#allocation11 + $0x1020] sm:$0xff]
    %v7227 = vld [vmem:[#allocation11 + $0x1028] sm:$0xff]
    %v7228 = vld [vmem:[#allocation11 + $0x1030] sm:$0xff]
    %v7229 = vld [vmem:[#allocation11 + $0x1038] sm:$0xff]
    %v7230 = vld [vmem:[#allocation11 + $0x1040] sm:$0xff]
    %v7231 = vld [vmem:[#allocation11 + $0x1048] sm:$0xff]
    %v7232 = vld [vmem:[#allocation11 + $0x1050] sm:$0xff]
    %v7233 = vld [vmem:[#allocation11 + $0x1058] sm:$0xff]
    %v7234 = vld [vmem:[#allocation11 + $0x1060] sm:$0xff]
    %v7235 = vld [vmem:[#allocation11 + $0x1068] sm:$0xff]
    %v7236 = vld [vmem:[#allocation11 + $0x1070] sm:$0xff]
    %v7237 = vld [vmem:[#allocation11 + $0x1078] sm:$0xff]
    %v7238 = vld [vmem:[#allocation11 + $0x1080] sm:$0xff]
    %v7239 = vld [vmem:[#allocation11 + $0x1088] sm:$0xff]
    %v7240 = vld [vmem:[#allocation11 + $0x1090] sm:$0xff]
    %v7241 = vld [vmem:[#allocation11 + $0x1098] sm:$0xff]
    %v7242 = vld [vmem:[#allocation11 + $0x10a0] sm:$0xff]
    %v7243 = vld [vmem:[#allocation11 + $0x10a8] sm:$0xff]
    %v7244 = vld [vmem:[#allocation11 + $0x10b0] sm:$0xff]
    %v7245 = vld [vmem:[#allocation11 + $0x10b8] sm:$0xff]
    %v7246 = vld [vmem:[#allocation11 + $0x10c0] sm:$0xff]
    %v7247 = vld [vmem:[#allocation11 + $0x10c8] sm:$0xff]
    %v7248 = vld [vmem:[#allocation11 + $0x10d0] sm:$0xff]
    %v7249 = vld [vmem:[#allocation11 + $0x10d8] sm:$0xff]
    %v7250 = vld [vmem:[#allocation11 + $0x10e0] sm:$0xff]
    %v7251 = vld [vmem:[#allocation11 + $0x10e8] sm:$0xff]
    %v7252 = vld [vmem:[#allocation11 + $0x10f0] sm:$0xff]
    %v7253 = vld [vmem:[#allocation11 + $0x10f8] sm:$0xff]
    %v7254 = vld [vmem:[#allocation11 + $0x1100] sm:$0xff]
    %v7255 = vld [vmem:[#allocation11 + $0x1108] sm:$0xff]
    %v7256 = vld [vmem:[#allocation11 + $0x1110] sm:$0xff]
    %v7257 = vld [vmem:[#allocation11 + $0x1118] sm:$0xff]
    %v7258 = vld [vmem:[#allocation11 + $0x1120] sm:$0xff]
    %v7259 = vld [vmem:[#allocation11 + $0x1128] sm:$0xff]
    %v7260 = vld [vmem:[#allocation11 + $0x1130] sm:$0xff]
    %v7261 = vld [vmem:[#allocation11 + $0x1138] sm:$0xff]
    %v7262 = vld [vmem:[#allocation11 + $0x1140] sm:$0xff]
    %v7263 = vld [vmem:[#allocation11 + $0x1148] sm:$0xff]
    %v7264 = vld [vmem:[#allocation11 + $0x1150] sm:$0xff]
    %v7265 = vld [vmem:[#allocation11 + $0x1158] sm:$0xff]
    %v7266 = vld [vmem:[#allocation11 + $0x1160] sm:$0xff]
    %v7267 = vld [vmem:[#allocation11 + $0x1168] sm:$0xff]
    %v7268 = vld [vmem:[#allocation11 + $0x1170] sm:$0xff]
    %v7269 = vld [vmem:[#allocation11 + $0x1178] sm:$0xff]
    %v7270 = vld [vmem:[#allocation11 + $0x1180] sm:$0xff]
    %v7271 = vld [vmem:[#allocation11 + $0x1188] sm:$0xff]
    %v7272 = vld [vmem:[#allocation11 + $0x1190] sm:$0xff]
    %v7273 = vld [vmem:[#allocation11 + $0x1198] sm:$0xff]
    %v7274 = vld [vmem:[#allocation11 + $0x11a0] sm:$0xff]
    %v7275 = vld [vmem:[#allocation11 + $0x11a8] sm:$0xff]
    %v7276 = vld [vmem:[#allocation11 + $0x11b0] sm:$0xff]
    %v7277 = vld [vmem:[#allocation11 + $0x11b8] sm:$0xff]
    %v7278 = vld [vmem:[#allocation11 + $0x11c0] sm:$0xff]
    %v7279 = vld [vmem:[#allocation11 + $0x11c8] sm:$0xff]
    %v7280 = vld [vmem:[#allocation11 + $0x11d0] sm:$0xff]
    %v7281 = vld [vmem:[#allocation11 + $0x11d8] sm:$0xff]
    %v7282 = vld [vmem:[#allocation11 + $0x11e0] sm:$0xff]
    %v7283 = vld [vmem:[#allocation11 + $0x11e8] sm:$0xff]
    %v7284 = vld [vmem:[#allocation11 + $0x11f0] sm:$0xff]
    %v7285 = vld [vmem:[#allocation11 + $0x11f8] sm:$0xff]
    %v7286 = vld [vmem:[#allocation11 + $0x1200] sm:$0xff]
    %v7287 = vld [vmem:[#allocation11 + $0x1208] sm:$0xff]
    %v7288 = vld [vmem:[#allocation11 + $0x1210] sm:$0xff]
    %v7289 = vld [vmem:[#allocation11 + $0x1218] sm:$0xff]
    %v7290 = vld [vmem:[#allocation11 + $0x1220] sm:$0xff]
    %v7291 = vld [vmem:[#allocation11 + $0x1228] sm:$0xff]
    %v7292 = vld [vmem:[#allocation11 + $0x1230] sm:$0xff]
    %v7293 = vld [vmem:[#allocation11 + $0x1238] sm:$0xff]
    %v7294 = vld [vmem:[#allocation11 + $0x1240] sm:$0xff]
    %v7295 = vld [vmem:[#allocation11 + $0x1248] sm:$0xff]
    %v7296 = vld [vmem:[#allocation11 + $0x1250] sm:$0xff]
    %v7297 = vld [vmem:[#allocation11 + $0x1258] sm:$0xff]
    %v7298 = vld [vmem:[#allocation11 + $0x1260] sm:$0xff]
    %v7299 = vld [vmem:[#allocation11 + $0x1268] sm:$0xff]
    %v7300 = vld [vmem:[#allocation11 + $0x1270] sm:$0xff]
    %v7301 = vld [vmem:[#allocation11 + $0x1278] sm:$0xff]
    %v7302 = vld [vmem:[#allocation11 + $0x1280] sm:$0xff]
    %v7303 = vld [vmem:[#allocation11 + $0x1288] sm:$0xff]
    %v7304 = vld [vmem:[#allocation11 + $0x1290] sm:$0xff]
    %v7305 = vld [vmem:[#allocation11 + $0x1298] sm:$0xff]
    %v7306 = vld [vmem:[#allocation11 + $0x12a0] sm:$0xff]
    %v7307 = vld [vmem:[#allocation11 + $0x12a8] sm:$0xff]
    %v7308 = vld [vmem:[#allocation11 + $0x12b0] sm:$0xff]
    %v7309 = vld [vmem:[#allocation11 + $0x12b8] sm:$0xff]
    %v7310 = vld [vmem:[#allocation11 + $0x12c0] sm:$0xff]
    %v7311 = vld [vmem:[#allocation11 + $0x12c8] sm:$0xff]
    %v7312 = vld [vmem:[#allocation11 + $0x12d0] sm:$0xff]
    %v7313 = vld [vmem:[#allocation11 + $0x12d8] sm:$0xff]
    %v7314 = vld [vmem:[#allocation11 + $0x12e0] sm:$0xff]
    %v7315 = vld [vmem:[#allocation11 + $0x12e8] sm:$0xff]
    %v7316 = vld [vmem:[#allocation11 + $0x12f0] sm:$0xff]
    %v7317 = vld [vmem:[#allocation11 + $0x12f8] sm:$0xff]
    %v7318 = vld [vmem:[#allocation11 + $0x1300] sm:$0xff]
    %v7319 = vld [vmem:[#allocation11 + $0x1308] sm:$0xff]
    %v7320 = vld [vmem:[#allocation11 + $0x1310] sm:$0xff]
    %v7321 = vld [vmem:[#allocation11 + $0x1318] sm:$0xff]
    %v7322 = vld [vmem:[#allocation11 + $0x1320] sm:$0xff]
    %v7323 = vld [vmem:[#allocation11 + $0x1328] sm:$0xff]
    %v7324 = vld [vmem:[#allocation11 + $0x1330] sm:$0xff]
    %v7325 = vld [vmem:[#allocation11 + $0x1338] sm:$0xff]
    %v7326 = vld [vmem:[#allocation11 + $0x1340] sm:$0xff]
    %v7327 = vld [vmem:[#allocation11 + $0x1348] sm:$0xff]
    %v7328 = vld [vmem:[#allocation11 + $0x1350] sm:$0xff]
    %v7329 = vld [vmem:[#allocation11 + $0x1358] sm:$0xff]
    %v7330 = vld [vmem:[#allocation11 + $0x1360] sm:$0xff]
    %v7331 = vld [vmem:[#allocation11 + $0x1368] sm:$0xff]
    %v7332 = vld [vmem:[#allocation11 + $0x1370] sm:$0xff]
    %v7333 = vld [vmem:[#allocation11 + $0x1378] sm:$0xff]
    %v7334 = vld [vmem:[#allocation11 + $0x1380] sm:$0xff]
    %v7335 = vld [vmem:[#allocation11 + $0x1388] sm:$0xff]
    %v7336 = vld [vmem:[#allocation11 + $0x1390] sm:$0xff]
    %v7337 = vld [vmem:[#allocation11 + $0x1398] sm:$0xff]
    %v7338 = vld [vmem:[#allocation11 + $0x13a0] sm:$0xff]
    %v7339 = vld [vmem:[#allocation11 + $0x13a8] sm:$0xff]
    %v7340 = vld [vmem:[#allocation11 + $0x13b0] sm:$0xff]
    %v7341 = vld [vmem:[#allocation11 + $0x13b8] sm:$0xff]
    %v7342 = vld [vmem:[#allocation11 + $0x13c0] sm:$0xff]
    %v7343 = vld [vmem:[#allocation11 + $0x13c8] sm:$0xff]
    %v7344 = vld [vmem:[#allocation11 + $0x13d0] sm:$0xff]
    %v7345 = vld [vmem:[#allocation11 + $0x13d8] sm:$0xff]
    %v7346 = vld [vmem:[#allocation11 + $0x13e0] sm:$0xff]
    %v7347 = vld [vmem:[#allocation11 + $0x13e8] sm:$0xff]
    %v7348 = vld [vmem:[#allocation11 + $0x13f0] sm:$0xff]
    %v7349 = vld [vmem:[#allocation11 + $0x13f8] sm:$0xff]
    %v7350 = vld [vmem:[#allocation11 + $0x1400] sm:$0xff]
    %v7351 = vld [vmem:[#allocation11 + $0x1408] sm:$0xff]
    %v7352 = vld [vmem:[#allocation11 + $0x1410] sm:$0xff]
    %v7353 = vld [vmem:[#allocation11 + $0x1418] sm:$0xff]
    %v7354 = vld [vmem:[#allocation11 + $0x1420] sm:$0xff]
    %v7355 = vld [vmem:[#allocation11 + $0x1428] sm:$0xff]
    %v7356 = vld [vmem:[#allocation11 + $0x1430] sm:$0xff]
    %v7357 = vld [vmem:[#allocation11 + $0x1438] sm:$0xff]
    %v7358 = vld [vmem:[#allocation11 + $0x1440] sm:$0xff]
    %v7359 = vld [vmem:[#allocation11 + $0x1448] sm:$0xff]
    %v7360 = vld [vmem:[#allocation11 + $0x1450] sm:$0xff]
    %v7361 = vld [vmem:[#allocation11 + $0x1458] sm:$0xff]
    %v7362 = vld [vmem:[#allocation11 + $0x1460] sm:$0xff]
    %v7363 = vld [vmem:[#allocation11 + $0x1468] sm:$0xff]
    %v7364 = vld [vmem:[#allocation11 + $0x1470] sm:$0xff]
    %v7365 = vld [vmem:[#allocation11 + $0x1478] sm:$0xff]
    %v7366 = vld [vmem:[#allocation11 + $0x1480] sm:$0xff]
    %v7367 = vld [vmem:[#allocation11 + $0x1488] sm:$0xff]
    %v7368 = vld [vmem:[#allocation11 + $0x1490] sm:$0xff]
    %v7369 = vld [vmem:[#allocation11 + $0x1498] sm:$0xff]
    %v7370 = vld [vmem:[#allocation11 + $0x14a0] sm:$0xff]
    %v7371 = vld [vmem:[#allocation11 + $0x14a8] sm:$0xff]
    %v7372 = vld [vmem:[#allocation11 + $0x14b0] sm:$0xff]
    %v7373 = vld [vmem:[#allocation11 + $0x14b8] sm:$0xff]
    %v7374 = vld [vmem:[#allocation11 + $0x14c0] sm:$0xff]
    %v7375 = vld [vmem:[#allocation11 + $0x14c8] sm:$0xff]
    %v7376 = vld [vmem:[#allocation11 + $0x14d0] sm:$0xff]
    %v7377 = vld [vmem:[#allocation11 + $0x14d8] sm:$0xff]
    %v7378 = vld [vmem:[#allocation11 + $0x14e0] sm:$0xff]
    %v7379 = vld [vmem:[#allocation11 + $0x14e8] sm:$0xff]
    %v7380 = vld [vmem:[#allocation11 + $0x14f0] sm:$0xff]
    %v7381 = vld [vmem:[#allocation11 + $0x14f8] sm:$0xff]
    %v7382 = vld [vmem:[#allocation11 + $0x1500] sm:$0xff]
    %v7383 = vld [vmem:[#allocation11 + $0x1508] sm:$0xff]
    %v7384 = vld [vmem:[#allocation11 + $0x1510] sm:$0xff]
    %v7385 = vld [vmem:[#allocation11 + $0x1518] sm:$0xff]
    %v7386 = vld [vmem:[#allocation11 + $0x1520] sm:$0xff]
    %v7387 = vld [vmem:[#allocation11 + $0x1528] sm:$0xff]
    %v7388 = vld [vmem:[#allocation11 + $0x1530] sm:$0xff]
    %v7389 = vld [vmem:[#allocation11 + $0x1538] sm:$0xff]
    %v7390 = vld [vmem:[#allocation11 + $0x1540] sm:$0xff]
    %v7391 = vld [vmem:[#allocation11 + $0x1548] sm:$0xff]
    %v7392 = vld [vmem:[#allocation11 + $0x1550] sm:$0xff]
    %v7393 = vld [vmem:[#allocation11 + $0x1558] sm:$0xff]
    %v7394 = vld [vmem:[#allocation11 + $0x1560] sm:$0xff]
    %v7395 = vld [vmem:[#allocation11 + $0x1568] sm:$0xff]
    %v7396 = vld [vmem:[#allocation11 + $0x1570] sm:$0xff]
    %v7397 = vld [vmem:[#allocation11 + $0x1578] sm:$0xff]
    %v7398 = vld [vmem:[#allocation11 + $0x1580] sm:$0xff]
    %v7399 = vld [vmem:[#allocation11 + $0x1588] sm:$0xff]
    %v7400 = vld [vmem:[#allocation11 + $0x1590] sm:$0xff]
    %v7401 = vld [vmem:[#allocation11 + $0x1598] sm:$0xff]
    %v7402 = vld [vmem:[#allocation11 + $0x15a0] sm:$0xff]
    %v7403 = vld [vmem:[#allocation11 + $0x15a8] sm:$0xff]
    %v7404 = vld [vmem:[#allocation11 + $0x15b0] sm:$0xff]
    %v7405 = vld [vmem:[#allocation11 + $0x15b8] sm:$0xff]
    %v7406 = vld [vmem:[#allocation11 + $0x15c0] sm:$0xff]
    %v7407 = vld [vmem:[#allocation11 + $0x15c8] sm:$0xff]
    %v7408 = vld [vmem:[#allocation11 + $0x15d0] sm:$0xff]
    %v7409 = vld [vmem:[#allocation11 + $0x15d8] sm:$0xff]
    %v7410 = vld [vmem:[#allocation11 + $0x15e0] sm:$0xff]
    %v7411 = vld [vmem:[#allocation11 + $0x15e8] sm:$0xff]
    %v7412 = vld [vmem:[#allocation11 + $0x15f0] sm:$0xff]
    %v7413 = vld [vmem:[#allocation11 + $0x15f8] sm:$0xff]
    %v7414 = vld [vmem:[#allocation11 + $0x1600] sm:$0xff]
    %v7415 = vld [vmem:[#allocation11 + $0x1608] sm:$0xff]
    %v7416 = vld [vmem:[#allocation11 + $0x1610] sm:$0xff]
    %v7417 = vld [vmem:[#allocation11 + $0x1618] sm:$0xff]
    %v7418 = vld [vmem:[#allocation11 + $0x1620] sm:$0xff]
    %v7419 = vld [vmem:[#allocation11 + $0x1628] sm:$0xff]
    %v7420 = vld [vmem:[#allocation11 + $0x1630] sm:$0xff]
    %v7421 = vld [vmem:[#allocation11 + $0x1638] sm:$0xff]
    %v7422 = vld [vmem:[#allocation11 + $0x1640] sm:$0xff]
    %v7423 = vld [vmem:[#allocation11 + $0x1648] sm:$0xff]
    %v7424 = vld [vmem:[#allocation11 + $0x1650] sm:$0xff]
    %v7425 = vld [vmem:[#allocation11 + $0x1658] sm:$0xff]
    %v7426 = vld [vmem:[#allocation11 + $0x1660] sm:$0xff]
    %v7427 = vld [vmem:[#allocation11 + $0x1668] sm:$0xff]
    %v7428 = vld [vmem:[#allocation11 + $0x1670] sm:$0xff]
    %v7429 = vld [vmem:[#allocation11 + $0x1678] sm:$0xff]
    %v7430 = vld [vmem:[#allocation11 + $0x1680] sm:$0xff]
    %v7431 = vld [vmem:[#allocation11 + $0x1688] sm:$0xff]
    %v7432 = vld [vmem:[#allocation11 + $0x1690] sm:$0xff]
    %v7433 = vld [vmem:[#allocation11 + $0x1698] sm:$0xff]
    %v7434 = vld [vmem:[#allocation11 + $0x16a0] sm:$0xff]
    %v7435 = vld [vmem:[#allocation11 + $0x16a8] sm:$0xff]
    %v7436 = vld [vmem:[#allocation11 + $0x16b0] sm:$0xff]
    %v7437 = vld [vmem:[#allocation11 + $0x16b8] sm:$0xff]
    %v7438 = vld [vmem:[#allocation11 + $0x16c0] sm:$0xff]
    %v7439 = vld [vmem:[#allocation11 + $0x16c8] sm:$0xff]
    %v7440 = vld [vmem:[#allocation11 + $0x16d0] sm:$0xff]
    %v7441 = vld [vmem:[#allocation11 + $0x16d8] sm:$0xff]
    %v7442 = vld [vmem:[#allocation11 + $0x16e0] sm:$0xff]
    %v7443 = vld [vmem:[#allocation11 + $0x16e8] sm:$0xff]
    %v7444 = vld [vmem:[#allocation11 + $0x16f0] sm:$0xff]
    %v7445 = vld [vmem:[#allocation11 + $0x16f8] sm:$0xff]
    %v7446 = vld [vmem:[#allocation11 + $0x1700] sm:$0xff]
    %v7447 = vld [vmem:[#allocation11 + $0x1708] sm:$0xff]
    %v7448 = vld [vmem:[#allocation11 + $0x1710] sm:$0xff]
    %v7449 = vld [vmem:[#allocation11 + $0x1718] sm:$0xff]
    %v7450 = vld [vmem:[#allocation11 + $0x1720] sm:$0xff]
    %v7451 = vld [vmem:[#allocation11 + $0x1728] sm:$0xff]
    %v7452 = vld [vmem:[#allocation11 + $0x1730] sm:$0xff]
    %v7453 = vld [vmem:[#allocation11 + $0x1738] sm:$0xff]
    %v7454 = vld [vmem:[#allocation11 + $0x1740] sm:$0xff]
    %v7455 = vld [vmem:[#allocation11 + $0x1748] sm:$0xff]
    %v7456 = vld [vmem:[#allocation11 + $0x1750] sm:$0xff]
    %v7457 = vld [vmem:[#allocation11 + $0x1758] sm:$0xff]
    %v7458 = vld [vmem:[#allocation11 + $0x1760] sm:$0xff]
    %v7459 = vld [vmem:[#allocation11 + $0x1768] sm:$0xff]
    %v7460 = vld [vmem:[#allocation11 + $0x1770] sm:$0xff]
    %v7461 = vld [vmem:[#allocation11 + $0x1778] sm:$0xff]
    %v7462 = vld [vmem:[#allocation11 + $0x1780] sm:$0xff]
    %v7463 = vld [vmem:[#allocation11 + $0x1788] sm:$0xff]
    %v7464 = vld [vmem:[#allocation11 + $0x1790] sm:$0xff]
    %v7465 = vld [vmem:[#allocation11 + $0x1798] sm:$0xff]
    %v7466 = vld [vmem:[#allocation11 + $0x17a0] sm:$0xff]
    %v7467 = vld [vmem:[#allocation11 + $0x17a8] sm:$0xff]
    %v7468 = vld [vmem:[#allocation11 + $0x17b0] sm:$0xff]
    %v7469 = vld [vmem:[#allocation11 + $0x17b8] sm:$0xff]
    %v7470 = vld [vmem:[#allocation11 + $0x17c0] sm:$0xff]
    %v7471 = vld [vmem:[#allocation11 + $0x17c8] sm:$0xff]
    %v7472 = vld [vmem:[#allocation11 + $0x17d0] sm:$0xff]
    %v7473 = vld [vmem:[#allocation11 + $0x17d8] sm:$0xff]
    %v7474 = vld [vmem:[#allocation11 + $0x17e0] sm:$0xff]
    %v7475 = vld [vmem:[#allocation11 + $0x17e8] sm:$0xff]
    %v7476 = vld [vmem:[#allocation11 + $0x17f0] sm:$0xff]
    %v7477 = vld [vmem:[#allocation11 + $0x17f8] sm:$0xff]
    %v7478 = vld [vmem:[#allocation11 + $0x1800] sm:$0xff]
    %v7479 = vld [vmem:[#allocation11 + $0x1808] sm:$0xff]
    %v7480 = vld [vmem:[#allocation11 + $0x1810] sm:$0xff]
    %v7481 = vld [vmem:[#allocation11 + $0x1818] sm:$0xff]
    %v7482 = vld [vmem:[#allocation11 + $0x1820] sm:$0xff]
    %v7483 = vld [vmem:[#allocation11 + $0x1828] sm:$0xff]
    %v7484 = vld [vmem:[#allocation11 + $0x1830] sm:$0xff]
    %v7485 = vld [vmem:[#allocation11 + $0x1838] sm:$0xff]
    %v7486 = vld [vmem:[#allocation11 + $0x1840] sm:$0xff]
    %v7487 = vld [vmem:[#allocation11 + $0x1848] sm:$0xff]
    %v7488 = vld [vmem:[#allocation11 + $0x1850] sm:$0xff]
    %v7489 = vld [vmem:[#allocation11 + $0x1858] sm:$0xff]
    %v7490 = vld [vmem:[#allocation11 + $0x1860] sm:$0xff]
    %v7491 = vld [vmem:[#allocation11 + $0x1868] sm:$0xff]
    %v7492 = vld [vmem:[#allocation11 + $0x1870] sm:$0xff]
    %v7493 = vld [vmem:[#allocation11 + $0x1878] sm:$0xff]
    %v7494 = vld [vmem:[#allocation11 + $0x1880] sm:$0xff]
    %v7495 = vld [vmem:[#allocation11 + $0x1888] sm:$0xff]
    %v7496 = vld [vmem:[#allocation11 + $0x1890] sm:$0xff]
    %v7497 = vld [vmem:[#allocation11 + $0x1898] sm:$0xff]
    %v7498 = vld [vmem:[#allocation11 + $0x18a0] sm:$0xff]
    %v7499 = vld [vmem:[#allocation11 + $0x18a8] sm:$0xff]
    %v7500 = vld [vmem:[#allocation11 + $0x18b0] sm:$0xff]
    %v7501 = vld [vmem:[#allocation11 + $0x18b8] sm:$0xff]
    %v7502 = vld [vmem:[#allocation11 + $0x18c0] sm:$0xff]
    %v7503 = vld [vmem:[#allocation11 + $0x18c8] sm:$0xff]
    %v7504 = vld [vmem:[#allocation11 + $0x18d0] sm:$0xff]
    %v7505 = vld [vmem:[#allocation11 + $0x18d8] sm:$0xff]
    %v7506 = vld [vmem:[#allocation11 + $0x18e0] sm:$0xff]
    %v7507 = vld [vmem:[#allocation11 + $0x18e8] sm:$0xff]
    %v7508 = vld [vmem:[#allocation11 + $0x18f0] sm:$0xff]
    %v7509 = vld [vmem:[#allocation11 + $0x18f8] sm:$0xff]
    %v7510 = vld [vmem:[#allocation11 + $0x1900] sm:$0xff]
    %v7511 = vld [vmem:[#allocation11 + $0x1908] sm:$0xff]
    %v7512 = vld [vmem:[#allocation11 + $0x1910] sm:$0xff]
    %v7513 = vld [vmem:[#allocation11 + $0x1918] sm:$0xff]
    %v7514 = vld [vmem:[#allocation11 + $0x1920] sm:$0xff]
    %v7515 = vld [vmem:[#allocation11 + $0x1928] sm:$0xff]
    %v7516 = vld [vmem:[#allocation11 + $0x1930] sm:$0xff]
    %v7517 = vld [vmem:[#allocation11 + $0x1938] sm:$0xff]
    %v7518 = vld [vmem:[#allocation11 + $0x1940] sm:$0xff]
    %v7519 = vld [vmem:[#allocation11 + $0x1948] sm:$0xff]
    %v7520 = vld [vmem:[#allocation11 + $0x1950] sm:$0xff]
    %v7521 = vld [vmem:[#allocation11 + $0x1958] sm:$0xff]
    %v7522 = vld [vmem:[#allocation11 + $0x1960] sm:$0xff]
    %v7523 = vld [vmem:[#allocation11 + $0x1968] sm:$0xff]
    %v7524 = vld [vmem:[#allocation11 + $0x1970] sm:$0xff]
    %v7525 = vld [vmem:[#allocation11 + $0x1978] sm:$0xff]
    %v7526 = vld [vmem:[#allocation11 + $0x1980] sm:$0xff]
    %v7527 = vld [vmem:[#allocation11 + $0x1988] sm:$0xff]
    %v7528 = vld [vmem:[#allocation11 + $0x1990] sm:$0xff]
    %v7529 = vld [vmem:[#allocation11 + $0x1998] sm:$0xff]
    %v7530 = vld [vmem:[#allocation11 + $0x19a0] sm:$0xff]
    %v7531 = vld [vmem:[#allocation11 + $0x19a8] sm:$0xff]
    %v7532 = vld [vmem:[#allocation11 + $0x19b0] sm:$0xff]
    %v7533 = vld [vmem:[#allocation11 + $0x19b8] sm:$0xff]
    %v7534 = vld [vmem:[#allocation11 + $0x19c0] sm:$0xff]
    %v7535 = vld [vmem:[#allocation11 + $0x19c8] sm:$0xff]
    %v7536 = vld [vmem:[#allocation11 + $0x19d0] sm:$0xff]
    %v7537 = vld [vmem:[#allocation11 + $0x19d8] sm:$0xff]
    %v7538 = vld [vmem:[#allocation11 + $0x19e0] sm:$0xff]
    %v7539 = vld [vmem:[#allocation11 + $0x19e8] sm:$0xff]
    %v7540 = vld [vmem:[#allocation11 + $0x19f0] sm:$0xff]
    %v7541 = vld [vmem:[#allocation11 + $0x19f8] sm:$0xff]
    %v7542 = vld [vmem:[#allocation11 + $0x1a00] sm:$0xff]
    %v7543 = vld [vmem:[#allocation11 + $0x1a08] sm:$0xff]
    %v7544 = vld [vmem:[#allocation11 + $0x1a10] sm:$0xff]
    %v7545 = vld [vmem:[#allocation11 + $0x1a18] sm:$0xff]
    %v7546 = vld [vmem:[#allocation11 + $0x1a20] sm:$0xff]
    %v7547 = vld [vmem:[#allocation11 + $0x1a28] sm:$0xff]
    %v7548 = vld [vmem:[#allocation11 + $0x1a30] sm:$0xff]
    %v7549 = vld [vmem:[#allocation11 + $0x1a38] sm:$0xff]
    %v7550 = vld [vmem:[#allocation11 + $0x1a40] sm:$0xff]
    %v7551 = vld [vmem:[#allocation11 + $0x1a48] sm:$0xff]
    %v7552 = vld [vmem:[#allocation11 + $0x1a50] sm:$0xff]
    %v7553 = vld [vmem:[#allocation11 + $0x1a58] sm:$0xff]
    %v7554 = vld [vmem:[#allocation11 + $0x1a60] sm:$0xff]
    %v7555 = vld [vmem:[#allocation11 + $0x1a68] sm:$0xff]
    %v7556 = vld [vmem:[#allocation11 + $0x1a70] sm:$0xff]
    %v7557 = vld [vmem:[#allocation11 + $0x1a78] sm:$0xff]
    %v7558 = vld [vmem:[#allocation11 + $0x1a80] sm:$0xff]
    %v7559 = vld [vmem:[#allocation11 + $0x1a88] sm:$0xff]
    %v7560 = vld [vmem:[#allocation11 + $0x1a90] sm:$0xff]
    %v7561 = vld [vmem:[#allocation11 + $0x1a98] sm:$0xff]
    %v7562 = vld [vmem:[#allocation11 + $0x1aa0] sm:$0xff]
    %v7563 = vld [vmem:[#allocation11 + $0x1aa8] sm:$0xff]
    %v7564 = vld [vmem:[#allocation11 + $0x1ab0] sm:$0xff]
    %v7565 = vld [vmem:[#allocation11 + $0x1ab8] sm:$0xff]
    %v7566 = vld [vmem:[#allocation11 + $0x1ac0] sm:$0xff]
    %v7567 = vld [vmem:[#allocation11 + $0x1ac8] sm:$0xff]
    %v7568 = vld [vmem:[#allocation11 + $0x1ad0] sm:$0xff]
    %v7569 = vld [vmem:[#allocation11 + $0x1ad8] sm:$0xff]
    %v7570 = vld [vmem:[#allocation11 + $0x1ae0] sm:$0xff]
    %v7571 = vld [vmem:[#allocation11 + $0x1ae8] sm:$0xff]
    %v7572 = vld [vmem:[#allocation11 + $0x1af0] sm:$0xff]
    %v7573 = vld [vmem:[#allocation11 + $0x1af8] sm:$0xff]
    %v7574 = vld [vmem:[#allocation11 + $0x1b00] sm:$0xff]
    %v7575 = vld [vmem:[#allocation11 + $0x1b08] sm:$0xff]
    %v7576 = vld [vmem:[#allocation11 + $0x1b10] sm:$0xff]
    %v7577 = vld [vmem:[#allocation11 + $0x1b18] sm:$0xff]
    %v7578 = vld [vmem:[#allocation11 + $0x1b20] sm:$0xff]
    %v7579 = vld [vmem:[#allocation11 + $0x1b28] sm:$0xff]
    %v7580 = vld [vmem:[#allocation11 + $0x1b30] sm:$0xff]
    %v7581 = vld [vmem:[#allocation11 + $0x1b38] sm:$0xff]
    %v7582 = vld [vmem:[#allocation11 + $0x1b40] sm:$0xff]
    %v7583 = vld [vmem:[#allocation11 + $0x1b48] sm:$0xff]
    %v7584 = vld [vmem:[#allocation11 + $0x1b50] sm:$0xff]
    %v7585 = vld [vmem:[#allocation11 + $0x1b58] sm:$0xff]
    %v7586 = vld [vmem:[#allocation11 + $0x1b60] sm:$0xff]
    %v7587 = vld [vmem:[#allocation11 + $0x1b68] sm:$0xff]
    %v7588 = vld [vmem:[#allocation11 + $0x1b70] sm:$0xff]
    %v7589 = vld [vmem:[#allocation11 + $0x1b78] sm:$0xff]
    %v7590 = vld [vmem:[#allocation11 + $0x1b80] sm:$0xff]
    %v7591 = vld [vmem:[#allocation11 + $0x1b88] sm:$0xff]
    %v7592 = vld [vmem:[#allocation11 + $0x1b90] sm:$0xff]
    %v7593 = vld [vmem:[#allocation11 + $0x1b98] sm:$0xff]
    %v7594 = vld [vmem:[#allocation11 + $0x1ba0] sm:$0xff]
    %v7595 = vld [vmem:[#allocation11 + $0x1ba8] sm:$0xff]
    %v7596 = vld [vmem:[#allocation11 + $0x1bb0] sm:$0xff]
    %v7597 = vld [vmem:[#allocation11 + $0x1bb8] sm:$0xff]
    %v7598 = vld [vmem:[#allocation11 + $0x1bc0] sm:$0xff]
    %v7599 = vld [vmem:[#allocation11 + $0x1bc8] sm:$0xff]
    %v7600 = vld [vmem:[#allocation11 + $0x1bd0] sm:$0xff]
    %v7601 = vld [vmem:[#allocation11 + $0x1bd8] sm:$0xff]
    %v7602 = vld [vmem:[#allocation11 + $0x1be0] sm:$0xff]
    %v7603 = vld [vmem:[#allocation11 + $0x1be8] sm:$0xff]
    %v7604 = vld [vmem:[#allocation11 + $0x1bf0] sm:$0xff]
    %v7605 = vld [vmem:[#allocation11 + $0x1bf8] sm:$0xff]
    %v7606 = vld [vmem:[#allocation11 + $0x1c00] sm:$0xff]
    %v7607 = vld [vmem:[#allocation11 + $0x1c08] sm:$0xff]
    %v7608 = vld [vmem:[#allocation11 + $0x1c10] sm:$0xff]
    %v7609 = vld [vmem:[#allocation11 + $0x1c18] sm:$0xff]
    %v7610 = vld [vmem:[#allocation11 + $0x1c20] sm:$0xff]
    %v7611 = vld [vmem:[#allocation11 + $0x1c28] sm:$0xff]
    %v7612 = vld [vmem:[#allocation11 + $0x1c30] sm:$0xff]
    %v7613 = vld [vmem:[#allocation11 + $0x1c38] sm:$0xff]
    %v7614 = vld [vmem:[#allocation11 + $0x1c40] sm:$0xff]
    %v7615 = vld [vmem:[#allocation11 + $0x1c48] sm:$0xff]
    %v7616 = vld [vmem:[#allocation11 + $0x1c50] sm:$0xff]
    %v7617 = vld [vmem:[#allocation11 + $0x1c58] sm:$0xff]
    %v7618 = vld [vmem:[#allocation11 + $0x1c60] sm:$0xff]
    %v7619 = vld [vmem:[#allocation11 + $0x1c68] sm:$0xff]
    %v7620 = vld [vmem:[#allocation11 + $0x1c70] sm:$0xff]
    %v7621 = vld [vmem:[#allocation11 + $0x1c78] sm:$0xff]
    %v7622 = vld [vmem:[#allocation11 + $0x1c80] sm:$0xff]
    %v7623 = vld [vmem:[#allocation11 + $0x1c88] sm:$0xff]
    %v7624 = vld [vmem:[#allocation11 + $0x1c90] sm:$0xff]
    %v7625 = vld [vmem:[#allocation11 + $0x1c98] sm:$0xff]
    %v7626 = vld [vmem:[#allocation11 + $0x1ca0] sm:$0xff]
    %v7627 = vld [vmem:[#allocation11 + $0x1ca8] sm:$0xff]
    %v7628 = vld [vmem:[#allocation11 + $0x1cb0] sm:$0xff]
    %v7629 = vld [vmem:[#allocation11 + $0x1cb8] sm:$0xff]
    %v7630 = vld [vmem:[#allocation11 + $0x1cc0] sm:$0xff]
    %v7631 = vld [vmem:[#allocation11 + $0x1cc8] sm:$0xff]
    %v7632 = vld [vmem:[#allocation11 + $0x1cd0] sm:$0xff]
    %v7633 = vld [vmem:[#allocation11 + $0x1cd8] sm:$0xff]
    %v7634 = vld [vmem:[#allocation11 + $0x1ce0] sm:$0xff]
    %v7635 = vld [vmem:[#allocation11 + $0x1ce8] sm:$0xff]
    %v7636 = vld [vmem:[#allocation11 + $0x1cf0] sm:$0xff]
    %v7637 = vld [vmem:[#allocation11 + $0x1cf8] sm:$0xff]
    %v7638 = vld [vmem:[#allocation11 + $0x1d00] sm:$0xff]
    %v7639 = vld [vmem:[#allocation11 + $0x1d08] sm:$0xff]
    %v7640 = vld [vmem:[#allocation11 + $0x1d10] sm:$0xff]
    %v7641 = vld [vmem:[#allocation11 + $0x1d18] sm:$0xff]
    %v7642 = vld [vmem:[#allocation11 + $0x1d20] sm:$0xff]
    %v7643 = vld [vmem:[#allocation11 + $0x1d28] sm:$0xff]
    %v7644 = vld [vmem:[#allocation11 + $0x1d30] sm:$0xff]
    %v7645 = vld [vmem:[#allocation11 + $0x1d38] sm:$0xff]
    %v7646 = vld [vmem:[#allocation11 + $0x1d40] sm:$0xff]
    %v7647 = vld [vmem:[#allocation11 + $0x1d48] sm:$0xff]
    %v7648 = vld [vmem:[#allocation11 + $0x1d50] sm:$0xff]
    %v7649 = vld [vmem:[#allocation11 + $0x1d58] sm:$0xff]
    %v7650 = vld [vmem:[#allocation11 + $0x1d60] sm:$0xff]
    %v7651 = vld [vmem:[#allocation11 + $0x1d68] sm:$0xff]
    %v7652 = vld [vmem:[#allocation11 + $0x1d70] sm:$0xff]
    %v7653 = vld [vmem:[#allocation11 + $0x1d78] sm:$0xff]
    %v7654 = vld [vmem:[#allocation11 + $0x1d80] sm:$0xff]
    %v7655 = vld [vmem:[#allocation11 + $0x1d88] sm:$0xff]
    %v7656 = vld [vmem:[#allocation11 + $0x1d90] sm:$0xff]
    %v7657 = vld [vmem:[#allocation11 + $0x1d98] sm:$0xff]
    %v7658 = vld [vmem:[#allocation11 + $0x1da0] sm:$0xff]
    %v7659 = vld [vmem:[#allocation11 + $0x1da8] sm:$0xff]
    %v7660 = vld [vmem:[#allocation11 + $0x1db0] sm:$0xff]
    %v7661 = vld [vmem:[#allocation11 + $0x1db8] sm:$0xff]
    %v7662 = vld [vmem:[#allocation11 + $0x1dc0] sm:$0xff]
    %v7663 = vld [vmem:[#allocation11 + $0x1dc8] sm:$0xff]
    %v7664 = vld [vmem:[#allocation11 + $0x1dd0] sm:$0xff]
    %v7665 = vld [vmem:[#allocation11 + $0x1dd8] sm:$0xff]
    %v7666 = vld [vmem:[#allocation11 + $0x1de0] sm:$0xff]
    %v7667 = vld [vmem:[#allocation11 + $0x1de8] sm:$0xff]
    %v7668 = vld [vmem:[#allocation11 + $0x1df0] sm:$0xff]
    %v7669 = vld [vmem:[#allocation11 + $0x1df8] sm:$0xff]
    %v7670 = vld [vmem:[#allocation11 + $0x1e00] sm:$0xff]
    %v7671 = vld [vmem:[#allocation11 + $0x1e08] sm:$0xff]
    %v7672 = vld [vmem:[#allocation11 + $0x1e10] sm:$0xff]
    %v7673 = vld [vmem:[#allocation11 + $0x1e18] sm:$0xff]
    %v7674 = vld [vmem:[#allocation11 + $0x1e20] sm:$0xff]
    %v7675 = vld [vmem:[#allocation11 + $0x1e28] sm:$0xff]
    %v7676 = vld [vmem:[#allocation11 + $0x1e30] sm:$0xff]
    %v7677 = vld [vmem:[#allocation11 + $0x1e38] sm:$0xff]
    %v7678 = vld [vmem:[#allocation11 + $0x1e40] sm:$0xff]
    %v7679 = vld [vmem:[#allocation11 + $0x1e48] sm:$0xff]
    %v7680 = vld [vmem:[#allocation11 + $0x1e50] sm:$0xff]
    %v7681 = vld [vmem:[#allocation11 + $0x1e58] sm:$0xff]
    %v7682 = vld [vmem:[#allocation11 + $0x1e60] sm:$0xff]
    %v7683 = vld [vmem:[#allocation11 + $0x1e68] sm:$0xff]
    %v7684 = vld [vmem:[#allocation11 + $0x1e70] sm:$0xff]
    %v7685 = vld [vmem:[#allocation11 + $0x1e78] sm:$0xff]
    %v7686 = vld [vmem:[#allocation11 + $0x1e80] sm:$0xff]
    %v7687 = vld [vmem:[#allocation11 + $0x1e88] sm:$0xff]
    %v7688 = vld [vmem:[#allocation11 + $0x1e90] sm:$0xff]
    %v7689 = vld [vmem:[#allocation11 + $0x1e98] sm:$0xff]
    %v7690 = vld [vmem:[#allocation11 + $0x1ea0] sm:$0xff]
    %v7691 = vld [vmem:[#allocation11 + $0x1ea8] sm:$0xff]
    %v7692 = vld [vmem:[#allocation11 + $0x1eb0] sm:$0xff]
    %v7693 = vld [vmem:[#allocation11 + $0x1eb8] sm:$0xff]
    %v7694 = vld [vmem:[#allocation11 + $0x1ec0] sm:$0xff]
    %v7695 = vld [vmem:[#allocation11 + $0x1ec8] sm:$0xff]
    %v7696 = vld [vmem:[#allocation11 + $0x1ed0] sm:$0xff]
    %v7697 = vld [vmem:[#allocation11 + $0x1ed8] sm:$0xff]
    %v7698 = vld [vmem:[#allocation11 + $0x1ee0] sm:$0xff]
    %v7699 = vld [vmem:[#allocation11 + $0x1ee8] sm:$0xff]
    %v7700 = vld [vmem:[#allocation11 + $0x1ef0] sm:$0xff]
    %v7701 = vld [vmem:[#allocation11 + $0x1ef8] sm:$0xff]
    %v7702 = vld [vmem:[#allocation11 + $0x1f00] sm:$0xff]
    %v7703 = vld [vmem:[#allocation11 + $0x1f08] sm:$0xff]
    %v7704 = vld [vmem:[#allocation11 + $0x1f10] sm:$0xff]
    %v7705 = vld [vmem:[#allocation11 + $0x1f18] sm:$0xff]
    %v7706 = vld [vmem:[#allocation11 + $0x1f20] sm:$0xff]
    %v7707 = vld [vmem:[#allocation11 + $0x1f28] sm:$0xff]
    %v7708 = vld [vmem:[#allocation11 + $0x1f30] sm:$0xff]
    %v7709 = vld [vmem:[#allocation11 + $0x1f38] sm:$0xff]
    %v7710 = vld [vmem:[#allocation11 + $0x1f40] sm:$0xff]
    %v7711 = vld [vmem:[#allocation11 + $0x1f48] sm:$0xff]
    %v7712 = vld [vmem:[#allocation11 + $0x1f50] sm:$0xff]
    %v7713 = vld [vmem:[#allocation11 + $0x1f58] sm:$0xff]
    %v7714 = vld [vmem:[#allocation11 + $0x1f60] sm:$0xff]
    %v7715 = vld [vmem:[#allocation11 + $0x1f68] sm:$0xff]
    %v7716 = vld [vmem:[#allocation11 + $0x1f70] sm:$0xff]
    %v7717 = vld [vmem:[#allocation11 + $0x1f78] sm:$0xff]
    %v7718 = vld [vmem:[#allocation11 + $0x1f80] sm:$0xff]
    %v7719 = vld [vmem:[#allocation11 + $0x1f88] sm:$0xff]
    %v7720 = vld [vmem:[#allocation11 + $0x1f90] sm:$0xff]
    %v7721 = vld [vmem:[#allocation11 + $0x1f98] sm:$0xff]
    %v7722 = vld [vmem:[#allocation11 + $0x1fa0] sm:$0xff]
    %v7723 = vld [vmem:[#allocation11 + $0x1fa8] sm:$0xff]
    %v7724 = vld [vmem:[#allocation11 + $0x1fb0] sm:$0xff]
    %v7725 = vld [vmem:[#allocation11 + $0x1fb8] sm:$0xff]
    %v7726 = vld [vmem:[#allocation11 + $0x1fc0] sm:$0xff]
    %v7727 = vld [vmem:[#allocation11 + $0x1fc8] sm:$0xff]
    %v7728 = vld [vmem:[#allocation11 + $0x1fd0] sm:$0xff]
    %v7729 = vld [vmem:[#allocation11 + $0x1fd8] sm:$0xff]
    %v7730 = vld [vmem:[#allocation11 + $0x1fe0] sm:$0xff]
    %v7731 = vld [vmem:[#allocation11 + $0x1fe8] sm:$0xff]
    %v7732 = vld [vmem:[#allocation11 + $0x1ff0] sm:$0xff]
    %v7733 = vld [vmem:[#allocation11 + $0x1ff8] sm:$0xff]
    %v7734 = vld [vmem:[#allocation12] sm:$0xff]
    %v7736 = vlaneseq
    %v7737 = vshrl.u32 %v7736, 7
    %v7738 = vsub.s32 0, %v7737
    %v7739 = vrot.slane %v7734, %v7738
    %v7740 = vlaneseq
    %v7741 = vshrl.u32 %v7740, 7
    %v7742 = vsub.s32 1, %v7741
    %v7743 = vrot.slane %v7734, %v7742
    %v7744 = vlaneseq
    %v7745 = vshrl.u32 %v7744, 7
    %v7746 = vsub.s32 2, %v7745
    %v7747 = vrot.slane %v7734, %v7746
    %v7748 = vlaneseq
    %v7749 = vshrl.u32 %v7748, 7
    %v7750 = vsub.s32 3, %v7749
    %v7751 = vrot.slane %v7734, %v7750
    %v7752 = vlaneseq
    %v7753 = vshrl.u32 %v7752, 7
    %v7754 = vsub.s32 4, %v7753
    %v7755 = vrot.slane %v7734, %v7754
    %v7756 = vlaneseq
    %v7757 = vshrl.u32 %v7756, 7
    %v7758 = vsub.s32 5, %v7757
    %v7759 = vrot.slane %v7734, %v7758
    %v7760 = vlaneseq
    %v7761 = vshrl.u32 %v7760, 7
    %v7762 = vsub.s32 6, %v7761
    %v7763 = vrot.slane %v7734, %v7762
    %v7764 = vlaneseq
    %v7765 = vshrl.u32 %v7764, 7
    %v7766 = vsub.s32 7, %v7765
    %v7767 = vrot.slane %v7734, %v7766
    %v7778 = vcombine.high %v6708, %v6708
    %v7780 = vunpack.c.l.s4 1983009808
    %v7781 = vunpack.c.0.s8 %v7780
    %v7782 = vlaneseq
    %v7783 = vshrl.u32 %v7782, 7
    %v7784 = vsub.s32 %v7781, %v7783
    %v7785 = vrot.slane %v6708, %v7784
    %v7787 = vunpack.c.l.s4 1983009808
    %v7788 = vunpack.c.0.s8 %v7787
    %v7789 = vlaneseq
    %v7790 = vshrl.u32 %v7789, 7
    %v7791 = vsub.s32 %v7788, %v7790
    %v7792 = vrot.slane %v7778, %v7791
    %v7793 = vcombine.high %v7785, %v7785
    %v7794 = vcombine.high %v7792, %v7792
    %v7795 = vcombine.high %v6709, %v6709
    %v7797 = vunpack.c.l.s4 1983009808
    %v7798 = vunpack.c.0.s8 %v7797
    %v7799 = vlaneseq
    %v7800 = vshrl.u32 %v7799, 7
    %v7801 = vsub.s32 %v7798, %v7800
    %v7802 = vrot.slane %v6709, %v7801
    %v7804 = vunpack.c.l.s4 1983009808
    %v7805 = vunpack.c.0.s8 %v7804
    %v7806 = vlaneseq
    %v7807 = vshrl.u32 %v7806, 7
    %v7808 = vsub.s32 %v7805, %v7807
    %v7809 = vrot.slane %v7795, %v7808
    %v7810 = vcombine.high %v7802, %v7802
    %v7811 = vcombine.high %v7809, %v7809
    %7820 = vmatprep.subr.mxu0 %v6711
    %7821 = vmatpush1.msra.mxu0 %v6710
    %7822 = vmatprep.subr.mxu0 %v6719
    %7823 = vmatpush1.msra.mxu0 %v6718
    %7824 = vmatprep.subr.mxu0 %v6727
    %7825 = vmatpush1.msra.mxu0 %v6726
    %7826 = vmatprep.subr.mxu0 %v6735
    %7827 = vmatpush1.msra.mxu0 %v6734
    %7828 = vmatprep.subr.mxu0 %v6743
    %7829 = vmatpush1.msra.mxu0 %v6742
    %7830 = vmatprep.subr.mxu0 %v6751
    %7831 = vmatpush1.msra.mxu0 %v6750
    %7832 = vmatprep.subr.mxu0 %v6759
    %7833 = vmatpush1.msra.mxu0 %v6758
    %7834 = vmatprep.subr.mxu0 %v6767
    %7835 = vmatpush1.msra.mxu0 %v6766
    %7836 = vmatprep.subr.mxu0 %v6775
    %7837 = vmatpush1.msra.mxu0 %v6774
    %7838 = vmatprep.subr.mxu0 %v6783
    %7839 = vmatpush1.msra.mxu0 %v6782
    %7840 = vmatprep.subr.mxu0 %v6791
    %7841 = vmatpush1.msra.mxu0 %v6790
    %7842 = vmatprep.subr.mxu0 %v6799
    %7843 = vmatpush1.msra.mxu0 %v6798
    %7844 = vmatprep.subr.mxu0 %v6807
    %7845 = vmatpush1.msra.mxu0 %v6806
    %7846 = vmatprep.subr.mxu0 %v6815
    %7847 = vmatpush1.msra.mxu0 %v6814
    %7848 = vmatprep.subr.mxu0 %v6823
    %7849 = vmatpush1.msra.mxu0 %v6822
    %7850 = vmatprep.subr.mxu0 %v6831
    %7851 = vmatpush1.msra.mxu0 %v6830
    %7852 = vmatprep.subr.mxu0 %v6839
    %7853 = vmatpush1.msra.mxu0 %v6838
    %7854 = vmatprep.subr.mxu0 %v6847
    %7855 = vmatpush1.msra.mxu0 %v6846
    %7856 = vmatprep.subr.mxu0 %v6855
    %7857 = vmatpush1.msra.mxu0 %v6854
    %7858 = vmatprep.subr.mxu0 %v6863
    %7859 = vmatpush1.msra.mxu0 %v6862
    %7860 = vmatprep.subr.mxu0 %v6871
    %7861 = vmatpush1.msra.mxu0 %v6870
    %7862 = vmatprep.subr.mxu0 %v6879
    %7863 = vmatpush1.msra.mxu0 %v6878
    %7864 = vmatprep.subr.mxu0 %v6887
    %7865 = vmatpush1.msra.mxu0 %v6886
    %7866 = vmatprep.subr.mxu0 %v6895
    %7867 = vmatpush1.msra.mxu0 %v6894
    %7868 = vmatprep.subr.mxu0 %v6903
    %7869 = vmatpush1.msra.mxu0 %v6902
    %7870 = vmatprep.subr.mxu0 %v6911
    %7871 = vmatpush1.msra.mxu0 %v6910
    %7872 = vmatprep.subr.mxu0 %v6919
    %7873 = vmatpush1.msra.mxu0 %v6918
    %7874 = vmatprep.subr.mxu0 %v6927
    %7875 = vmatpush1.msra.mxu0 %v6926
    %7876 = vmatprep.subr.mxu0 %v6935
    %7877 = vmatpush1.msra.mxu0 %v6934
    %7878 = vmatprep.subr.mxu0 %v6943
    %7879 = vmatpush1.msra.mxu0 %v6942
    %7880 = vmatprep.subr.mxu0 %v6951
    %7881 = vmatpush1.msra.mxu0 %v6950
    %7882 = vmatprep.subr.mxu0 %v6959
    %7883 = vmatpush1.msra.mxu0 %v6958
    %7884 = vmatprep.mubr.f32.mxu0 %v7793
    %7885 = vmatmul.mubr.f32.gmra.mrb[0].mxu0 %v7785
    %v7886 = vpop.f32.mrb[0].mxu0
    %v7887 = vadd.f32 %v7739, %v7886
    %v7888 = vpop.f32.mrb[0].mxu0
    %v7889 = vadd.f32 %v7743, %v7888
    %7890 = vdwg.mxu0
    %7891 = vmatprep.subr.mxu0 %v6967
    %7892 = vmatpush1.msra.mxu0 %v6966
    %7893 = vmatprep.subr.mxu0 %v6975
    %7894 = vmatpush1.msra.mxu0 %v6974
    %7895 = vmatprep.subr.mxu0 %v6983
    %7896 = vmatpush1.msra.mxu0 %v6982
    %7897 = vmatprep.subr.mxu0 %v6991
    %7898 = vmatpush1.msra.mxu0 %v6990
    %7899 = vmatprep.subr.mxu0 %v6999
    %7900 = vmatpush1.msra.mxu0 %v6998
    %7901 = vmatprep.subr.mxu0 %v7007
    %7902 = vmatpush1.msra.mxu0 %v7006
    %7903 = vmatprep.subr.mxu0 %v7015
    %7904 = vmatpush1.msra.mxu0 %v7014
    %7905 = vmatprep.subr.mxu0 %v7023
    %7906 = vmatpush1.msra.mxu0 %v7022
    %7907 = vmatprep.subr.mxu0 %v7031
    %7908 = vmatpush1.msra.mxu0 %v7030
    %7909 = vmatprep.subr.mxu0 %v7039
    %7910 = vmatpush1.msra.mxu0 %v7038
    %7911 = vmatprep.subr.mxu0 %v7047
    %7912 = vmatpush1.msra.mxu0 %v7046
    %7913 = vmatprep.subr.mxu0 %v7055
    %7914 = vmatpush1.msra.mxu0 %v7054
    %7915 = vmatprep.subr.mxu0 %v7063
    %7916 = vmatpush1.msra.mxu0 %v7062
    %7917 = vmatprep.subr.mxu0 %v7071
    %7918 = vmatpush1.msra.mxu0 %v7070
    %7919 = vmatprep.subr.mxu0 %v7079
    %7920 = vmatpush1.msra.mxu0 %v7078
    %7921 = vmatprep.subr.mxu0 %v7087
    %7922 = vmatpush1.msra.mxu0 %v7086
    %7923 = vmatprep.subr.mxu0 %v7095
    %7924 = vmatpush1.msra.mxu0 %v7094
    %7925 = vmatprep.subr.mxu0 %v7103
    %7926 = vmatpush1.msra.mxu0 %v7102
    %7927 = vmatprep.subr.mxu0 %v7111
    %7928 = vmatpush1.msra.mxu0 %v7110
    %7929 = vmatprep.subr.mxu0 %v7119
    %7930 = vmatpush1.msra.mxu0 %v7118
    %7931 = vmatprep.subr.mxu0 %v7127
    %7932 = vmatpush1.msra.mxu0 %v7126
    %7933 = vmatprep.subr.mxu0 %v7135
    %7934 = vmatpush1.msra.mxu0 %v7134
    %7935 = vmatprep.subr.mxu0 %v7143
    %7936 = vmatpush1.msra.mxu0 %v7142
    %7937 = vmatprep.subr.mxu0 %v7151
    %7938 = vmatpush1.msra.mxu0 %v7150
    %7939 = vmatprep.subr.mxu0 %v7159
    %7940 = vmatpush1.msra.mxu0 %v7158
    %7941 = vmatprep.subr.mxu0 %v7167
    %7942 = vmatpush1.msra.mxu0 %v7166
    %7943 = vmatprep.subr.mxu0 %v7175
    %7944 = vmatpush1.msra.mxu0 %v7174
    %7945 = vmatprep.subr.mxu0 %v7183
    %7946 = vmatpush1.msra.mxu0 %v7182
    %7947 = vmatprep.subr.mxu0 %v7191
    %7948 = vmatpush1.msra.mxu0 %v7190
    %7949 = vmatprep.subr.mxu0 %v7199
    %7950 = vmatpush1.msra.mxu0 %v7198
    %7951 = vmatprep.subr.mxu0 %v7207
    %7952 = vmatpush1.msra.mxu0 %v7206
    %7953 = vmatprep.subr.mxu0 %v7215
    %7954 = vmatpush1.msra.mxu0 %v7214
    %7955 = vmatprep.mubr.f32.mxu0 %v7794
    %7956 = vmatmul.mubr.f32.gmra.mrb[0].mxu0 %v7792
    %v7957 = vpop.f32.mrb[0].mxu0
    %v7958 = vadd.f32 %v7887, %v7957
    %v7959 = vpop.f32.mrb[0].mxu0
    %v7960 = vadd.f32 %v7889, %v7959
    %7961 = vdwg.mxu0
    %7962 = vmatprep.subr.mxu0 %v7223
    %7963 = vmatpush1.msra.mxu0 %v7222
    %7964 = vmatprep.subr.mxu0 %v7231
    %7965 = vmatpush1.msra.mxu0 %v7230
    %7966 = vmatprep.subr.mxu0 %v7239
    %7967 = vmatpush1.msra.mxu0 %v7238
    %7968 = vmatprep.subr.mxu0 %v7247
    %7969 = vmatpush1.msra.mxu0 %v7246
    %7970 = vmatprep.subr.mxu0 %v7255
    %7971 = vmatpush1.msra.mxu0 %v7254
    %7972 = vmatprep.subr.mxu0 %v7263
    %7973 = vmatpush1.msra.mxu0 %v7262
    %7974 = vmatprep.subr.mxu0 %v7271
    %7975 = vmatpush1.msra.mxu0 %v7270
    %7976 = vmatprep.subr.mxu0 %v7279
    %7977 = vmatpush1.msra.mxu0 %v7278
    %7978 = vmatprep.subr.mxu0 %v7287
    %7979 = vmatpush1.msra.mxu0 %v7286
    %7980 = vmatprep.subr.mxu0 %v7295
    %7981 = vmatpush1.msra.mxu0 %v7294
    %7982 = vmatprep.subr.mxu0 %v7303
    %7983 = vmatpush1.msra.mxu0 %v7302
    %7984 = vmatprep.subr.mxu0 %v7311
    %7985 = vmatpush1.msra.mxu0 %v7310
    %7986 = vmatprep.subr.mxu0 %v7319
    %7987 = vmatpush1.msra.mxu0 %v7318
    %7988 = vmatprep.subr.mxu0 %v7327
    %7989 = vmatpush1.msra.mxu0 %v7326
    %7990 = vmatprep.subr.mxu0 %v7335
    %7991 = vmatpush1.msra.mxu0 %v7334
    %7992 = vmatprep.subr.mxu0 %v7343
    %7993 = vmatpush1.msra.mxu0 %v7342
    %7994 = vmatprep.subr.mxu0 %v7351
    %7995 = vmatpush1.msra.mxu0 %v7350
    %7996 = vmatprep.subr.mxu0 %v7359
    %7997 = vmatpush1.msra.mxu0 %v7358
    %7998 = vmatprep.subr.mxu0 %v7367
    %7999 = vmatpush1.msra.mxu0 %v7366
    %8000 = vmatprep.subr.mxu0 %v7375
    %8001 = vmatpush1.msra.mxu0 %v7374
    %8002 = vmatprep.subr.mxu0 %v7383
    %8003 = vmatpush1.msra.mxu0 %v7382
    %8004 = vmatprep.subr.mxu0 %v7391
    %8005 = vmatpush1.msra.mxu0 %v7390
    %8006 = vmatprep.subr.mxu0 %v7399
    %8007 = vmatpush1.msra.mxu0 %v7398
    %8008 = vmatprep.subr.mxu0 %v7407
    %8009 = vmatpush1.msra.mxu0 %v7406
    %8010 = vmatprep.subr.mxu0 %v7415
    %8011 = vmatpush1.msra.mxu0 %v7414
    %8012 = vmatprep.subr.mxu0 %v7423
    %8013 = vmatpush1.msra.mxu0 %v7422
    %8014 = vmatprep.subr.mxu0 %v7431
    %8015 = vmatpush1.msra.mxu0 %v7430
    %8016 = vmatprep.subr.mxu0 %v7439
    %8017 = vmatpush1.msra.mxu0 %v7438
    %8018 = vmatprep.subr.mxu0 %v7447
    %8019 = vmatpush1.msra.mxu0 %v7446
    %8020 = vmatprep.subr.mxu0 %v7455
    %8021 = vmatpush1.msra.mxu0 %v7454
    %8022 = vmatprep.subr.mxu0 %v7463
    %8023 = vmatpush1.msra.mxu0 %v7462
    %8024 = vmatprep.subr.mxu0 %v7471
    %8025 = vmatpush1.msra.mxu0 %v7470
    %8026 = vmatprep.mubr.f32.mxu0 %v7810
    %8027 = vmatmul.mubr.f32.gmra.mrb[0].mxu0 %v7802
    %v8028 = vpop.f32.mrb[0].mxu0
    %v8029 = vadd.f32 %v7958, %v8028
    %v8030 = vpop.f32.mrb[0].mxu0
    %v8031 = vadd.f32 %v7960, %v8030
    %8032 = vdwg.mxu0
    %8033 = vmatprep.subr.mxu0 %v7479
    %8034 = vmatpush1.msra.mxu0 %v7478
    %8035 = vmatprep.subr.mxu0 %v7487
    %8036 = vmatpush1.msra.mxu0 %v7486
    %8037 = vmatprep.subr.mxu0 %v7495
    %8038 = vmatpush1.msra.mxu0 %v7494
    %8039 = vmatprep.subr.mxu0 %v7503
    %8040 = vmatpush1.msra.mxu0 %v7502
    %8041 = vmatprep.subr.mxu0 %v7511
    %8042 = vmatpush1.msra.mxu0 %v7510
    %8043 = vmatprep.subr.mxu0 %v7519
    %8044 = vmatpush1.msra.mxu0 %v7518
    %8045 = vmatprep.subr.mxu0 %v7527
    %8046 = vmatpush1.msra.mxu0 %v7526
    %8047 = vmatprep.subr.mxu0 %v7535
    %8048 = vmatpush1.msra.mxu0 %v7534
    %8049 = vmatprep.subr.mxu0 %v7543
    %8050 = vmatpush1.msra.mxu0 %v7542
    %8051 = vmatprep.subr.mxu0 %v7551
    %8052 = vmatpush1.msra.mxu0 %v7550
    %8053 = vmatprep.subr.mxu0 %v7559
    %8054 = vmatpush1.msra.mxu0 %v7558
    %8055 = vmatprep.subr.mxu0 %v7567
    %8056 = vmatpush1.msra.mxu0 %v7566
    %8057 = vmatprep.subr.mxu0 %v7575
    %8058 = vmatpush1.msra.mxu0 %v7574
    %8059 = vmatprep.subr.mxu0 %v7583
    %8060 = vmatpush1.msra.mxu0 %v7582
    %8061 = vmatprep.subr.mxu0 %v7591
    %8062 = vmatpush1.msra.mxu0 %v7590
    %8063 = vmatprep.subr.mxu0 %v7599
    %8064 = vmatpush1.msra.mxu0 %v7598
    %8065 = vmatprep.subr.mxu0 %v7607
    %8066 = vmatpush1.msra.mxu0 %v7606
    %8067 = vmatprep.subr.mxu0 %v7615
    %8068 = vmatpush1.msra.mxu0 %v7614
    %8069 = vmatprep.subr.mxu0 %v7623
    %8070 = vmatpush1.msra.mxu0 %v7622
    %8071 = vmatprep.subr.mxu0 %v7631
    %8072 = vmatpush1.msra.mxu0 %v7630
    %8073 = vmatprep.subr.mxu0 %v7639
    %8074 = vmatpush1.msra.mxu0 %v7638
    %8075 = vmatprep.subr.mxu0 %v7647
    %8076 = vmatpush1.msra.mxu0 %v7646
    %8077 = vmatprep.subr.mxu0 %v7655
    %8078 = vmatpush1.msra.mxu0 %v7654
    %8079 = vmatprep.subr.mxu0 %v7663
    %8080 = vmatpush1.msra.mxu0 %v7662
    %8081 = vmatprep.subr.mxu0 %v7671
    %8082 = vmatpush1.msra.mxu0 %v7670
    %8083 = vmatprep.subr.mxu0 %v7679
    %8084 = vmatpush1.msra.mxu0 %v7678
    %8085 = vmatprep.subr.mxu0 %v7687
    %8086 = vmatpush1.msra.mxu0 %v7686
    %8087 = vmatprep.subr.mxu0 %v7695
    %8088 = vmatpush1.msra.mxu0 %v7694
    %8089 = vmatprep.subr.mxu0 %v7703
    %8090 = vmatpush1.msra.mxu0 %v7702
    %8091 = vmatprep.subr.mxu0 %v7711
    %8092 = vmatpush1.msra.mxu0 %v7710
    %8093 = vmatprep.subr.mxu0 %v7719
    %8094 = vmatpush1.msra.mxu0 %v7718
    %8095 = vmatprep.subr.mxu0 %v7727
    %8096 = vmatpush1.msra.mxu0 %v7726
    %8097 = vmatprep.mubr.f32.mxu0 %v7811
    %8098 = vmatmul.mubr.f32.gmra.mrb[0].mxu0 %v7809
    %v8099 = vpop.f32.mrb[0].mxu0
    %v8100 = vadd.f32 %v8029, %v8099
    %v8101 = vpop.f32.mrb[0].mxu0
    %v8102 = vadd.f32 %v8031, %v8101
    %8103 = vdwg.mxu0
    %8104 = vmatprep.subr.mxu0 %v6713
    %8105 = vmatpush1.msra.mxu0 %v6712
    %8106 = vmatprep.subr.mxu0 %v6721
    %8107 = vmatpush1.msra.mxu0 %v6720
    %8108 = vmatprep.subr.mxu0 %v6729
    %8109 = vmatpush1.msra.mxu0 %v6728
    %8110 = vmatprep.subr.mxu0 %v6737
    %8111 = vmatpush1.msra.mxu0 %v6736
    %8112 = vmatprep.subr.mxu0 %v6745
    %8113 = vmatpush1.msra.mxu0 %v6744
    %8114 = vmatprep.subr.mxu0 %v6753
    %8115 = vmatpush1.msra.mxu0 %v6752
    %8116 = vmatprep.subr.mxu0 %v6761
    %8117 = vmatpush1.msra.mxu0 %v6760
    %8118 = vmatprep.subr.mxu0 %v6769
    %8119 = vmatpush1.msra.mxu0 %v6768
    %8120 = vmatprep.subr.mxu0 %v6777
    %8121 = vmatpush1.msra.mxu0 %v6776
    %8122 = vmatprep.subr.mxu0 %v6785
    %8123 = vmatpush1.msra.mxu0 %v6784
    %8124 = vmatprep.subr.mxu0 %v6793
    %8125 = vmatpush1.msra.mxu0 %v6792
    %8126 = vmatprep.subr.mxu0 %v6801
    %8127 = vmatpush1.msra.mxu0 %v6800
    %8128 = vmatprep.subr.mxu0 %v6809
    %8129 = vmatpush1.msra.mxu0 %v6808
    %8130 = vmatprep.subr.mxu0 %v6817
    %8131 = vmatpush1.msra.mxu0 %v6816
    %8132 = vmatprep.subr.mxu0 %v6825
    %8133 = vmatpush1.msra.mxu0 %v6824
    %8134 = vmatprep.subr.mxu0 %v6833
    %8135 = vmatpush1.msra.mxu0 %v6832
    %8136 = vmatprep.subr.mxu0 %v6841
    %8137 = vmatpush1.msra.mxu0 %v6840
    %8138 = vmatprep.subr.mxu0 %v6849
    %8139 = vmatpush1.msra.mxu0 %v6848
    %8140 = vmatprep.subr.mxu0 %v6857
    %8141 = vmatpush1.msra.mxu0 %v6856
    %8142 = vmatprep.subr.mxu0 %v6865
    %8143 = vmatpush1.msra.mxu0 %v6864
    %8144 = vmatprep.subr.mxu0 %v6873
    %8145 = vmatpush1.msra.mxu0 %v6872
    %8146 = vmatprep.subr.mxu0 %v6881
    %8147 = vmatpush1.msra.mxu0 %v6880
    %8148 = vmatprep.subr.mxu0 %v6889
    %8149 = vmatpush1.msra.mxu0 %v6888
    %8150 = vmatprep.subr.mxu0 %v6897
    %8151 = vmatpush1.msra.mxu0 %v6896
    %8152 = vmatprep.subr.mxu0 %v6905
    %8153 = vmatpush1.msra.mxu0 %v6904
    %8154 = vmatprep.subr.mxu0 %v6913
    %8155 = vmatpush1.msra.mxu0 %v6912
    %8156 = vmatprep.subr.mxu0 %v6921
    %8157 = vmatpush1.msra.mxu0 %v6920
    %8158 = vmatprep.subr.mxu0 %v6929
    %8159 = vmatpush1.msra.mxu0 %v6928
    %8160 = vmatprep.subr.mxu0 %v6937
    %8161 = vmatpush1.msra.mxu0 %v6936
    %8162 = vmatprep.subr.mxu0 %v6945
    %8163 = vmatpush1.msra.mxu0 %v6944
    %8164 = vmatprep.subr.mxu0 %v6953
    %8165 = vmatpush1.msra.mxu0 %v6952
    %8166 = vmatprep.subr.mxu0 %v6961
    %8167 = vmatpush1.msra.mxu0 %v6960
    %8168 = vmatprep.mubr.f32.mxu0 %v7793
    %8169 = vmatmul.mubr.f32.gmra.mrb[0].mxu0 %v7785
    %v8170 = vpop.f32.mrb[0].mxu0
    %v8171 = vadd.f32 %v7747, %v8170
    %v8172 = vpop.f32.mrb[0].mxu0
    %v8173 = vadd.f32 %v7751, %v8172
    %8174 = vdwg.mxu0
    %8175 = vmatprep.subr.mxu0 %v6969
    %8176 = vmatpush1.msra.mxu0 %v6968
    %8177 = vmatprep.subr.mxu0 %v6977
    %8178 = vmatpush1.msra.mxu0 %v6976
    %8179 = vmatprep.subr.mxu0 %v6985
    %8180 = vmatpush1.msra.mxu0 %v6984
    %8181 = vmatprep.subr.mxu0 %v6993
    %8182 = vmatpush1.msra.mxu0 %v6992
    %8183 = vmatprep.subr.mxu0 %v7001
    %8184 = vmatpush1.msra.mxu0 %v7000
    %8185 = vmatprep.subr.mxu0 %v7009
    %8186 = vmatpush1.msra.mxu0 %v7008
    %8187 = vmatprep.subr.mxu0 %v7017
    %8188 = vmatpush1.msra.mxu0 %v7016
    %8189 = vmatprep.subr.mxu0 %v7025
    %8190 = vmatpush1.msra.mxu0 %v7024
    %8191 = vmatprep.subr.mxu0 %v7033
    %8192 = vmatpush1.msra.mxu0 %v7032
    %8193 = vmatprep.subr.mxu0 %v7041
    %8194 = vmatpush1.msra.mxu0 %v7040
    %8195 = vmatprep.subr.mxu0 %v7049
    %8196 = vmatpush1.msra.mxu0 %v7048
    %8197 = vmatprep.subr.mxu0 %v7057
    %8198 = vmatpush1.msra.mxu0 %v7056
    %8199 = vmatprep.subr.mxu0 %v7065
    %8200 = vmatpush1.msra.mxu0 %v7064
    %8201 = vmatprep.subr.mxu0 %v7073
    %8202 = vmatpush1.msra.mxu0 %v7072
    %8203 = vmatprep.subr.mxu0 %v7081
    %8204 = vmatpush1.msra.mxu0 %v7080
    %8205 = vmatprep.subr.mxu0 %v7089
    %8206 = vmatpush1.msra.mxu0 %v7088
    %8207 = vmatprep.subr.mxu0 %v7097
    %8208 = vmatpush1.msra.mxu0 %v7096
    %8209 = vmatprep.subr.mxu0 %v7105
    %8210 = vmatpush1.msra.mxu0 %v7104
    %8211 = vmatprep.subr.mxu0 %v7113
    %8212 = vmatpush1.msra.mxu0 %v7112
    %8213 = vmatprep.subr.mxu0 %v7121
    %8214 = vmatpush1.msra.mxu0 %v7120
    %8215 = vmatprep.subr.mxu0 %v7129
    %8216 = vmatpush1.msra.mxu0 %v7128
    %8217 = vmatprep.subr.mxu0 %v7137
    %8218 = vmatpush1.msra.mxu0 %v7136
    %8219 = vmatprep.subr.mxu0 %v7145
    %8220 = vmatpush1.msra.mxu0 %v7144
    %8221 = vmatprep.subr.mxu0 %v7153
    %8222 = vmatpush1.msra.mxu0 %v7152
    %8223 = vmatprep.subr.mxu0 %v7161
    %8224 = vmatpush1.msra.mxu0 %v7160
    %8225 = vmatprep.subr.mxu0 %v7169
    %8226 = vmatpush1.msra.mxu0 %v7168
    %8227 = vmatprep.subr.mxu0 %v7177
    %8228 = vmatpush1.msra.mxu0 %v7176
    %8229 = vmatprep.subr.mxu0 %v7185
    %8230 = vmatpush1.msra.mxu0 %v7184
    %8231 = vmatprep.subr.mxu0 %v7193
    %8232 = vmatpush1.msra.mxu0 %v7192
    %8233 = vmatprep.subr.mxu0 %v7201
    %8234 = vmatpush1.msra.mxu0 %v7200
    %8235 = vmatprep.subr.mxu0 %v7209
    %8236 = vmatpush1.msra.mxu0 %v7208
    %8237 = vmatprep.subr.mxu0 %v7217
    %8238 = vmatpush1.msra.mxu0 %v7216
    %8239 = vmatprep.mubr.f32.mxu0 %v7794
    %8240 = vmatmul.mubr.f32.gmra.mrb[0].mxu0 %v7792
    %v8241 = vpop.f32.mrb[0].mxu0
    %v8242 = vadd.f32 %v8171, %v8241
    %v8243 = vpop.f32.mrb[0].mxu0
    %v8244 = vadd.f32 %v8173, %v8243
    %8245 = vdwg.mxu0
    %8246 = vmatprep.subr.mxu0 %v7225
    %8247 = vmatpush1.msra.mxu0 %v7224
    %8248 = vmatprep.subr.mxu0 %v7233
    %8249 = vmatpush1.msra.mxu0 %v7232
    %8250 = vmatprep.subr.mxu0 %v7241
    %8251 = vmatpush1.msra.mxu0 %v7240
    %8252 = vmatprep.subr.mxu0 %v7249
    %8253 = vmatpush1.msra.mxu0 %v7248
    %8254 = vmatprep.subr.mxu0 %v7257
    %8255 = vmatpush1.msra.mxu0 %v7256
    %8256 = vmatprep.subr.mxu0 %v7265
    %8257 = vmatpush1.msra.mxu0 %v7264
    %8258 = vmatprep.subr.mxu0 %v7273
    %8259 = vmatpush1.msra.mxu0 %v7272
    %8260 = vmatprep.subr.mxu0 %v7281
    %8261 = vmatpush1.msra.mxu0 %v7280
    %8262 = vmatprep.subr.mxu0 %v7289
    %8263 = vmatpush1.msra.mxu0 %v7288
    %8264 = vmatprep.subr.mxu0 %v7297
    %8265 = vmatpush1.msra.mxu0 %v7296
    %8266 = vmatprep.subr.mxu0 %v7305
    %8267 = vmatpush1.msra.mxu0 %v7304
    %8268 = vmatprep.subr.mxu0 %v7313
    %8269 = vmatpush1.msra.mxu0 %v7312
    %8270 = vmatprep.subr.mxu0 %v7321
    %8271 = vmatpush1.msra.mxu0 %v7320
    %8272 = vmatprep.subr.mxu0 %v7329
    %8273 = vmatpush1.msra.mxu0 %v7328
    %8274 = vmatprep.subr.mxu0 %v7337
    %8275 = vmatpush1.msra.mxu0 %v7336
    %8276 = vmatprep.subr.mxu0 %v7345
    %8277 = vmatpush1.msra.mxu0 %v7344
    %8278 = vmatprep.subr.mxu0 %v7353
    %8279 = vmatpush1.msra.mxu0 %v7352
    %8280 = vmatprep.subr.mxu0 %v7361
    %8281 = vmatpush1.msra.mxu0 %v7360
    %8282 = vmatprep.subr.mxu0 %v7369
    %8283 = vmatpush1.msra.mxu0 %v7368
    %8284 = vmatprep.subr.mxu0 %v7377
    %8285 = vmatpush1.msra.mxu0 %v7376
    %8286 = vmatprep.subr.mxu0 %v7385
    %8287 = vmatpush1.msra.mxu0 %v7384
    %8288 = vmatprep.subr.mxu0 %v7393
    %8289 = vmatpush1.msra.mxu0 %v7392
    %8290 = vmatprep.subr.mxu0 %v7401
    %8291 = vmatpush1.msra.mxu0 %v7400
    %8292 = vmatprep.subr.mxu0 %v7409
    %8293 = vmatpush1.msra.mxu0 %v7408
    %8294 = vmatprep.subr.mxu0 %v7417
    %8295 = vmatpush1.msra.mxu0 %v7416
    %8296 = vmatprep.subr.mxu0 %v7425
    %8297 = vmatpush1.msra.mxu0 %v7424
    %8298 = vmatprep.subr.mxu0 %v7433
    %8299 = vmatpush1.msra.mxu0 %v7432
    %8300 = vmatprep.subr.mxu0 %v7441
    %8301 = vmatpush1.msra.mxu0 %v7440
    %8302 = vmatprep.subr.mxu0 %v7449
    %8303 = vmatpush1.msra.mxu0 %v7448
    %8304 = vmatprep.subr.mxu0 %v7457
    %8305 = vmatpush1.msra.mxu0 %v7456
    %8306 = vmatprep.subr.mxu0 %v7465
    %8307 = vmatpush1.msra.mxu0 %v7464
    %8308 = vmatprep.subr.mxu0 %v7473
    %8309 = vmatpush1.msra.mxu0 %v7472
    %8310 = vmatprep.mubr.f32.mxu0 %v7810
    %8311 = vmatmul.mubr.f32.gmra.mrb[0].mxu0 %v7802
    %v8312 = vpop.f32.mrb[0].mxu0
    %v8313 = vadd.f32 %v8242, %v8312
    %v8314 = vpop.f32.mrb[0].mxu0
    %v8315 = vadd.f32 %v8244, %v8314
    %8316 = vdwg.mxu0
    %8317 = vmatprep.subr.mxu0 %v7481
    %8318 = vmatpush1.msra.mxu0 %v7480
    %8319 = vmatprep.subr.mxu0 %v7489
    %8320 = vmatpush1.msra.mxu0 %v7488
    %8321 = vmatprep.subr.mxu0 %v7497
    %8322 = vmatpush1.msra.mxu0 %v7496
    %8323 = vmatprep.subr.mxu0 %v7505
    %8324 = vmatpush1.msra.mxu0 %v7504
    %8325 = vmatprep.subr.mxu0 %v7513
    %8326 = vmatpush1.msra.mxu0 %v7512
    %8327 = vmatprep.subr.mxu0 %v7521
    %8328 = vmatpush1.msra.mxu0 %v7520
    %8329 = vmatprep.subr.mxu0 %v7529
    %8330 = vmatpush1.msra.mxu0 %v7528
    %8331 = vmatprep.subr.mxu0 %v7537
    %8332 = vmatpush1.msra.mxu0 %v7536
    %8333 = vmatprep.subr.mxu0 %v7545
    %8334 = vmatpush1.msra.mxu0 %v7544
    %8335 = vmatprep.subr.mxu0 %v7553
    %8336 = vmatpush1.msra.mxu0 %v7552
    %8337 = vmatprep.subr.mxu0 %v7561
    %8338 = vmatpush1.msra.mxu0 %v7560
    %8339 = vmatprep.subr.mxu0 %v7569
    %8340 = vmatpush1.msra.mxu0 %v7568
    %8341 = vmatprep.subr.mxu0 %v7577
    %8342 = vmatpush1.msra.mxu0 %v7576
    %8343 = vmatprep.subr.mxu0 %v7585
    %8344 = vmatpush1.msra.mxu0 %v7584
    %8345 = vmatprep.subr.mxu0 %v7593
    %8346 = vmatpush1.msra.mxu0 %v7592
    %8347 = vmatprep.subr.mxu0 %v7601
    %8348 = vmatpush1.msra.mxu0 %v7600
    %8349 = vmatprep.subr.mxu0 %v7609
    %8350 = vmatpush1.msra.mxu0 %v7608
    %8351 = vmatprep.subr.mxu0 %v7617
    %8352 = vmatpush1.msra.mxu0 %v7616
    %8353 = vmatprep.subr.mxu0 %v7625
    %8354 = vmatpush1.msra.mxu0 %v7624
    %8355 = vmatprep.subr.mxu0 %v7633
    %8356 = vmatpush1.msra.mxu0 %v7632
    %8357 = vmatprep.subr.mxu0 %v7641
    %8358 = vmatpush1.msra.mxu0 %v7640
    %8359 = vmatprep.subr.mxu0 %v7649
    %8360 = vmatpush1.msra.mxu0 %v7648
    %8361 = vmatprep.subr.mxu0 %v7657
    %8362 = vmatpush1.msra.mxu0 %v7656
    %8363 = vmatprep.subr.mxu0 %v7665
    %8364 = vmatpush1.msra.mxu0 %v7664
    %8365 = vmatprep.subr.mxu0 %v7673
    %8366 = vmatpush1.msra.mxu0 %v7672
    %8367 = vmatprep.subr.mxu0 %v7681
    %8368 = vmatpush1.msra.mxu0 %v7680
    %8369 = vmatprep.subr.mxu0 %v7689
    %8370 = vmatpush1.msra.mxu0 %v7688
    %8371 = vmatprep.subr.mxu0 %v7697
    %8372 = vmatpush1.msra.mxu0 %v7696
    %8373 = vmatprep.subr.mxu0 %v7705
    %8374 = vmatpush1.msra.mxu0 %v7704
    %8375 = vmatprep.subr.mxu0 %v7713
    %8376 = vmatpush1.msra.mxu0 %v7712
    %8377 = vmatprep.subr.mxu0 %v7721
    %8378 = vmatpush1.msra.mxu0 %v7720
    %8379 = vmatprep.subr.mxu0 %v7729
    %8380 = vmatpush1.msra.mxu0 %v7728
    %8381 = vmatprep.mubr.f32.mxu0 %v7811
    %8382 = vmatmul.mubr.f32.gmra.mrb[0].mxu0 %v7809
    %v8383 = vpop.f32.mrb[0].mxu0
    %v8384 = vadd.f32 %v8313, %v8383
    %v8385 = vpop.f32.mrb[0].mxu0
    %v8386 = vadd.f32 %v8315, %v8385
    %8387 = vdwg.mxu0
    %8388 = vmatprep.subr.mxu0 %v6715
    %8389 = vmatpush1.msra.mxu0 %v6714
    %8390 = vmatprep.subr.mxu0 %v6723
    %8391 = vmatpush1.msra.mxu0 %v6722
    %8392 = vmatprep.subr.mxu0 %v6731
    %8393 = vmatpush1.msra.mxu0 %v6730
    %8394 = vmatprep.subr.mxu0 %v6739
    %8395 = vmatpush1.msra.mxu0 %v6738
    %8396 = vmatprep.subr.mxu0 %v6747
    %8397 = vmatpush1.msra.mxu0 %v6746
    %8398 = vmatprep.subr.mxu0 %v6755
    %8399 = vmatpush1.msra.mxu0 %v6754
    %8400 = vmatprep.subr.mxu0 %v6763
    %8401 = vmatpush1.msra.mxu0 %v6762
    %8402 = vmatprep.subr.mxu0 %v6771
    %8403 = vmatpush1.msra.mxu0 %v6770
    %8404 = vmatprep.subr.mxu0 %v6779
    %8405 = vmatpush1.msra.mxu0 %v6778
    %8406 = vmatprep.subr.mxu0 %v6787
    %8407 = vmatpush1.msra.mxu0 %v6786
    %8408 = vmatprep.subr.mxu0 %v6795
    %8409 = vmatpush1.msra.mxu0 %v6794
    %8410 = vmatprep.subr.mxu0 %v6803
    %8411 = vmatpush1.msra.mxu0 %v6802
    %8412 = vmatprep.subr.mxu0 %v6811
    %8413 = vmatpush1.msra.mxu0 %v6810
    %8414 = vmatprep.subr.mxu0 %v6819
    %8415 = vmatpush1.msra.mxu0 %v6818
    %8416 = vmatprep.subr.mxu0 %v6827
    %8417 = vmatpush1.msra.mxu0 %v6826
    %8418 = vmatprep.subr.mxu0 %v6835
    %8419 = vmatpush1.msra.mxu0 %v6834
    %8420 = vmatprep.subr.mxu0 %v6843
    %8421 = vmatpush1.msra.mxu0 %v6842
    %8422 = vmatprep.subr.mxu0 %v6851
    %8423 = vmatpush1.msra.mxu0 %v6850
    %8424 = vmatprep.subr.mxu0 %v6859
    %8425 = vmatpush1.msra.mxu0 %v6858
    %8426 = vmatprep.subr.mxu0 %v6867
    %8427 = vmatpush1.msra.mxu0 %v6866
    %8428 = vmatprep.subr.mxu0 %v6875
    %8429 = vmatpush1.msra.mxu0 %v6874
    %8430 = vmatprep.subr.mxu0 %v6883
    %8431 = vmatpush1.msra.mxu0 %v6882
    %8432 = vmatprep.subr.mxu0 %v6891
    %8433 = vmatpush1.msra.mxu0 %v6890
    %8434 = vmatprep.subr.mxu0 %v6899
    %8435 = vmatpush1.msra.mxu0 %v6898
    %8436 = vmatprep.subr.mxu0 %v6907
    %8437 = vmatpush1.msra.mxu0 %v6906
    %8438 = vmatprep.subr.mxu0 %v6915
    %8439 = vmatpush1.msra.mxu0 %v6914
    %8440 = vmatprep.subr.mxu0 %v6923
    %8441 = vmatpush1.msra.mxu0 %v6922
    %8442 = vmatprep.subr.mxu0 %v6931
    %8443 = vmatpush1.msra.mxu0 %v6930
    %8444 = vmatprep.subr.mxu0 %v6939
    %8445 = vmatpush1.msra.mxu0 %v6938
    %8446 = vmatprep.subr.mxu0 %v6947
    %8447 = vmatpush1.msra.mxu0 %v6946
    %8448 = vmatprep.subr.mxu0 %v6955
    %8449 = vmatpush1.msra.mxu0 %v6954
    %8450 = vmatprep.subr.mxu0 %v6963
    %8451 = vmatpush1.msra.mxu0 %v6962
    %8452 = vmatprep.mubr.f32.mxu0 %v7793
    %8453 = vmatmul.mubr.f32.gmra.mrb[0].mxu0 %v7785
    %v8454 = vpop.f32.mrb[0].mxu0
    %v8455 = vadd.f32 %v7755, %v8454
    %v8456 = vpop.f32.mrb[0].mxu0
    %v8457 = vadd.f32 %v7759, %v8456
    %8458 = vdwg.mxu0
    %8459 = vmatprep.subr.mxu0 %v6971
    %8460 = vmatpush1.msra.mxu0 %v6970
    %8461 = vmatprep.subr.mxu0 %v6979
    %8462 = vmatpush1.msra.mxu0 %v6978
    %8463 = vmatprep.subr.mxu0 %v6987
    %8464 = vmatpush1.msra.mxu0 %v6986
    %8465 = vmatprep.subr.mxu0 %v6995
    %8466 = vmatpush1.msra.mxu0 %v6994
    %8467 = vmatprep.subr.mxu0 %v7003
    %8468 = vmatpush1.msra.mxu0 %v7002
    %8469 = vmatprep.subr.mxu0 %v7011
    %8470 = vmatpush1.msra.mxu0 %v7010
    %8471 = vmatprep.subr.mxu0 %v7019
    %8472 = vmatpush1.msra.mxu0 %v7018
    %8473 = vmatprep.subr.mxu0 %v7027
    %8474 = vmatpush1.msra.mxu0 %v7026
    %8475 = vmatprep.subr.mxu0 %v7035
    %8476 = vmatpush1.msra.mxu0 %v7034
    %8477 = vmatprep.subr.mxu0 %v7043
    %8478 = vmatpush1.msra.mxu0 %v7042
    %8479 = vmatprep.subr.mxu0 %v7051
    %8480 = vmatpush1.msra.mxu0 %v7050
    %8481 = vmatprep.subr.mxu0 %v7059
    %8482 = vmatpush1.msra.mxu0 %v7058
    %8483 = vmatprep.subr.mxu0 %v7067
    %8484 = vmatpush1.msra.mxu0 %v7066
    %8485 = vmatprep.subr.mxu0 %v7075
    %8486 = vmatpush1.msra.mxu0 %v7074
    %8487 = vmatprep.subr.mxu0 %v7083
    %8488 = vmatpush1.msra.mxu0 %v7082
    %8489 = vmatprep.subr.mxu0 %v7091
    %8490 = vmatpush1.msra.mxu0 %v7090
    %8491 = vmatprep.subr.mxu0 %v7099
    %8492 = vmatpush1.msra.mxu0 %v7098
    %8493 = vmatprep.subr.mxu0 %v7107
    %8494 = vmatpush1.msra.mxu0 %v7106
    %8495 = vmatprep.subr.mxu0 %v7115
    %8496 = vmatpush1.msra.mxu0 %v7114
    %8497 = vmatprep.subr.mxu0 %v7123
    %8498 = vmatpush1.msra.mxu0 %v7122
    %8499 = vmatprep.subr.mxu0 %v7131
    %8500 = vmatpush1.msra.mxu0 %v7130
    %8501 = vmatprep.subr.mxu0 %v7139
    %8502 = vmatpush1.msra.mxu0 %v7138
    %8503 = vmatprep.subr.mxu0 %v7147
    %8504 = vmatpush1.msra.mxu0 %v7146
    %8505 = vmatprep.subr.mxu0 %v7155
    %8506 = vmatpush1.msra.mxu0 %v7154
    %8507 = vmatprep.subr.mxu0 %v7163
    %8508 = vmatpush1.msra.mxu0 %v7162
    %8509 = vmatprep.subr.mxu0 %v7171
    %8510 = vmatpush1.msra.mxu0 %v7170
    %8511 = vmatprep.subr.mxu0 %v7179
    %8512 = vmatpush1.msra.mxu0 %v7178
    %8513 = vmatprep.subr.mxu0 %v7187
    %8514 = vmatpush1.msra.mxu0 %v7186
    %8515 = vmatprep.subr.mxu0 %v7195
    %8516 = vmatpush1.msra.mxu0 %v7194
    %8517 = vmatprep.subr.mxu0 %v7203
    %8518 = vmatpush1.msra.mxu0 %v7202
    %8519 = vmatprep.subr.mxu0 %v7211
    %8520 = vmatpush1.msra.mxu0 %v7210
    %8521 = vmatprep.subr.mxu0 %v7219
    %8522 = vmatpush1.msra.mxu0 %v7218
    %8523 = vmatprep.mubr.f32.mxu0 %v7794
    %8524 = vmatmul.mubr.f32.gmra.mrb[0].mxu0 %v7792
    %v8525 = vpop.f32.mrb[0].mxu0
    %v8526 = vadd.f32 %v8455, %v8525
    %v8527 = vpop.f32.mrb[0].mxu0
    %v8528 = vadd.f32 %v8457, %v8527
    %8529 = vdwg.mxu0
    %8530 = vmatprep.subr.mxu0 %v7227
    %8531 = vmatpush1.msra.mxu0 %v7226
    %8532 = vmatprep.subr.mxu0 %v7235
    %8533 = vmatpush1.msra.mxu0 %v7234
    %8534 = vmatprep.subr.mxu0 %v7243
    %8535 = vmatpush1.msra.mxu0 %v7242
    %8536 = vmatprep.subr.mxu0 %v7251
    %8537 = vmatpush1.msra.mxu0 %v7250
    %8538 = vmatprep.subr.mxu0 %v7259
    %8539 = vmatpush1.msra.mxu0 %v7258
    %8540 = vmatprep.subr.mxu0 %v7267
    %8541 = vmatpush1.msra.mxu0 %v7266
    %8542 = vmatprep.subr.mxu0 %v7275
    %8543 = vmatpush1.msra.mxu0 %v7274
    %8544 = vmatprep.subr.mxu0 %v7283
    %8545 = vmatpush1.msra.mxu0 %v7282
    %8546 = vmatprep.subr.mxu0 %v7291
    %8547 = vmatpush1.msra.mxu0 %v7290
    %8548 = vmatprep.subr.mxu0 %v7299
    %8549 = vmatpush1.msra.mxu0 %v7298
    %8550 = vmatprep.subr.mxu0 %v7307
    %8551 = vmatpush1.msra.mxu0 %v7306
    %8552 = vmatprep.subr.mxu0 %v7315
    %8553 = vmatpush1.msra.mxu0 %v7314
    %8554 = vmatprep.subr.mxu0 %v7323
    %8555 = vmatpush1.msra.mxu0 %v7322
    %8556 = vmatprep.subr.mxu0 %v7331
    %8557 = vmatpush1.msra.mxu0 %v7330
    %8558 = vmatprep.subr.mxu0 %v7339
    %8559 = vmatpush1.msra.mxu0 %v7338
    %8560 = vmatprep.subr.mxu0 %v7347
    %8561 = vmatpush1.msra.mxu0 %v7346
    %8562 = vmatprep.subr.mxu0 %v7355
    %8563 = vmatpush1.msra.mxu0 %v7354
    %8564 = vmatprep.subr.mxu0 %v7363
    %8565 = vmatpush1.msra.mxu0 %v7362
    %8566 = vmatprep.subr.mxu0 %v7371
    %8567 = vmatpush1.msra.mxu0 %v7370
    %8568 = vmatprep.subr.mxu0 %v7379
    %8569 = vmatpush1.msra.mxu0 %v7378
    %8570 = vmatprep.subr.mxu0 %v7387
    %8571 = vmatpush1.msra.mxu0 %v7386
    %8572 = vmatprep.subr.mxu0 %v7395
    %8573 = vmatpush1.msra.mxu0 %v7394
    %8574 = vmatprep.subr.mxu0 %v7403
    %8575 = vmatpush1.msra.mxu0 %v7402
    %8576 = vmatprep.subr.mxu0 %v7411
    %8577 = vmatpush1.msra.mxu0 %v7410
    %8578 = vmatprep.subr.mxu0 %v7419
    %8579 = vmatpush1.msra.mxu0 %v7418
    %8580 = vmatprep.subr.mxu0 %v7427
    %8581 = vmatpush1.msra.mxu0 %v7426
    %8582 = vmatprep.subr.mxu0 %v7435
    %8583 = vmatpush1.msra.mxu0 %v7434
    %8584 = vmatprep.subr.mxu0 %v7443
    %8585 = vmatpush1.msra.mxu0 %v7442
    %8586 = vmatprep.subr.mxu0 %v7451
    %8587 = vmatpush1.msra.mxu0 %v7450
    %8588 = vmatprep.subr.mxu0 %v7459
    %8589 = vmatpush1.msra.mxu0 %v7458
    %8590 = vmatprep.subr.mxu0 %v7467
    %8591 = vmatpush1.msra.mxu0 %v7466
    %8592 = vmatprep.subr.mxu0 %v7475
    %8593 = vmatpush1.msra.mxu0 %v7474
    %8594 = vmatprep.mubr.f32.mxu0 %v7810
    %8595 = vmatmul.mubr.f32.gmra.mrb[0].mxu0 %v7802
    %v8596 = vpop.f32.mrb[0].mxu0
    %v8597 = vadd.f32 %v8526, %v8596
    %v8598 = vpop.f32.mrb[0].mxu0
    %v8599 = vadd.f32 %v8528, %v8598
    %8600 = vdwg.mxu0
    %8601 = vmatprep.subr.mxu0 %v7483
    %8602 = vmatpush1.msra.mxu0 %v7482
    %8603 = vmatprep.subr.mxu0 %v7491
    %8604 = vmatpush1.msra.mxu0 %v7490
    %8605 = vmatprep.subr.mxu0 %v7499
    %8606 = vmatpush1.msra.mxu0 %v7498
    %8607 = vmatprep.subr.mxu0 %v7507
    %8608 = vmatpush1.msra.mxu0 %v7506
    %8609 = vmatprep.subr.mxu0 %v7515
    %8610 = vmatpush1.msra.mxu0 %v7514
    %8611 = vmatprep.subr.mxu0 %v7523
    %8612 = vmatpush1.msra.mxu0 %v7522
    %8613 = vmatprep.subr.mxu0 %v7531
    %8614 = vmatpush1.msra.mxu0 %v7530
    %8615 = vmatprep.subr.mxu0 %v7539
    %8616 = vmatpush1.msra.mxu0 %v7538
    %8617 = vmatprep.subr.mxu0 %v7547
    %8618 = vmatpush1.msra.mxu0 %v7546
    %8619 = vmatprep.subr.mxu0 %v7555
    %8620 = vmatpush1.msra.mxu0 %v7554
    %8621 = vmatprep.subr.mxu0 %v7563
    %8622 = vmatpush1.msra.mxu0 %v7562
    %8623 = vmatprep.subr.mxu0 %v7571
    %8624 = vmatpush1.msra.mxu0 %v7570
    %8625 = vmatprep.subr.mxu0 %v7579
    %8626 = vmatpush1.msra.mxu0 %v7578
    %8627 = vmatprep.subr.mxu0 %v7587
    %8628 = vmatpush1.msra.mxu0 %v7586
    %8629 = vmatprep.subr.mxu0 %v7595
    %8630 = vmatpush1.msra.mxu0 %v7594
    %8631 = vmatprep.subr.mxu0 %v7603
    %8632 = vmatpush1.msra.mxu0 %v7602
    %8633 = vmatprep.subr.mxu0 %v7611
    %8634 = vmatpush1.msra.mxu0 %v7610
    %8635 = vmatprep.subr.mxu0 %v7619
    %8636 = vmatpush1.msra.mxu0 %v7618
    %8637 = vmatprep.subr.mxu0 %v7627
    %8638 = vmatpush1.msra.mxu0 %v7626
    %8639 = vmatprep.subr.mxu0 %v7635
    %8640 = vmatpush1.msra.mxu0 %v7634
    %8641 = vmatprep.subr.mxu0 %v7643
    %8642 = vmatpush1.msra.mxu0 %v7642
    %8643 = vmatprep.subr.mxu0 %v7651
    %8644 = vmatpush1.msra.mxu0 %v7650
    %8645 = vmatprep.subr.mxu0 %v7659
    %8646 = vmatpush1.msra.mxu0 %v7658
    %8647 = vmatprep.subr.mxu0 %v7667
    %8648 = vmatpush1.msra.mxu0 %v7666
    %8649 = vmatprep.subr.mxu0 %v7675
    %8650 = vmatpush1.msra.mxu0 %v7674
    %8651 = vmatprep.subr.mxu0 %v7683
    %8652 = vmatpush1.msra.mxu0 %v7682
    %8653 = vmatprep.subr.mxu0 %v7691
    %8654 = vmatpush1.msra.mxu0 %v7690
    %8655 = vmatprep.subr.mxu0 %v7699
    %8656 = vmatpush1.msra.mxu0 %v7698
    %8657 = vmatprep.subr.mxu0 %v7707
    %8658 = vmatpush1.msra.mxu0 %v7706
    %8659 = vmatprep.subr.mxu0 %v7715
    %8660 = vmatpush1.msra.mxu0 %v7714
    %8661 = vmatprep.subr.mxu0 %v7723
    %8662 = vmatpush1.msra.mxu0 %v7722
    %8663 = vmatprep.subr.mxu0 %v7731
    %8664 = vmatpush1.msra.mxu0 %v7730
    %8665 = vmatprep.mubr.f32.mxu0 %v7811
    %8666 = vmatmul.mubr.f32.gmra.mrb[0].mxu0 %v7809
    %v8667 = vpop.f32.mrb[0].mxu0
    %v8668 = vadd.f32 %v8597, %v8667
    %v8669 = vpop.f32.mrb[0].mxu0
    %v8670 = vadd.f32 %v8599, %v8669
    %8671 = vdwg.mxu0
    %8672 = vmatprep.subr.mxu0 %v6717
    %8673 = vmatpush1.msra.mxu0 %v6716
    %8674 = vmatprep.subr.mxu0 %v6725
    %8675 = vmatpush1.msra.mxu0 %v6724
    %8676 = vmatprep.subr.mxu0 %v6733
    %8677 = vmatpush1.msra.mxu0 %v6732
    %8678 = vmatprep.subr.mxu0 %v6741
    %8679 = vmatpush1.msra.mxu0 %v6740
    %8680 = vmatprep.subr.mxu0 %v6749
    %8681 = vmatpush1.msra.mxu0 %v6748
    %8682 = vmatprep.subr.mxu0 %v6757
    %8683 = vmatpush1.msra.mxu0 %v6756
    %8684 = vmatprep.subr.mxu0 %v6765
    %8685 = vmatpush1.msra.mxu0 %v6764
    %8686 = vmatprep.subr.mxu0 %v6773
    %8687 = vmatpush1.msra.mxu0 %v6772
    %8688 = vmatprep.subr.mxu0 %v6781
    %8689 = vmatpush1.msra.mxu0 %v6780
    %8690 = vmatprep.subr.mxu0 %v6789
    %8691 = vmatpush1.msra.mxu0 %v6788
    %8692 = vmatprep.subr.mxu0 %v6797
    %8693 = vmatpush1.msra.mxu0 %v6796
    %8694 = vmatprep.subr.mxu0 %v6805
    %8695 = vmatpush1.msra.mxu0 %v6804
    %8696 = vmatprep.subr.mxu0 %v6813
    %8697 = vmatpush1.msra.mxu0 %v6812
    %8698 = vmatprep.subr.mxu0 %v6821
    %8699 = vmatpush1.msra.mxu0 %v6820
    %8700 = vmatprep.subr.mxu0 %v6829
    %8701 = vmatpush1.msra.mxu0 %v6828
    %8702 = vmatprep.subr.mxu0 %v6837
    %8703 = vmatpush1.msra.mxu0 %v6836
    %8704 = vmatprep.subr.mxu0 %v6845
    %8705 = vmatpush1.msra.mxu0 %v6844
    %8706 = vmatprep.subr.mxu0 %v6853
    %8707 = vmatpush1.msra.mxu0 %v6852
    %8708 = vmatprep.subr.mxu0 %v6861
    %8709 = vmatpush1.msra.mxu0 %v6860
    %8710 = vmatprep.subr.mxu0 %v6869
    %8711 = vmatpush1.msra.mxu0 %v6868
    %8712 = vmatprep.subr.mxu0 %v6877
    %8713 = vmatpush1.msra.mxu0 %v6876
    %8714 = vmatprep.subr.mxu0 %v6885
    %8715 = vmatpush1.msra.mxu0 %v6884
    %8716 = vmatprep.subr.mxu0 %v6893
    %8717 = vmatpush1.msra.mxu0 %v6892
    %8718 = vmatprep.subr.mxu0 %v6901
    %8719 = vmatpush1.msra.mxu0 %v6900
    %8720 = vmatprep.subr.mxu0 %v6909
    %8721 = vmatpush1.msra.mxu0 %v6908
    %8722 = vmatprep.subr.mxu0 %v6917
    %8723 = vmatpush1.msra.mxu0 %v6916
    %8724 = vmatprep.subr.mxu0 %v6925
    %8725 = vmatpush1.msra.mxu0 %v6924
    %8726 = vmatprep.subr.mxu0 %v6933
    %8727 = vmatpush1.msra.mxu0 %v6932
    %8728 = vmatprep.subr.mxu0 %v6941
    %8729 = vmatpush1.msra.mxu0 %v6940
    %8730 = vmatprep.subr.mxu0 %v6949
    %8731 = vmatpush1.msra.mxu0 %v6948
    %8732 = vmatprep.subr.mxu0 %v6957
    %8733 = vmatpush1.msra.mxu0 %v6956
    %8734 = vmatprep.subr.mxu0 %v6965
    %8735 = vmatpush1.msra.mxu0 %v6964
    %8736 = vmatprep.mubr.f32.mxu0 %v7793
    %8737 = vmatmul.mubr.f32.gmra.mrb[0].mxu0 %v7785
    %v8738 = vpop.f32.mrb[0].mxu0
    %v8739 = vadd.f32 %v7763, %v8738
    %v8740 = vpop.f32.mrb[0].mxu0
    %v8741 = vadd.f32 %v7767, %v8740
    %8742 = vdwg.mxu0
    %8743 = vmatprep.subr.mxu0 %v6973
    %8744 = vmatpush1.msra.mxu0 %v6972
    %8745 = vmatprep.subr.mxu0 %v6981
    %8746 = vmatpush1.msra.mxu0 %v6980
    %8747 = vmatprep.subr.mxu0 %v6989
    %8748 = vmatpush1.msra.mxu0 %v6988
    %8749 = vmatprep.subr.mxu0 %v6997
    %8750 = vmatpush1.msra.mxu0 %v6996
    %8751 = vmatprep.subr.mxu0 %v7005
    %8752 = vmatpush1.msra.mxu0 %v7004
    %8753 = vmatprep.subr.mxu0 %v7013
    %8754 = vmatpush1.msra.mxu0 %v7012
    %8755 = vmatprep.subr.mxu0 %v7021
    %8756 = vmatpush1.msra.mxu0 %v7020
    %8757 = vmatprep.subr.mxu0 %v7029
    %8758 = vmatpush1.msra.mxu0 %v7028
    %8759 = vmatprep.subr.mxu0 %v7037
    %8760 = vmatpush1.msra.mxu0 %v7036
    %8761 = vmatprep.subr.mxu0 %v7045
    %8762 = vmatpush1.msra.mxu0 %v7044
    %8763 = vmatprep.subr.mxu0 %v7053
    %8764 = vmatpush1.msra.mxu0 %v7052
    %8765 = vmatprep.subr.mxu0 %v7061
    %8766 = vmatpush1.msra.mxu0 %v7060
    %8767 = vmatprep.subr.mxu0 %v7069
    %8768 = vmatpush1.msra.mxu0 %v7068
    %8769 = vmatprep.subr.mxu0 %v7077
    %8770 = vmatpush1.msra.mxu0 %v7076
    %8771 = vmatprep.subr.mxu0 %v7085
    %8772 = vmatpush1.msra.mxu0 %v7084
    %8773 = vmatprep.subr.mxu0 %v7093
    %8774 = vmatpush1.msra.mxu0 %v7092
    %8775 = vmatprep.subr.mxu0 %v7101
    %8776 = vmatpush1.msra.mxu0 %v7100
    %8777 = vmatprep.subr.mxu0 %v7109
    %8778 = vmatpush1.msra.mxu0 %v7108
    %8779 = vmatprep.subr.mxu0 %v7117
    %8780 = vmatpush1.msra.mxu0 %v7116
    %8781 = vmatprep.subr.mxu0 %v7125
    %8782 = vmatpush1.msra.mxu0 %v7124
    %8783 = vmatprep.subr.mxu0 %v7133
    %8784 = vmatpush1.msra.mxu0 %v7132
    %8785 = vmatprep.subr.mxu0 %v7141
    %8786 = vmatpush1.msra.mxu0 %v7140
    %8787 = vmatprep.subr.mxu0 %v7149
    %8788 = vmatpush1.msra.mxu0 %v7148
    %8789 = vmatprep.subr.mxu0 %v7157
    %8790 = vmatpush1.msra.mxu0 %v7156
    %8791 = vmatprep.subr.mxu0 %v7165
    %8792 = vmatpush1.msra.mxu0 %v7164
    %8793 = vmatprep.subr.mxu0 %v7173
    %8794 = vmatpush1.msra.mxu0 %v7172
    %8795 = vmatprep.subr.mxu0 %v7181
    %8796 = vmatpush1.msra.mxu0 %v7180
    %8797 = vmatprep.subr.mxu0 %v7189
    %8798 = vmatpush1.msra.mxu0 %v7188
    %8799 = vmatprep.subr.mxu0 %v7197
    %8800 = vmatpush1.msra.mxu0 %v7196
    %8801 = vmatprep.subr.mxu0 %v7205
    %8802 = vmatpush1.msra.mxu0 %v7204
    %8803 = vmatprep.subr.mxu0 %v7213
    %8804 = vmatpush1.msra.mxu0 %v7212
    %8805 = vmatprep.subr.mxu0 %v7221
    %8806 = vmatpush1.msra.mxu0 %v7220
    %8807 = vmatprep.mubr.f32.mxu0 %v7794
    %8808 = vmatmul.mubr.f32.gmra.mrb[0].mxu0 %v7792
    %v8809 = vpop.f32.mrb[0].mxu0
    %v8810 = vadd.f32 %v8739, %v8809
    %v8811 = vpop.f32.mrb[0].mxu0
    %v8812 = vadd.f32 %v8741, %v8811
    %8813 = vdwg.mxu0
    %8814 = vmatprep.subr.mxu0 %v7229
    %8815 = vmatpush1.msra.mxu0 %v7228
    %8816 = vmatprep.subr.mxu0 %v7237
    %8817 = vmatpush1.msra.mxu0 %v7236
    %8818 = vmatprep.subr.mxu0 %v7245
    %8819 = vmatpush1.msra.mxu0 %v7244
    %8820 = vmatprep.subr.mxu0 %v7253
    %8821 = vmatpush1.msra.mxu0 %v7252
    %8822 = vmatprep.subr.mxu0 %v7261
    %8823 = vmatpush1.msra.mxu0 %v7260
    %8824 = vmatprep.subr.mxu0 %v7269
    %8825 = vmatpush1.msra.mxu0 %v7268
    %8826 = vmatprep.subr.mxu0 %v7277
    %8827 = vmatpush1.msra.mxu0 %v7276
    %8828 = vmatprep.subr.mxu0 %v7285
    %8829 = vmatpush1.msra.mxu0 %v7284
    %8830 = vmatprep.subr.mxu0 %v7293
    %8831 = vmatpush1.msra.mxu0 %v7292
    %8832 = vmatprep.subr.mxu0 %v7301
    %8833 = vmatpush1.msra.mxu0 %v7300
    %8834 = vmatprep.subr.mxu0 %v7309
    %8835 = vmatpush1.msra.mxu0 %v7308
    %8836 = vmatprep.subr.mxu0 %v7317
    %8837 = vmatpush1.msra.mxu0 %v7316
    %8838 = vmatprep.subr.mxu0 %v7325
    %8839 = vmatpush1.msra.mxu0 %v7324
    %8840 = vmatprep.subr.mxu0 %v7333
    %8841 = vmatpush1.msra.mxu0 %v7332
    %8842 = vmatprep.subr.mxu0 %v7341
    %8843 = vmatpush1.msra.mxu0 %v7340
    %8844 = vmatprep.subr.mxu0 %v7349
    %8845 = vmatpush1.msra.mxu0 %v7348
    %8846 = vmatprep.subr.mxu0 %v7357
    %8847 = vmatpush1.msra.mxu0 %v7356
    %8848 = vmatprep.subr.mxu0 %v7365
    %8849 = vmatpush1.msra.mxu0 %v7364
    %8850 = vmatprep.subr.mxu0 %v7373
    %8851 = vmatpush1.msra.mxu0 %v7372
    %8852 = vmatprep.subr.mxu0 %v7381
    %8853 = vmatpush1.msra.mxu0 %v7380
    %8854 = vmatprep.subr.mxu0 %v7389
    %8855 = vmatpush1.msra.mxu0 %v7388
    %8856 = vmatprep.subr.mxu0 %v7397
    %8857 = vmatpush1.msra.mxu0 %v7396
    %8858 = vmatprep.subr.mxu0 %v7405
    %8859 = vmatpush1.msra.mxu0 %v7404
    %8860 = vmatprep.subr.mxu0 %v7413
    %8861 = vmatpush1.msra.mxu0 %v7412
    %8862 = vmatprep.subr.mxu0 %v7421
    %8863 = vmatpush1.msra.mxu0 %v7420
    %8864 = vmatprep.subr.mxu0 %v7429
    %8865 = vmatpush1.msra.mxu0 %v7428
    %8866 = vmatprep.subr.mxu0 %v7437
    %8867 = vmatpush1.msra.mxu0 %v7436
    %8868 = vmatprep.subr.mxu0 %v7445
    %8869 = vmatpush1.msra.mxu0 %v7444
    %8870 = vmatprep.subr.mxu0 %v7453
    %8871 = vmatpush1.msra.mxu0 %v7452
    %8872 = vmatprep.subr.mxu0 %v7461
    %8873 = vmatpush1.msra.mxu0 %v7460
    %8874 = vmatprep.subr.mxu0 %v7469
    %8875 = vmatpush1.msra.mxu0 %v7468
    %8876 = vmatprep.subr.mxu0 %v7477
    %8877 = vmatpush1.msra.mxu0 %v7476
    %8878 = vmatprep.mubr.f32.mxu0 %v7810
    %8879 = vmatmul.mubr.f32.gmra.mrb[0].mxu0 %v7802
    %v8880 = vpop.f32.mrb[0].mxu0
    %v8881 = vadd.f32 %v8810, %v8880
    %v8882 = vpop.f32.mrb[0].mxu0
    %v8883 = vadd.f32 %v8812, %v8882
    %8884 = vdwg.mxu0
    %8885 = vmatprep.subr.mxu0 %v7485
    %8886 = vmatpush1.msra.mxu0 %v7484
    %8887 = vmatprep.subr.mxu0 %v7493
    %8888 = vmatpush1.msra.mxu0 %v7492
    %8889 = vmatprep.subr.mxu0 %v7501
    %8890 = vmatpush1.msra.mxu0 %v7500
    %8891 = vmatprep.subr.mxu0 %v7509
    %8892 = vmatpush1.msra.mxu0 %v7508
    %8893 = vmatprep.subr.mxu0 %v7517
    %8894 = vmatpush1.msra.mxu0 %v7516
    %8895 = vmatprep.subr.mxu0 %v7525
    %8896 = vmatpush1.msra.mxu0 %v7524
    %8897 = vmatprep.subr.mxu0 %v7533
    %8898 = vmatpush1.msra.mxu0 %v7532
    %8899 = vmatprep.subr.mxu0 %v7541
    %8900 = vmatpush1.msra.mxu0 %v7540
    %8901 = vmatprep.subr.mxu0 %v7549
    %8902 = vmatpush1.msra.mxu0 %v7548
    %8903 = vmatprep.subr.mxu0 %v7557
    %8904 = vmatpush1.msra.mxu0 %v7556
    %8905 = vmatprep.subr.mxu0 %v7565
    %8906 = vmatpush1.msra.mxu0 %v7564
    %8907 = vmatprep.subr.mxu0 %v7573
    %8908 = vmatpush1.msra.mxu0 %v7572
    %8909 = vmatprep.subr.mxu0 %v7581
    %8910 = vmatpush1.msra.mxu0 %v7580
    %8911 = vmatprep.subr.mxu0 %v7589
    %8912 = vmatpush1.msra.mxu0 %v7588
    %8913 = vmatprep.subr.mxu0 %v7597
    %8914 = vmatpush1.msra.mxu0 %v7596
    %8915 = vmatprep.subr.mxu0 %v7605
    %8916 = vmatpush1.msra.mxu0 %v7604
    %8917 = vmatprep.subr.mxu0 %v7613
    %8918 = vmatpush1.msra.mxu0 %v7612
    %8919 = vmatprep.subr.mxu0 %v7621
    %8920 = vmatpush1.msra.mxu0 %v7620
    %8921 = vmatprep.subr.mxu0 %v7629
    %8922 = vmatpush1.msra.mxu0 %v7628
    %8923 = vmatprep.subr.mxu0 %v7637
    %8924 = vmatpush1.msra.mxu0 %v7636
    %8925 = vmatprep.subr.mxu0 %v7645
    %8926 = vmatpush1.msra.mxu0 %v7644
    %8927 = vmatprep.subr.mxu0 %v7653
    %8928 = vmatpush1.msra.mxu0 %v7652
    %8929 = vmatprep.subr.mxu0 %v7661
    %8930 = vmatpush1.msra.mxu0 %v7660
    %8931 = vmatprep.subr.mxu0 %v7669
    %8932 = vmatpush1.msra.mxu0 %v7668
    %8933 = vmatprep.subr.mxu0 %v7677
    %8934 = vmatpush1.msra.mxu0 %v7676
    %8935 = vmatprep.subr.mxu0 %v7685
    %8936 = vmatpush1.msra.mxu0 %v7684
    %8937 = vmatprep.subr.mxu0 %v7693
    %8938 = vmatpush1.msra.mxu0 %v7692
    %8939 = vmatprep.subr.mxu0 %v7701
    %8940 = vmatpush1.msra.mxu0 %v7700
    %8941 = vmatprep.subr.mxu0 %v7709
    %8942 = vmatpush1.msra.mxu0 %v7708
    %8943 = vmatprep.subr.mxu0 %v7717
    %8944 = vmatpush1.msra.mxu0 %v7716
    %8945 = vmatprep.subr.mxu0 %v7725
    %8946 = vmatpush1.msra.mxu0 %v7724
    %8947 = vmatprep.subr.mxu0 %v7733
    %8948 = vmatpush1.msra.mxu0 %v7732
    %8949 = vmatprep.mubr.f32.mxu0 %v7811
    %8950 = vmatmul.mubr.f32.gmra.mrb[0].mxu0 %v7809
    %v8951 = vpop.f32.mrb[0].mxu0
    %v8952 = vadd.f32 %v8881, %v8951
    %v8953 = vpop.f32.mrb[0].mxu0
    %v8954 = vadd.f32 %v8883, %v8953
    %8955 = vdwg.mxu0
    %v8956 = vmax.f32 %v8100, 0.0
    %v8957 = vmax.f32 %v8102, 0.0
    %v8958 = vmax.f32 %v8384, 0.0
    %v8959 = vmax.f32 %v8386, 0.0
    %v8960 = vmax.f32 %v8668, 0.0
    %v8961 = vmax.f32 %v8670, 0.0
    %v8962 = vmax.f32 %v8952, 0.0
    %v8963 = vmax.f32 %v8954, 0.0
    %v8964 = vld [vmem:[#allocation14] sm:$0xff]
    %v8965 = vld [vmem:[#allocation14 + $0x8] sm:$0xff]
    %v8966 = vld [vmem:[#allocation14 + $0x10] sm:$0xff]
    %v8967 = vld [vmem:[#allocation14 + $0x18] sm:$0xff]
    %v8968 = vld [vmem:[#allocation14 + $0x20] sm:$0xff]
    %v8969 = vld [vmem:[#allocation14 + $0x28] sm:$0xff]
    %v8970 = vld [vmem:[#allocation14 + $0x30] sm:$0xff]
    %v8971 = vld [vmem:[#allocation14 + $0x38] sm:$0xff]
    %v8972 = vld [vmem:[#allocation14 + $0x40] sm:$0xff]
    %v8973 = vld [vmem:[#allocation14 + $0x48] sm:$0xff]
    %v8974 = vld [vmem:[#allocation14 + $0x50] sm:$0xff]
    %v8975 = vld [vmem:[#allocation14 + $0x58] sm:$0xff]
    %v8976 = vld [vmem:[#allocation14 + $0x60] sm:$0xff]
    %v8977 = vld [vmem:[#allocation14 + $0x68] sm:$0xff]
    %v8978 = vld [vmem:[#allocation14 + $0x70] sm:$0xff]
    %v8979 = vld [vmem:[#allocation14 + $0x78] sm:$0xff]
    %v8980 = vld [vmem:[#allocation14 + $0x80] sm:$0xff]
    %v8981 = vld [vmem:[#allocation14 + $0x88] sm:$0xff]
    %v8982 = vld [vmem:[#allocation14 + $0x90] sm:$0xff]
    %v8983 = vld [vmem:[#allocation14 + $0x98] sm:$0xff]
    %v8984 = vld [vmem:[#allocation14 + $0xa0] sm:$0xff]
    %v8985 = vld [vmem:[#allocation14 + $0xa8] sm:$0xff]
    %v8986 = vld [vmem:[#allocation14 + $0xb0] sm:$0xff]
    %v8987 = vld [vmem:[#allocation14 + $0xb8] sm:$0xff]
    %v8988 = vld [vmem:[#allocation14 + $0xc0] sm:$0xff]
    %v8989 = vld [vmem:[#allocation14 + $0xc8] sm:$0xff]
    %v8990 = vld [vmem:[#allocation14 + $0xd0] sm:$0xff]
    %v8991 = vld [vmem:[#allocation14 + $0xd8] sm:$0xff]
    %v8992 = vld [vmem:[#allocation14 + $0xe0] sm:$0xff]
    %v8993 = vld [vmem:[#allocation14 + $0xe8] sm:$0xff]
    %v8994 = vld [vmem:[#allocation14 + $0xf0] sm:$0xff]
    %v8995 = vld [vmem:[#allocation14 + $0xf8] sm:$0xff]
    %v8996 = vld [vmem:[#allocation14 + $0x100] sm:$0xff]
    %v8997 = vld [vmem:[#allocation14 + $0x108] sm:$0xff]
    %v8998 = vld [vmem:[#allocation14 + $0x110] sm:$0xff]
    %v8999 = vld [vmem:[#allocation14 + $0x118] sm:$0xff]
    %v9000 = vld [vmem:[#allocation14 + $0x120] sm:$0xff]
    %v9001 = vld [vmem:[#allocation14 + $0x128] sm:$0xff]
    %v9002 = vld [vmem:[#allocation14 + $0x130] sm:$0xff]
    %v9003 = vld [vmem:[#allocation14 + $0x138] sm:$0xff]
    %v9004 = vld [vmem:[#allocation14 + $0x140] sm:$0xff]
    %v9005 = vld [vmem:[#allocation14 + $0x148] sm:$0xff]
    %v9006 = vld [vmem:[#allocation14 + $0x150] sm:$0xff]
    %v9007 = vld [vmem:[#allocation14 + $0x158] sm:$0xff]
    %v9008 = vld [vmem:[#allocation14 + $0x160] sm:$0xff]
    %v9009 = vld [vmem:[#allocation14 + $0x168] sm:$0xff]
    %v9010 = vld [vmem:[#allocation14 + $0x170] sm:$0xff]
    %v9011 = vld [vmem:[#allocation14 + $0x178] sm:$0xff]
    %v9012 = vld [vmem:[#allocation14 + $0x180] sm:$0xff]
    %v9013 = vld [vmem:[#allocation14 + $0x188] sm:$0xff]
    %v9014 = vld [vmem:[#allocation14 + $0x190] sm:$0xff]
    %v9015 = vld [vmem:[#allocation14 + $0x198] sm:$0xff]
    %v9016 = vld [vmem:[#allocation14 + $0x1a0] sm:$0xff]
    %v9017 = vld [vmem:[#allocation14 + $0x1a8] sm:$0xff]
    %v9018 = vld [vmem:[#allocation14 + $0x1b0] sm:$0xff]
    %v9019 = vld [vmem:[#allocation14 + $0x1b8] sm:$0xff]
    %v9020 = vld [vmem:[#allocation14 + $0x1c0] sm:$0xff]
    %v9021 = vld [vmem:[#allocation14 + $0x1c8] sm:$0xff]
    %v9022 = vld [vmem:[#allocation14 + $0x1d0] sm:$0xff]
    %v9023 = vld [vmem:[#allocation14 + $0x1d8] sm:$0xff]
    %v9024 = vld [vmem:[#allocation14 + $0x1e0] sm:$0xff]
    %v9025 = vld [vmem:[#allocation14 + $0x1e8] sm:$0xff]
    %v9026 = vld [vmem:[#allocation14 + $0x1f0] sm:$0xff]
    %v9027 = vld [vmem:[#allocation14 + $0x1f8] sm:$0xff]
    %v9028 = vld [vmem:[#allocation14 + $0x200] sm:$0xff]
    %v9029 = vld [vmem:[#allocation14 + $0x208] sm:$0xff]
    %v9030 = vld [vmem:[#allocation14 + $0x210] sm:$0xff]
    %v9031 = vld [vmem:[#allocation14 + $0x218] sm:$0xff]
    %v9032 = vld [vmem:[#allocation14 + $0x220] sm:$0xff]
    %v9033 = vld [vmem:[#allocation14 + $0x228] sm:$0xff]
    %v9034 = vld [vmem:[#allocation14 + $0x230] sm:$0xff]
    %v9035 = vld [vmem:[#allocation14 + $0x238] sm:$0xff]
    %v9036 = vld [vmem:[#allocation14 + $0x240] sm:$0xff]
    %v9037 = vld [vmem:[#allocation14 + $0x248] sm:$0xff]
    %v9038 = vld [vmem:[#allocation14 + $0x250] sm:$0xff]
    %v9039 = vld [vmem:[#allocation14 + $0x258] sm:$0xff]
    %v9040 = vld [vmem:[#allocation14 + $0x260] sm:$0xff]
    %v9041 = vld [vmem:[#allocation14 + $0x268] sm:$0xff]
    %v9042 = vld [vmem:[#allocation14 + $0x270] sm:$0xff]
    %v9043 = vld [vmem:[#allocation14 + $0x278] sm:$0xff]
    %v9044 = vld [vmem:[#allocation14 + $0x280] sm:$0xff]
    %v9045 = vld [vmem:[#allocation14 + $0x288] sm:$0xff]
    %v9046 = vld [vmem:[#allocation14 + $0x290] sm:$0xff]
    %v9047 = vld [vmem:[#allocation14 + $0x298] sm:$0xff]
    %v9048 = vld [vmem:[#allocation14 + $0x2a0] sm:$0xff]
    %v9049 = vld [vmem:[#allocation14 + $0x2a8] sm:$0xff]
    %v9050 = vld [vmem:[#allocation14 + $0x2b0] sm:$0xff]
    %v9051 = vld [vmem:[#allocation14 + $0x2b8] sm:$0xff]
    %v9052 = vld [vmem:[#allocation14 + $0x2c0] sm:$0xff]
    %v9053 = vld [vmem:[#allocation14 + $0x2c8] sm:$0xff]
    %v9054 = vld [vmem:[#allocation14 + $0x2d0] sm:$0xff]
    %v9055 = vld [vmem:[#allocation14 + $0x2d8] sm:$0xff]
    %v9056 = vld [vmem:[#allocation14 + $0x2e0] sm:$0xff]
    %v9057 = vld [vmem:[#allocation14 + $0x2e8] sm:$0xff]
    %v9058 = vld [vmem:[#allocation14 + $0x2f0] sm:$0xff]
    %v9059 = vld [vmem:[#allocation14 + $0x2f8] sm:$0xff]
    %v9060 = vld [vmem:[#allocation14 + $0x300] sm:$0xff]
    %v9061 = vld [vmem:[#allocation14 + $0x308] sm:$0xff]
    %v9062 = vld [vmem:[#allocation14 + $0x310] sm:$0xff]
    %v9063 = vld [vmem:[#allocation14 + $0x318] sm:$0xff]
    %v9064 = vld [vmem:[#allocation14 + $0x320] sm:$0xff]
    %v9065 = vld [vmem:[#allocation14 + $0x328] sm:$0xff]
    %v9066 = vld [vmem:[#allocation14 + $0x330] sm:$0xff]
    %v9067 = vld [vmem:[#allocation14 + $0x338] sm:$0xff]
    %v9068 = vld [vmem:[#allocation14 + $0x340] sm:$0xff]
    %v9069 = vld [vmem:[#allocation14 + $0x348] sm:$0xff]
    %v9070 = vld [vmem:[#allocation14 + $0x350] sm:$0xff]
    %v9071 = vld [vmem:[#allocation14 + $0x358] sm:$0xff]
    %v9072 = vld [vmem:[#allocation14 + $0x360] sm:$0xff]
    %v9073 = vld [vmem:[#allocation14 + $0x368] sm:$0xff]
    %v9074 = vld [vmem:[#allocation14 + $0x370] sm:$0xff]
    %v9075 = vld [vmem:[#allocation14 + $0x378] sm:$0xff]
    %v9076 = vld [vmem:[#allocation14 + $0x380] sm:$0xff]
    %v9077 = vld [vmem:[#allocation14 + $0x388] sm:$0xff]
    %v9078 = vld [vmem:[#allocation14 + $0x390] sm:$0xff]
    %v9079 = vld [vmem:[#allocation14 + $0x398] sm:$0xff]
    %v9080 = vld [vmem:[#allocation14 + $0x3a0] sm:$0xff]
    %v9081 = vld [vmem:[#allocation14 + $0x3a8] sm:$0xff]
    %v9082 = vld [vmem:[#allocation14 + $0x3b0] sm:$0xff]
    %v9083 = vld [vmem:[#allocation14 + $0x3b8] sm:$0xff]
    %v9084 = vld [vmem:[#allocation14 + $0x3c0] sm:$0xff]
    %v9085 = vld [vmem:[#allocation14 + $0x3c8] sm:$0xff]
    %v9086 = vld [vmem:[#allocation14 + $0x3d0] sm:$0xff]
    %v9087 = vld [vmem:[#allocation14 + $0x3d8] sm:$0xff]
    %v9088 = vld [vmem:[#allocation14 + $0x3e0] sm:$0xff]
    %v9089 = vld [vmem:[#allocation14 + $0x3e8] sm:$0xff]
    %v9090 = vld [vmem:[#allocation14 + $0x3f0] sm:$0xff]
    %v9091 = vld [vmem:[#allocation14 + $0x3f8] sm:$0xff]
    %v9092 = vld [vmem:[#allocation15] sm:$0x1]
    %v9094 = vlaneseq
    %v9095 = vshrl.u32 %v9094, 7
    %v9096 = vsub.s32 0, %v9095
    %v9097 = vrot.slane %v9092, %v9096
    %9099 = vmatprep.subr.mxu0 0.0
    %9100 = vmatpush1.msra.mxu0 %v8964
    %9101 = vmatprep.subr.mxu0 0.0
    %9102 = vmatpush1.msra.mxu0 %v8965
    %9103 = vmatprep.subr.mxu0 0.0
    %9104 = vmatpush1.msra.mxu0 %v8966
    %9105 = vmatprep.subr.mxu0 0.0
    %9106 = vmatpush1.msra.mxu0 %v8967
    %9107 = vmatprep.subr.mxu0 0.0
    %9108 = vmatpush1.msra.mxu0 %v8968
    %9109 = vmatprep.subr.mxu0 0.0
    %9110 = vmatpush1.msra.mxu0 %v8969
    %9111 = vmatprep.subr.mxu0 0.0
    %9112 = vmatpush1.msra.mxu0 %v8970
    %9113 = vmatprep.subr.mxu0 0.0
    %9114 = vmatpush1.msra.mxu0 %v8971
    %9115 = vmatprep.subr.mxu0 0.0
    %9116 = vmatpush1.msra.mxu0 %v8972
    %9117 = vmatprep.subr.mxu0 0.0
    %9118 = vmatpush1.msra.mxu0 %v8973
    %9119 = vmatprep.subr.mxu0 0.0
    %9120 = vmatpush1.msra.mxu0 %v8974
    %9121 = vmatprep.subr.mxu0 0.0
    %9122 = vmatpush1.msra.mxu0 %v8975
    %9123 = vmatprep.subr.mxu0 0.0
    %9124 = vmatpush1.msra.mxu0 %v8976
    %9125 = vmatprep.subr.mxu0 0.0
    %9126 = vmatpush1.msra.mxu0 %v8977
    %9127 = vmatprep.subr.mxu0 0.0
    %9128 = vmatpush1.msra.mxu0 %v8978
    %9129 = vmatprep.subr.mxu0 0.0
    %9130 = vmatpush1.msra.mxu0 %v8979
    %9131 = vmatprep.subr.mxu0 0.0
    %9132 = vmatpush1.msra.mxu0 %v8980
    %9133 = vmatprep.subr.mxu0 0.0
    %9134 = vmatpush1.msra.mxu0 %v8981
    %9135 = vmatprep.subr.mxu0 0.0
    %9136 = vmatpush1.msra.mxu0 %v8982
    %9137 = vmatprep.subr.mxu0 0.0
    %9138 = vmatpush1.msra.mxu0 %v8983
    %9139 = vmatprep.subr.mxu0 0.0
    %9140 = vmatpush1.msra.mxu0 %v8984
    %9141 = vmatprep.subr.mxu0 0.0
    %9142 = vmatpush1.msra.mxu0 %v8985
    %9143 = vmatprep.subr.mxu0 0.0
    %9144 = vmatpush1.msra.mxu0 %v8986
    %9145 = vmatprep.subr.mxu0 0.0
    %9146 = vmatpush1.msra.mxu0 %v8987
    %9147 = vmatprep.subr.mxu0 0.0
    %9148 = vmatpush1.msra.mxu0 %v8988
    %9149 = vmatprep.subr.mxu0 0.0
    %9150 = vmatpush1.msra.mxu0 %v8989
    %9151 = vmatprep.subr.mxu0 0.0
    %9152 = vmatpush1.msra.mxu0 %v8990
    %9153 = vmatprep.subr.mxu0 0.0
    %9154 = vmatpush1.msra.mxu0 %v8991
    %9155 = vmatprep.subr.mxu0 0.0
    %9156 = vmatpush1.msra.mxu0 %v8992
    %9157 = vmatprep.subr.mxu0 0.0
    %9158 = vmatpush1.msra.mxu0 %v8993
    %9159 = vmatprep.subr.mxu0 0.0
    %9160 = vmatpush1.msra.mxu0 %v8994
    %9161 = vmatprep.subr.mxu0 0.0
    %9162 = vmatpush1.msra.mxu0 %v8995
    %9163 = vmatprep.mubr.f32.mxu0 %v8957
    %9164 = vmatmul.mubr.f32.gmra.mrb[0].mxu0 %v8956
    %v9165 = vpop.f32.mrb[0].mxu0
    %v9166 = vadd.f32 %v9097, %v9165
    %v9167 = vpop.f32.mrb[0].mxu0
    %9168 = vdwg.mxu0
    %9169 = vmatprep.subr.mxu0 0.0
    %9170 = vmatpush1.msra.mxu0 %v8996
    %9171 = vmatprep.subr.mxu0 0.0
    %9172 = vmatpush1.msra.mxu0 %v8997
    %9173 = vmatprep.subr.mxu0 0.0
    %9174 = vmatpush1.msra.mxu0 %v8998
    %9175 = vmatprep.subr.mxu0 0.0
    %9176 = vmatpush1.msra.mxu0 %v8999
    %9177 = vmatprep.subr.mxu0 0.0
    %9178 = vmatpush1.msra.mxu0 %v9000
    %9179 = vmatprep.subr.mxu0 0.0
    %9180 = vmatpush1.msra.mxu0 %v9001
    %9181 = vmatprep.subr.mxu0 0.0
    %9182 = vmatpush1.msra.mxu0 %v9002
    %9183 = vmatprep.subr.mxu0 0.0
    %9184 = vmatpush1.msra.mxu0 %v9003
    %9185 = vmatprep.subr.mxu0 0.0
    %9186 = vmatpush1.msra.mxu0 %v9004
    %9187 = vmatprep.subr.mxu0 0.0
    %9188 = vmatpush1.msra.mxu0 %v9005
    %9189 = vmatprep.subr.mxu0 0.0
    %9190 = vmatpush1.msra.mxu0 %v9006
    %9191 = vmatprep.subr.mxu0 0.0
    %9192 = vmatpush1.msra.mxu0 %v9007
    %9193 = vmatprep.subr.mxu0 0.0
    %9194 = vmatpush1.msra.mxu0 %v9008
    %9195 = vmatprep.subr.mxu0 0.0
    %9196 = vmatpush1.msra.mxu0 %v9009
    %9197 = vmatprep.subr.mxu0 0.0
    %9198 = vmatpush1.msra.mxu0 %v9010
    %9199 = vmatprep.subr.mxu0 0.0
    %9200 = vmatpush1.msra.mxu0 %v9011
    %9201 = vmatprep.subr.mxu0 0.0
    %9202 = vmatpush1.msra.mxu0 %v9012
    %9203 = vmatprep.subr.mxu0 0.0
    %9204 = vmatpush1.msra.mxu0 %v9013
    %9205 = vmatprep.subr.mxu0 0.0
    %9206 = vmatpush1.msra.mxu0 %v9014
    %9207 = vmatprep.subr.mxu0 0.0
    %9208 = vmatpush1.msra.mxu0 %v9015
    %9209 = vmatprep.subr.mxu0 0.0
    %9210 = vmatpush1.msra.mxu0 %v9016
    %9211 = vmatprep.subr.mxu0 0.0
    %9212 = vmatpush1.msra.mxu0 %v9017
    %9213 = vmatprep.subr.mxu0 0.0
    %9214 = vmatpush1.msra.mxu0 %v9018
    %9215 = vmatprep.subr.mxu0 0.0
    %9216 = vmatpush1.msra.mxu0 %v9019
    %9217 = vmatprep.subr.mxu0 0.0
    %9218 = vmatpush1.msra.mxu0 %v9020
    %9219 = vmatprep.subr.mxu0 0.0
    %9220 = vmatpush1.msra.mxu0 %v9021
    %9221 = vmatprep.subr.mxu0 0.0
    %9222 = vmatpush1.msra.mxu0 %v9022
    %9223 = vmatprep.subr.mxu0 0.0
    %9224 = vmatpush1.msra.mxu0 %v9023
    %9225 = vmatprep.subr.mxu0 0.0
    %9226 = vmatpush1.msra.mxu0 %v9024
    %9227 = vmatprep.subr.mxu0 0.0
    %9228 = vmatpush1.msra.mxu0 %v9025
    %9229 = vmatprep.subr.mxu0 0.0
    %9230 = vmatpush1.msra.mxu0 %v9026
    %9231 = vmatprep.subr.mxu0 0.0
    %9232 = vmatpush1.msra.mxu0 %v9027
    %9233 = vmatprep.mubr.f32.mxu0 %v8959
    %9234 = vmatmul.mubr.f32.gmra.mrb[0].mxu0 %v8958
    %v9235 = vpop.f32.mrb[0].mxu0
    %v9236 = vadd.f32 %v9166, %v9235
    %v9237 = vpop.f32.mrb[0].mxu0
    %9238 = vdwg.mxu0
    %9239 = vmatprep.subr.mxu0 0.0
    %9240 = vmatpush1.msra.mxu0 %v9028
    %9241 = vmatprep.subr.mxu0 0.0
    %9242 = vmatpush1.msra.mxu0 %v9029
    %9243 = vmatprep.subr.mxu0 0.0
    %9244 = vmatpush1.msra.mxu0 %v9030
    %9245 = vmatprep.subr.mxu0 0.0
    %9246 = vmatpush1.msra.mxu0 %v9031
    %9247 = vmatprep.subr.mxu0 0.0
    %9248 = vmatpush1.msra.mxu0 %v9032
    %9249 = vmatprep.subr.mxu0 0.0
    %9250 = vmatpush1.msra.mxu0 %v9033
    %9251 = vmatprep.subr.mxu0 0.0
    %9252 = vmatpush1.msra.mxu0 %v9034
    %9253 = vmatprep.subr.mxu0 0.0
    %9254 = vmatpush1.msra.mxu0 %v9035
    %9255 = vmatprep.subr.mxu0 0.0
    %9256 = vmatpush1.msra.mxu0 %v9036
    %9257 = vmatprep.subr.mxu0 0.0
    %9258 = vmatpush1.msra.mxu0 %v9037
    %9259 = vmatprep.subr.mxu0 0.0
    %9260 = vmatpush1.msra.mxu0 %v9038
    %9261 = vmatprep.subr.mxu0 0.0
    %9262 = vmatpush1.msra.mxu0 %v9039
    %9263 = vmatprep.subr.mxu0 0.0
    %9264 = vmatpush1.msra.mxu0 %v9040
    %9265 = vmatprep.subr.mxu0 0.0
    %9266 = vmatpush1.msra.mxu0 %v9041
    %9267 = vmatprep.subr.mxu0 0.0
    %9268 = vmatpush1.msra.mxu0 %v9042
    %9269 = vmatprep.subr.mxu0 0.0
    %9270 = vmatpush1.msra.mxu0 %v9043
    %9271 = vmatprep.subr.mxu0 0.0
    %9272 = vmatpush1.msra.mxu0 %v9044
    %9273 = vmatprep.subr.mxu0 0.0
    %9274 = vmatpush1.msra.mxu0 %v9045
    %9275 = vmatprep.subr.mxu0 0.0
    %9276 = vmatpush1.msra.mxu0 %v9046
    %9277 = vmatprep.subr.mxu0 0.0
    %9278 = vmatpush1.msra.mxu0 %v9047
    %9279 = vmatprep.subr.mxu0 0.0
    %9280 = vmatpush1.msra.mxu0 %v9048
    %9281 = vmatprep.subr.mxu0 0.0
    %9282 = vmatpush1.msra.mxu0 %v9049
    %9283 = vmatprep.subr.mxu0 0.0
    %9284 = vmatpush1.msra.mxu0 %v9050
    %9285 = vmatprep.subr.mxu0 0.0
    %9286 = vmatpush1.msra.mxu0 %v9051
    %9287 = vmatprep.subr.mxu0 0.0
    %9288 = vmatpush1.msra.mxu0 %v9052
    %9289 = vmatprep.subr.mxu0 0.0
    %9290 = vmatpush1.msra.mxu0 %v9053
    %9291 = vmatprep.subr.mxu0 0.0
    %9292 = vmatpush1.msra.mxu0 %v9054
    %9293 = vmatprep.subr.mxu0 0.0
    %9294 = vmatpush1.msra.mxu0 %v9055
    %9295 = vmatprep.subr.mxu0 0.0
    %9296 = vmatpush1.msra.mxu0 %v9056
    %9297 = vmatprep.subr.mxu0 0.0
    %9298 = vmatpush1.msra.mxu0 %v9057
    %9299 = vmatprep.subr.mxu0 0.0
    %9300 = vmatpush1.msra.mxu0 %v9058
    %9301 = vmatprep.subr.mxu0 0.0
    %9302 = vmatpush1.msra.mxu0 %v9059
    %9303 = vmatprep.mubr.f32.mxu0 %v8961
    %9304 = vmatmul.mubr.f32.gmra.mrb[0].mxu0 %v8960
    %v9305 = vpop.f32.mrb[0].mxu0
    %v9306 = vadd.f32 %v9236, %v9305
    %v9307 = vpop.f32.mrb[0].mxu0
    %9308 = vdwg.mxu0
    %9309 = vmatprep.subr.mxu0 0.0
    %9310 = vmatpush1.msra.mxu0 %v9060
    %9311 = vmatprep.subr.mxu0 0.0
    %9312 = vmatpush1.msra.mxu0 %v9061
    %9313 = vmatprep.subr.mxu0 0.0
    %9314 = vmatpush1.msra.mxu0 %v9062
    %9315 = vmatprep.subr.mxu0 0.0
    %9316 = vmatpush1.msra.mxu0 %v9063
    %9317 = vmatprep.subr.mxu0 0.0
    %9318 = vmatpush1.msra.mxu0 %v9064
    %9319 = vmatprep.subr.mxu0 0.0
    %9320 = vmatpush1.msra.mxu0 %v9065
    %9321 = vmatprep.subr.mxu0 0.0
    %9322 = vmatpush1.msra.mxu0 %v9066
    %9323 = vmatprep.subr.mxu0 0.0
    %9324 = vmatpush1.msra.mxu0 %v9067
    %9325 = vmatprep.subr.mxu0 0.0
    %9326 = vmatpush1.msra.mxu0 %v9068
    %9327 = vmatprep.subr.mxu0 0.0
    %9328 = vmatpush1.msra.mxu0 %v9069
    %9329 = vmatprep.subr.mxu0 0.0
    %9330 = vmatpush1.msra.mxu0 %v9070
    %9331 = vmatprep.subr.mxu0 0.0
    %9332 = vmatpush1.msra.mxu0 %v9071
    %9333 = vmatprep.subr.mxu0 0.0
    %9334 = vmatpush1.msra.mxu0 %v9072
    %9335 = vmatprep.subr.mxu0 0.0
    %9336 = vmatpush1.msra.mxu0 %v9073
    %9337 = vmatprep.subr.mxu0 0.0
    %9338 = vmatpush1.msra.mxu0 %v9074
    %9339 = vmatprep.subr.mxu0 0.0
    %9340 = vmatpush1.msra.mxu0 %v9075
    %9341 = vmatprep.subr.mxu0 0.0
    %9342 = vmatpush1.msra.mxu0 %v9076
    %9343 = vmatprep.subr.mxu0 0.0
    %9344 = vmatpush1.msra.mxu0 %v9077
    %9345 = vmatprep.subr.mxu0 0.0
    %9346 = vmatpush1.msra.mxu0 %v9078
    %9347 = vmatprep.subr.mxu0 0.0
    %9348 = vmatpush1.msra.mxu0 %v9079
    %9349 = vmatprep.subr.mxu0 0.0
    %9350 = vmatpush1.msra.mxu0 %v9080
    %9351 = vmatprep.subr.mxu0 0.0
    %9352 = vmatpush1.msra.mxu0 %v9081
    %9353 = vmatprep.subr.mxu0 0.0
    %9354 = vmatpush1.msra.mxu0 %v9082
    %9355 = vmatprep.subr.mxu0 0.0
    %9356 = vmatpush1.msra.mxu0 %v9083
    %9357 = vmatprep.subr.mxu0 0.0
    %9358 = vmatpush1.msra.mxu0 %v9084
    %9359 = vmatprep.subr.mxu0 0.0
    %9360 = vmatpush1.msra.mxu0 %v9085
    %9361 = vmatprep.subr.mxu0 0.0
    %9362 = vmatpush1.msra.mxu0 %v9086
    %9363 = vmatprep.subr.mxu0 0.0
    %9364 = vmatpush1.msra.mxu0 %v9087
    %9365 = vmatprep.subr.mxu0 0.0
    %9366 = vmatpush1.msra.mxu0 %v9088
    %9367 = vmatprep.subr.mxu0 0.0
    %9368 = vmatpush1.msra.mxu0 %v9089
    %9369 = vmatprep.subr.mxu0 0.0
    %9370 = vmatpush1.msra.mxu0 %v9090
    %9371 = vmatprep.subr.mxu0 0.0
    %9372 = vmatpush1.msra.mxu0 %v9091
    %9373 = vmatprep.mubr.f32.mxu0 %v8963
    %9374 = vmatmul.mubr.f32.gmra.mrb[0].mxu0 %v8962
    %v9375 = vpop.f32.mrb[0].mxu0
    %v9376 = vadd.f32 %v9306, %v9375
    %v9377 = vpop.f32.mrb[0].mxu0
    %9378 = vdwg.mxu0
    %vm9379 = vcmask 1041408
    %v9380 = vsel %vm9379, %v9376, -inf
    %9381 = vmax.xlane.f32.xlu0 %v9380
    %v9382 = vpop.xlane.xlu0 %9381
    %v9383 = vsub.f32 %v9376, %v9382
    %v9384 = vmul.f32 %v9383, 1.442695
    %v9385 = vpow.pop %v9384
    %v9386 = vsel %vm9379, %v9385, 0.0
    %9387 = vadd.xlane.f32.xlu0 %v9386
    %v9388 = vpop.xlane.xlu0 %9387
    %v9389 = vrcp.pop %v9388
    %v9390 = vmul.f32 %v9385, %v9389
    %9391 = vst [vmem:[#allocation17] sm:$0x3] %v9390
    // Predicated region
    $region70: #{mnist_net_forward.1} parent=1 // pred_check
      _
    $region71: #{mnist_net_forward.1} parent=1 // pred_check_branch
      %9393 = sbr.rel (0) target = $region73
    $region72: #{mnist_net_forward.1} parent=1 // pred_region
      %s9395 = ssub.s32 32, 32
      %9396 = vsyncadd [#allocation5], %s9395
      %s9398 = sshll.u32 [#allocation17], 4
      %s9399 = int_to_ptr.vmem [resolvable:$true] %s9398
      %9401 = dma.vmem_to_hbm [thread:$0]  %s9399, 32, %s9, [#allocation5]
    $region73: #{mnist_net_forward.1} parent=1 // pred_fallthru
      _
    // Predicated region
    $region74: #{mnist_net_forward.1} parent=1 // pred_check
      _
    $region75: #{mnist_net_forward.1} parent=1 // pred_check_branch
      %9403 = sbr.rel (0) target = $region77
    $region76: #{mnist_net_forward.1} parent=1 // pred_region
      %9404 = dma.done [#allocation5], 32
    $region77: #{mnist_net_forward.1} parent=1 // pred_fallthru
      _
    %9405 = vsyncpa [#allocation4], 1
    %9406 = vsyncpa [#allocation7], 1
    %9407 = vsyncpa [#allocation10], 1
    %9408 = vsyncpa [#allocation13], 1
    %9409 = vsyncpa [#allocation16], 1
    %9410 = vsyncpa [#allocation5], 1

</llo_original>
